<compile_context>
chip_gen: v7x
topology: tpu7x:2x2x1
jax: 0.10.0
libtpu: 0.0.40
codegen_flags: <defaults>
</compile_context>

<pallas_src>
import functools

import numpy as np
import jax
import jax.numpy as jnp
from jax.experimental import pallas as pl
from jax.experimental.pallas import tpu as pltpu


_PAD0 = 8  # interior offset inside the padded scratch (sublane-aligned stores)


# ----------------------------------------------------------------------------
# Constant matrices (built with numpy; constant-folded under jit)
# ----------------------------------------------------------------------------
def _interp_matrix(n_out, n_in):
    """align_corners=True linear interpolation matrix, shape (n_out, n_in)."""
    m = np.zeros((n_out, n_in), dtype=np.float32)
    for o in range(n_out):
        src = o * (n_in - 1) / (n_out - 1) if n_out > 1 else 0.0
        i0 = min(int(np.floor(src)), n_in - 1)
        i1 = min(i0 + 1, n_in - 1)
        f = src - i0
        m[o, i0] += 1.0 - f
        m[o, i1] += f
    return m


def _pool_select_matrix(H, W):
    """(Ho*Wo, H*W) 0/1 matrix selecting the top-left corner of each 2x2 window."""
    Ho, Wo = H // 2, W // 2
    s = np.zeros((Ho * Wo, H * W), dtype=np.float32)
    for hi in range(Ho):
        for wi in range(Wo):
            s[hi * Wo + wi, (2 * hi) * W + 2 * wi] = 1.0
    return s


# ----------------------------------------------------------------------------
# Fused FCN forward kernel (one image per grid step)
# ----------------------------------------------------------------------------
def _fcn_kernel(x_ref, w1_ref, b1_ref, w2_ref, b2_ref, w3_ref, b3_ref,
                w4_ref, b4_ref, psel_ref, up_ref, o_ref,
                pad1, pad2, pad3, pad4, pat1, pat2, pat3, pat4, pbuf,
                *, H, W):
    Hh, Wh = H // 2, W // 2  # spatial size after 2x2 maxpool

    def conv(pad_ref, pat_ref, w_ref, b_ref, hin, win, ksize, cin, relu):
        # im2col: copy the K*K shifted windows into the patch buffer, then do
        # a single (hin*win, K*K*cin) x (K*K*cin, cout) MXU matmul.
        p = (ksize - 1) // 2
        for dy in range(ksize):
            for dx in range(ksize):
                t = dy * ksize + dx
                y0 = _PAD0 - p + dy
                x0 = _PAD0 - p + dx
                pat_ref[:, :, t * cin:(t + 1) * cin] = (
                    pad_ref[y0:y0 + hin, x0:x0 + win, :].astype(pat_ref.dtype))
        patches = pat_ref[...].reshape(hin * win, ksize * ksize * cin)
        out = jnp.dot(patches.astype(jnp.bfloat16), w_ref[...],
                      preferred_element_type=jnp.float32)
        out = out + b_ref[...]                     # (1, Cout) broadcast
        if relu:
            out = jnp.maximum(out, 0.0)
        return out                                 # (hin*win, Cout) float32

    cin = x_ref.shape[-1]
    n_classes = o_ref.shape[-1]

    # ---- conv1 (3x3, pad 1, cin->16) + ReLU --------------------------------
    pad1[...] = jnp.zeros_like(pad1)
    pad1[_PAD0:_PAD0 + H, _PAD0:_PAD0 + W, :] = x_ref[0]
    h1 = conv(pad1, pat1, w1_ref, b1_ref, H, W, 3, cin, True)       # (H*W, 16)

    # ---- conv2 (3x3, pad 1, 16->32) + ReLU ---------------------------------
    pad2[...] = jnp.zeros_like(pad2)
    pad2[_PAD0:_PAD0 + H, _PAD0:_PAD0 + W, :] = h1.reshape(H, W, 16)
    h2 = conv(pad2, pat2, w2_ref, b2_ref, H, W, 3, 16, True)        # (H*W, 32)

    # ---- maxpool 2x2 / stride 2 --------------------------------------------
    # Windowed max of the flat (row = h*W + w) activation at offsets
    # {0, 1, W, W+1}, then a constant 0/1 selection matmul picks the rows
    # corresponding to even (h, w). Avoids strided loads / HBM shuffles.
    pbuf[...] = jnp.zeros_like(pbuf)
    pbuf[0:H * W, :] = h2
    m = jnp.maximum(
        jnp.maximum(pbuf[0:H * W, :], pbuf[1:H * W + 1, :]),
        jnp.maximum(pbuf[W:H * W + W, :], pbuf[W + 1:H * W + W + 1, :]))
    pooled = jnp.dot(psel_ref[...], m,
                     preferred_element_type=jnp.float32)            # (Hh*Wh, 32)

    # ---- conv3 (3x3, pad 1, 32->16) + ReLU ---------------------------------
    pad3[...] = jnp.zeros_like(pad3)
    pad3[_PAD0:_PAD0 + Hh, _PAD0:_PAD0 + Wh, :] = pooled.reshape(Hh, Wh, 32)
    h3 = conv(pad3, pat3, w3_ref, b3_ref, Hh, Wh, 3, 32, True)      # (Hh*Wh, 16)

    # ---- bilinear 2x upsample, align_corners=True (single matmul) ----------
    up = jnp.dot(up_ref[...], h3, preferred_element_type=jnp.float32)  # (H*W, 16)

    # ---- logits conv (5x5, pad 2, 16->n_classes), no activation ------------
    pad4[...] = jnp.zeros_like(pad4)
    pad4[_PAD0:_PAD0 + H, _PAD0:_PAD0 + W, :] = up.reshape(H, W, 16)
    h4 = conv(pad4, pat4, w4_ref, b4_ref, H, W, 5, 16, False)       # (H*W, ncls)

    o_ref[0] = h4.reshape(H, W, n_classes).astype(o_ref.dtype)


# ----------------------------------------------------------------------------
# Parameters (deterministic init, PyTorch Conv2d-style uniform bounds)
# Weight layout: (KH*KW*Cin, Cout) with row index = (dy*KW + dx)*Cin + ci.
# ----------------------------------------------------------------------------
def init_fcn_params(key, in_channels=3, n_classes=2):
    def conv_init(k, ksize, cin, cout):
        k1, k2 = jax.random.split(k)
        bound = 1.0 / np.sqrt(cin * ksize * ksize)
        w = jax.random.uniform(k1, (ksize, ksize, cin, cout), jnp.float32,
                               -bound, bound)
        b = jax.random.uniform(k2, (cout,), jnp.float32, -bound, bound)
        return w.reshape(ksize * ksize * cin, cout), b

    k1, k2, k3, k4 = jax.random.split(key, 4)
    return {
        "conv1": conv_init(k1, 3, in_channels, 16),
        "conv2": conv_init(k2, 3, 16, 32),
        "conv3": conv_init(k3, 3, 32, 16),
        "logits": conv_init(k4, 5, 16, n_classes),
    }


# ----------------------------------------------------------------------------
# Forward pass wrapper (NCHW in -> NCHW logits out, like the PyTorch module)
# ----------------------------------------------------------------------------
@jax.jit
def fcn_forward(params, x_nchw):
    N, cin, H, W = x_nchw.shape
    assert H % 16 == 0 and W % 16 == 0, "spatial dims must be multiples of 16"
    n_classes = params["logits"][1].shape[0]
    Hh, Wh = H // 2, W // 2

    x = jnp.transpose(x_nchw, (0, 2, 3, 1))        # NCHW -> NHWC (tiny)
    w1, b1 = params["conv1"]
    w2, b2 = params["conv2"]
    w3, b3 = params["conv3"]
    w4, b4 = params["logits"]

    psel = jnp.asarray(_pool_select_matrix(H, W))                         # (Hh*Wh, H*W)
    upm = jnp.asarray(np.kron(_interp_matrix(H, Hh), _interp_matrix(W, Wh)))  # (H*W, Hh*Wh)

    kern = functools.partial(_fcn_kernel, H=H, W=W)

    out_nhwc = pl.pallas_call(
        kern,
        out_shape=jax.ShapeDtypeStruct((N, H, W, n_classes), jnp.float32),
        grid=(N,),
        in_specs=[
            pl.BlockSpec((1, H, W, cin), lambda n: (n, 0, 0, 0)),
            pl.BlockSpec((9 * cin, 16), lambda n: (0, 0)),
            pl.BlockSpec((1, 16), lambda n: (0, 0)),
            pl.BlockSpec((9 * 16, 32), lambda n: (0, 0)),
            pl.BlockSpec((1, 32), lambda n: (0, 0)),
            pl.BlockSpec((9 * 32, 16), lambda n: (0, 0)),
            pl.BlockSpec((1, 16), lambda n: (0, 0)),
            pl.BlockSpec((25 * 16, n_classes), lambda n: (0, 0)),
            pl.BlockSpec((1, n_classes), lambda n: (0, 0)),
            pl.BlockSpec((Hh * Wh, H * W), lambda n: (0, 0)),
            pl.BlockSpec((H * W, Hh * Wh), lambda n: (0, 0)),
        ],
        out_specs=pl.BlockSpec((1, H, W, n_classes), lambda n: (n, 0, 0, 0)),
        scratch_shapes=[
            # zero-padded activations (interior at sublane-aligned offset 8)
            pltpu.VMEM((_PAD0 + 1 + H, _PAD0 + 1 + W, cin), jnp.float32),   # pad1
            pltpu.VMEM((_PAD0 + 1 + H, _PAD0 + 1 + W, 16), jnp.float32),    # pad2
            pltpu.VMEM((_PAD0 + 1 + Hh, _PAD0 + 1 + Wh, 32), jnp.float32),  # pad3
            pltpu.VMEM((_PAD0 + 2 + H, _PAD0 + 2 + W, 16), jnp.float32),    # pad4
            # im2col patch buffers
            pltpu.VMEM((H, W, 9 * cin), jnp.bfloat16),                      # pat1
            pltpu.VMEM((H, W, 9 * 16), jnp.bfloat16),                       # pat2
            pltpu.VMEM((Hh, Wh, 9 * 32), jnp.float32),                      # pat3
            pltpu.VMEM((H, W, 25 * 16), jnp.bfloat16),                      # pat4
            # flat buffer for the maxpool windowed max
            pltpu.VMEM((H * W + W + 8, 32), jnp.float32),                   # pbuf
        ],
        compiler_params=pltpu.CompilerParams(
            dimension_semantics=("parallel",)),
    )(x,
      w1.astype(jnp.bfloat16), b1.reshape(1, -1),
      w2.astype(jnp.bfloat16), b2.reshape(1, -1),
      w3.astype(jnp.bfloat16), b3.reshape(1, -1),
      w4.astype(jnp.bfloat16), b4.reshape(1, -1),
      psel, upm)

    return jnp.transpose(out_nhwc, (0, 3, 1, 2))   # NHWC -> NCHW logits


if __name__ == "__main__":
    key = jax.random.PRNGKey(0)
    pkey, xkey = jax.random.split(key)
    params = init_fcn_params(pkey, in_channels=3, n_classes=2)
    x = jax.random.normal(xkey, (2, 3, 16, 16), dtype=jnp.float32)   # NCHW input

    logits = fcn_forward(params, x)
    logits = jax.block_until_ready(logits)

    assert logits.shape == (2, 2, 16, 16), logits.shape
    assert bool(jnp.all(jnp.isfinite(logits)))
    print("KERNEL_OK")
</pallas_src>

<mosaic_0001>
module attributes {stable_mosaic.version = 11 : i64} {
  func.func @_fcn_kernel(%arg0: i32, %arg1: memref<1x16x16x3xf32, #tpu.memory_space<vmem>>, %arg2: memref<27x16xbf16, #tpu.memory_space<vmem>>, %arg3: memref<1x16xf32, #tpu.memory_space<vmem>>, %arg4: memref<144x32xbf16, #tpu.memory_space<vmem>>, %arg5: memref<1x32xf32, #tpu.memory_space<vmem>>, %arg6: memref<288x16xbf16, #tpu.memory_space<vmem>>, %arg7: memref<1x16xf32, #tpu.memory_space<vmem>>, %arg8: memref<400x2xbf16, #tpu.memory_space<vmem>>, %arg9: memref<1x2xf32, #tpu.memory_space<vmem>>, %arg10: memref<64x256xf32, #tpu.memory_space<vmem>>, %arg11: memref<256x64xf32, #tpu.memory_space<vmem>>, %arg12: memref<1x16x16x2xf32, #tpu.memory_space<vmem>>, %arg13: memref<25x25x3xf32, #tpu.memory_space<vmem>>, %arg14: memref<25x25x16xf32, #tpu.memory_space<vmem>>, %arg15: memref<17x17x32xf32, #tpu.memory_space<vmem>>, %arg16: memref<26x26x16xf32, #tpu.memory_space<vmem>>, %arg17: memref<16x16x27xbf16, #tpu.memory_space<vmem>>, %arg18: memref<16x16x144xbf16, #tpu.memory_space<vmem>>, %arg19: memref<8x8x288xf32, #tpu.memory_space<vmem>>, %arg20: memref<16x16x400xbf16, #tpu.memory_space<vmem>>, %arg21: memref<280x32xf32, #tpu.memory_space<vmem>>) attributes {dimension_semantics = [#tpu.dimension_semantics<parallel>], iteration_bounds = array<i64: 2>, scalar_prefetch = 0 : i64, scratch_operands = 9 : i64, tpu.core_type = #tpu.core_type<tc>, window_params = [{transform_indices = @transform_0, window_bounds = array<i64: 1, 16, 16, 3>}, {pipeline_mode = #tpu.pipeline_mode<synchronous>, transform_indices = @transform_1, window_bounds = array<i64: 27, 16>}, {pipeline_mode = #tpu.pipeline_mode<synchronous>, transform_indices = @transform_2, window_bounds = array<i64: 1, 16>}, {pipeline_mode = #tpu.pipeline_mode<synchronous>, transform_indices = @transform_3, window_bounds = array<i64: 144, 32>}, {pipeline_mode = #tpu.pipeline_mode<synchronous>, transform_indices = @transform_4, window_bounds = array<i64: 1, 32>}, {pipeline_mode = #tpu.pipeline_mode<synchronous>, transform_indices = @transform_5, window_bounds = array<i64: 288, 16>}, {pipeline_mode = #tpu.pipeline_mode<synchronous>, transform_indices = @transform_6, window_bounds = array<i64: 1, 16>}, {pipeline_mode = #tpu.pipeline_mode<synchronous>, transform_indices = @transform_7, window_bounds = array<i64: 400, 2>}, {pipeline_mode = #tpu.pipeline_mode<synchronous>, transform_indices = @transform_8, window_bounds = array<i64: 1, 2>}, {pipeline_mode = #tpu.pipeline_mode<synchronous>, transform_indices = @transform_9, window_bounds = array<i64: 64, 256>}, {pipeline_mode = #tpu.pipeline_mode<synchronous>, transform_indices = @transform_10, window_bounds = array<i64: 256, 64>}, {transform_indices = @transform_11, window_bounds = array<i64: 1, 16, 16, 2>}]} {
    %cst = arith.constant 0.000000e+00 : f32
    %0 = vector.broadcast %cst : f32 to vector<25x25x3xf32>
    %c0 = arith.constant 0 : index
    %c0_0 = arith.constant 0 : index
    %c0_1 = arith.constant 0 : index
    %1 = vector.load %arg13[%c0, %c0_0, %c0_1] : memref<25x25x3xf32, #tpu.memory_space<vmem>>, vector<25x25x3xf32>
    tpu.vector_store %arg13[%c0, %c0_0, %c0_1], %0 {strides = array<i32>} : memref<25x25x3xf32, #tpu.memory_space<vmem>>, vector<25x25x3xf32>,
    %c0_2 = arith.constant 0 : index
    %c0_3 = arith.constant 0 : index
    %c0_4 = arith.constant 0 : index
    %c0_5 = arith.constant 0 : index
    %2 = vector.load %arg1[%c0_2, %c0_3, %c0_4, %c0_5] : memref<1x16x16x3xf32, #tpu.memory_space<vmem>>, vector<1x16x16x3xf32>
    %3 = vector.shape_cast %2 : vector<1x16x16x3xf32> to vector<16x16x3xf32>
    %c8 = arith.constant 8 : index
    %c8_6 = arith.constant 8 : index
    %c0_7 = arith.constant 0 : index
    %4 = vector.load %arg13[%c8, %c8_6, %c0_7] : memref<25x25x3xf32, #tpu.memory_space<vmem>>, vector<16x16x3xf32>
    tpu.vector_store %arg13[%c8, %c8_6, %c0_7], %3 {strides = array<i32>} : memref<25x25x3xf32, #tpu.memory_space<vmem>>, vector<16x16x3xf32>,
    %c7 = arith.constant 7 : index
    %c7_8 = arith.constant 7 : index
    %c0_9 = arith.constant 0 : index
    %5 = vector.load %arg13[%c7, %c7_8, %c0_9] : memref<25x25x3xf32, #tpu.memory_space<vmem>>, vector<16x16x3xf32>
    %6 = arith.truncf %5 : vector<16x16x3xf32> to vector<16x16x3xbf16>
    %c0_10 = arith.constant 0 : index
    %c0_11 = arith.constant 0 : index
    %c0_12 = arith.constant 0 : index
    %7 = vector.load %arg17[%c0_10, %c0_11, %c0_12] : memref<16x16x27xbf16, #tpu.memory_space<vmem>>, vector<16x16x3xbf16>
    tpu.vector_store %arg17[%c0_10, %c0_11, %c0_12], %6 {strides = array<i32>} : memref<16x16x27xbf16, #tpu.memory_space<vmem>>, vector<16x16x3xbf16>,
    %c7_13 = arith.constant 7 : index
    %c8_14 = arith.constant 8 : index
    %c0_15 = arith.constant 0 : index
    %8 = vector.load %arg13[%c7_13, %c8_14, %c0_15] : memref<25x25x3xf32, #tpu.memory_space<vmem>>, vector<16x16x3xf32>
    %9 = arith.truncf %8 : vector<16x16x3xf32> to vector<16x16x3xbf16>
    %c0_16 = arith.constant 0 : index
    %c0_17 = arith.constant 0 : index
    %c3 = arith.constant 3 : index
    %10 = vector.load %arg17[%c0_16, %c0_17, %c3] : memref<16x16x27xbf16, #tpu.memory_space<vmem>>, vector<16x16x3xbf16>
    tpu.vector_store %arg17[%c0_16, %c0_17, %c3], %9 {strides = array<i32>} : memref<16x16x27xbf16, #tpu.memory_space<vmem>>, vector<16x16x3xbf16>,
    %c7_18 = arith.constant 7 : index
    %c9 = arith.constant 9 : index
    %c0_19 = arith.constant 0 : index
    %11 = vector.load %arg13[%c7_18, %c9, %c0_19] : memref<25x25x3xf32, #tpu.memory_space<vmem>>, vector<16x16x3xf32>
    %12 = arith.truncf %11 : vector<16x16x3xf32> to vector<16x16x3xbf16>
    %c0_20 = arith.constant 0 : index
    %c0_21 = arith.constant 0 : index
    %c6 = arith.constant 6 : index
    %13 = vector.load %arg17[%c0_20, %c0_21, %c6] : memref<16x16x27xbf16, #tpu.memory_space<vmem>>, vector<16x16x3xbf16>
    tpu.vector_store %arg17[%c0_20, %c0_21, %c6], %12 {strides = array<i32>} : memref<16x16x27xbf16, #tpu.memory_space<vmem>>, vector<16x16x3xbf16>,
    %c8_22 = arith.constant 8 : index
    %c7_23 = arith.constant 7 : index
    %c0_24 = arith.constant 0 : index
    %14 = vector.load %arg13[%c8_22, %c7_23, %c0_24] : memref<25x25x3xf32, #tpu.memory_space<vmem>>, vector<16x16x3xf32>
    %15 = arith.truncf %14 : vector<16x16x3xf32> to vector<16x16x3xbf16>
    %c0_25 = arith.constant 0 : index
    %c0_26 = arith.constant 0 : index
    %c9_27 = arith.constant 9 : index
    %16 = vector.load %arg17[%c0_25, %c0_26, %c9_27] : memref<16x16x27xbf16, #tpu.memory_space<vmem>>, vector<16x16x3xbf16>
    tpu.vector_store %arg17[%c0_25, %c0_26, %c9_27], %15 {strides = array<i32>} : memref<16x16x27xbf16, #tpu.memory_space<vmem>>, vector<16x16x3xbf16>,
    %c8_28 = arith.constant 8 : index
    %c8_29 = arith.constant 8 : index
    %c0_30 = arith.constant 0 : index
    %17 = vector.load %arg13[%c8_28, %c8_29, %c0_30] : memref<25x25x3xf32, #tpu.memory_space<vmem>>, vector<16x16x3xf32>
    %18 = arith.truncf %17 : vector<16x16x3xf32> to vector<16x16x3xbf16>
    %c0_31 = arith.constant 0 : index
    %c0_32 = arith.constant 0 : index
    %c12 = arith.constant 12 : index
    %19 = vector.load %arg17[%c0_31, %c0_32, %c12] : memref<16x16x27xbf16, #tpu.memory_space<vmem>>, vector<16x16x3xbf16>
    tpu.vector_store %arg17[%c0_31, %c0_32, %c12], %18 {strides = array<i32>} : memref<16x16x27xbf16, #tpu.memory_space<vmem>>, vector<16x16x3xbf16>,
    %c8_33 = arith.constant 8 : index
    %c9_34 = arith.constant 9 : index
    %c0_35 = arith.constant 0 : index
    %20 = vector.load %arg13[%c8_33, %c9_34, %c0_35] : memref<25x25x3xf32, #tpu.memory_space<vmem>>, vector<16x16x3xf32>
    %21 = arith.truncf %20 : vector<16x16x3xf32> to vector<16x16x3xbf16>
    %c0_36 = arith.constant 0 : index
    %c0_37 = arith.constant 0 : index
    %c15 = arith.constant 15 : index
    %22 = vector.load %arg17[%c0_36, %c0_37, %c15] : memref<16x16x27xbf16, #tpu.memory_space<vmem>>, vector<16x16x3xbf16>
    tpu.vector_store %arg17[%c0_36, %c0_37, %c15], %21 {strides = array<i32>} : memref<16x16x27xbf16, #tpu.memory_space<vmem>>, vector<16x16x3xbf16>,
    %c9_38 = arith.constant 9 : index
    %c7_39 = arith.constant 7 : index
    %c0_40 = arith.constant 0 : index
    %23 = vector.load %arg13[%c9_38, %c7_39, %c0_40] : memref<25x25x3xf32, #tpu.memory_space<vmem>>, vector<16x16x3xf32>
    %24 = arith.truncf %23 : vector<16x16x3xf32> to vector<16x16x3xbf16>
    %c0_41 = arith.constant 0 : index
    %c0_42 = arith.constant 0 : index
    %c18 = arith.constant 18 : index
    %25 = vector.load %arg17[%c0_41, %c0_42, %c18] : memref<16x16x27xbf16, #tpu.memory_space<vmem>>, vector<16x16x3xbf16>
    tpu.vector_store %arg17[%c0_41, %c0_42, %c18], %24 {strides = array<i32>} : memref<16x16x27xbf16, #tpu.memory_space<vmem>>, vector<16x16x3xbf16>,
    %c9_43 = arith.constant 9 : index
    %c8_44 = arith.constant 8 : index
    %c0_45 = arith.constant 0 : index
    %26 = vector.load %arg13[%c9_43, %c8_44, %c0_45] : memref<25x25x3xf32, #tpu.memory_space<vmem>>, vector<16x16x3xf32>
    %27 = arith.truncf %26 : vector<16x16x3xf32> to vector<16x16x3xbf16>
    %c0_46 = arith.constant 0 : index
    %c0_47 = arith.constant 0 : index
    %c21 = arith.constant 21 : index
    %28 = vector.load %arg17[%c0_46, %c0_47, %c21] : memref<16x16x27xbf16, #tpu.memory_space<vmem>>, vector<16x16x3xbf16>
    tpu.vector_store %arg17[%c0_46, %c0_47, %c21], %27 {strides = array<i32>} : memref<16x16x27xbf16, #tpu.memory_space<vmem>>, vector<16x16x3xbf16>,
    %c9_48 = arith.constant 9 : index
    %c9_49 = arith.constant 9 : index
    %c0_50 = arith.constant 0 : index
    %29 = vector.load %arg13[%c9_48, %c9_49, %c0_50] : memref<25x25x3xf32, #tpu.memory_space<vmem>>, vector<16x16x3xf32>
    %30 = arith.truncf %29 : vector<16x16x3xf32> to vector<16x16x3xbf16>
    %c0_51 = arith.constant 0 : index
    %c0_52 = arith.constant 0 : index
    %c24 = arith.constant 24 : index
    %31 = vector.load %arg17[%c0_51, %c0_52, %c24] : memref<16x16x27xbf16, #tpu.memory_space<vmem>>, vector<16x16x3xbf16>
    tpu.vector_store %arg17[%c0_51, %c0_52, %c24], %30 {strides = array<i32>} : memref<16x16x27xbf16, #tpu.memory_space<vmem>>, vector<16x16x3xbf16>,
    %c0_53 = arith.constant 0 : index
    %c0_54 = arith.constant 0 : index
    %c0_55 = arith.constant 0 : index
    %32 = vector.load %arg17[%c0_53, %c0_54, %c0_55] : memref<16x16x27xbf16, #tpu.memory_space<vmem>>, vector<16x16x27xbf16>
    %33 = vector.shape_cast %32 : vector<16x16x27xbf16> to vector<256x27xbf16>
    %c0_56 = arith.constant 0 : index
    %c0_57 = arith.constant 0 : index
    %34 = vector.load %arg2[%c0_56, %c0_57] : memref<27x16xbf16, #tpu.memory_space<vmem>>, vector<27x16xbf16>
    %cst_58 = arith.constant dense<0.000000e+00> : vector<256x16xf32>
    %35 = tpu.matmul %33, %34, %cst_58 {dimension_numbers = #tpu.dot_dimension_numbers<[1], [0], [0], [1], [0, 0, 1, 1], [], []>} : vector<256x27xbf16>, vector<27x16xbf16>, vector<256x16xf32> -> vector<256x16xf32>
    %c0_59 = arith.constant 0 : index
    %c0_60 = arith.constant 0 : index
    %36 = vector.load %arg3[%c0_59, %c0_60] : memref<1x16xf32, #tpu.memory_space<vmem>>, vector<1x16xf32>
    %37 = vector.broadcast %36 : vector<1x16xf32> to vector<256x16xf32>
    %38 = arith.addf %35, %37 : vector<256x16xf32>
    %cst_61 = arith.constant 0.000000e+00 : f32
    %39 = vector.broadcast %cst_61 : f32 to vector<256x16xf32>
    %40 = arith.maximumf %38, %39 : vector<256x16xf32>
    %cst_62 = arith.constant 0.000000e+00 : f32
    %41 = vector.broadcast %cst_62 : f32 to vector<25x25x16xf32>
    %c0_63 = arith.constant 0 : index
    %c0_64 = arith.constant 0 : index
    %c0_65 = arith.constant 0 : index
    %42 = vector.load %arg14[%c0_63, %c0_64, %c0_65] : memref<25x25x16xf32, #tpu.memory_space<vmem>>, vector<25x25x16xf32>
    tpu.vector_store %arg14[%c0_63, %c0_64, %c0_65], %41 {strides = array<i32>} : memref<25x25x16xf32, #tpu.memory_space<vmem>>, vector<25x25x16xf32>,
    %43 = vector.shape_cast %40 : vector<256x16xf32> to vector<16x16x16xf32>
    %c8_66 = arith.constant 8 : index
    %c8_67 = arith.constant 8 : index
    %c0_68 = arith.constant 0 : index
    %44 = vector.load %arg14[%c8_66, %c8_67, %c0_68] : memref<25x25x16xf32, #tpu.memory_space<vmem>>, vector<16x16x16xf32>
    tpu.vector_store %arg14[%c8_66, %c8_67, %c0_68], %43 {strides = array<i32>} : memref<25x25x16xf32, #tpu.memory_space<vmem>>, vector<16x16x16xf32>,
    %c7_69 = arith.constant 7 : index
    %c7_70 = arith.constant 7 : index
    %c0_71 = arith.constant 0 : index
    %45 = vector.load %arg14[%c7_69, %c7_70, %c0_71] : memref<25x25x16xf32, #tpu.memory_space<vmem>>, vector<16x16x16xf32>
    %46 = arith.truncf %45 : vector<16x16x16xf32> to vector<16x16x16xbf16>
    %c0_72 = arith.constant 0 : index
    %c0_73 = arith.constant 0 : index
    %c0_74 = arith.constant 0 : index
    %47 = vector.load %arg18[%c0_72, %c0_73, %c0_74] : memref<16x16x144xbf16, #tpu.memory_space<vmem>>, vector<16x16x16xbf16>
    tpu.vector_store %arg18[%c0_72, %c0_73, %c0_74], %46 {strides = array<i32>} : memref<16x16x144xbf16, #tpu.memory_space<vmem>>, vector<16x16x16xbf16>,
    %c7_75 = arith.constant 7 : index
    %c8_76 = arith.constant 8 : index
    %c0_77 = arith.constant 0 : index
    %48 = vector.load %arg14[%c7_75, %c8_76, %c0_77] : memref<25x25x16xf32, #tpu.memory_space<vmem>>, vector<16x16x16xf32>
    %49 = arith.truncf %48 : vector<16x16x16xf32> to vector<16x16x16xbf16>
    %c0_78 = arith.constant 0 : index
    %c0_79 = arith.constant 0 : index
    %c16 = arith.constant 16 : index
    %50 = vector.load %arg18[%c0_78, %c0_79, %c16] : memref<16x16x144xbf16, #tpu.memory_space<vmem>>, vector<16x16x16xbf16>
    tpu.vector_store %arg18[%c0_78, %c0_79, %c16], %49 {strides = array<i32>} : memref<16x16x144xbf16, #tpu.memory_space<vmem>>, vector<16x16x16xbf16>,
    %c7_80 = arith.constant 7 : index
    %c9_81 = arith.constant 9 : index
    %c0_82 = arith.constant 0 : index
    %51 = vector.load %arg14[%c7_80, %c9_81, %c0_82] : memref<25x25x16xf32, #tpu.memory_space<vmem>>, vector<16x16x16xf32>
    %52 = arith.truncf %51 : vector<16x16x16xf32> to vector<16x16x16xbf16>
    %c0_83 = arith.constant 0 : index
    %c0_84 = arith.constant 0 : index
    %c32 = arith.constant 32 : index
    %53 = vector.load %arg18[%c0_83, %c0_84, %c32] : memref<16x16x144xbf16, #tpu.memory_space<vmem>>, vector<16x16x16xbf16>
    tpu.vector_store %arg18[%c0_83, %c0_84, %c32], %52 {strides = array<i32>} : memref<16x16x144xbf16, #tpu.memory_space<vmem>>, vector<16x16x16xbf16>,
    %c8_85 = arith.constant 8 : index
    %c7_86 = arith.constant 7 : index
    %c0_87 = arith.constant 0 : index
    %54 = vector.load %arg14[%c8_85, %c7_86, %c0_87] : memref<25x25x16xf32, #tpu.memory_space<vmem>>, vector<16x16x16xf32>
    %55 = arith.truncf %54 : vector<16x16x16xf32> to vector<16x16x16xbf16>
    %c0_88 = arith.constant 0 : index
    %c0_89 = arith.constant 0 : index
    %c48 = arith.constant 48 : index
    %56 = vector.load %arg18[%c0_88, %c0_89, %c48] : memref<16x16x144xbf16, #tpu.memory_space<vmem>>, vector<16x16x16xbf16>
    tpu.vector_store %arg18[%c0_88, %c0_89, %c48], %55 {strides = array<i32>} : memref<16x16x144xbf16, #tpu.memory_space<vmem>>, vector<16x16x16xbf16>,
    %c8_90 = arith.constant 8 : index
    %c8_91 = arith.constant 8 : index
    %c0_92 = arith.constant 0 : index
    %57 = vector.load %arg14[%c8_90, %c8_91, %c0_92] : memref<25x25x16xf32, #tpu.memory_space<vmem>>, vector<16x16x16xf32>
    %58 = arith.truncf %57 : vector<16x16x16xf32> to vector<16x16x16xbf16>
    %c0_93 = arith.constant 0 : index
    %c0_94 = arith.constant 0 : index
    %c64 = arith.constant 64 : index
    %59 = vector.load %arg18[%c0_93, %c0_94, %c64] : memref<16x16x144xbf16, #tpu.memory_space<vmem>>, vector<16x16x16xbf16>
    tpu.vector_store %arg18[%c0_93, %c0_94, %c64], %58 {strides = array<i32>} : memref<16x16x144xbf16, #tpu.memory_space<vmem>>, vector<16x16x16xbf16>,
    %c8_95 = arith.constant 8 : index
    %c9_96 = arith.constant 9 : index
    %c0_97 = arith.constant 0 : index
    %60 = vector.load %arg14[%c8_95, %c9_96, %c0_97] : memref<25x25x16xf32, #tpu.memory_space<vmem>>, vector<16x16x16xf32>
    %61 = arith.truncf %60 : vector<16x16x16xf32> to vector<16x16x16xbf16>
    %c0_98 = arith.constant 0 : index
    %c0_99 = arith.constant 0 : index
    %c80 = arith.constant 80 : index
    %62 = vector.load %arg18[%c0_98, %c0_99, %c80] : memref<16x16x144xbf16, #tpu.memory_space<vmem>>, vector<16x16x16xbf16>
    tpu.vector_store %arg18[%c0_98, %c0_99, %c80], %61 {strides = array<i32>} : memref<16x16x144xbf16, #tpu.memory_space<vmem>>, vector<16x16x16xbf16>,
    %c9_100 = arith.constant 9 : index
    %c7_101 = arith.constant 7 : index
    %c0_102 = arith.constant 0 : index
    %63 = vector.load %arg14[%c9_100, %c7_101, %c0_102] : memref<25x25x16xf32, #tpu.memory_space<vmem>>, vector<16x16x16xf32>
    %64 = arith.truncf %63 : vector<16x16x16xf32> to vector<16x16x16xbf16>
    %c0_103 = arith.constant 0 : index
    %c0_104 = arith.constant 0 : index
    %c96 = arith.constant 96 : index
    %65 = vector.load %arg18[%c0_103, %c0_104, %c96] : memref<16x16x144xbf16, #tpu.memory_space<vmem>>, vector<16x16x16xbf16>
    tpu.vector_store %arg18[%c0_103, %c0_104, %c96], %64 {strides = array<i32>} : memref<16x16x144xbf16, #tpu.memory_space<vmem>>, vector<16x16x16xbf16>,
    %c9_105 = arith.constant 9 : index
    %c8_106 = arith.constant 8 : index
    %c0_107 = arith.constant 0 : index
    %66 = vector.load %arg14[%c9_105, %c8_106, %c0_107] : memref<25x25x16xf32, #tpu.memory_space<vmem>>, vector<16x16x16xf32>
    %67 = arith.truncf %66 : vector<16x16x16xf32> to vector<16x16x16xbf16>
    %c0_108 = arith.constant 0 : index
    %c0_109 = arith.constant 0 : index
    %c112 = arith.constant 112 : index
    %68 = vector.load %arg18[%c0_108, %c0_109, %c112] : memref<16x16x144xbf16, #tpu.memory_space<vmem>>, vector<16x16x16xbf16>
    tpu.vector_store %arg18[%c0_108, %c0_109, %c112], %67 {strides = array<i32>} : memref<16x16x144xbf16, #tpu.memory_space<vmem>>, vector<16x16x16xbf16>,
    %c9_110 = arith.constant 9 : index
    %c9_111 = arith.constant 9 : index
    %c0_112 = arith.constant 0 : index
    %69 = vector.load %arg14[%c9_110, %c9_111, %c0_112] : memref<25x25x16xf32, #tpu.memory_space<vmem>>, vector<16x16x16xf32>
    %70 = arith.truncf %69 : vector<16x16x16xf32> to vector<16x16x16xbf16>
    %c0_113 = arith.constant 0 : index
    %c0_114 = arith.constant 0 : index
    %c128 = arith.constant 128 : index
    %71 = vector.load %arg18[%c0_113, %c0_114, %c128] : memref<16x16x144xbf16, #tpu.memory_space<vmem>>, vector<16x16x16xbf16>
    tpu.vector_store %arg18[%c0_113, %c0_114, %c128], %70 {strides = array<i32>} : memref<16x16x144xbf16, #tpu.memory_space<vmem>>, vector<16x16x16xbf16>,
    %c0_115 = arith.constant 0 : index
    %c0_116 = arith.constant 0 : index
    %c0_117 = arith.constant 0 : index
    %72 = vector.load %arg18[%c0_115, %c0_116, %c0_117] : memref<16x16x144xbf16, #tpu.memory_space<vmem>>, vector<16x16x144xbf16>
    %73 = vector.shape_cast %72 : vector<16x16x144xbf16> to vector<256x144xbf16>
    %c0_118 = arith.constant 0 : index
    %c0_119 = arith.constant 0 : index
    %74 = vector.load %arg4[%c0_118, %c0_119] : memref<144x32xbf16, #tpu.memory_space<vmem>>, vector<144x32xbf16>
    %cst_120 = arith.constant dense<0.000000e+00> : vector<256x32xf32>
    %75 = tpu.matmul %73, %74, %cst_120 {dimension_numbers = #tpu.dot_dimension_numbers<[1], [0], [0], [1], [0, 0, 1, 1], [], []>} : vector<256x144xbf16>, vector<144x32xbf16>, vector<256x32xf32> -> vector<256x32xf32>
    %c0_121 = arith.constant 0 : index
    %c0_122 = arith.constant 0 : index
    %76 = vector.load %arg5[%c0_121, %c0_122] : memref<1x32xf32, #tpu.memory_space<vmem>>, vector<1x32xf32>
    %77 = vector.broadcast %76 : vector<1x32xf32> to vector<256x32xf32>
    %78 = arith.addf %75, %77 : vector<256x32xf32>
    %cst_123 = arith.constant 0.000000e+00 : f32
    %79 = vector.broadcast %cst_123 : f32 to vector<256x32xf32>
    %80 = arith.maximumf %78, %79 : vector<256x32xf32>
    %cst_124 = arith.constant 0.000000e+00 : f32
    %81 = vector.broadcast %cst_124 : f32 to vector<280x32xf32>
    %c0_125 = arith.constant 0 : index
    %c0_126 = arith.constant 0 : index
    %82 = vector.load %arg21[%c0_125, %c0_126] : memref<280x32xf32, #tpu.memory_space<vmem>>, vector<280x32xf32>
    tpu.vector_store %arg21[%c0_125, %c0_126], %81 {strides = array<i32>} : memref<280x32xf32, #tpu.memory_space<vmem>>, vector<280x32xf32>,
    %c0_127 = arith.constant 0 : index
    %c0_128 = arith.constant 0 : index
    %83 = vector.load %arg21[%c0_127, %c0_128] : memref<280x32xf32, #tpu.memory_space<vmem>>, vector<256x32xf32>
    tpu.vector_store %arg21[%c0_127, %c0_128], %80 {strides = array<i32>} : memref<280x32xf32, #tpu.memory_space<vmem>>, vector<256x32xf32>,
    %c0_129 = arith.constant 0 : index
    %c0_130 = arith.constant 0 : index
    %84 = vector.load %arg21[%c0_129, %c0_130] : memref<280x32xf32, #tpu.memory_space<vmem>>, vector<256x32xf32>
    %c1 = arith.constant 1 : index
    %c0_131 = arith.constant 0 : index
    %85 = vector.load %arg21[%c1, %c0_131] : memref<280x32xf32, #tpu.memory_space<vmem>>, vector<256x32xf32>
    %86 = arith.maximumf %84, %85 : vector<256x32xf32>
    %c16_132 = arith.constant 16 : index
    %c0_133 = arith.constant 0 : index
    %87 = vector.load %arg21[%c16_132, %c0_133] : memref<280x32xf32, #tpu.memory_space<vmem>>, vector<256x32xf32>
    %c17 = arith.constant 17 : index
    %c0_134 = arith.constant 0 : index
    %88 = vector.load %arg21[%c17, %c0_134] : memref<280x32xf32, #tpu.memory_space<vmem>>, vector<256x32xf32>
    %89 = arith.maximumf %87, %88 : vector<256x32xf32>
    %90 = arith.maximumf %86, %89 : vector<256x32xf32>
    %c0_135 = arith.constant 0 : index
    %c0_136 = arith.constant 0 : index
    %91 = vector.load %arg10[%c0_135, %c0_136] : memref<64x256xf32, #tpu.memory_space<vmem>>, vector<64x256xf32>
    %cst_137 = arith.constant dense<0.000000e+00> : vector<64x32xf32>
    %92 = tpu.matmul %91, %90, %cst_137 {dimension_numbers = #tpu.dot_dimension_numbers<[1], [0], [0], [1], [0, 0, 1, 1], [], []>} : vector<64x256xf32>, vector<256x32xf32>, vector<64x32xf32> -> vector<64x32xf32>
    %cst_138 = arith.constant 0.000000e+00 : f32
    %93 = vector.broadcast %cst_138 : f32 to vector<17x17x32xf32>
    %c0_139 = arith.constant 0 : index
    %c0_140 = arith.constant 0 : index
    %c0_141 = arith.constant 0 : index
    %94 = vector.load %arg15[%c0_139, %c0_140, %c0_141] : memref<17x17x32xf32, #tpu.memory_space<vmem>>, vector<17x17x32xf32>
    tpu.vector_store %arg15[%c0_139, %c0_140, %c0_141], %93 {strides = array<i32>} : memref<17x17x32xf32, #tpu.memory_space<vmem>>, vector<17x17x32xf32>,
    %95 = vector.shape_cast %92 : vector<64x32xf32> to vector<8x8x32xf32>
    %c8_142 = arith.constant 8 : index
    %c8_143 = arith.constant 8 : index
    %c0_144 = arith.constant 0 : index
    %96 = vector.load %arg15[%c8_142, %c8_143, %c0_144] : memref<17x17x32xf32, #tpu.memory_space<vmem>>, vector<8x8x32xf32>
    tpu.vector_store %arg15[%c8_142, %c8_143, %c0_144], %95 {strides = array<i32>} : memref<17x17x32xf32, #tpu.memory_space<vmem>>, vector<8x8x32xf32>,
    %c7_145 = arith.constant 7 : index
    %c7_146 = arith.constant 7 : index
    %c0_147 = arith.constant 0 : index
    %97 = vector.load %arg15[%c7_145, %c7_146, %c0_147] : memref<17x17x32xf32, #tpu.memory_space<vmem>>, vector<8x8x32xf32>
    %c0_148 = arith.constant 0 : index
    %c0_149 = arith.constant 0 : index
    %c0_150 = arith.constant 0 : index
    %98 = vector.load %arg19[%c0_148, %c0_149, %c0_150] : memref<8x8x288xf32, #tpu.memory_space<vmem>>, vector<8x8x32xf32>
    tpu.vector_store %arg19[%c0_148, %c0_149, %c0_150], %97 {strides = array<i32>} : memref<8x8x288xf32, #tpu.memory_space<vmem>>, vector<8x8x32xf32>,
    %c7_151 = arith.constant 7 : index
    %c8_152 = arith.constant 8 : index
    %c0_153 = arith.constant 0 : index
    %99 = vector.load %arg15[%c7_151, %c8_152, %c0_153] : memref<17x17x32xf32, #tpu.memory_space<vmem>>, vector<8x8x32xf32>
    %c0_154 = arith.constant 0 : index
    %c0_155 = arith.constant 0 : index
    %c32_156 = arith.constant 32 : index
    %100 = vector.load %arg19[%c0_154, %c0_155, %c32_156] : memref<8x8x288xf32, #tpu.memory_space<vmem>>, vector<8x8x32xf32>
    tpu.vector_store %arg19[%c0_154, %c0_155, %c32_156], %99 {strides = array<i32>} : memref<8x8x288xf32, #tpu.memory_space<vmem>>, vector<8x8x32xf32>,
    %c7_157 = arith.constant 7 : index
    %c9_158 = arith.constant 9 : index
    %c0_159 = arith.constant 0 : index
    %101 = vector.load %arg15[%c7_157, %c9_158, %c0_159] : memref<17x17x32xf32, #tpu.memory_space<vmem>>, vector<8x8x32xf32>
    %c0_160 = arith.constant 0 : index
    %c0_161 = arith.constant 0 : index
    %c64_162 = arith.constant 64 : index
    %102 = vector.load %arg19[%c0_160, %c0_161, %c64_162] : memref<8x8x288xf32, #tpu.memory_space<vmem>>, vector<8x8x32xf32>
    tpu.vector_store %arg19[%c0_160, %c0_161, %c64_162], %101 {strides = array<i32>} : memref<8x8x288xf32, #tpu.memory_space<vmem>>, vector<8x8x32xf32>,
    %c8_163 = arith.constant 8 : index
    %c7_164 = arith.constant 7 : index
    %c0_165 = arith.constant 0 : index
    %103 = vector.load %arg15[%c8_163, %c7_164, %c0_165] : memref<17x17x32xf32, #tpu.memory_space<vmem>>, vector<8x8x32xf32>
    %c0_166 = arith.constant 0 : index
    %c0_167 = arith.constant 0 : index
    %c96_168 = arith.constant 96 : index
    %104 = vector.load %arg19[%c0_166, %c0_167, %c96_168] : memref<8x8x288xf32, #tpu.memory_space<vmem>>, vector<8x8x32xf32>
    tpu.vector_store %arg19[%c0_166, %c0_167, %c96_168], %103 {strides = array<i32>} : memref<8x8x288xf32, #tpu.memory_space<vmem>>, vector<8x8x32xf32>,
    %c8_169 = arith.constant 8 : index
    %c8_170 = arith.constant 8 : index
    %c0_171 = arith.constant 0 : index
    %105 = vector.load %arg15[%c8_169, %c8_170, %c0_171] : memref<17x17x32xf32, #tpu.memory_space<vmem>>, vector<8x8x32xf32>
    %c0_172 = arith.constant 0 : index
    %c0_173 = arith.constant 0 : index
    %c128_174 = arith.constant 128 : index
    %106 = vector.load %arg19[%c0_172, %c0_173, %c128_174] : memref<8x8x288xf32, #tpu.memory_space<vmem>>, vector<8x8x32xf32>
    tpu.vector_store %arg19[%c0_172, %c0_173, %c128_174], %105 {strides = array<i32>} : memref<8x8x288xf32, #tpu.memory_space<vmem>>, vector<8x8x32xf32>,
    %c8_175 = arith.constant 8 : index
    %c9_176 = arith.constant 9 : index
    %c0_177 = arith.constant 0 : index
    %107 = vector.load %arg15[%c8_175, %c9_176, %c0_177] : memref<17x17x32xf32, #tpu.memory_space<vmem>>, vector<8x8x32xf32>
    %c0_178 = arith.constant 0 : index
    %c0_179 = arith.constant 0 : index
    %c160 = arith.constant 160 : index
    %108 = vector.load %arg19[%c0_178, %c0_179, %c160] : memref<8x8x288xf32, #tpu.memory_space<vmem>>, vector<8x8x32xf32>
    tpu.vector_store %arg19[%c0_178, %c0_179, %c160], %107 {strides = array<i32>} : memref<8x8x288xf32, #tpu.memory_space<vmem>>, vector<8x8x32xf32>,
    %c9_180 = arith.constant 9 : index
    %c7_181 = arith.constant 7 : index
    %c0_182 = arith.constant 0 : index
    %109 = vector.load %arg15[%c9_180, %c7_181, %c0_182] : memref<17x17x32xf32, #tpu.memory_space<vmem>>, vector<8x8x32xf32>
    %c0_183 = arith.constant 0 : index
    %c0_184 = arith.constant 0 : index
    %c192 = arith.constant 192 : index
    %110 = vector.load %arg19[%c0_183, %c0_184, %c192] : memref<8x8x288xf32, #tpu.memory_space<vmem>>, vector<8x8x32xf32>
    tpu.vector_store %arg19[%c0_183, %c0_184, %c192], %109 {strides = array<i32>} : memref<8x8x288xf32, #tpu.memory_space<vmem>>, vector<8x8x32xf32>,
    %c9_185 = arith.constant 9 : index
    %c8_186 = arith.constant 8 : index
    %c0_187 = arith.constant 0 : index
    %111 = vector.load %arg15[%c9_185, %c8_186, %c0_187] : memref<17x17x32xf32, #tpu.memory_space<vmem>>, vector<8x8x32xf32>
    %c0_188 = arith.constant 0 : index
    %c0_189 = arith.constant 0 : index
    %c224 = arith.constant 224 : index
    %112 = vector.load %arg19[%c0_188, %c0_189, %c224] : memref<8x8x288xf32, #tpu.memory_space<vmem>>, vector<8x8x32xf32>
    tpu.vector_store %arg19[%c0_188, %c0_189, %c224], %111 {strides = array<i32>} : memref<8x8x288xf32, #tpu.memory_space<vmem>>, vector<8x8x32xf32>,
    %c9_190 = arith.constant 9 : index
    %c9_191 = arith.constant 9 : index
    %c0_192 = arith.constant 0 : index
    %113 = vector.load %arg15[%c9_190, %c9_191, %c0_192] : memref<17x17x32xf32, #tpu.memory_space<vmem>>, vector<8x8x32xf32>
    %c0_193 = arith.constant 0 : index
    %c0_194 = arith.constant 0 : index
    %c256 = arith.constant 256 : index
    %114 = vector.load %arg19[%c0_193, %c0_194, %c256] : memref<8x8x288xf32, #tpu.memory_space<vmem>>, vector<8x8x32xf32>
    tpu.vector_store %arg19[%c0_193, %c0_194, %c256], %113 {strides = array<i32>} : memref<8x8x288xf32, #tpu.memory_space<vmem>>, vector<8x8x32xf32>,
    %c0_195 = arith.constant 0 : index
    %c0_196 = arith.constant 0 : index
    %c0_197 = arith.constant 0 : index
    %115 = vector.load %arg19[%c0_195, %c0_196, %c0_197] : memref<8x8x288xf32, #tpu.memory_space<vmem>>, vector<8x8x288xf32>
    %116 = vector.shape_cast %115 : vector<8x8x288xf32> to vector<64x288xf32>
    %117 = arith.truncf %116 : vector<64x288xf32> to vector<64x288xbf16>
    %c0_198 = arith.constant 0 : index
    %c0_199 = arith.constant 0 : index
    %118 = vector.load %arg6[%c0_198, %c0_199] : memref<288x16xbf16, #tpu.memory_space<vmem>>, vector<288x16xbf16>
    %cst_200 = arith.constant dense<0.000000e+00> : vector<64x16xf32>
    %119 = tpu.matmul %117, %118, %cst_200 {dimension_numbers = #tpu.dot_dimension_numbers<[1], [0], [0], [1], [0, 0, 1, 1], [], []>} : vector<64x288xbf16>, vector<288x16xbf16>, vector<64x16xf32> -> vector<64x16xf32>
    %c0_201 = arith.constant 0 : index
    %c0_202 = arith.constant 0 : index
    %120 = vector.load %arg7[%c0_201, %c0_202] : memref<1x16xf32, #tpu.memory_space<vmem>>, vector<1x16xf32>
    %121 = vector.broadcast %120 : vector<1x16xf32> to vector<64x16xf32>
    %122 = arith.addf %119, %121 : vector<64x16xf32>
    %cst_203 = arith.constant 0.000000e+00 : f32
    %123 = vector.broadcast %cst_203 : f32 to vector<64x16xf32>
    %124 = arith.maximumf %122, %123 : vector<64x16xf32>
    %c0_204 = arith.constant 0 : index
    %c0_205 = arith.constant 0 : index
    %125 = vector.load %arg11[%c0_204, %c0_205] : memref<256x64xf32, #tpu.memory_space<vmem>>, vector<256x64xf32>
    %cst_206 = arith.constant dense<0.000000e+00> : vector<256x16xf32>
    %126 = tpu.matmul %125, %124, %cst_206 {dimension_numbers = #tpu.dot_dimension_numbers<[1], [0], [0], [1], [0, 0, 1, 1], [], []>} : vector<256x64xf32>, vector<64x16xf32>, vector<256x16xf32> -> vector<256x16xf32>
    %cst_207 = arith.constant 0.000000e+00 : f32
    %127 = vector.broadcast %cst_207 : f32 to vector<26x26x16xf32>
    %c0_208 = arith.constant 0 : index
    %c0_209 = arith.constant 0 : index
    %c0_210 = arith.constant 0 : index
    %128 = vector.load %arg16[%c0_208, %c0_209, %c0_210] : memref<26x26x16xf32, #tpu.memory_space<vmem>>, vector<26x26x16xf32>
    tpu.vector_store %arg16[%c0_208, %c0_209, %c0_210], %127 {strides = array<i32>} : memref<26x26x16xf32, #tpu.memory_space<vmem>>, vector<26x26x16xf32>,
    %129 = vector.shape_cast %126 : vector<256x16xf32> to vector<16x16x16xf32>
    %c8_211 = arith.constant 8 : index
    %c8_212 = arith.constant 8 : index
    %c0_213 = arith.constant 0 : index
    %130 = vector.load %arg16[%c8_211, %c8_212, %c0_213] : memref<26x26x16xf32, #tpu.memory_space<vmem>>, vector<16x16x16xf32>
    tpu.vector_store %arg16[%c8_211, %c8_212, %c0_213], %129 {strides = array<i32>} : memref<26x26x16xf32, #tpu.memory_space<vmem>>, vector<16x16x16xf32>,
    %c6_214 = arith.constant 6 : index
    %c6_215 = arith.constant 6 : index
    %c0_216 = arith.constant 0 : index
    %131 = vector.load %arg16[%c6_214, %c6_215, %c0_216] : memref<26x26x16xf32, #tpu.memory_space<vmem>>, vector<16x16x16xf32>
    %132 = arith.truncf %131 : vector<16x16x16xf32> to vector<16x16x16xbf16>
    %c0_217 = arith.constant 0 : index
    %c0_218 = arith.constant 0 : index
    %c0_219 = arith.constant 0 : index
    %133 = vector.load %arg20[%c0_217, %c0_218, %c0_219] : memref<16x16x400xbf16, #tpu.memory_space<vmem>>, vector<16x16x16xbf16>
    tpu.vector_store %arg20[%c0_217, %c0_218, %c0_219], %132 {strides = array<i32>} : memref<16x16x400xbf16, #tpu.memory_space<vmem>>, vector<16x16x16xbf16>,
    %c6_220 = arith.constant 6 : index
    %c7_221 = arith.constant 7 : index
    %c0_222 = arith.constant 0 : index
    %134 = vector.load %arg16[%c6_220, %c7_221, %c0_222] : memref<26x26x16xf32, #tpu.memory_space<vmem>>, vector<16x16x16xf32>
    %135 = arith.truncf %134 : vector<16x16x16xf32> to vector<16x16x16xbf16>
    %c0_223 = arith.constant 0 : index
    %c0_224 = arith.constant 0 : index
    %c16_225 = arith.constant 16 : index
    %136 = vector.load %arg20[%c0_223, %c0_224, %c16_225] : memref<16x16x400xbf16, #tpu.memory_space<vmem>>, vector<16x16x16xbf16>
    tpu.vector_store %arg20[%c0_223, %c0_224, %c16_225], %135 {strides = array<i32>} : memref<16x16x400xbf16, #tpu.memory_space<vmem>>, vector<16x16x16xbf16>,
    %c6_226 = arith.constant 6 : index
    %c8_227 = arith.constant 8 : index
    %c0_228 = arith.constant 0 : index
    %137 = vector.load %arg16[%c6_226, %c8_227, %c0_228] : memref<26x26x16xf32, #tpu.memory_space<vmem>>, vector<16x16x16xf32>
    %138 = arith.truncf %137 : vector<16x16x16xf32> to vector<16x16x16xbf16>
    %c0_229 = arith.constant 0 : index
    %c0_230 = arith.constant 0 : index
    %c32_231 = arith.constant 32 : index
    %139 = vector.load %arg20[%c0_229, %c0_230, %c32_231] : memref<16x16x400xbf16, #tpu.memory_space<vmem>>, vector<16x16x16xbf16>
    tpu.vector_store %arg20[%c0_229, %c0_230, %c32_231], %138 {strides = array<i32>} : memref<16x16x400xbf16, #tpu.memory_space<vmem>>, vector<16x16x16xbf16>,
    %c6_232 = arith.constant 6 : index
    %c9_233 = arith.constant 9 : index
    %c0_234 = arith.constant 0 : index
    %140 = vector.load %arg16[%c6_232, %c9_233, %c0_234] : memref<26x26x16xf32, #tpu.memory_space<vmem>>, vector<16x16x16xf32>
    %141 = arith.truncf %140 : vector<16x16x16xf32> to vector<16x16x16xbf16>
    %c0_235 = arith.constant 0 : index
    %c0_236 = arith.constant 0 : index
    %c48_237 = arith.constant 48 : index
    %142 = vector.load %arg20[%c0_235, %c0_236, %c48_237] : memref<16x16x400xbf16, #tpu.memory_space<vmem>>, vector<16x16x16xbf16>
    tpu.vector_store %arg20[%c0_235, %c0_236, %c48_237], %141 {strides = array<i32>} : memref<16x16x400xbf16, #tpu.memory_space<vmem>>, vector<16x16x16xbf16>,
    %c6_238 = arith.constant 6 : index
    %c10 = arith.constant 10 : index
    %c0_239 = arith.constant 0 : index
    %143 = vector.load %arg16[%c6_238, %c10, %c0_239] : memref<26x26x16xf32, #tpu.memory_space<vmem>>, vector<16x16x16xf32>
    %144 = arith.truncf %143 : vector<16x16x16xf32> to vector<16x16x16xbf16>
    %c0_240 = arith.constant 0 : index
    %c0_241 = arith.constant 0 : index
    %c64_242 = arith.constant 64 : index
    %145 = vector.load %arg20[%c0_240, %c0_241, %c64_242] : memref<16x16x400xbf16, #tpu.memory_space<vmem>>, vector<16x16x16xbf16>
    tpu.vector_store %arg20[%c0_240, %c0_241, %c64_242], %144 {strides = array<i32>} : memref<16x16x400xbf16, #tpu.memory_space<vmem>>, vector<16x16x16xbf16>,
    %c7_243 = arith.constant 7 : index
    %c6_244 = arith.constant 6 : index
    %c0_245 = arith.constant 0 : index
    %146 = vector.load %arg16[%c7_243, %c6_244, %c0_245] : memref<26x26x16xf32, #tpu.memory_space<vmem>>, vector<16x16x16xf32>
    %147 = arith.truncf %146 : vector<16x16x16xf32> to vector<16x16x16xbf16>
    %c0_246 = arith.constant 0 : index
    %c0_247 = arith.constant 0 : index
    %c80_248 = arith.constant 80 : index
    %148 = vector.load %arg20[%c0_246, %c0_247, %c80_248] : memref<16x16x400xbf16, #tpu.memory_space<vmem>>, vector<16x16x16xbf16>
    tpu.vector_store %arg20[%c0_246, %c0_247, %c80_248], %147 {strides = array<i32>} : memref<16x16x400xbf16, #tpu.memory_space<vmem>>, vector<16x16x16xbf16>,
    %c7_249 = arith.constant 7 : index
    %c7_250 = arith.constant 7 : index
    %c0_251 = arith.constant 0 : index
    %149 = vector.load %arg16[%c7_249, %c7_250, %c0_251] : memref<26x26x16xf32, #tpu.memory_space<vmem>>, vector<16x16x16xf32>
    %150 = arith.truncf %149 : vector<16x16x16xf32> to vector<16x16x16xbf16>
    %c0_252 = arith.constant 0 : index
    %c0_253 = arith.constant 0 : index
    %c96_254 = arith.constant 96 : index
    %151 = vector.load %arg20[%c0_252, %c0_253, %c96_254] : memref<16x16x400xbf16, #tpu.memory_space<vmem>>, vector<16x16x16xbf16>
    tpu.vector_store %arg20[%c0_252, %c0_253, %c96_254], %150 {strides = array<i32>} : memref<16x16x400xbf16, #tpu.memory_space<vmem>>, vector<16x16x16xbf16>,
    %c7_255 = arith.constant 7 : index
    %c8_256 = arith.constant 8 : index
    %c0_257 = arith.constant 0 : index
    %152 = vector.load %arg16[%c7_255, %c8_256, %c0_257] : memref<26x26x16xf32, #tpu.memory_space<vmem>>, vector<16x16x16xf32>
    %153 = arith.truncf %152 : vector<16x16x16xf32> to vector<16x16x16xbf16>
    %c0_258 = arith.constant 0 : index
    %c0_259 = arith.constant 0 : index
    %c112_260 = arith.constant 112 : index
    %154 = vector.load %arg20[%c0_258, %c0_259, %c112_260] : memref<16x16x400xbf16, #tpu.memory_space<vmem>>, vector<16x16x16xbf16>
    tpu.vector_store %arg20[%c0_258, %c0_259, %c112_260], %153 {strides = array<i32>} : memref<16x16x400xbf16, #tpu.memory_space<vmem>>, vector<16x16x16xbf16>,
    %c7_261 = arith.constant 7 : index
    %c9_262 = arith.constant 9 : index
    %c0_263 = arith.constant 0 : index
    %155 = vector.load %arg16[%c7_261, %c9_262, %c0_263] : memref<26x26x16xf32, #tpu.memory_space<vmem>>, vector<16x16x16xf32>
    %156 = arith.truncf %155 : vector<16x16x16xf32> to vector<16x16x16xbf16>
    %c0_264 = arith.constant 0 : index
    %c0_265 = arith.constant 0 : index
    %c128_266 = arith.constant 128 : index
    %157 = vector.load %arg20[%c0_264, %c0_265, %c128_266] : memref<16x16x400xbf16, #tpu.memory_space<vmem>>, vector<16x16x16xbf16>
    tpu.vector_store %arg20[%c0_264, %c0_265, %c128_266], %156 {strides = array<i32>} : memref<16x16x400xbf16, #tpu.memory_space<vmem>>, vector<16x16x16xbf16>,
    %c7_267 = arith.constant 7 : index
    %c10_268 = arith.constant 10 : index
    %c0_269 = arith.constant 0 : index
    %158 = vector.load %arg16[%c7_267, %c10_268, %c0_269] : memref<26x26x16xf32, #tpu.memory_space<vmem>>, vector<16x16x16xf32>
    %159 = arith.truncf %158 : vector<16x16x16xf32> to vector<16x16x16xbf16>
    %c0_270 = arith.constant 0 : index
    %c0_271 = arith.constant 0 : index
    %c144 = arith.constant 144 : index
    %160 = vector.load %arg20[%c0_270, %c0_271, %c144] : memref<16x16x400xbf16, #tpu.memory_space<vmem>>, vector<16x16x16xbf16>
    tpu.vector_store %arg20[%c0_270, %c0_271, %c144], %159 {strides = array<i32>} : memref<16x16x400xbf16, #tpu.memory_space<vmem>>, vector<16x16x16xbf16>,
    %c8_272 = arith.constant 8 : index
    %c6_273 = arith.constant 6 : index
    %c0_274 = arith.constant 0 : index
    %161 = vector.load %arg16[%c8_272, %c6_273, %c0_274] : memref<26x26x16xf32, #tpu.memory_space<vmem>>, vector<16x16x16xf32>
    %162 = arith.truncf %161 : vector<16x16x16xf32> to vector<16x16x16xbf16>
    %c0_275 = arith.constant 0 : index
    %c0_276 = arith.constant 0 : index
    %c160_277 = arith.constant 160 : index
    %163 = vector.load %arg20[%c0_275, %c0_276, %c160_277] : memref<16x16x400xbf16, #tpu.memory_space<vmem>>, vector<16x16x16xbf16>
    tpu.vector_store %arg20[%c0_275, %c0_276, %c160_277], %162 {strides = array<i32>} : memref<16x16x400xbf16, #tpu.memory_space<vmem>>, vector<16x16x16xbf16>,
    %c8_278 = arith.constant 8 : index
    %c7_279 = arith.constant 7 : index
    %c0_280 = arith.constant 0 : index
    %164 = vector.load %arg16[%c8_278, %c7_279, %c0_280] : memref<26x26x16xf32, #tpu.memory_space<vmem>>, vector<16x16x16xf32>
    %165 = arith.truncf %164 : vector<16x16x16xf32> to vector<16x16x16xbf16>
    %c0_281 = arith.constant 0 : index
    %c0_282 = arith.constant 0 : index
    %c176 = arith.constant 176 : index
    %166 = vector.load %arg20[%c0_281, %c0_282, %c176] : memref<16x16x400xbf16, #tpu.memory_space<vmem>>, vector<16x16x16xbf16>
    tpu.vector_store %arg20[%c0_281, %c0_282, %c176], %165 {strides = array<i32>} : memref<16x16x400xbf16, #tpu.memory_space<vmem>>, vector<16x16x16xbf16>,
    %c8_283 = arith.constant 8 : index
    %c8_284 = arith.constant 8 : index
    %c0_285 = arith.constant 0 : index
    %167 = vector.load %arg16[%c8_283, %c8_284, %c0_285] : memref<26x26x16xf32, #tpu.memory_space<vmem>>, vector<16x16x16xf32>
    %168 = arith.truncf %167 : vector<16x16x16xf32> to vector<16x16x16xbf16>
    %c0_286 = arith.constant 0 : index
    %c0_287 = arith.constant 0 : index
    %c192_288 = arith.constant 192 : index
    %169 = vector.load %arg20[%c0_286, %c0_287, %c192_288] : memref<16x16x400xbf16, #tpu.memory_space<vmem>>, vector<16x16x16xbf16>
    tpu.vector_store %arg20[%c0_286, %c0_287, %c192_288], %168 {strides = array<i32>} : memref<16x16x400xbf16, #tpu.memory_space<vmem>>, vector<16x16x16xbf16>,
    %c8_289 = arith.constant 8 : index
    %c9_290 = arith.constant 9 : index
    %c0_291 = arith.constant 0 : index
    %170 = vector.load %arg16[%c8_289, %c9_290, %c0_291] : memref<26x26x16xf32, #tpu.memory_space<vmem>>, vector<16x16x16xf32>
    %171 = arith.truncf %170 : vector<16x16x16xf32> to vector<16x16x16xbf16>
    %c0_292 = arith.constant 0 : index
    %c0_293 = arith.constant 0 : index
    %c208 = arith.constant 208 : index
    %172 = vector.load %arg20[%c0_292, %c0_293, %c208] : memref<16x16x400xbf16, #tpu.memory_space<vmem>>, vector<16x16x16xbf16>
    tpu.vector_store %arg20[%c0_292, %c0_293, %c208], %171 {strides = array<i32>} : memref<16x16x400xbf16, #tpu.memory_space<vmem>>, vector<16x16x16xbf16>,
    %c8_294 = arith.constant 8 : index
    %c10_295 = arith.constant 10 : index
    %c0_296 = arith.constant 0 : index
    %173 = vector.load %arg16[%c8_294, %c10_295, %c0_296] : memref<26x26x16xf32, #tpu.memory_space<vmem>>, vector<16x16x16xf32>
    %174 = arith.truncf %173 : vector<16x16x16xf32> to vector<16x16x16xbf16>
    %c0_297 = arith.constant 0 : index
    %c0_298 = arith.constant 0 : index
    %c224_299 = arith.constant 224 : index
    %175 = vector.load %arg20[%c0_297, %c0_298, %c224_299] : memref<16x16x400xbf16, #tpu.memory_space<vmem>>, vector<16x16x16xbf16>
    tpu.vector_store %arg20[%c0_297, %c0_298, %c224_299], %174 {strides = array<i32>} : memref<16x16x400xbf16, #tpu.memory_space<vmem>>, vector<16x16x16xbf16>,
    %c9_300 = arith.constant 9 : index
    %c6_301 = arith.constant 6 : index
    %c0_302 = arith.constant 0 : index
    %176 = vector.load %arg16[%c9_300, %c6_301, %c0_302] : memref<26x26x16xf32, #tpu.memory_space<vmem>>, vector<16x16x16xf32>
    %177 = arith.truncf %176 : vector<16x16x16xf32> to vector<16x16x16xbf16>
    %c0_303 = arith.constant 0 : index
    %c0_304 = arith.constant 0 : index
    %c240 = arith.constant 240 : index
    %178 = vector.load %arg20[%c0_303, %c0_304, %c240] : memref<16x16x400xbf16, #tpu.memory_space<vmem>>, vector<16x16x16xbf16>
    tpu.vector_store %arg20[%c0_303, %c0_304, %c240], %177 {strides = array<i32>} : memref<16x16x400xbf16, #tpu.memory_space<vmem>>, vector<16x16x16xbf16>,
    %c9_305 = arith.constant 9 : index
    %c7_306 = arith.constant 7 : index
    %c0_307 = arith.constant 0 : index
    %179 = vector.load %arg16[%c9_305, %c7_306, %c0_307] : memref<26x26x16xf32, #tpu.memory_space<vmem>>, vector<16x16x16xf32>
    %180 = arith.truncf %179 : vector<16x16x16xf32> to vector<16x16x16xbf16>
    %c0_308 = arith.constant 0 : index
    %c0_309 = arith.constant 0 : index
    %c256_310 = arith.constant 256 : index
    %181 = vector.load %arg20[%c0_308, %c0_309, %c256_310] : memref<16x16x400xbf16, #tpu.memory_space<vmem>>, vector<16x16x16xbf16>
    tpu.vector_store %arg20[%c0_308, %c0_309, %c256_310], %180 {strides = array<i32>} : memref<16x16x400xbf16, #tpu.memory_space<vmem>>, vector<16x16x16xbf16>,
    %c9_311 = arith.constant 9 : index
    %c8_312 = arith.constant 8 : index
    %c0_313 = arith.constant 0 : index
    %182 = vector.load %arg16[%c9_311, %c8_312, %c0_313] : memref<26x26x16xf32, #tpu.memory_space<vmem>>, vector<16x16x16xf32>
    %183 = arith.truncf %182 : vector<16x16x16xf32> to vector<16x16x16xbf16>
    %c0_314 = arith.constant 0 : index
    %c0_315 = arith.constant 0 : index
    %c272 = arith.constant 272 : index
    %184 = vector.load %arg20[%c0_314, %c0_315, %c272] : memref<16x16x400xbf16, #tpu.memory_space<vmem>>, vector<16x16x16xbf16>
    tpu.vector_store %arg20[%c0_314, %c0_315, %c272], %183 {strides = array<i32>} : memref<16x16x400xbf16, #tpu.memory_space<vmem>>, vector<16x16x16xbf16>,
    %c9_316 = arith.constant 9 : index
    %c9_317 = arith.constant 9 : index
    %c0_318 = arith.constant 0 : index
    %185 = vector.load %arg16[%c9_316, %c9_317, %c0_318] : memref<26x26x16xf32, #tpu.memory_space<vmem>>, vector<16x16x16xf32>
    %186 = arith.truncf %185 : vector<16x16x16xf32> to vector<16x16x16xbf16>
    %c0_319 = arith.constant 0 : index
    %c0_320 = arith.constant 0 : index
    %c288 = arith.constant 288 : index
    %187 = vector.load %arg20[%c0_319, %c0_320, %c288] : memref<16x16x400xbf16, #tpu.memory_space<vmem>>, vector<16x16x16xbf16>
    tpu.vector_store %arg20[%c0_319, %c0_320, %c288], %186 {strides = array<i32>} : memref<16x16x400xbf16, #tpu.memory_space<vmem>>, vector<16x16x16xbf16>,
    %c9_321 = arith.constant 9 : index
    %c10_322 = arith.constant 10 : index
    %c0_323 = arith.constant 0 : index
    %188 = vector.load %arg16[%c9_321, %c10_322, %c0_323] : memref<26x26x16xf32, #tpu.memory_space<vmem>>, vector<16x16x16xf32>
    %189 = arith.truncf %188 : vector<16x16x16xf32> to vector<16x16x16xbf16>
    %c0_324 = arith.constant 0 : index
    %c0_325 = arith.constant 0 : index
    %c304 = arith.constant 304 : index
    %190 = vector.load %arg20[%c0_324, %c0_325, %c304] : memref<16x16x400xbf16, #tpu.memory_space<vmem>>, vector<16x16x16xbf16>
    tpu.vector_store %arg20[%c0_324, %c0_325, %c304], %189 {strides = array<i32>} : memref<16x16x400xbf16, #tpu.memory_space<vmem>>, vector<16x16x16xbf16>,
    %c10_326 = arith.constant 10 : index
    %c6_327 = arith.constant 6 : index
    %c0_328 = arith.constant 0 : index
    %191 = vector.load %arg16[%c10_326, %c6_327, %c0_328] : memref<26x26x16xf32, #tpu.memory_space<vmem>>, vector<16x16x16xf32>
    %192 = arith.truncf %191 : vector<16x16x16xf32> to vector<16x16x16xbf16>
    %c0_329 = arith.constant 0 : index
    %c0_330 = arith.constant 0 : index
    %c320 = arith.constant 320 : index
    %193 = vector.load %arg20[%c0_329, %c0_330, %c320] : memref<16x16x400xbf16, #tpu.memory_space<vmem>>, vector<16x16x16xbf16>
    tpu.vector_store %arg20[%c0_329, %c0_330, %c320], %192 {strides = array<i32>} : memref<16x16x400xbf16, #tpu.memory_space<vmem>>, vector<16x16x16xbf16>,
    %c10_331 = arith.constant 10 : index
    %c7_332 = arith.constant 7 : index
    %c0_333 = arith.constant 0 : index
    %194 = vector.load %arg16[%c10_331, %c7_332, %c0_333] : memref<26x26x16xf32, #tpu.memory_space<vmem>>, vector<16x16x16xf32>
    %195 = arith.truncf %194 : vector<16x16x16xf32> to vector<16x16x16xbf16>
    %c0_334 = arith.constant 0 : index
    %c0_335 = arith.constant 0 : index
    %c336 = arith.constant 336 : index
    %196 = vector.load %arg20[%c0_334, %c0_335, %c336] : memref<16x16x400xbf16, #tpu.memory_space<vmem>>, vector<16x16x16xbf16>
    tpu.vector_store %arg20[%c0_334, %c0_335, %c336], %195 {strides = array<i32>} : memref<16x16x400xbf16, #tpu.memory_space<vmem>>, vector<16x16x16xbf16>,
    %c10_336 = arith.constant 10 : index
    %c8_337 = arith.constant 8 : index
    %c0_338 = arith.constant 0 : index
    %197 = vector.load %arg16[%c10_336, %c8_337, %c0_338] : memref<26x26x16xf32, #tpu.memory_space<vmem>>, vector<16x16x16xf32>
    %198 = arith.truncf %197 : vector<16x16x16xf32> to vector<16x16x16xbf16>
    %c0_339 = arith.constant 0 : index
    %c0_340 = arith.constant 0 : index
    %c352 = arith.constant 352 : index
    %199 = vector.load %arg20[%c0_339, %c0_340, %c352] : memref<16x16x400xbf16, #tpu.memory_space<vmem>>, vector<16x16x16xbf16>
    tpu.vector_store %arg20[%c0_339, %c0_340, %c352], %198 {strides = array<i32>} : memref<16x16x400xbf16, #tpu.memory_space<vmem>>, vector<16x16x16xbf16>,
    %c10_341 = arith.constant 10 : index
    %c9_342 = arith.constant 9 : index
    %c0_343 = arith.constant 0 : index
    %200 = vector.load %arg16[%c10_341, %c9_342, %c0_343] : memref<26x26x16xf32, #tpu.memory_space<vmem>>, vector<16x16x16xf32>
    %201 = arith.truncf %200 : vector<16x16x16xf32> to vector<16x16x16xbf16>
    %c0_344 = arith.constant 0 : index
    %c0_345 = arith.constant 0 : index
    %c368 = arith.constant 368 : index
    %202 = vector.load %arg20[%c0_344, %c0_345, %c368] : memref<16x16x400xbf16, #tpu.memory_space<vmem>>, vector<16x16x16xbf16>
    tpu.vector_store %arg20[%c0_344, %c0_345, %c368], %201 {strides = array<i32>} : memref<16x16x400xbf16, #tpu.memory_space<vmem>>, vector<16x16x16xbf16>,
    %c10_346 = arith.constant 10 : index
    %c10_347 = arith.constant 10 : index
    %c0_348 = arith.constant 0 : index
    %203 = vector.load %arg16[%c10_346, %c10_347, %c0_348] : memref<26x26x16xf32, #tpu.memory_space<vmem>>, vector<16x16x16xf32>
    %204 = arith.truncf %203 : vector<16x16x16xf32> to vector<16x16x16xbf16>
    %c0_349 = arith.constant 0 : index
    %c0_350 = arith.constant 0 : index
    %c384 = arith.constant 384 : index
    %205 = vector.load %arg20[%c0_349, %c0_350, %c384] : memref<16x16x400xbf16, #tpu.memory_space<vmem>>, vector<16x16x16xbf16>
    tpu.vector_store %arg20[%c0_349, %c0_350, %c384], %204 {strides = array<i32>} : memref<16x16x400xbf16, #tpu.memory_space<vmem>>, vector<16x16x16xbf16>,
    %c0_351 = arith.constant 0 : index
    %c0_352 = arith.constant 0 : index
    %c0_353 = arith.constant 0 : index
    %206 = vector.load %arg20[%c0_351, %c0_352, %c0_353] : memref<16x16x400xbf16, #tpu.memory_space<vmem>>, vector<16x16x400xbf16>
    %207 = vector.shape_cast %206 : vector<16x16x400xbf16> to vector<256x400xbf16>
    %c0_354 = arith.constant 0 : index
    %c0_355 = arith.constant 0 : index
    %208 = vector.load %arg8[%c0_354, %c0_355] : memref<400x2xbf16, #tpu.memory_space<vmem>>, vector<400x2xbf16>
    %cst_356 = arith.constant dense<0.000000e+00> : vector<256x2xf32>
    %209 = tpu.matmul %207, %208, %cst_356 {dimension_numbers = #tpu.dot_dimension_numbers<[1], [0], [0], [1], [0, 0, 1, 1], [], []>} : vector<256x400xbf16>, vector<400x2xbf16>, vector<256x2xf32> -> vector<256x2xf32>
    %c0_357 = arith.constant 0 : index
    %c0_358 = arith.constant 0 : index
    %210 = vector.load %arg9[%c0_357, %c0_358] : memref<1x2xf32, #tpu.memory_space<vmem>>, vector<1x2xf32>
    %211 = vector.broadcast %210 : vector<1x2xf32> to vector<256x2xf32>
    %212 = arith.addf %209, %211 : vector<256x2xf32>
    %213 = vector.shape_cast %212 : vector<256x2xf32> to vector<16x16x2xf32>
    %c0_359 = arith.constant 0 : index
    %c0_360 = arith.constant 0 : index
    %c0_361 = arith.constant 0 : index
    %c0_362 = arith.constant 0 : index
    %214 = vector.load %arg12[%c0_359, %c0_360, %c0_361, %c0_362] : memref<1x16x16x2xf32, #tpu.memory_space<vmem>>, vector<1x16x16x2xf32>
    %215 = vector.shape_cast %214 : vector<1x16x16x2xf32> to vector<16x16x2xf32>
    %216 = vector.shape_cast %213 : vector<16x16x2xf32> to vector<1x16x16x2xf32>
    tpu.vector_store %arg12[%c0_359, %c0_360, %c0_361, %c0_362], %216 {strides = array<i32>} : memref<1x16x16x2xf32, #tpu.memory_space<vmem>>, vector<1x16x16x2xf32>,
    return
  }
  func.func @transform_0(%arg0: i32) -> (i32, i32, i32, i32) {
    %c0_i32 = arith.constant 0 : i32
    %c0_i32_0 = arith.constant 0 : i32
    %c0_i32_1 = arith.constant 0 : i32
    %c0_i32_2 = arith.constant 0 : i32
    return %arg0, %c0_i32, %c0_i32_0, %c0_i32_1 : i32, i32, i32, i32
  }
  func.func @transform_1(%arg0: i32) -> (i32, i32) {
    %c0_i32 = arith.constant 0 : i32
    %c0_i32_0 = arith.constant 0 : i32
    %c0_i32_1 = arith.constant 0 : i32
    return %c0_i32, %c0_i32_0 : i32, i32
  }
  func.func @transform_2(%arg0: i32) -> (i32, i32) {
    %c0_i32 = arith.constant 0 : i32
    %c0_i32_0 = arith.constant 0 : i32
    %c0_i32_1 = arith.constant 0 : i32
    return %c0_i32, %c0_i32_0 : i32, i32
  }
  func.func @transform_3(%arg0: i32) -> (i32, i32) {
    %c0_i32 = arith.constant 0 : i32
    %c0_i32_0 = arith.constant 0 : i32
    %c0_i32_1 = arith.constant 0 : i32
    return %c0_i32, %c0_i32_0 : i32, i32
  }
  func.func @transform_4(%arg0: i32) -> (i32, i32) {
    %c0_i32 = arith.constant 0 : i32
    %c0_i32_0 = arith.constant 0 : i32
    %c0_i32_1 = arith.constant 0 : i32
    return %c0_i32, %c0_i32_0 : i32, i32
  }
  func.func @transform_5(%arg0: i32) -> (i32, i32) {
    %c0_i32 = arith.constant 0 : i32
    %c0_i32_0 = arith.constant 0 : i32
    %c0_i32_1 = arith.constant 0 : i32
    return %c0_i32, %c0_i32_0 : i32, i32
  }
  func.func @transform_6(%arg0: i32) -> (i32, i32) {
    %c0_i32 = arith.constant 0 : i32
    %c0_i32_0 = arith.constant 0 : i32
    %c0_i32_1 = arith.constant 0 : i32
    return %c0_i32, %c0_i32_0 : i32, i32
  }
  func.func @transform_7(%arg0: i32) -> (i32, i32) {
    %c0_i32 = arith.constant 0 : i32
    %c0_i32_0 = arith.constant 0 : i32
    %c0_i32_1 = arith.constant 0 : i32
    return %c0_i32, %c0_i32_0 : i32, i32
  }
  func.func @transform_8(%arg0: i32) -> (i32, i32) {
    %c0_i32 = arith.constant 0 : i32
    %c0_i32_0 = arith.constant 0 : i32
    %c0_i32_1 = arith.constant 0 : i32
    return %c0_i32, %c0_i32_0 : i32, i32
  }
  func.func @transform_9(%arg0: i32) -> (i32, i32) {
    %c0_i32 = arith.constant 0 : i32
    %c0_i32_0 = arith.constant 0 : i32
    %c0_i32_1 = arith.constant 0 : i32
    return %c0_i32, %c0_i32_0 : i32, i32
  }
  func.func @transform_10(%arg0: i32) -> (i32, i32) {
    %c0_i32 = arith.constant 0 : i32
    %c0_i32_0 = arith.constant 0 : i32
    %c0_i32_1 = arith.constant 0 : i32
    return %c0_i32, %c0_i32_0 : i32, i32
  }
  func.func @transform_11(%arg0: i32) -> (i32, i32, i32, i32) {
    %c0_i32 = arith.constant 0 : i32
    %c0_i32_0 = arith.constant 0 : i32
    %c0_i32_1 = arith.constant 0 : i32
    %c0_i32_2 = arith.constant 0 : i32
    return %arg0, %c0_i32, %c0_i32_0, %c0_i32_1 : i32, i32, i32, i32
  }
}

</mosaic_0001>

<llo_original>
// kernel: fcn_forward.1
$region0: #{fcn_forward.1}
  #allocation0 [shape = 'u32[]', space=smem, size = 0x4, offset = 0x4, fixed_abs, tag = 'smem constant byte address 0x4 - core index']
  #allocation1 [shape = 'u32[144,128]{1,0:T(1,128)}', space=vmem, size = 0x12000, scoped, tag = 'internal scratch']
  #allocation2 [shape = 'f32[25,25,3]{2,1,0:T(8,128)}', space=vmem, size = 0x64000, scoped, tag = 'scratch operand']
  #allocation3 [shape = 'f32[25,25,16]{2,1,0:T(8,128)}', space=vmem, size = 0x64000, scoped, tag = 'scratch operand']
  #allocation4 [shape = 'f32[17,17,32]{2,1,0:T(8,128)}', space=vmem, size = 0x33000, scoped, tag = 'scratch operand']
  #allocation5 [shape = 'f32[26,26,16]{2,1,0:T(8,128)}', space=vmem, size = 0x68000, scoped, tag = 'scratch operand']
  #allocation6 [shape = 'bf16[16,16,27]{2,1,0:T(16,128)(2,1)}', space=vmem, size = 0x10000, scoped, tag = 'scratch operand']
  #allocation7 [shape = 'bf16[16,16,144]{2,1,0:T(16,128)(2,1)}', space=vmem, size = 0x20000, scoped, tag = 'scratch operand']
  #allocation8 [shape = 'f32[8,8,288]{2,1,0:T(8,128)}', space=vmem, size = 0x18000, scoped, tag = 'scratch operand']
  #allocation9 [shape = 'bf16[16,16,400]{2,1,0:T(16,128)(2,1)}', space=vmem, size = 0x40000, scoped, tag = 'scratch operand']
  #allocation10 [shape = 'f32[280,32]{1,0:T(8,128)}', space=vmem, size = 0x23000, scoped, tag = 'scratch operand']
  %s0 = inlined_call_operand.vmem [shape: f32[2,16,16,3], index: 0, kind: input, shape index: {}]
  %s1 = inlined_call_operand.vmem [shape: bf16[27,16], index: 1, kind: input, shape index: {}]
  %s2 = inlined_call_operand.vmem [shape: f32[1,16], index: 2, kind: input, shape index: {}]
  %s3 = inlined_call_operand.vmem [shape: bf16[144,32], index: 3, kind: input, shape index: {}]
  %s4 = inlined_call_operand.vmem [shape: f32[1,32], index: 4, kind: input, shape index: {}]
  %s5 = inlined_call_operand.vmem [shape: bf16[288,16], index: 5, kind: input, shape index: {}]
  %s6 = inlined_call_operand.vmem [shape: f32[1,16], index: 6, kind: input, shape index: {}]
  %s7 = inlined_call_operand.vmem [shape: bf16[400,2], index: 7, kind: input, shape index: {}]
  %s8 = inlined_call_operand.vmem [shape: f32[1,2], index: 8, kind: input, shape index: {}]
  %s9 = inlined_call_operand.vmem [shape: f32[64,256], index: 9, kind: input, shape index: {}]
  %s10 = inlined_call_operand.vmem [shape: f32[256,64], index: 10, kind: input, shape index: {}]
  %s11 = inlined_call_operand.vmem [shape: f32[2,16,16,2], index: 11, kind: output, shape index: {}]
  %s12 = sld [smem:[#allocation0]]
  $region77: #{fcn_forward.1} parent=0
    _
  %s14 = ssub.s32 1, %s12
  %s15 = scalar_select 0, %s14, %s12
  loop: start=0, step=1, limit=4
  $region2: #{fcn_forward.1} parent=0 // loop_pre_header
    _
  $region3: #{fcn_forward.1} parent=0 // loop_header
    %s17 = sphi 0, %s21
    %p18 = scmp.ge.s32.totalorder %s17, 4
    %s27 = sphi 0, %s29
    %s30 = sphi 0, %s27
    %s31 = sphi 0, %s30
    %s47 = sphi 0, %s31
    %s51 = sphi 0, %s51
    %s53 = sphi 0, %s51
    %s54 = sphi 0, %s53
    %s68 = sphi 0, %s54
    %s72 = sphi 0, %s72
    %s74 = sphi 0, %s72
    %s75 = sphi 0, %s74
    %s89 = sphi 0, %s75
    %s93 = sphi 0, %s93
    %s95 = sphi 0, %s93
    %s96 = sphi 0, %s95
    %s110 = sphi 0, %s96
    %s114 = sphi 0, %s114
    %s116 = sphi 0, %s114
    %s117 = sphi 0, %s116
    %s131 = sphi 0, %s117
    %s135 = sphi 0, %s135
    %s137 = sphi 0, %s135
    %s138 = sphi 0, %s137
    %s152 = sphi 0, %s138
    %s156 = sphi 0, %s156
    %s158 = sphi 0, %s156
    %s159 = sphi 0, %s158
    %s173 = sphi 0, %s159
    %s177 = sphi 0, %s177
    %s179 = sphi 0, %s177
    %s180 = sphi 0, %s179
    %s194 = sphi 0, %s180
    %s198 = sphi 0, %s198
    %s200 = sphi 0, %s198
    %s201 = sphi 0, %s200
    %s215 = sphi 0, %s201
    %s219 = sphi 0, %s219
    %s221 = sphi 0, %s219
    %s222 = sphi 0, %s221
    %s236 = sphi 0, %s222
    %s240 = sphi 0, %s240
    %s242 = sphi 0, %s240
    %s243 = sphi 0, %s242
    %s257 = sphi 0, %s243
    %s263 = sphi 0, %s265
    %s266 = sphi 0, %s263
    %s267 = sphi 0, %s266
    %s283 = sphi 0, %s267
  $region4: #{fcn_forward.1} parent=0 // loop_header_branch
    %20 = sbr.rel (%p18) target = $region8
  $region5: #{fcn_forward.1} parent=0 // loop_body
    %s22 = ssub.s32 %s17, 1
    %s23 = ssub.s32 %s17, 2
    %s24 = sadd.s32 %s17, 1
    %s25 = ssub.s32 %s17, %s24
    %p26 = scmp.eq.s32.totalorder %s25, 0
    %s28 = sadd.s32 %s27, 1
    %s29 = scalar_select %p26, %s27, %s28
    %p32 = pneg %p26
    %p33 = scmp.eq.s32.totalorder %s17, 1
    %p34 = por %p32, %p33
    %p35 = scmp.ne.s32.totalorder %s27, %s30
    %p36 = scmp.eq.s32.totalorder %s17, 0
    %p37 = por %p35, %p36
    %p38 = scmp.ne.s32.totalorder %s27, %s30
    %p39 = scmp.eq.s32.totalorder %s22, 1
    %p40 = por %p38, %p39
    %p41 = scmp.ne.s32.totalorder %s30, %s31
    %p42 = scmp.eq.s32.totalorder %s22, 0
    %p43 = por %p41, %p42
    %p44 = scmp.ne.s32.totalorder %s30, %s31
    %p45 = scmp.eq.s32.totalorder %s23, 1
    %p46 = por %p44, %p45
    %p48 = scmp.ne.s32.totalorder %s31, %s47
    %p49 = scmp.eq.s32.totalorder %s23, 0
    %p50 = por %p48, %p49
    %s52 = sadd.s32 %s51, 1
    %p55 = scmp.eq.s32.totalorder %s17, 1
    %p56 = scmp.ne.s32.totalorder %s51, %s53
    %p57 = scmp.eq.s32.totalorder %s17, 0
    %p58 = por %p56, %p57
    %p59 = scmp.ne.s32.totalorder %s51, %s53
    %p60 = scmp.eq.s32.totalorder %s22, 1
    %p61 = por %p59, %p60
    %p62 = scmp.ne.s32.totalorder %s53, %s54
    %p63 = scmp.eq.s32.totalorder %s22, 0
    %p64 = por %p62, %p63
    %p65 = scmp.ne.s32.totalorder %s53, %s54
    %p66 = scmp.eq.s32.totalorder %s23, 1
    %p67 = por %p65, %p66
    %p69 = scmp.ne.s32.totalorder %s54, %s68
    %p70 = scmp.eq.s32.totalorder %s23, 0
    %p71 = por %p69, %p70
    %s73 = sadd.s32 %s72, 1
    %p76 = scmp.eq.s32.totalorder %s17, 1
    %p77 = scmp.ne.s32.totalorder %s72, %s74
    %p78 = scmp.eq.s32.totalorder %s17, 0
    %p79 = por %p77, %p78
    %p80 = scmp.ne.s32.totalorder %s72, %s74
    %p81 = scmp.eq.s32.totalorder %s22, 1
    %p82 = por %p80, %p81
    %p83 = scmp.ne.s32.totalorder %s74, %s75
    %p84 = scmp.eq.s32.totalorder %s22, 0
    %p85 = por %p83, %p84
    %p86 = scmp.ne.s32.totalorder %s74, %s75
    %p87 = scmp.eq.s32.totalorder %s23, 1
    %p88 = por %p86, %p87
    %p90 = scmp.ne.s32.totalorder %s75, %s89
    %p91 = scmp.eq.s32.totalorder %s23, 0
    %p92 = por %p90, %p91
    %s94 = sadd.s32 %s93, 1
    %p97 = scmp.eq.s32.totalorder %s17, 1
    %p98 = scmp.ne.s32.totalorder %s93, %s95
    %p99 = scmp.eq.s32.totalorder %s17, 0
    %p100 = por %p98, %p99
    %p101 = scmp.ne.s32.totalorder %s93, %s95
    %p102 = scmp.eq.s32.totalorder %s22, 1
    %p103 = por %p101, %p102
    %p104 = scmp.ne.s32.totalorder %s95, %s96
    %p105 = scmp.eq.s32.totalorder %s22, 0
    %p106 = por %p104, %p105
    %p107 = scmp.ne.s32.totalorder %s95, %s96
    %p108 = scmp.eq.s32.totalorder %s23, 1
    %p109 = por %p107, %p108
    %p111 = scmp.ne.s32.totalorder %s96, %s110
    %p112 = scmp.eq.s32.totalorder %s23, 0
    %p113 = por %p111, %p112
    %s115 = sadd.s32 %s114, 1
    %p118 = scmp.eq.s32.totalorder %s17, 1
    %p119 = scmp.ne.s32.totalorder %s114, %s116
    %p120 = scmp.eq.s32.totalorder %s17, 0
    %p121 = por %p119, %p120
    %p122 = scmp.ne.s32.totalorder %s114, %s116
    %p123 = scmp.eq.s32.totalorder %s22, 1
    %p124 = por %p122, %p123
    %p125 = scmp.ne.s32.totalorder %s116, %s117
    %p126 = scmp.eq.s32.totalorder %s22, 0
    %p127 = por %p125, %p126
    %p128 = scmp.ne.s32.totalorder %s116, %s117
    %p129 = scmp.eq.s32.totalorder %s23, 1
    %p130 = por %p128, %p129
    %p132 = scmp.ne.s32.totalorder %s117, %s131
    %p133 = scmp.eq.s32.totalorder %s23, 0
    %p134 = por %p132, %p133
    %s136 = sadd.s32 %s135, 1
    %p139 = scmp.eq.s32.totalorder %s17, 1
    %p140 = scmp.ne.s32.totalorder %s135, %s137
    %p141 = scmp.eq.s32.totalorder %s17, 0
    %p142 = por %p140, %p141
    %p143 = scmp.ne.s32.totalorder %s135, %s137
    %p144 = scmp.eq.s32.totalorder %s22, 1
    %p145 = por %p143, %p144
    %p146 = scmp.ne.s32.totalorder %s137, %s138
    %p147 = scmp.eq.s32.totalorder %s22, 0
    %p148 = por %p146, %p147
    %p149 = scmp.ne.s32.totalorder %s137, %s138
    %p150 = scmp.eq.s32.totalorder %s23, 1
    %p151 = por %p149, %p150
    %p153 = scmp.ne.s32.totalorder %s138, %s152
    %p154 = scmp.eq.s32.totalorder %s23, 0
    %p155 = por %p153, %p154
    %s157 = sadd.s32 %s156, 1
    %p160 = scmp.eq.s32.totalorder %s17, 1
    %p161 = scmp.ne.s32.totalorder %s156, %s158
    %p162 = scmp.eq.s32.totalorder %s17, 0
    %p163 = por %p161, %p162
    %p164 = scmp.ne.s32.totalorder %s156, %s158
    %p165 = scmp.eq.s32.totalorder %s22, 1
    %p166 = por %p164, %p165
    %p167 = scmp.ne.s32.totalorder %s158, %s159
    %p168 = scmp.eq.s32.totalorder %s22, 0
    %p169 = por %p167, %p168
    %p170 = scmp.ne.s32.totalorder %s158, %s159
    %p171 = scmp.eq.s32.totalorder %s23, 1
    %p172 = por %p170, %p171
    %p174 = scmp.ne.s32.totalorder %s159, %s173
    %p175 = scmp.eq.s32.totalorder %s23, 0
    %p176 = por %p174, %p175
    %s178 = sadd.s32 %s177, 1
    %p181 = scmp.eq.s32.totalorder %s17, 1
    %p182 = scmp.ne.s32.totalorder %s177, %s179
    %p183 = scmp.eq.s32.totalorder %s17, 0
    %p184 = por %p182, %p183
    %p185 = scmp.ne.s32.totalorder %s177, %s179
    %p186 = scmp.eq.s32.totalorder %s22, 1
    %p187 = por %p185, %p186
    %p188 = scmp.ne.s32.totalorder %s179, %s180
    %p189 = scmp.eq.s32.totalorder %s22, 0
    %p190 = por %p188, %p189
    %p191 = scmp.ne.s32.totalorder %s179, %s180
    %p192 = scmp.eq.s32.totalorder %s23, 1
    %p193 = por %p191, %p192
    %p195 = scmp.ne.s32.totalorder %s180, %s194
    %p196 = scmp.eq.s32.totalorder %s23, 0
    %p197 = por %p195, %p196
    %s199 = sadd.s32 %s198, 1
    %p202 = scmp.eq.s32.totalorder %s17, 1
    %p203 = scmp.ne.s32.totalorder %s198, %s200
    %p204 = scmp.eq.s32.totalorder %s17, 0
    %p205 = por %p203, %p204
    %p206 = scmp.ne.s32.totalorder %s198, %s200
    %p207 = scmp.eq.s32.totalorder %s22, 1
    %p208 = por %p206, %p207
    %p209 = scmp.ne.s32.totalorder %s200, %s201
    %p210 = scmp.eq.s32.totalorder %s22, 0
    %p211 = por %p209, %p210
    %p212 = scmp.ne.s32.totalorder %s200, %s201
    %p213 = scmp.eq.s32.totalorder %s23, 1
    %p214 = por %p212, %p213
    %p216 = scmp.ne.s32.totalorder %s201, %s215
    %p217 = scmp.eq.s32.totalorder %s23, 0
    %p218 = por %p216, %p217
    %s220 = sadd.s32 %s219, 1
    %p223 = scmp.eq.s32.totalorder %s17, 1
    %p224 = scmp.ne.s32.totalorder %s219, %s221
    %p225 = scmp.eq.s32.totalorder %s17, 0
    %p226 = por %p224, %p225
    %p227 = scmp.ne.s32.totalorder %s219, %s221
    %p228 = scmp.eq.s32.totalorder %s22, 1
    %p229 = por %p227, %p228
    %p230 = scmp.ne.s32.totalorder %s221, %s222
    %p231 = scmp.eq.s32.totalorder %s22, 0
    %p232 = por %p230, %p231
    %p233 = scmp.ne.s32.totalorder %s221, %s222
    %p234 = scmp.eq.s32.totalorder %s23, 1
    %p235 = por %p233, %p234
    %p237 = scmp.ne.s32.totalorder %s222, %s236
    %p238 = scmp.eq.s32.totalorder %s23, 0
    %p239 = por %p237, %p238
    %s241 = sadd.s32 %s240, 1
    %p244 = scmp.eq.s32.totalorder %s17, 1
    %p245 = scmp.ne.s32.totalorder %s240, %s242
    %p246 = scmp.eq.s32.totalorder %s17, 0
    %p247 = por %p245, %p246
    %p248 = scmp.ne.s32.totalorder %s240, %s242
    %p249 = scmp.eq.s32.totalorder %s22, 1
    %p250 = por %p248, %p249
    %p251 = scmp.ne.s32.totalorder %s242, %s243
    %p252 = scmp.eq.s32.totalorder %s22, 0
    %p253 = por %p251, %p252
    %p254 = scmp.ne.s32.totalorder %s242, %s243
    %p255 = scmp.eq.s32.totalorder %s23, 1
    %p256 = por %p254, %p255
    %p258 = scmp.ne.s32.totalorder %s243, %s257
    %p259 = scmp.eq.s32.totalorder %s23, 0
    %p260 = por %p258, %p259
    %s261 = ssub.s32 %s17, %s24
    %p262 = scmp.eq.s32.totalorder %s261, 0
    %s264 = sadd.s32 %s263, 1
    %s265 = scalar_select %p262, %s263, %s264
    %p268 = pneg %p262
    %p269 = scmp.eq.s32.totalorder %s17, 1
    %p270 = por %p268, %p269
    %p271 = scmp.ne.s32.totalorder %s263, %s266
    %p272 = scmp.eq.s32.totalorder %s17, 0
    %p273 = por %p271, %p272
    %p274 = scmp.ne.s32.totalorder %s263, %s266
    %p275 = scmp.eq.s32.totalorder %s22, 1
    %p276 = por %p274, %p275
    %p277 = scmp.ne.s32.totalorder %s266, %s267
    %p278 = scmp.eq.s32.totalorder %s22, 0
    %p279 = por %p277, %p278
    %p280 = scmp.ne.s32.totalorder %s266, %s267
    %p281 = scmp.eq.s32.totalorder %s23, 1
    %p282 = por %p280, %p281
    %p284 = scmp.ne.s32.totalorder %s267, %s283
    %p285 = scmp.eq.s32.totalorder %s23, 0
    %p286 = por %p284, %p285
    %p287 = scmp.le.s32.totalorder 1, %s17
    %p288 = scmp.lt.s32.totalorder %s17, 3
    %p289 = pnand %p287, %p288
    %p290 = pneg %p289
    // Predicated region
    $region9: #{fcn_forward.1} parent=5 // pred_check
      _
    $region10: #{fcn_forward.1} parent=5 // pred_check_branch
      %292 = sbr.rel (%p289) target = $region12
    $region11: #{fcn_forward.1} parent=5 // pred_region
      %s293 = ssub.s32 %s17, 1
      // Predicated region
      $region13: #{fcn_forward.1} parent=11 // pred_check
        %p294 = pneg %p64
      $region14: #{fcn_forward.1} parent=11 // pred_check_branch
        %296 = sbr.rel (%p294) target = $region16
      $region15: #{fcn_forward.1} parent=11 // pred_region
        _
      $region16: #{fcn_forward.1} parent=11 // pred_fallthru
        _
      // Predicated region
      $region17: #{fcn_forward.1} parent=11 // pred_check
        %p297 = pneg %p85
      $region18: #{fcn_forward.1} parent=11 // pred_check_branch
        %299 = sbr.rel (%p297) target = $region20
      $region19: #{fcn_forward.1} parent=11 // pred_region
        _
      $region20: #{fcn_forward.1} parent=11 // pred_fallthru
        _
      // Predicated region
      $region21: #{fcn_forward.1} parent=11 // pred_check
        %p300 = pneg %p106
      $region22: #{fcn_forward.1} parent=11 // pred_check_branch
        %302 = sbr.rel (%p300) target = $region24
      $region23: #{fcn_forward.1} parent=11 // pred_region
        _
      $region24: #{fcn_forward.1} parent=11 // pred_fallthru
        _
      // Predicated region
      $region25: #{fcn_forward.1} parent=11 // pred_check
        %p303 = pneg %p127
      $region26: #{fcn_forward.1} parent=11 // pred_check_branch
        %305 = sbr.rel (%p303) target = $region28
      $region27: #{fcn_forward.1} parent=11 // pred_region
        _
      $region28: #{fcn_forward.1} parent=11 // pred_fallthru
        _
      // Predicated region
      $region29: #{fcn_forward.1} parent=11 // pred_check
        %p306 = pneg %p148
      $region30: #{fcn_forward.1} parent=11 // pred_check_branch
        %308 = sbr.rel (%p306) target = $region32
      $region31: #{fcn_forward.1} parent=11 // pred_region
        _
      $region32: #{fcn_forward.1} parent=11 // pred_fallthru
        _
      // Predicated region
      $region33: #{fcn_forward.1} parent=11 // pred_check
        %p309 = pneg %p169
      $region34: #{fcn_forward.1} parent=11 // pred_check_branch
        %311 = sbr.rel (%p309) target = $region36
      $region35: #{fcn_forward.1} parent=11 // pred_region
        _
      $region36: #{fcn_forward.1} parent=11 // pred_fallthru
        _
      // Predicated region
      $region37: #{fcn_forward.1} parent=11 // pred_check
        %p312 = pneg %p190
      $region38: #{fcn_forward.1} parent=11 // pred_check_branch
        %314 = sbr.rel (%p312) target = $region40
      $region39: #{fcn_forward.1} parent=11 // pred_region
        _
      $region40: #{fcn_forward.1} parent=11 // pred_fallthru
        _
      // Predicated region
      $region41: #{fcn_forward.1} parent=11 // pred_check
        %p315 = pneg %p211
      $region42: #{fcn_forward.1} parent=11 // pred_check_branch
        %317 = sbr.rel (%p315) target = $region44
      $region43: #{fcn_forward.1} parent=11 // pred_region
        _
      $region44: #{fcn_forward.1} parent=11 // pred_fallthru
        _
      // Predicated region
      $region45: #{fcn_forward.1} parent=11 // pred_check
        %p318 = pneg %p232
      $region46: #{fcn_forward.1} parent=11 // pred_check_branch
        %320 = sbr.rel (%p318) target = $region48
      $region47: #{fcn_forward.1} parent=11 // pred_region
        _
      $region48: #{fcn_forward.1} parent=11 // pred_fallthru
        _
      // Predicated region
      $region49: #{fcn_forward.1} parent=11 // pred_check
        %p321 = pneg %p253
      $region50: #{fcn_forward.1} parent=11 // pred_check_branch
        %323 = sbr.rel (%p321) target = $region52
      $region51: #{fcn_forward.1} parent=11 // pred_region
        _
      $region52: #{fcn_forward.1} parent=11 // pred_fallthru
        _
    $region12: #{fcn_forward.1} parent=5 // pred_fallthru
      _
    %p324 = scmp.lt.s32.totalorder %s17, 2
    // Predicated region
    $region53: #{fcn_forward.1} parent=5 // pred_check
      %p325 = pneg %p324
    $region54: #{fcn_forward.1} parent=5 // pred_check_branch
      %327 = sbr.rel (%p325) target = $region56
    $region55: #{fcn_forward.1} parent=5 // pred_region
      // Predicated region
      $region57: #{fcn_forward.1} parent=55 // pred_check
        %p328 = pneg %p37
      $region58: #{fcn_forward.1} parent=55 // pred_check_branch
        %330 = sbr.rel (%p328) target = $region60
      $region59: #{fcn_forward.1} parent=55 // pred_region
        %p331 = scmp.lt.s32.totalorder %s17, 1
        %s332 = scalar_select %p331, %s17, 1
        %s333 = smul.addr %s332, 32
        %s334 = smul.addr %s333, 8
        %s335 = scalar_lea.vmem %s0, %s334
      $region60: #{fcn_forward.1} parent=55 // pred_fallthru
        _
    $region56: #{fcn_forward.1} parent=5 // pred_fallthru
      _
    %p336 = scmp.le.s32.totalorder 1, %s17
    %p337 = scmp.lt.s32.totalorder %s17, 3
    %p338 = pnand %p336, %p337
    %p339 = pneg %p338
    // Predicated region
    $region61: #{fcn_forward.1} parent=5 // pred_check
      _
    $region62: #{fcn_forward.1} parent=5 // pred_check_branch
      %341 = sbr.rel (%p338) target = $region64
    $region63: #{fcn_forward.1} parent=5 // pred_region
      %s342 = ssub.s32 %s17, 1
      %p343 = scmp.lt.s32.totalorder %s22, 1
      %s344 = scalar_select %p343, %s22, 1
      %s345 = smul.addr %s344, 32
      %s346 = smul.addr %s345, 8
      %s347 = scalar_lea.vmem %s0, %s346
      %p348 = pneg %p43
      %p349 = pneg %p40
      %p350 = pneg %p64
      %p351 = pneg %p61
      %p352 = pneg %p85
      %p353 = pneg %p82
      %p354 = pneg %p106
      %p355 = pneg %p103
      %p356 = pneg %p127
      %p357 = pneg %p124
      %p358 = pneg %p148
      %p359 = pneg %p145
      %p360 = pneg %p169
      %p361 = pneg %p166
      %p362 = pneg %p190
      %p363 = pneg %p187
      %p364 = pneg %p211
      %p365 = pneg %p208
      %p366 = pneg %p232
      %p367 = pneg %p229
      %p368 = pneg %p253
      %p369 = pneg %p250
      %p370 = pneg %p279
      %p371 = pneg %p276
      %p372 = scmp.lt.s32.totalorder %s22, 1
      %s373 = scalar_select %p372, %s22, 1
      %s374 = smul.addr %s373, 32
      %s375 = smul.addr %s374, 8
      %s376 = scalar_lea.vmem %s11, %s375
      %p377 = scmp.lt.s32.totalorder %s22, 1
      %s378 = scalar_select %p377, %s22, 1
      %s379 = smul.addr %s378, 32
      %s380 = smul.addr %s379, 8
      %s381 = scalar_lea.vmem %s0, %s380
      %p382 = scmp.lt.s32.totalorder %s22, 1
      %s383 = scalar_select %p382, %s22, 1
      %s384 = smul.addr %s383, 32
      %s385 = smul.addr %s384, 8
      %s386 = scalar_lea.vmem %s11, %s385
      %vm388 = vcmask 23552
      %389 = vst.msk [vmem:[#allocation2] sm:$0xff] %vm388, 0.0
      %390 = vst.msk [vmem:[#allocation2 + $0x8] sm:$0xff] %vm388, 0.0
      %391 = vst.msk [vmem:[#allocation2 + $0x10] sm:$0xff] %vm388, 0.0
      %vm392 = vcmask 16384
      %393 = vst.msk [vmem:[#allocation2 + $0x18] sm:$0x1] %vm392, 0.0
      %394 = vst.msk [vmem:[#allocation2 + $0x20] sm:$0xff] %vm388, 0.0
      %395 = vst.msk [vmem:[#allocation2 + $0x28] sm:$0xff] %vm388, 0.0
      %396 = vst.msk [vmem:[#allocation2 + $0x30] sm:$0xff] %vm388, 0.0
      %397 = vst.msk [vmem:[#allocation2 + $0x38] sm:$0x1] %vm392, 0.0
      %398 = vst.msk [vmem:[#allocation2 + $0x40] sm:$0xff] %vm388, 0.0
      %399 = vst.msk [vmem:[#allocation2 + $0x48] sm:$0xff] %vm388, 0.0
      %400 = vst.msk [vmem:[#allocation2 + $0x50] sm:$0xff] %vm388, 0.0
      %401 = vst.msk [vmem:[#allocation2 + $0x58] sm:$0x1] %vm392, 0.0
      %402 = vst.msk [vmem:[#allocation2 + $0x60] sm:$0xff] %vm388, 0.0
      %403 = vst.msk [vmem:[#allocation2 + $0x68] sm:$0xff] %vm388, 0.0
      %404 = vst.msk [vmem:[#allocation2 + $0x70] sm:$0xff] %vm388, 0.0
      %405 = vst.msk [vmem:[#allocation2 + $0x78] sm:$0x1] %vm392, 0.0
      %406 = vst.msk [vmem:[#allocation2 + $0x80] sm:$0xff] %vm388, 0.0
      %407 = vst.msk [vmem:[#allocation2 + $0x88] sm:$0xff] %vm388, 0.0
      %408 = vst.msk [vmem:[#allocation2 + $0x90] sm:$0xff] %vm388, 0.0
      %409 = vst.msk [vmem:[#allocation2 + $0x98] sm:$0x1] %vm392, 0.0
      %410 = vst.msk [vmem:[#allocation2 + $0xa0] sm:$0xff] %vm388, 0.0
      %411 = vst.msk [vmem:[#allocation2 + $0xa8] sm:$0xff] %vm388, 0.0
      %412 = vst.msk [vmem:[#allocation2 + $0xb0] sm:$0xff] %vm388, 0.0
      %413 = vst.msk [vmem:[#allocation2 + $0xb8] sm:$0x1] %vm392, 0.0
      %414 = vst.msk [vmem:[#allocation2 + $0xc0] sm:$0xff] %vm388, 0.0
      %415 = vst.msk [vmem:[#allocation2 + $0xc8] sm:$0xff] %vm388, 0.0
      %416 = vst.msk [vmem:[#allocation2 + $0xd0] sm:$0xff] %vm388, 0.0
      %417 = vst.msk [vmem:[#allocation2 + $0xd8] sm:$0x1] %vm392, 0.0
      %418 = vst.msk [vmem:[#allocation2 + $0xe0] sm:$0xff] %vm388, 0.0
      %419 = vst.msk [vmem:[#allocation2 + $0xe8] sm:$0xff] %vm388, 0.0
      %420 = vst.msk [vmem:[#allocation2 + $0xf0] sm:$0xff] %vm388, 0.0
      %421 = vst.msk [vmem:[#allocation2 + $0xf8] sm:$0x1] %vm392, 0.0
      %422 = vst.msk [vmem:[#allocation2 + $0x100] sm:$0xff] %vm388, 0.0
      %423 = vst.msk [vmem:[#allocation2 + $0x108] sm:$0xff] %vm388, 0.0
      %424 = vst.msk [vmem:[#allocation2 + $0x110] sm:$0xff] %vm388, 0.0
      %425 = vst.msk [vmem:[#allocation2 + $0x118] sm:$0x1] %vm392, 0.0
      %426 = vst.msk [vmem:[#allocation2 + $0x120] sm:$0xff] %vm388, 0.0
      %427 = vst.msk [vmem:[#allocation2 + $0x128] sm:$0xff] %vm388, 0.0
      %428 = vst.msk [vmem:[#allocation2 + $0x130] sm:$0xff] %vm388, 0.0
      %429 = vst.msk [vmem:[#allocation2 + $0x138] sm:$0x1] %vm392, 0.0
      %430 = vst.msk [vmem:[#allocation2 + $0x140] sm:$0xff] %vm388, 0.0
      %431 = vst.msk [vmem:[#allocation2 + $0x148] sm:$0xff] %vm388, 0.0
      %432 = vst.msk [vmem:[#allocation2 + $0x150] sm:$0xff] %vm388, 0.0
      %433 = vst.msk [vmem:[#allocation2 + $0x158] sm:$0x1] %vm392, 0.0
      %434 = vst.msk [vmem:[#allocation2 + $0x160] sm:$0xff] %vm388, 0.0
      %435 = vst.msk [vmem:[#allocation2 + $0x168] sm:$0xff] %vm388, 0.0
      %436 = vst.msk [vmem:[#allocation2 + $0x170] sm:$0xff] %vm388, 0.0
      %437 = vst.msk [vmem:[#allocation2 + $0x178] sm:$0x1] %vm392, 0.0
      %438 = vst.msk [vmem:[#allocation2 + $0x180] sm:$0xff] %vm388, 0.0
      %439 = vst.msk [vmem:[#allocation2 + $0x188] sm:$0xff] %vm388, 0.0
      %440 = vst.msk [vmem:[#allocation2 + $0x190] sm:$0xff] %vm388, 0.0
      %441 = vst.msk [vmem:[#allocation2 + $0x198] sm:$0x1] %vm392, 0.0
      %442 = vst.msk [vmem:[#allocation2 + $0x1a0] sm:$0xff] %vm388, 0.0
      %443 = vst.msk [vmem:[#allocation2 + $0x1a8] sm:$0xff] %vm388, 0.0
      %444 = vst.msk [vmem:[#allocation2 + $0x1b0] sm:$0xff] %vm388, 0.0
      %445 = vst.msk [vmem:[#allocation2 + $0x1b8] sm:$0x1] %vm392, 0.0
      %446 = vst.msk [vmem:[#allocation2 + $0x1c0] sm:$0xff] %vm388, 0.0
      %447 = vst.msk [vmem:[#allocation2 + $0x1c8] sm:$0xff] %vm388, 0.0
      %448 = vst.msk [vmem:[#allocation2 + $0x1d0] sm:$0xff] %vm388, 0.0
      %449 = vst.msk [vmem:[#allocation2 + $0x1d8] sm:$0x1] %vm392, 0.0
      %450 = vst.msk [vmem:[#allocation2 + $0x1e0] sm:$0xff] %vm388, 0.0
      %451 = vst.msk [vmem:[#allocation2 + $0x1e8] sm:$0xff] %vm388, 0.0
      %452 = vst.msk [vmem:[#allocation2 + $0x1f0] sm:$0xff] %vm388, 0.0
      %453 = vst.msk [vmem:[#allocation2 + $0x1f8] sm:$0x1] %vm392, 0.0
      %454 = vst.msk [vmem:[#allocation2 + $0x200] sm:$0xff] %vm388, 0.0
      %455 = vst.msk [vmem:[#allocation2 + $0x208] sm:$0xff] %vm388, 0.0
      %456 = vst.msk [vmem:[#allocation2 + $0x210] sm:$0xff] %vm388, 0.0
      %457 = vst.msk [vmem:[#allocation2 + $0x218] sm:$0x1] %vm392, 0.0
      %458 = vst.msk [vmem:[#allocation2 + $0x220] sm:$0xff] %vm388, 0.0
      %459 = vst.msk [vmem:[#allocation2 + $0x228] sm:$0xff] %vm388, 0.0
      %460 = vst.msk [vmem:[#allocation2 + $0x230] sm:$0xff] %vm388, 0.0
      %461 = vst.msk [vmem:[#allocation2 + $0x238] sm:$0x1] %vm392, 0.0
      %462 = vst.msk [vmem:[#allocation2 + $0x240] sm:$0xff] %vm388, 0.0
      %463 = vst.msk [vmem:[#allocation2 + $0x248] sm:$0xff] %vm388, 0.0
      %464 = vst.msk [vmem:[#allocation2 + $0x250] sm:$0xff] %vm388, 0.0
      %465 = vst.msk [vmem:[#allocation2 + $0x258] sm:$0x1] %vm392, 0.0
      %466 = vst.msk [vmem:[#allocation2 + $0x260] sm:$0xff] %vm388, 0.0
      %467 = vst.msk [vmem:[#allocation2 + $0x268] sm:$0xff] %vm388, 0.0
      %468 = vst.msk [vmem:[#allocation2 + $0x270] sm:$0xff] %vm388, 0.0
      %469 = vst.msk [vmem:[#allocation2 + $0x278] sm:$0x1] %vm392, 0.0
      %470 = vst.msk [vmem:[#allocation2 + $0x280] sm:$0xff] %vm388, 0.0
      %471 = vst.msk [vmem:[#allocation2 + $0x288] sm:$0xff] %vm388, 0.0
      %472 = vst.msk [vmem:[#allocation2 + $0x290] sm:$0xff] %vm388, 0.0
      %473 = vst.msk [vmem:[#allocation2 + $0x298] sm:$0x1] %vm392, 0.0
      %474 = vst.msk [vmem:[#allocation2 + $0x2a0] sm:$0xff] %vm388, 0.0
      %475 = vst.msk [vmem:[#allocation2 + $0x2a8] sm:$0xff] %vm388, 0.0
      %476 = vst.msk [vmem:[#allocation2 + $0x2b0] sm:$0xff] %vm388, 0.0
      %477 = vst.msk [vmem:[#allocation2 + $0x2b8] sm:$0x1] %vm392, 0.0
      %478 = vst.msk [vmem:[#allocation2 + $0x2c0] sm:$0xff] %vm388, 0.0
      %479 = vst.msk [vmem:[#allocation2 + $0x2c8] sm:$0xff] %vm388, 0.0
      %480 = vst.msk [vmem:[#allocation2 + $0x2d0] sm:$0xff] %vm388, 0.0
      %481 = vst.msk [vmem:[#allocation2 + $0x2d8] sm:$0x1] %vm392, 0.0
      %482 = vst.msk [vmem:[#allocation2 + $0x2e0] sm:$0xff] %vm388, 0.0
      %483 = vst.msk [vmem:[#allocation2 + $0x2e8] sm:$0xff] %vm388, 0.0
      %484 = vst.msk [vmem:[#allocation2 + $0x2f0] sm:$0xff] %vm388, 0.0
      %485 = vst.msk [vmem:[#allocation2 + $0x2f8] sm:$0x1] %vm392, 0.0
      %486 = vst.msk [vmem:[#allocation2 + $0x300] sm:$0xff] %vm388, 0.0
      %487 = vst.msk [vmem:[#allocation2 + $0x308] sm:$0xff] %vm388, 0.0
      %488 = vst.msk [vmem:[#allocation2 + $0x310] sm:$0xff] %vm388, 0.0
      %489 = vst.msk [vmem:[#allocation2 + $0x318] sm:$0x1] %vm392, 0.0
      %v490 = vld [vmem:[%s381] sm:$0xff]
      %v491 = vld [vmem:[%s381 + $0x8] sm:$0xff]
      %v492 = vld [vmem:[%s381 + $0x10] sm:$0xff]
      %v493 = vld [vmem:[%s381 + $0x18] sm:$0xff]
      %v494 = vld [vmem:[%s381 + $0x20] sm:$0xff]
      %v495 = vld [vmem:[%s381 + $0x28] sm:$0xff]
      %v496 = vld [vmem:[%s381 + $0x30] sm:$0xff]
      %v497 = vld [vmem:[%s381 + $0x38] sm:$0xff]
      %v498 = vld [vmem:[%s381 + $0x40] sm:$0xff]
      %v499 = vld [vmem:[%s381 + $0x48] sm:$0xff]
      %v500 = vld [vmem:[%s381 + $0x50] sm:$0xff]
      %v501 = vld [vmem:[%s381 + $0x58] sm:$0xff]
      %v502 = vld [vmem:[%s381 + $0x60] sm:$0xff]
      %v503 = vld [vmem:[%s381 + $0x68] sm:$0xff]
      %v504 = vld [vmem:[%s381 + $0x70] sm:$0xff]
      %v505 = vld [vmem:[%s381 + $0x78] sm:$0xff]
      %v506 = vld [vmem:[%s381 + $0x80] sm:$0xff]
      %v507 = vld [vmem:[%s381 + $0x88] sm:$0xff]
      %v508 = vld [vmem:[%s381 + $0x90] sm:$0xff]
      %v509 = vld [vmem:[%s381 + $0x98] sm:$0xff]
      %v510 = vld [vmem:[%s381 + $0xa0] sm:$0xff]
      %v511 = vld [vmem:[%s381 + $0xa8] sm:$0xff]
      %v512 = vld [vmem:[%s381 + $0xb0] sm:$0xff]
      %v513 = vld [vmem:[%s381 + $0xb8] sm:$0xff]
      %v514 = vld [vmem:[%s381 + $0xc0] sm:$0xff]
      %v515 = vld [vmem:[%s381 + $0xc8] sm:$0xff]
      %v516 = vld [vmem:[%s381 + $0xd0] sm:$0xff]
      %v517 = vld [vmem:[%s381 + $0xd8] sm:$0xff]
      %v518 = vld [vmem:[%s381 + $0xe0] sm:$0xff]
      %v519 = vld [vmem:[%s381 + $0xe8] sm:$0xff]
      %v520 = vld [vmem:[%s381 + $0xf0] sm:$0xff]
      %v521 = vld [vmem:[%s381 + $0xf8] sm:$0xff]
      %s522 = scalar_lea.vmem [#allocation2], 256
      %523 = vst.msk [vmem:[%s522 + $0x8] sm:$0xff] %vm388, %v490
      %524 = vst.msk [vmem:[%s522 + $0x10] sm:$0xff] %vm388, %v491
      %525 = vst.msk [vmem:[%s522 + $0x28] sm:$0xff] %vm388, %v492
      %526 = vst.msk [vmem:[%s522 + $0x30] sm:$0xff] %vm388, %v493
      %527 = vst.msk [vmem:[%s522 + $0x48] sm:$0xff] %vm388, %v494
      %528 = vst.msk [vmem:[%s522 + $0x50] sm:$0xff] %vm388, %v495
      %529 = vst.msk [vmem:[%s522 + $0x68] sm:$0xff] %vm388, %v496
      %530 = vst.msk [vmem:[%s522 + $0x70] sm:$0xff] %vm388, %v497
      %531 = vst.msk [vmem:[%s522 + $0x88] sm:$0xff] %vm388, %v498
      %532 = vst.msk [vmem:[%s522 + $0x90] sm:$0xff] %vm388, %v499
      %533 = vst.msk [vmem:[%s522 + $0xa8] sm:$0xff] %vm388, %v500
      %534 = vst.msk [vmem:[%s522 + $0xb0] sm:$0xff] %vm388, %v501
      %535 = vst.msk [vmem:[%s522 + $0xc8] sm:$0xff] %vm388, %v502
      %536 = vst.msk [vmem:[%s522 + $0xd0] sm:$0xff] %vm388, %v503
      %537 = vst.msk [vmem:[%s522 + $0xe8] sm:$0xff] %vm388, %v504
      %538 = vst.msk [vmem:[%s522 + $0xf0] sm:$0xff] %vm388, %v505
      %539 = vst.msk [vmem:[%s522 + $0x108] sm:$0xff] %vm388, %v506
      %540 = vst.msk [vmem:[%s522 + $0x110] sm:$0xff] %vm388, %v507
      %541 = vst.msk [vmem:[%s522 + $0x128] sm:$0xff] %vm388, %v508
      %542 = vst.msk [vmem:[%s522 + $0x130] sm:$0xff] %vm388, %v509
      %543 = vst.msk [vmem:[%s522 + $0x148] sm:$0xff] %vm388, %v510
      %544 = vst.msk [vmem:[%s522 + $0x150] sm:$0xff] %vm388, %v511
      %545 = vst.msk [vmem:[%s522 + $0x168] sm:$0xff] %vm388, %v512
      %546 = vst.msk [vmem:[%s522 + $0x170] sm:$0xff] %vm388, %v513
      %547 = vst.msk [vmem:[%s522 + $0x188] sm:$0xff] %vm388, %v514
      %548 = vst.msk [vmem:[%s522 + $0x190] sm:$0xff] %vm388, %v515
      %549 = vst.msk [vmem:[%s522 + $0x1a8] sm:$0xff] %vm388, %v516
      %550 = vst.msk [vmem:[%s522 + $0x1b0] sm:$0xff] %vm388, %v517
      %551 = vst.msk [vmem:[%s522 + $0x1c8] sm:$0xff] %vm388, %v518
      %552 = vst.msk [vmem:[%s522 + $0x1d0] sm:$0xff] %vm388, %v519
      %553 = vst.msk [vmem:[%s522 + $0x1e8] sm:$0xff] %vm388, %v520
      %554 = vst.msk [vmem:[%s522 + $0x1f0] sm:$0xff] %vm388, %v521
      %s555 = scalar_lea.vmem [#allocation2], 224
      %v556 = vld [vmem:[%s555 + $0x7] sm:$0xff]
      %v557 = vld [vmem:[%s555 + $0xf] sm:$0xff]
      %v558 = vld [vmem:[%s555 + $0x27] sm:$0xff]
      %v559 = vld [vmem:[%s555 + $0x2f] sm:$0xff]
      %v560 = vld [vmem:[%s555 + $0x47] sm:$0xff]
      %v561 = vld [vmem:[%s555 + $0x4f] sm:$0xff]
      %v562 = vld [vmem:[%s555 + $0x67] sm:$0xff]
      %v563 = vld [vmem:[%s555 + $0x6f] sm:$0xff]
      %v564 = vld [vmem:[%s555 + $0x87] sm:$0xff]
      %v565 = vld [vmem:[%s555 + $0x8f] sm:$0xff]
      %v566 = vld [vmem:[%s555 + $0xa7] sm:$0xff]
      %v567 = vld [vmem:[%s555 + $0xaf] sm:$0xff]
      %v568 = vld [vmem:[%s555 + $0xc7] sm:$0xff]
      %v569 = vld [vmem:[%s555 + $0xcf] sm:$0xff]
      %v570 = vld [vmem:[%s555 + $0xe7] sm:$0xff]
      %v571 = vld [vmem:[%s555 + $0xef] sm:$0xff]
      %v572 = vld [vmem:[%s555 + $0x107] sm:$0xff]
      %v573 = vld [vmem:[%s555 + $0x10f] sm:$0xff]
      %v574 = vld [vmem:[%s555 + $0x127] sm:$0xff]
      %v575 = vld [vmem:[%s555 + $0x12f] sm:$0xff]
      %v576 = vld [vmem:[%s555 + $0x147] sm:$0xff]
      %v577 = vld [vmem:[%s555 + $0x14f] sm:$0xff]
      %v578 = vld [vmem:[%s555 + $0x167] sm:$0xff]
      %v579 = vld [vmem:[%s555 + $0x16f] sm:$0xff]
      %v580 = vld [vmem:[%s555 + $0x187] sm:$0xff]
      %v581 = vld [vmem:[%s555 + $0x18f] sm:$0xff]
      %v582 = vld [vmem:[%s555 + $0x1a7] sm:$0xff]
      %v583 = vld [vmem:[%s555 + $0x1af] sm:$0xff]
      %v584 = vld [vmem:[%s555 + $0x1c7] sm:$0xff]
      %v585 = vld [vmem:[%s555 + $0x1cf] sm:$0xff]
      %v586 = vld [vmem:[%s555 + $0x1e7] sm:$0xff]
      %v587 = vld [vmem:[%s555 + $0x1ef] sm:$0xff]
      %v588 = vpack.c.bf16 %v557, %v556
      %v589 = vpack.c.bf16 %v559, %v558
      %v590 = vpack.c.bf16 %v561, %v560
      %v591 = vpack.c.bf16 %v563, %v562
      %v592 = vpack.c.bf16 %v565, %v564
      %v593 = vpack.c.bf16 %v567, %v566
      %v594 = vpack.c.bf16 %v569, %v568
      %v595 = vpack.c.bf16 %v571, %v570
      %v596 = vpack.c.bf16 %v573, %v572
      %v597 = vpack.c.bf16 %v575, %v574
      %v598 = vpack.c.bf16 %v577, %v576
      %v599 = vpack.c.bf16 %v579, %v578
      %v600 = vpack.c.bf16 %v581, %v580
      %v601 = vpack.c.bf16 %v583, %v582
      %v602 = vpack.c.bf16 %v585, %v584
      %v603 = vpack.c.bf16 %v587, %v586
      %604 = vst.msk [vmem:[#allocation6] sm:$0xff] %vm388, %v588
      %605 = vst.msk [vmem:[#allocation6 + $0x8] sm:$0xff] %vm388, %v589
      %606 = vst.msk [vmem:[#allocation6 + $0x10] sm:$0xff] %vm388, %v590
      %607 = vst.msk [vmem:[#allocation6 + $0x18] sm:$0xff] %vm388, %v591
      %608 = vst.msk [vmem:[#allocation6 + $0x20] sm:$0xff] %vm388, %v592
      %609 = vst.msk [vmem:[#allocation6 + $0x28] sm:$0xff] %vm388, %v593
      %610 = vst.msk [vmem:[#allocation6 + $0x30] sm:$0xff] %vm388, %v594
      %611 = vst.msk [vmem:[#allocation6 + $0x38] sm:$0xff] %vm388, %v595
      %612 = vst.msk [vmem:[#allocation6 + $0x40] sm:$0xff] %vm388, %v596
      %613 = vst.msk [vmem:[#allocation6 + $0x48] sm:$0xff] %vm388, %v597
      %614 = vst.msk [vmem:[#allocation6 + $0x50] sm:$0xff] %vm388, %v598
      %615 = vst.msk [vmem:[#allocation6 + $0x58] sm:$0xff] %vm388, %v599
      %616 = vst.msk [vmem:[#allocation6 + $0x60] sm:$0xff] %vm388, %v600
      %617 = vst.msk [vmem:[#allocation6 + $0x68] sm:$0xff] %vm388, %v601
      %618 = vst.msk [vmem:[#allocation6 + $0x70] sm:$0xff] %vm388, %v602
      %619 = vst.msk [vmem:[#allocation6 + $0x78] sm:$0xff] %vm388, %v603
      %v620 = vld [vmem:[%s555 + $0x8] sm:$0xff]
      %v621 = vld [vmem:[%s555 + $0x10] sm:$0xff]
      %v622 = vld [vmem:[%s555 + $0x28] sm:$0xff]
      %v623 = vld [vmem:[%s555 + $0x30] sm:$0xff]
      %v624 = vld [vmem:[%s555 + $0x48] sm:$0xff]
      %v625 = vld [vmem:[%s555 + $0x50] sm:$0xff]
      %v626 = vld [vmem:[%s555 + $0x68] sm:$0xff]
      %v627 = vld [vmem:[%s555 + $0x70] sm:$0xff]
      %v628 = vld [vmem:[%s555 + $0x88] sm:$0xff]
      %v629 = vld [vmem:[%s555 + $0x90] sm:$0xff]
      %v630 = vld [vmem:[%s555 + $0xa8] sm:$0xff]
      %v631 = vld [vmem:[%s555 + $0xb0] sm:$0xff]
      %v632 = vld [vmem:[%s555 + $0xc8] sm:$0xff]
      %v633 = vld [vmem:[%s555 + $0xd0] sm:$0xff]
      %v634 = vld [vmem:[%s555 + $0xe8] sm:$0xff]
      %v635 = vld [vmem:[%s555 + $0xf0] sm:$0xff]
      %v636 = vld [vmem:[%s555 + $0x108] sm:$0xff]
      %v637 = vld [vmem:[%s555 + $0x110] sm:$0xff]
      %v638 = vld [vmem:[%s555 + $0x128] sm:$0xff]
      %v639 = vld [vmem:[%s555 + $0x130] sm:$0xff]
      %v640 = vld [vmem:[%s555 + $0x148] sm:$0xff]
      %v641 = vld [vmem:[%s555 + $0x150] sm:$0xff]
      %v642 = vld [vmem:[%s555 + $0x168] sm:$0xff]
      %v643 = vld [vmem:[%s555 + $0x170] sm:$0xff]
      %v644 = vld [vmem:[%s555 + $0x188] sm:$0xff]
      %v645 = vld [vmem:[%s555 + $0x190] sm:$0xff]
      %v646 = vld [vmem:[%s555 + $0x1a8] sm:$0xff]
      %v647 = vld [vmem:[%s555 + $0x1b0] sm:$0xff]
      %v648 = vld [vmem:[%s555 + $0x1c8] sm:$0xff]
      %v649 = vld [vmem:[%s555 + $0x1d0] sm:$0xff]
      %v650 = vld [vmem:[%s555 + $0x1e8] sm:$0xff]
      %v651 = vld [vmem:[%s555 + $0x1f0] sm:$0xff]
      %v652 = vpack.c.bf16 %v621, %v620
      %v653 = vpack.c.bf16 %v623, %v622
      %v654 = vpack.c.bf16 %v625, %v624
      %v655 = vpack.c.bf16 %v627, %v626
      %v656 = vpack.c.bf16 %v629, %v628
      %v657 = vpack.c.bf16 %v631, %v630
      %v658 = vpack.c.bf16 %v633, %v632
      %v659 = vpack.c.bf16 %v635, %v634
      %v660 = vpack.c.bf16 %v637, %v636
      %v661 = vpack.c.bf16 %v639, %v638
      %v662 = vpack.c.bf16 %v641, %v640
      %v663 = vpack.c.bf16 %v643, %v642
      %v664 = vpack.c.bf16 %v645, %v644
      %v665 = vpack.c.bf16 %v647, %v646
      %v666 = vpack.c.bf16 %v649, %v648
      %v667 = vpack.c.bf16 %v651, %v650
      %684 = vrot.lane.b32.xlu0 %v652, 3
      %v685 = vpop.permute.xlu0 %684
      %686 = vrot.lane.b32.xlu0 %v653, 3
      %v687 = vpop.permute.xlu0 %686
      %688 = vrot.lane.b32.xlu0 %v654, 3
      %v689 = vpop.permute.xlu0 %688
      %690 = vrot.lane.b32.xlu0 %v655, 3
      %v691 = vpop.permute.xlu0 %690
      %692 = vrot.lane.b32.xlu0 %v656, 3
      %v693 = vpop.permute.xlu0 %692
      %694 = vrot.lane.b32.xlu0 %v657, 3
      %v695 = vpop.permute.xlu0 %694
      %696 = vrot.lane.b32.xlu0 %v658, 3
      %v697 = vpop.permute.xlu0 %696
      %698 = vrot.lane.b32.xlu0 %v659, 3
      %v699 = vpop.permute.xlu0 %698
      %700 = vrot.lane.b32.xlu0 %v660, 3
      %v701 = vpop.permute.xlu0 %700
      %702 = vrot.lane.b32.xlu0 %v661, 3
      %v703 = vpop.permute.xlu0 %702
      %704 = vrot.lane.b32.xlu0 %v662, 3
      %v705 = vpop.permute.xlu0 %704
      %706 = vrot.lane.b32.xlu0 %v663, 3
      %v707 = vpop.permute.xlu0 %706
      %708 = vrot.lane.b32.xlu0 %v664, 3
      %v709 = vpop.permute.xlu0 %708
      %710 = vrot.lane.b32.xlu0 %v665, 3
      %v711 = vpop.permute.xlu0 %710
      %712 = vrot.lane.b32.xlu0 %v666, 3
      %v713 = vpop.permute.xlu0 %712
      %714 = vrot.lane.b32.xlu0 %v667, 3
      %v715 = vpop.permute.xlu0 %714
      %vm732 = vcmask 48152
      %733 = vst.msk [vmem:[#allocation6] sm:$0xff] %vm732, %v685
      %734 = vst.msk [vmem:[#allocation6 + $0x8] sm:$0xff] %vm732, %v687
      %735 = vst.msk [vmem:[#allocation6 + $0x10] sm:$0xff] %vm732, %v689
      %736 = vst.msk [vmem:[#allocation6 + $0x18] sm:$0xff] %vm732, %v691
      %737 = vst.msk [vmem:[#allocation6 + $0x20] sm:$0xff] %vm732, %v693
      %738 = vst.msk [vmem:[#allocation6 + $0x28] sm:$0xff] %vm732, %v695
      %739 = vst.msk [vmem:[#allocation6 + $0x30] sm:$0xff] %vm732, %v697
      %740 = vst.msk [vmem:[#allocation6 + $0x38] sm:$0xff] %vm732, %v699
      %741 = vst.msk [vmem:[#allocation6 + $0x40] sm:$0xff] %vm732, %v701
      %742 = vst.msk [vmem:[#allocation6 + $0x48] sm:$0xff] %vm732, %v703
      %743 = vst.msk [vmem:[#allocation6 + $0x50] sm:$0xff] %vm732, %v705
      %744 = vst.msk [vmem:[#allocation6 + $0x58] sm:$0xff] %vm732, %v707
      %745 = vst.msk [vmem:[#allocation6 + $0x60] sm:$0xff] %vm732, %v709
      %746 = vst.msk [vmem:[#allocation6 + $0x68] sm:$0xff] %vm732, %v711
      %747 = vst.msk [vmem:[#allocation6 + $0x70] sm:$0xff] %vm732, %v713
      %748 = vst.msk [vmem:[#allocation6 + $0x78] sm:$0xff] %vm732, %v715
      %v749 = vld [vmem:[%s555 + $0x9] sm:$0xff]
      %v750 = vld [vmem:[%s555 + $0x11] sm:$0xff]
      %v751 = vld [vmem:[%s555 + $0x29] sm:$0xff]
      %v752 = vld [vmem:[%s555 + $0x31] sm:$0xff]
      %v753 = vld [vmem:[%s555 + $0x49] sm:$0xff]
      %v754 = vld [vmem:[%s555 + $0x51] sm:$0xff]
      %v755 = vld [vmem:[%s555 + $0x69] sm:$0xff]
      %v756 = vld [vmem:[%s555 + $0x71] sm:$0xff]
      %v757 = vld [vmem:[%s555 + $0x89] sm:$0xff]
      %v758 = vld [vmem:[%s555 + $0x91] sm:$0xff]
      %v759 = vld [vmem:[%s555 + $0xa9] sm:$0xff]
      %v760 = vld [vmem:[%s555 + $0xb1] sm:$0xff]
      %v761 = vld [vmem:[%s555 + $0xc9] sm:$0xff]
      %v762 = vld [vmem:[%s555 + $0xd1] sm:$0xff]
      %v763 = vld [vmem:[%s555 + $0xe9] sm:$0xff]
      %v764 = vld [vmem:[%s555 + $0xf1] sm:$0xff]
      %v765 = vld [vmem:[%s555 + $0x109] sm:$0xff]
      %v766 = vld [vmem:[%s555 + $0x111] sm:$0xff]
      %v767 = vld [vmem:[%s555 + $0x129] sm:$0xff]
      %v768 = vld [vmem:[%s555 + $0x131] sm:$0xff]
      %v769 = vld [vmem:[%s555 + $0x149] sm:$0xff]
      %v770 = vld [vmem:[%s555 + $0x151] sm:$0xff]
      %v771 = vld [vmem:[%s555 + $0x169] sm:$0xff]
      %v772 = vld [vmem:[%s555 + $0x171] sm:$0xff]
      %v773 = vld [vmem:[%s555 + $0x189] sm:$0xff]
      %v774 = vld [vmem:[%s555 + $0x191] sm:$0xff]
      %v775 = vld [vmem:[%s555 + $0x1a9] sm:$0xff]
      %v776 = vld [vmem:[%s555 + $0x1b1] sm:$0xff]
      %v777 = vld [vmem:[%s555 + $0x1c9] sm:$0xff]
      %v778 = vld [vmem:[%s555 + $0x1d1] sm:$0xff]
      %v779 = vld [vmem:[%s555 + $0x1e9] sm:$0xff]
      %v780 = vld [vmem:[%s555 + $0x1f1] sm:$0xff]
      %v781 = vpack.c.bf16 %v750, %v749
      %v782 = vpack.c.bf16 %v752, %v751
      %v783 = vpack.c.bf16 %v754, %v753
      %v784 = vpack.c.bf16 %v756, %v755
      %v785 = vpack.c.bf16 %v758, %v757
      %v786 = vpack.c.bf16 %v760, %v759
      %v787 = vpack.c.bf16 %v762, %v761
      %v788 = vpack.c.bf16 %v764, %v763
      %v789 = vpack.c.bf16 %v766, %v765
      %v790 = vpack.c.bf16 %v768, %v767
      %v791 = vpack.c.bf16 %v770, %v769
      %v792 = vpack.c.bf16 %v772, %v771
      %v793 = vpack.c.bf16 %v774, %v773
      %v794 = vpack.c.bf16 %v776, %v775
      %v795 = vpack.c.bf16 %v778, %v777
      %v796 = vpack.c.bf16 %v780, %v779
      %813 = vrot.lane.b32.xlu0 %v781, 6
      %v814 = vpop.permute.xlu0 %813
      %815 = vrot.lane.b32.xlu0 %v782, 6
      %v816 = vpop.permute.xlu0 %815
      %817 = vrot.lane.b32.xlu0 %v783, 6
      %v818 = vpop.permute.xlu0 %817
      %819 = vrot.lane.b32.xlu0 %v784, 6
      %v820 = vpop.permute.xlu0 %819
      %821 = vrot.lane.b32.xlu0 %v785, 6
      %v822 = vpop.permute.xlu0 %821
      %823 = vrot.lane.b32.xlu0 %v786, 6
      %v824 = vpop.permute.xlu0 %823
      %825 = vrot.lane.b32.xlu0 %v787, 6
      %v826 = vpop.permute.xlu0 %825
      %827 = vrot.lane.b32.xlu0 %v788, 6
      %v828 = vpop.permute.xlu0 %827
      %829 = vrot.lane.b32.xlu0 %v789, 6
      %v830 = vpop.permute.xlu0 %829
      %831 = vrot.lane.b32.xlu0 %v790, 6
      %v832 = vpop.permute.xlu0 %831
      %833 = vrot.lane.b32.xlu0 %v791, 6
      %v834 = vpop.permute.xlu0 %833
      %835 = vrot.lane.b32.xlu0 %v792, 6
      %v836 = vpop.permute.xlu0 %835
      %837 = vrot.lane.b32.xlu0 %v793, 6
      %v838 = vpop.permute.xlu0 %837
      %839 = vrot.lane.b32.xlu0 %v794, 6
      %v840 = vpop.permute.xlu0 %839
      %841 = vrot.lane.b32.xlu0 %v795, 6
      %v842 = vpop.permute.xlu0 %841
      %843 = vrot.lane.b32.xlu0 %v796, 6
      %v844 = vpop.permute.xlu0 %843
      %vm861 = vcmask 72752
      %862 = vst.msk [vmem:[#allocation6] sm:$0xff] %vm861, %v814
      %863 = vst.msk [vmem:[#allocation6 + $0x8] sm:$0xff] %vm861, %v816
      %864 = vst.msk [vmem:[#allocation6 + $0x10] sm:$0xff] %vm861, %v818
      %865 = vst.msk [vmem:[#allocation6 + $0x18] sm:$0xff] %vm861, %v820
      %866 = vst.msk [vmem:[#allocation6 + $0x20] sm:$0xff] %vm861, %v822
      %867 = vst.msk [vmem:[#allocation6 + $0x28] sm:$0xff] %vm861, %v824
      %868 = vst.msk [vmem:[#allocation6 + $0x30] sm:$0xff] %vm861, %v826
      %869 = vst.msk [vmem:[#allocation6 + $0x38] sm:$0xff] %vm861, %v828
      %870 = vst.msk [vmem:[#allocation6 + $0x40] sm:$0xff] %vm861, %v830
      %871 = vst.msk [vmem:[#allocation6 + $0x48] sm:$0xff] %vm861, %v832
      %872 = vst.msk [vmem:[#allocation6 + $0x50] sm:$0xff] %vm861, %v834
      %873 = vst.msk [vmem:[#allocation6 + $0x58] sm:$0xff] %vm861, %v836
      %874 = vst.msk [vmem:[#allocation6 + $0x60] sm:$0xff] %vm861, %v838
      %875 = vst.msk [vmem:[#allocation6 + $0x68] sm:$0xff] %vm861, %v840
      %876 = vst.msk [vmem:[#allocation6 + $0x70] sm:$0xff] %vm861, %v842
      %877 = vst.msk [vmem:[#allocation6 + $0x78] sm:$0xff] %vm861, %v844
      %v878 = vld [vmem:[%s522 + $0x7] sm:$0xff]
      %v879 = vld [vmem:[%s522 + $0xf] sm:$0xff]
      %v880 = vld [vmem:[%s522 + $0x27] sm:$0xff]
      %v881 = vld [vmem:[%s522 + $0x2f] sm:$0xff]
      %v882 = vld [vmem:[%s522 + $0x47] sm:$0xff]
      %v883 = vld [vmem:[%s522 + $0x4f] sm:$0xff]
      %v884 = vld [vmem:[%s522 + $0x67] sm:$0xff]
      %v885 = vld [vmem:[%s522 + $0x6f] sm:$0xff]
      %v886 = vld [vmem:[%s522 + $0x87] sm:$0xff]
      %v887 = vld [vmem:[%s522 + $0x8f] sm:$0xff]
      %v888 = vld [vmem:[%s522 + $0xa7] sm:$0xff]
      %v889 = vld [vmem:[%s522 + $0xaf] sm:$0xff]
      %v890 = vld [vmem:[%s522 + $0xc7] sm:$0xff]
      %v891 = vld [vmem:[%s522 + $0xcf] sm:$0xff]
      %v892 = vld [vmem:[%s522 + $0xe7] sm:$0xff]
      %v893 = vld [vmem:[%s522 + $0xef] sm:$0xff]
      %v894 = vld [vmem:[%s522 + $0x107] sm:$0xff]
      %v895 = vld [vmem:[%s522 + $0x10f] sm:$0xff]
      %v896 = vld [vmem:[%s522 + $0x127] sm:$0xff]
      %v897 = vld [vmem:[%s522 + $0x12f] sm:$0xff]
      %v898 = vld [vmem:[%s522 + $0x147] sm:$0xff]
      %v899 = vld [vmem:[%s522 + $0x14f] sm:$0xff]
      %v900 = vld [vmem:[%s522 + $0x167] sm:$0xff]
      %v901 = vld [vmem:[%s522 + $0x16f] sm:$0xff]
      %v902 = vld [vmem:[%s522 + $0x187] sm:$0xff]
      %v903 = vld [vmem:[%s522 + $0x18f] sm:$0xff]
      %v904 = vld [vmem:[%s522 + $0x1a7] sm:$0xff]
      %v905 = vld [vmem:[%s522 + $0x1af] sm:$0xff]
      %v906 = vld [vmem:[%s522 + $0x1c7] sm:$0xff]
      %v907 = vld [vmem:[%s522 + $0x1cf] sm:$0xff]
      %v908 = vld [vmem:[%s522 + $0x1e7] sm:$0xff]
      %v909 = vld [vmem:[%s522 + $0x1ef] sm:$0xff]
      %v910 = vpack.c.bf16 %v879, %v878
      %v911 = vpack.c.bf16 %v881, %v880
      %v912 = vpack.c.bf16 %v883, %v882
      %v913 = vpack.c.bf16 %v885, %v884
      %v914 = vpack.c.bf16 %v887, %v886
      %v915 = vpack.c.bf16 %v889, %v888
      %v916 = vpack.c.bf16 %v891, %v890
      %v917 = vpack.c.bf16 %v893, %v892
      %v918 = vpack.c.bf16 %v895, %v894
      %v919 = vpack.c.bf16 %v897, %v896
      %v920 = vpack.c.bf16 %v899, %v898
      %v921 = vpack.c.bf16 %v901, %v900
      %v922 = vpack.c.bf16 %v903, %v902
      %v923 = vpack.c.bf16 %v905, %v904
      %v924 = vpack.c.bf16 %v907, %v906
      %v925 = vpack.c.bf16 %v909, %v908
      %942 = vrot.lane.b32.xlu0 %v910, 9
      %v943 = vpop.permute.xlu0 %942
      %944 = vrot.lane.b32.xlu0 %v911, 9
      %v945 = vpop.permute.xlu0 %944
      %946 = vrot.lane.b32.xlu0 %v912, 9
      %v947 = vpop.permute.xlu0 %946
      %948 = vrot.lane.b32.xlu0 %v913, 9
      %v949 = vpop.permute.xlu0 %948
      %950 = vrot.lane.b32.xlu0 %v914, 9
      %v951 = vpop.permute.xlu0 %950
      %952 = vrot.lane.b32.xlu0 %v915, 9
      %v953 = vpop.permute.xlu0 %952
      %954 = vrot.lane.b32.xlu0 %v916, 9
      %v955 = vpop.permute.xlu0 %954
      %956 = vrot.lane.b32.xlu0 %v917, 9
      %v957 = vpop.permute.xlu0 %956
      %958 = vrot.lane.b32.xlu0 %v918, 9
      %v959 = vpop.permute.xlu0 %958
      %960 = vrot.lane.b32.xlu0 %v919, 9
      %v961 = vpop.permute.xlu0 %960
      %962 = vrot.lane.b32.xlu0 %v920, 9
      %v963 = vpop.permute.xlu0 %962
      %964 = vrot.lane.b32.xlu0 %v921, 9
      %v965 = vpop.permute.xlu0 %964
      %966 = vrot.lane.b32.xlu0 %v922, 9
      %v967 = vpop.permute.xlu0 %966
      %968 = vrot.lane.b32.xlu0 %v923, 9
      %v969 = vpop.permute.xlu0 %968
      %970 = vrot.lane.b32.xlu0 %v924, 9
      %v971 = vpop.permute.xlu0 %970
      %972 = vrot.lane.b32.xlu0 %v925, 9
      %v973 = vpop.permute.xlu0 %972
      %vm990 = vcmask 97352
      %991 = vst.msk [vmem:[#allocation6] sm:$0xff] %vm990, %v943
      %992 = vst.msk [vmem:[#allocation6 + $0x8] sm:$0xff] %vm990, %v945
      %993 = vst.msk [vmem:[#allocation6 + $0x10] sm:$0xff] %vm990, %v947
      %994 = vst.msk [vmem:[#allocation6 + $0x18] sm:$0xff] %vm990, %v949
      %995 = vst.msk [vmem:[#allocation6 + $0x20] sm:$0xff] %vm990, %v951
      %996 = vst.msk [vmem:[#allocation6 + $0x28] sm:$0xff] %vm990, %v953
      %997 = vst.msk [vmem:[#allocation6 + $0x30] sm:$0xff] %vm990, %v955
      %998 = vst.msk [vmem:[#allocation6 + $0x38] sm:$0xff] %vm990, %v957
      %999 = vst.msk [vmem:[#allocation6 + $0x40] sm:$0xff] %vm990, %v959
      %1000 = vst.msk [vmem:[#allocation6 + $0x48] sm:$0xff] %vm990, %v961
      %1001 = vst.msk [vmem:[#allocation6 + $0x50] sm:$0xff] %vm990, %v963
      %1002 = vst.msk [vmem:[#allocation6 + $0x58] sm:$0xff] %vm990, %v965
      %1003 = vst.msk [vmem:[#allocation6 + $0x60] sm:$0xff] %vm990, %v967
      %1004 = vst.msk [vmem:[#allocation6 + $0x68] sm:$0xff] %vm990, %v969
      %1005 = vst.msk [vmem:[#allocation6 + $0x70] sm:$0xff] %vm990, %v971
      %1006 = vst.msk [vmem:[#allocation6 + $0x78] sm:$0xff] %vm990, %v973
      %v1007 = vld [vmem:[%s522 + $0x8] sm:$0xff]
      %v1008 = vld [vmem:[%s522 + $0x10] sm:$0xff]
      %v1009 = vld [vmem:[%s522 + $0x28] sm:$0xff]
      %v1010 = vld [vmem:[%s522 + $0x30] sm:$0xff]
      %v1011 = vld [vmem:[%s522 + $0x48] sm:$0xff]
      %v1012 = vld [vmem:[%s522 + $0x50] sm:$0xff]
      %v1013 = vld [vmem:[%s522 + $0x68] sm:$0xff]
      %v1014 = vld [vmem:[%s522 + $0x70] sm:$0xff]
      %v1015 = vld [vmem:[%s522 + $0x88] sm:$0xff]
      %v1016 = vld [vmem:[%s522 + $0x90] sm:$0xff]
      %v1017 = vld [vmem:[%s522 + $0xa8] sm:$0xff]
      %v1018 = vld [vmem:[%s522 + $0xb0] sm:$0xff]
      %v1019 = vld [vmem:[%s522 + $0xc8] sm:$0xff]
      %v1020 = vld [vmem:[%s522 + $0xd0] sm:$0xff]
      %v1021 = vld [vmem:[%s522 + $0xe8] sm:$0xff]
      %v1022 = vld [vmem:[%s522 + $0xf0] sm:$0xff]
      %v1023 = vld [vmem:[%s522 + $0x108] sm:$0xff]
      %v1024 = vld [vmem:[%s522 + $0x110] sm:$0xff]
      %v1025 = vld [vmem:[%s522 + $0x128] sm:$0xff]
      %v1026 = vld [vmem:[%s522 + $0x130] sm:$0xff]
      %v1027 = vld [vmem:[%s522 + $0x148] sm:$0xff]
      %v1028 = vld [vmem:[%s522 + $0x150] sm:$0xff]
      %v1029 = vld [vmem:[%s522 + $0x168] sm:$0xff]
      %v1030 = vld [vmem:[%s522 + $0x170] sm:$0xff]
      %v1031 = vld [vmem:[%s522 + $0x188] sm:$0xff]
      %v1032 = vld [vmem:[%s522 + $0x190] sm:$0xff]
      %v1033 = vld [vmem:[%s522 + $0x1a8] sm:$0xff]
      %v1034 = vld [vmem:[%s522 + $0x1b0] sm:$0xff]
      %v1035 = vld [vmem:[%s522 + $0x1c8] sm:$0xff]
      %v1036 = vld [vmem:[%s522 + $0x1d0] sm:$0xff]
      %v1037 = vld [vmem:[%s522 + $0x1e8] sm:$0xff]
      %v1038 = vld [vmem:[%s522 + $0x1f0] sm:$0xff]
      %v1039 = vpack.c.bf16 %v1008, %v1007
      %v1040 = vpack.c.bf16 %v1010, %v1009
      %v1041 = vpack.c.bf16 %v1012, %v1011
      %v1042 = vpack.c.bf16 %v1014, %v1013
      %v1043 = vpack.c.bf16 %v1016, %v1015
      %v1044 = vpack.c.bf16 %v1018, %v1017
      %v1045 = vpack.c.bf16 %v1020, %v1019
      %v1046 = vpack.c.bf16 %v1022, %v1021
      %v1047 = vpack.c.bf16 %v1024, %v1023
      %v1048 = vpack.c.bf16 %v1026, %v1025
      %v1049 = vpack.c.bf16 %v1028, %v1027
      %v1050 = vpack.c.bf16 %v1030, %v1029
      %v1051 = vpack.c.bf16 %v1032, %v1031
      %v1052 = vpack.c.bf16 %v1034, %v1033
      %v1053 = vpack.c.bf16 %v1036, %v1035
      %v1054 = vpack.c.bf16 %v1038, %v1037
      %1071 = vrot.lane.b32.xlu0 %v1039, 12
      %v1072 = vpop.permute.xlu0 %1071
      %1073 = vrot.lane.b32.xlu0 %v1040, 12
      %v1074 = vpop.permute.xlu0 %1073
      %1075 = vrot.lane.b32.xlu0 %v1041, 12
      %v1076 = vpop.permute.xlu0 %1075
      %1077 = vrot.lane.b32.xlu0 %v1042, 12
      %v1078 = vpop.permute.xlu0 %1077
      %1079 = vrot.lane.b32.xlu0 %v1043, 12
      %v1080 = vpop.permute.xlu0 %1079
      %1081 = vrot.lane.b32.xlu0 %v1044, 12
      %v1082 = vpop.permute.xlu0 %1081
      %1083 = vrot.lane.b32.xlu0 %v1045, 12
      %v1084 = vpop.permute.xlu0 %1083
      %1085 = vrot.lane.b32.xlu0 %v1046, 12
      %v1086 = vpop.permute.xlu0 %1085
      %1087 = vrot.lane.b32.xlu0 %v1047, 12
      %v1088 = vpop.permute.xlu0 %1087
      %1089 = vrot.lane.b32.xlu0 %v1048, 12
      %v1090 = vpop.permute.xlu0 %1089
      %1091 = vrot.lane.b32.xlu0 %v1049, 12
      %v1092 = vpop.permute.xlu0 %1091
      %1093 = vrot.lane.b32.xlu0 %v1050, 12
      %v1094 = vpop.permute.xlu0 %1093
      %1095 = vrot.lane.b32.xlu0 %v1051, 12
      %v1096 = vpop.permute.xlu0 %1095
      %1097 = vrot.lane.b32.xlu0 %v1052, 12
      %v1098 = vpop.permute.xlu0 %1097
      %1099 = vrot.lane.b32.xlu0 %v1053, 12
      %v1100 = vpop.permute.xlu0 %1099
      %1101 = vrot.lane.b32.xlu0 %v1054, 12
      %v1102 = vpop.permute.xlu0 %1101
      %vm1119 = vcmask 121952
      %1120 = vst.msk [vmem:[#allocation6] sm:$0xff] %vm1119, %v1072
      %1121 = vst.msk [vmem:[#allocation6 + $0x8] sm:$0xff] %vm1119, %v1074
      %1122 = vst.msk [vmem:[#allocation6 + $0x10] sm:$0xff] %vm1119, %v1076
      %1123 = vst.msk [vmem:[#allocation6 + $0x18] sm:$0xff] %vm1119, %v1078
      %1124 = vst.msk [vmem:[#allocation6 + $0x20] sm:$0xff] %vm1119, %v1080
      %1125 = vst.msk [vmem:[#allocation6 + $0x28] sm:$0xff] %vm1119, %v1082
      %1126 = vst.msk [vmem:[#allocation6 + $0x30] sm:$0xff] %vm1119, %v1084
      %1127 = vst.msk [vmem:[#allocation6 + $0x38] sm:$0xff] %vm1119, %v1086
      %1128 = vst.msk [vmem:[#allocation6 + $0x40] sm:$0xff] %vm1119, %v1088
      %1129 = vst.msk [vmem:[#allocation6 + $0x48] sm:$0xff] %vm1119, %v1090
      %1130 = vst.msk [vmem:[#allocation6 + $0x50] sm:$0xff] %vm1119, %v1092
      %1131 = vst.msk [vmem:[#allocation6 + $0x58] sm:$0xff] %vm1119, %v1094
      %1132 = vst.msk [vmem:[#allocation6 + $0x60] sm:$0xff] %vm1119, %v1096
      %1133 = vst.msk [vmem:[#allocation6 + $0x68] sm:$0xff] %vm1119, %v1098
      %1134 = vst.msk [vmem:[#allocation6 + $0x70] sm:$0xff] %vm1119, %v1100
      %1135 = vst.msk [vmem:[#allocation6 + $0x78] sm:$0xff] %vm1119, %v1102
      %v1136 = vld [vmem:[%s522 + $0x9] sm:$0xff]
      %v1137 = vld [vmem:[%s522 + $0x11] sm:$0xff]
      %v1138 = vld [vmem:[%s522 + $0x29] sm:$0xff]
      %v1139 = vld [vmem:[%s522 + $0x31] sm:$0xff]
      %v1140 = vld [vmem:[%s522 + $0x49] sm:$0xff]
      %v1141 = vld [vmem:[%s522 + $0x51] sm:$0xff]
      %v1142 = vld [vmem:[%s522 + $0x69] sm:$0xff]
      %v1143 = vld [vmem:[%s522 + $0x71] sm:$0xff]
      %v1144 = vld [vmem:[%s522 + $0x89] sm:$0xff]
      %v1145 = vld [vmem:[%s522 + $0x91] sm:$0xff]
      %v1146 = vld [vmem:[%s522 + $0xa9] sm:$0xff]
      %v1147 = vld [vmem:[%s522 + $0xb1] sm:$0xff]
      %v1148 = vld [vmem:[%s522 + $0xc9] sm:$0xff]
      %v1149 = vld [vmem:[%s522 + $0xd1] sm:$0xff]
      %v1150 = vld [vmem:[%s522 + $0xe9] sm:$0xff]
      %v1151 = vld [vmem:[%s522 + $0xf1] sm:$0xff]
      %v1152 = vld [vmem:[%s522 + $0x109] sm:$0xff]
      %v1153 = vld [vmem:[%s522 + $0x111] sm:$0xff]
      %v1154 = vld [vmem:[%s522 + $0x129] sm:$0xff]
      %v1155 = vld [vmem:[%s522 + $0x131] sm:$0xff]
      %v1156 = vld [vmem:[%s522 + $0x149] sm:$0xff]
      %v1157 = vld [vmem:[%s522 + $0x151] sm:$0xff]
      %v1158 = vld [vmem:[%s522 + $0x169] sm:$0xff]
      %v1159 = vld [vmem:[%s522 + $0x171] sm:$0xff]
      %v1160 = vld [vmem:[%s522 + $0x189] sm:$0xff]
      %v1161 = vld [vmem:[%s522 + $0x191] sm:$0xff]
      %v1162 = vld [vmem:[%s522 + $0x1a9] sm:$0xff]
      %v1163 = vld [vmem:[%s522 + $0x1b1] sm:$0xff]
      %v1164 = vld [vmem:[%s522 + $0x1c9] sm:$0xff]
      %v1165 = vld [vmem:[%s522 + $0x1d1] sm:$0xff]
      %v1166 = vld [vmem:[%s522 + $0x1e9] sm:$0xff]
      %v1167 = vld [vmem:[%s522 + $0x1f1] sm:$0xff]
      %v1168 = vpack.c.bf16 %v1137, %v1136
      %v1169 = vpack.c.bf16 %v1139, %v1138
      %v1170 = vpack.c.bf16 %v1141, %v1140
      %v1171 = vpack.c.bf16 %v1143, %v1142
      %v1172 = vpack.c.bf16 %v1145, %v1144
      %v1173 = vpack.c.bf16 %v1147, %v1146
      %v1174 = vpack.c.bf16 %v1149, %v1148
      %v1175 = vpack.c.bf16 %v1151, %v1150
      %v1176 = vpack.c.bf16 %v1153, %v1152
      %v1177 = vpack.c.bf16 %v1155, %v1154
      %v1178 = vpack.c.bf16 %v1157, %v1156
      %v1179 = vpack.c.bf16 %v1159, %v1158
      %v1180 = vpack.c.bf16 %v1161, %v1160
      %v1181 = vpack.c.bf16 %v1163, %v1162
      %v1182 = vpack.c.bf16 %v1165, %v1164
      %v1183 = vpack.c.bf16 %v1167, %v1166
      %1200 = vrot.lane.b32.xlu0 %v1168, 15
      %v1201 = vpop.permute.xlu0 %1200
      %1202 = vrot.lane.b32.xlu0 %v1169, 15
      %v1203 = vpop.permute.xlu0 %1202
      %1204 = vrot.lane.b32.xlu0 %v1170, 15
      %v1205 = vpop.permute.xlu0 %1204
      %1206 = vrot.lane.b32.xlu0 %v1171, 15
      %v1207 = vpop.permute.xlu0 %1206
      %1208 = vrot.lane.b32.xlu0 %v1172, 15
      %v1209 = vpop.permute.xlu0 %1208
      %1210 = vrot.lane.b32.xlu0 %v1173, 15
      %v1211 = vpop.permute.xlu0 %1210
      %1212 = vrot.lane.b32.xlu0 %v1174, 15
      %v1213 = vpop.permute.xlu0 %1212
      %1214 = vrot.lane.b32.xlu0 %v1175, 15
      %v1215 = vpop.permute.xlu0 %1214
      %1216 = vrot.lane.b32.xlu0 %v1176, 15
      %v1217 = vpop.permute.xlu0 %1216
      %1218 = vrot.lane.b32.xlu0 %v1177, 15
      %v1219 = vpop.permute.xlu0 %1218
      %1220 = vrot.lane.b32.xlu0 %v1178, 15
      %v1221 = vpop.permute.xlu0 %1220
      %1222 = vrot.lane.b32.xlu0 %v1179, 15
      %v1223 = vpop.permute.xlu0 %1222
      %1224 = vrot.lane.b32.xlu0 %v1180, 15
      %v1225 = vpop.permute.xlu0 %1224
      %1226 = vrot.lane.b32.xlu0 %v1181, 15
      %v1227 = vpop.permute.xlu0 %1226
      %1228 = vrot.lane.b32.xlu0 %v1182, 15
      %v1229 = vpop.permute.xlu0 %1228
      %1230 = vrot.lane.b32.xlu0 %v1183, 15
      %v1231 = vpop.permute.xlu0 %1230
      %vm1248 = vcmask 146552
      %1249 = vst.msk [vmem:[#allocation6] sm:$0xff] %vm1248, %v1201
      %1250 = vst.msk [vmem:[#allocation6 + $0x8] sm:$0xff] %vm1248, %v1203
      %1251 = vst.msk [vmem:[#allocation6 + $0x10] sm:$0xff] %vm1248, %v1205
      %1252 = vst.msk [vmem:[#allocation6 + $0x18] sm:$0xff] %vm1248, %v1207
      %1253 = vst.msk [vmem:[#allocation6 + $0x20] sm:$0xff] %vm1248, %v1209
      %1254 = vst.msk [vmem:[#allocation6 + $0x28] sm:$0xff] %vm1248, %v1211
      %1255 = vst.msk [vmem:[#allocation6 + $0x30] sm:$0xff] %vm1248, %v1213
      %1256 = vst.msk [vmem:[#allocation6 + $0x38] sm:$0xff] %vm1248, %v1215
      %1257 = vst.msk [vmem:[#allocation6 + $0x40] sm:$0xff] %vm1248, %v1217
      %1258 = vst.msk [vmem:[#allocation6 + $0x48] sm:$0xff] %vm1248, %v1219
      %1259 = vst.msk [vmem:[#allocation6 + $0x50] sm:$0xff] %vm1248, %v1221
      %1260 = vst.msk [vmem:[#allocation6 + $0x58] sm:$0xff] %vm1248, %v1223
      %1261 = vst.msk [vmem:[#allocation6 + $0x60] sm:$0xff] %vm1248, %v1225
      %1262 = vst.msk [vmem:[#allocation6 + $0x68] sm:$0xff] %vm1248, %v1227
      %1263 = vst.msk [vmem:[#allocation6 + $0x70] sm:$0xff] %vm1248, %v1229
      %1264 = vst.msk [vmem:[#allocation6 + $0x78] sm:$0xff] %vm1248, %v1231
      %s1265 = scalar_lea.vmem [#allocation2], 288
      %v1266 = vld [vmem:[%s1265 + $0x7] sm:$0xff]
      %v1267 = vld [vmem:[%s1265 + $0xf] sm:$0xff]
      %v1268 = vld [vmem:[%s1265 + $0x27] sm:$0xff]
      %v1269 = vld [vmem:[%s1265 + $0x2f] sm:$0xff]
      %v1270 = vld [vmem:[%s1265 + $0x47] sm:$0xff]
      %v1271 = vld [vmem:[%s1265 + $0x4f] sm:$0xff]
      %v1272 = vld [vmem:[%s1265 + $0x67] sm:$0xff]
      %v1273 = vld [vmem:[%s1265 + $0x6f] sm:$0xff]
      %v1274 = vld [vmem:[%s1265 + $0x87] sm:$0xff]
      %v1275 = vld [vmem:[%s1265 + $0x8f] sm:$0xff]
      %v1276 = vld [vmem:[%s1265 + $0xa7] sm:$0xff]
      %v1277 = vld [vmem:[%s1265 + $0xaf] sm:$0xff]
      %v1278 = vld [vmem:[%s1265 + $0xc7] sm:$0xff]
      %v1279 = vld [vmem:[%s1265 + $0xcf] sm:$0xff]
      %v1280 = vld [vmem:[%s1265 + $0xe7] sm:$0xff]
      %v1281 = vld [vmem:[%s1265 + $0xef] sm:$0xff]
      %v1282 = vld [vmem:[%s1265 + $0x107] sm:$0xff]
      %v1283 = vld [vmem:[%s1265 + $0x10f] sm:$0xff]
      %v1284 = vld [vmem:[%s1265 + $0x127] sm:$0xff]
      %v1285 = vld [vmem:[%s1265 + $0x12f] sm:$0xff]
      %v1286 = vld [vmem:[%s1265 + $0x147] sm:$0xff]
      %v1287 = vld [vmem:[%s1265 + $0x14f] sm:$0xff]
      %v1288 = vld [vmem:[%s1265 + $0x167] sm:$0xff]
      %v1289 = vld [vmem:[%s1265 + $0x16f] sm:$0xff]
      %v1290 = vld [vmem:[%s1265 + $0x187] sm:$0xff]
      %v1291 = vld [vmem:[%s1265 + $0x18f] sm:$0xff]
      %v1292 = vld [vmem:[%s1265 + $0x1a7] sm:$0xff]
      %v1293 = vld [vmem:[%s1265 + $0x1af] sm:$0xff]
      %v1294 = vld [vmem:[%s1265 + $0x1c7] sm:$0xff]
      %v1295 = vld [vmem:[%s1265 + $0x1cf] sm:$0xff]
      %v1296 = vld [vmem:[%s1265 + $0x1e7] sm:$0xff]
      %v1297 = vld [vmem:[%s1265 + $0x1ef] sm:$0xff]
      %v1298 = vpack.c.bf16 %v1267, %v1266
      %v1299 = vpack.c.bf16 %v1269, %v1268
      %v1300 = vpack.c.bf16 %v1271, %v1270
      %v1301 = vpack.c.bf16 %v1273, %v1272
      %v1302 = vpack.c.bf16 %v1275, %v1274
      %v1303 = vpack.c.bf16 %v1277, %v1276
      %v1304 = vpack.c.bf16 %v1279, %v1278
      %v1305 = vpack.c.bf16 %v1281, %v1280
      %v1306 = vpack.c.bf16 %v1283, %v1282
      %v1307 = vpack.c.bf16 %v1285, %v1284
      %v1308 = vpack.c.bf16 %v1287, %v1286
      %v1309 = vpack.c.bf16 %v1289, %v1288
      %v1310 = vpack.c.bf16 %v1291, %v1290
      %v1311 = vpack.c.bf16 %v1293, %v1292
      %v1312 = vpack.c.bf16 %v1295, %v1294
      %v1313 = vpack.c.bf16 %v1297, %v1296
      %1330 = vrot.lane.b32.xlu0 %v1298, 18
      %v1331 = vpop.permute.xlu0 %1330
      %1332 = vrot.lane.b32.xlu0 %v1299, 18
      %v1333 = vpop.permute.xlu0 %1332
      %1334 = vrot.lane.b32.xlu0 %v1300, 18
      %v1335 = vpop.permute.xlu0 %1334
      %1336 = vrot.lane.b32.xlu0 %v1301, 18
      %v1337 = vpop.permute.xlu0 %1336
      %1338 = vrot.lane.b32.xlu0 %v1302, 18
      %v1339 = vpop.permute.xlu0 %1338
      %1340 = vrot.lane.b32.xlu0 %v1303, 18
      %v1341 = vpop.permute.xlu0 %1340
      %1342 = vrot.lane.b32.xlu0 %v1304, 18
      %v1343 = vpop.permute.xlu0 %1342
      %1344 = vrot.lane.b32.xlu0 %v1305, 18
      %v1345 = vpop.permute.xlu0 %1344
      %1346 = vrot.lane.b32.xlu0 %v1306, 18
      %v1347 = vpop.permute.xlu0 %1346
      %1348 = vrot.lane.b32.xlu0 %v1307, 18
      %v1349 = vpop.permute.xlu0 %1348
      %1350 = vrot.lane.b32.xlu0 %v1308, 18
      %v1351 = vpop.permute.xlu0 %1350
      %1352 = vrot.lane.b32.xlu0 %v1309, 18
      %v1353 = vpop.permute.xlu0 %1352
      %1354 = vrot.lane.b32.xlu0 %v1310, 18
      %v1355 = vpop.permute.xlu0 %1354
      %1356 = vrot.lane.b32.xlu0 %v1311, 18
      %v1357 = vpop.permute.xlu0 %1356
      %1358 = vrot.lane.b32.xlu0 %v1312, 18
      %v1359 = vpop.permute.xlu0 %1358
      %1360 = vrot.lane.b32.xlu0 %v1313, 18
      %v1361 = vpop.permute.xlu0 %1360
      %vm1378 = vcmask 171152
      %1379 = vst.msk [vmem:[#allocation6] sm:$0xff] %vm1378, %v1331
      %1380 = vst.msk [vmem:[#allocation6 + $0x8] sm:$0xff] %vm1378, %v1333
      %1381 = vst.msk [vmem:[#allocation6 + $0x10] sm:$0xff] %vm1378, %v1335
      %1382 = vst.msk [vmem:[#allocation6 + $0x18] sm:$0xff] %vm1378, %v1337
      %1383 = vst.msk [vmem:[#allocation6 + $0x20] sm:$0xff] %vm1378, %v1339
      %1384 = vst.msk [vmem:[#allocation6 + $0x28] sm:$0xff] %vm1378, %v1341
      %1385 = vst.msk [vmem:[#allocation6 + $0x30] sm:$0xff] %vm1378, %v1343
      %1386 = vst.msk [vmem:[#allocation6 + $0x38] sm:$0xff] %vm1378, %v1345
      %1387 = vst.msk [vmem:[#allocation6 + $0x40] sm:$0xff] %vm1378, %v1347
      %1388 = vst.msk [vmem:[#allocation6 + $0x48] sm:$0xff] %vm1378, %v1349
      %1389 = vst.msk [vmem:[#allocation6 + $0x50] sm:$0xff] %vm1378, %v1351
      %1390 = vst.msk [vmem:[#allocation6 + $0x58] sm:$0xff] %vm1378, %v1353
      %1391 = vst.msk [vmem:[#allocation6 + $0x60] sm:$0xff] %vm1378, %v1355
      %1392 = vst.msk [vmem:[#allocation6 + $0x68] sm:$0xff] %vm1378, %v1357
      %1393 = vst.msk [vmem:[#allocation6 + $0x70] sm:$0xff] %vm1378, %v1359
      %1394 = vst.msk [vmem:[#allocation6 + $0x78] sm:$0xff] %vm1378, %v1361
      %v1395 = vld [vmem:[%s1265 + $0x8] sm:$0xff]
      %v1396 = vld [vmem:[%s1265 + $0x10] sm:$0xff]
      %v1397 = vld [vmem:[%s1265 + $0x28] sm:$0xff]
      %v1398 = vld [vmem:[%s1265 + $0x30] sm:$0xff]
      %v1399 = vld [vmem:[%s1265 + $0x48] sm:$0xff]
      %v1400 = vld [vmem:[%s1265 + $0x50] sm:$0xff]
      %v1401 = vld [vmem:[%s1265 + $0x68] sm:$0xff]
      %v1402 = vld [vmem:[%s1265 + $0x70] sm:$0xff]
      %v1403 = vld [vmem:[%s1265 + $0x88] sm:$0xff]
      %v1404 = vld [vmem:[%s1265 + $0x90] sm:$0xff]
      %v1405 = vld [vmem:[%s1265 + $0xa8] sm:$0xff]
      %v1406 = vld [vmem:[%s1265 + $0xb0] sm:$0xff]
      %v1407 = vld [vmem:[%s1265 + $0xc8] sm:$0xff]
      %v1408 = vld [vmem:[%s1265 + $0xd0] sm:$0xff]
      %v1409 = vld [vmem:[%s1265 + $0xe8] sm:$0xff]
      %v1410 = vld [vmem:[%s1265 + $0xf0] sm:$0xff]
      %v1411 = vld [vmem:[%s1265 + $0x108] sm:$0xff]
      %v1412 = vld [vmem:[%s1265 + $0x110] sm:$0xff]
      %v1413 = vld [vmem:[%s1265 + $0x128] sm:$0xff]
      %v1414 = vld [vmem:[%s1265 + $0x130] sm:$0xff]
      %v1415 = vld [vmem:[%s1265 + $0x148] sm:$0xff]
      %v1416 = vld [vmem:[%s1265 + $0x150] sm:$0xff]
      %v1417 = vld [vmem:[%s1265 + $0x168] sm:$0xff]
      %v1418 = vld [vmem:[%s1265 + $0x170] sm:$0xff]
      %v1419 = vld [vmem:[%s1265 + $0x188] sm:$0xff]
      %v1420 = vld [vmem:[%s1265 + $0x190] sm:$0xff]
      %v1421 = vld [vmem:[%s1265 + $0x1a8] sm:$0xff]
      %v1422 = vld [vmem:[%s1265 + $0x1b0] sm:$0xff]
      %v1423 = vld [vmem:[%s1265 + $0x1c8] sm:$0xff]
      %v1424 = vld [vmem:[%s1265 + $0x1d0] sm:$0xff]
      %v1425 = vld [vmem:[%s1265 + $0x1e8] sm:$0xff]
      %v1426 = vld [vmem:[%s1265 + $0x1f0] sm:$0xff]
      %v1427 = vpack.c.bf16 %v1396, %v1395
      %v1428 = vpack.c.bf16 %v1398, %v1397
      %v1429 = vpack.c.bf16 %v1400, %v1399
      %v1430 = vpack.c.bf16 %v1402, %v1401
      %v1431 = vpack.c.bf16 %v1404, %v1403
      %v1432 = vpack.c.bf16 %v1406, %v1405
      %v1433 = vpack.c.bf16 %v1408, %v1407
      %v1434 = vpack.c.bf16 %v1410, %v1409
      %v1435 = vpack.c.bf16 %v1412, %v1411
      %v1436 = vpack.c.bf16 %v1414, %v1413
      %v1437 = vpack.c.bf16 %v1416, %v1415
      %v1438 = vpack.c.bf16 %v1418, %v1417
      %v1439 = vpack.c.bf16 %v1420, %v1419
      %v1440 = vpack.c.bf16 %v1422, %v1421
      %v1441 = vpack.c.bf16 %v1424, %v1423
      %v1442 = vpack.c.bf16 %v1426, %v1425
      %1459 = vrot.lane.b32.xlu0 %v1427, 21
      %v1460 = vpop.permute.xlu0 %1459
      %1461 = vrot.lane.b32.xlu0 %v1428, 21
      %v1462 = vpop.permute.xlu0 %1461
      %1463 = vrot.lane.b32.xlu0 %v1429, 21
      %v1464 = vpop.permute.xlu0 %1463
      %1465 = vrot.lane.b32.xlu0 %v1430, 21
      %v1466 = vpop.permute.xlu0 %1465
      %1467 = vrot.lane.b32.xlu0 %v1431, 21
      %v1468 = vpop.permute.xlu0 %1467
      %1469 = vrot.lane.b32.xlu0 %v1432, 21
      %v1470 = vpop.permute.xlu0 %1469
      %1471 = vrot.lane.b32.xlu0 %v1433, 21
      %v1472 = vpop.permute.xlu0 %1471
      %1473 = vrot.lane.b32.xlu0 %v1434, 21
      %v1474 = vpop.permute.xlu0 %1473
      %1475 = vrot.lane.b32.xlu0 %v1435, 21
      %v1476 = vpop.permute.xlu0 %1475
      %1477 = vrot.lane.b32.xlu0 %v1436, 21
      %v1478 = vpop.permute.xlu0 %1477
      %1479 = vrot.lane.b32.xlu0 %v1437, 21
      %v1480 = vpop.permute.xlu0 %1479
      %1481 = vrot.lane.b32.xlu0 %v1438, 21
      %v1482 = vpop.permute.xlu0 %1481
      %1483 = vrot.lane.b32.xlu0 %v1439, 21
      %v1484 = vpop.permute.xlu0 %1483
      %1485 = vrot.lane.b32.xlu0 %v1440, 21
      %v1486 = vpop.permute.xlu0 %1485
      %1487 = vrot.lane.b32.xlu0 %v1441, 21
      %v1488 = vpop.permute.xlu0 %1487
      %1489 = vrot.lane.b32.xlu0 %v1442, 21
      %v1490 = vpop.permute.xlu0 %1489
      %vm1507 = vcmask 195752
      %1508 = vst.msk [vmem:[#allocation6] sm:$0xff] %vm1507, %v1460
      %1509 = vst.msk [vmem:[#allocation6 + $0x8] sm:$0xff] %vm1507, %v1462
      %1510 = vst.msk [vmem:[#allocation6 + $0x10] sm:$0xff] %vm1507, %v1464
      %1511 = vst.msk [vmem:[#allocation6 + $0x18] sm:$0xff] %vm1507, %v1466
      %1512 = vst.msk [vmem:[#allocation6 + $0x20] sm:$0xff] %vm1507, %v1468
      %1513 = vst.msk [vmem:[#allocation6 + $0x28] sm:$0xff] %vm1507, %v1470
      %1514 = vst.msk [vmem:[#allocation6 + $0x30] sm:$0xff] %vm1507, %v1472
      %1515 = vst.msk [vmem:[#allocation6 + $0x38] sm:$0xff] %vm1507, %v1474
      %1516 = vst.msk [vmem:[#allocation6 + $0x40] sm:$0xff] %vm1507, %v1476
      %1517 = vst.msk [vmem:[#allocation6 + $0x48] sm:$0xff] %vm1507, %v1478
      %1518 = vst.msk [vmem:[#allocation6 + $0x50] sm:$0xff] %vm1507, %v1480
      %1519 = vst.msk [vmem:[#allocation6 + $0x58] sm:$0xff] %vm1507, %v1482
      %1520 = vst.msk [vmem:[#allocation6 + $0x60] sm:$0xff] %vm1507, %v1484
      %1521 = vst.msk [vmem:[#allocation6 + $0x68] sm:$0xff] %vm1507, %v1486
      %1522 = vst.msk [vmem:[#allocation6 + $0x70] sm:$0xff] %vm1507, %v1488
      %1523 = vst.msk [vmem:[#allocation6 + $0x78] sm:$0xff] %vm1507, %v1490
      %v1524 = vld [vmem:[%s1265 + $0x9] sm:$0xff]
      %v1525 = vld [vmem:[%s1265 + $0x11] sm:$0xff]
      %v1526 = vld [vmem:[%s1265 + $0x29] sm:$0xff]
      %v1527 = vld [vmem:[%s1265 + $0x31] sm:$0xff]
      %v1528 = vld [vmem:[%s1265 + $0x49] sm:$0xff]
      %v1529 = vld [vmem:[%s1265 + $0x51] sm:$0xff]
      %v1530 = vld [vmem:[%s1265 + $0x69] sm:$0xff]
      %v1531 = vld [vmem:[%s1265 + $0x71] sm:$0xff]
      %v1532 = vld [vmem:[%s1265 + $0x89] sm:$0xff]
      %v1533 = vld [vmem:[%s1265 + $0x91] sm:$0xff]
      %v1534 = vld [vmem:[%s1265 + $0xa9] sm:$0xff]
      %v1535 = vld [vmem:[%s1265 + $0xb1] sm:$0xff]
      %v1536 = vld [vmem:[%s1265 + $0xc9] sm:$0xff]
      %v1537 = vld [vmem:[%s1265 + $0xd1] sm:$0xff]
      %v1538 = vld [vmem:[%s1265 + $0xe9] sm:$0xff]
      %v1539 = vld [vmem:[%s1265 + $0xf1] sm:$0xff]
      %v1540 = vld [vmem:[%s1265 + $0x109] sm:$0xff]
      %v1541 = vld [vmem:[%s1265 + $0x111] sm:$0xff]
      %v1542 = vld [vmem:[%s1265 + $0x129] sm:$0xff]
      %v1543 = vld [vmem:[%s1265 + $0x131] sm:$0xff]
      %v1544 = vld [vmem:[%s1265 + $0x149] sm:$0xff]
      %v1545 = vld [vmem:[%s1265 + $0x151] sm:$0xff]
      %v1546 = vld [vmem:[%s1265 + $0x169] sm:$0xff]
      %v1547 = vld [vmem:[%s1265 + $0x171] sm:$0xff]
      %v1548 = vld [vmem:[%s1265 + $0x189] sm:$0xff]
      %v1549 = vld [vmem:[%s1265 + $0x191] sm:$0xff]
      %v1550 = vld [vmem:[%s1265 + $0x1a9] sm:$0xff]
      %v1551 = vld [vmem:[%s1265 + $0x1b1] sm:$0xff]
      %v1552 = vld [vmem:[%s1265 + $0x1c9] sm:$0xff]
      %v1553 = vld [vmem:[%s1265 + $0x1d1] sm:$0xff]
      %v1554 = vld [vmem:[%s1265 + $0x1e9] sm:$0xff]
      %v1555 = vld [vmem:[%s1265 + $0x1f1] sm:$0xff]
      %v1556 = vpack.c.bf16 %v1525, %v1524
      %v1557 = vpack.c.bf16 %v1527, %v1526
      %v1558 = vpack.c.bf16 %v1529, %v1528
      %v1559 = vpack.c.bf16 %v1531, %v1530
      %v1560 = vpack.c.bf16 %v1533, %v1532
      %v1561 = vpack.c.bf16 %v1535, %v1534
      %v1562 = vpack.c.bf16 %v1537, %v1536
      %v1563 = vpack.c.bf16 %v1539, %v1538
      %v1564 = vpack.c.bf16 %v1541, %v1540
      %v1565 = vpack.c.bf16 %v1543, %v1542
      %v1566 = vpack.c.bf16 %v1545, %v1544
      %v1567 = vpack.c.bf16 %v1547, %v1546
      %v1568 = vpack.c.bf16 %v1549, %v1548
      %v1569 = vpack.c.bf16 %v1551, %v1550
      %v1570 = vpack.c.bf16 %v1553, %v1552
      %v1571 = vpack.c.bf16 %v1555, %v1554
      %1588 = vrot.lane.b32.xlu0 %v1556, 24
      %v1589 = vpop.permute.xlu0 %1588
      %1590 = vrot.lane.b32.xlu0 %v1557, 24
      %v1591 = vpop.permute.xlu0 %1590
      %1592 = vrot.lane.b32.xlu0 %v1558, 24
      %v1593 = vpop.permute.xlu0 %1592
      %1594 = vrot.lane.b32.xlu0 %v1559, 24
      %v1595 = vpop.permute.xlu0 %1594
      %1596 = vrot.lane.b32.xlu0 %v1560, 24
      %v1597 = vpop.permute.xlu0 %1596
      %1598 = vrot.lane.b32.xlu0 %v1561, 24
      %v1599 = vpop.permute.xlu0 %1598
      %1600 = vrot.lane.b32.xlu0 %v1562, 24
      %v1601 = vpop.permute.xlu0 %1600
      %1602 = vrot.lane.b32.xlu0 %v1563, 24
      %v1603 = vpop.permute.xlu0 %1602
      %1604 = vrot.lane.b32.xlu0 %v1564, 24
      %v1605 = vpop.permute.xlu0 %1604
      %1606 = vrot.lane.b32.xlu0 %v1565, 24
      %v1607 = vpop.permute.xlu0 %1606
      %1608 = vrot.lane.b32.xlu0 %v1566, 24
      %v1609 = vpop.permute.xlu0 %1608
      %1610 = vrot.lane.b32.xlu0 %v1567, 24
      %v1611 = vpop.permute.xlu0 %1610
      %1612 = vrot.lane.b32.xlu0 %v1568, 24
      %v1613 = vpop.permute.xlu0 %1612
      %1614 = vrot.lane.b32.xlu0 %v1569, 24
      %v1615 = vpop.permute.xlu0 %1614
      %1616 = vrot.lane.b32.xlu0 %v1570, 24
      %v1617 = vpop.permute.xlu0 %1616
      %1618 = vrot.lane.b32.xlu0 %v1571, 24
      %v1619 = vpop.permute.xlu0 %1618
      %vm1636 = vcmask 220352
      %1637 = vst.msk [vmem:[#allocation6] sm:$0xff] %vm1636, %v1589
      %1638 = vst.msk [vmem:[#allocation6 + $0x8] sm:$0xff] %vm1636, %v1591
      %1639 = vst.msk [vmem:[#allocation6 + $0x10] sm:$0xff] %vm1636, %v1593
      %1640 = vst.msk [vmem:[#allocation6 + $0x18] sm:$0xff] %vm1636, %v1595
      %1641 = vst.msk [vmem:[#allocation6 + $0x20] sm:$0xff] %vm1636, %v1597
      %1642 = vst.msk [vmem:[#allocation6 + $0x28] sm:$0xff] %vm1636, %v1599
      %1643 = vst.msk [vmem:[#allocation6 + $0x30] sm:$0xff] %vm1636, %v1601
      %1644 = vst.msk [vmem:[#allocation6 + $0x38] sm:$0xff] %vm1636, %v1603
      %1645 = vst.msk [vmem:[#allocation6 + $0x40] sm:$0xff] %vm1636, %v1605
      %1646 = vst.msk [vmem:[#allocation6 + $0x48] sm:$0xff] %vm1636, %v1607
      %1647 = vst.msk [vmem:[#allocation6 + $0x50] sm:$0xff] %vm1636, %v1609
      %1648 = vst.msk [vmem:[#allocation6 + $0x58] sm:$0xff] %vm1636, %v1611
      %1649 = vst.msk [vmem:[#allocation6 + $0x60] sm:$0xff] %vm1636, %v1613
      %1650 = vst.msk [vmem:[#allocation6 + $0x68] sm:$0xff] %vm1636, %v1615
      %1651 = vst.msk [vmem:[#allocation6 + $0x70] sm:$0xff] %vm1636, %v1617
      %1652 = vst.msk [vmem:[#allocation6 + $0x78] sm:$0xff] %vm1636, %v1619
      %v1653 = vld [vmem:[#allocation6] sm:$0xff]
      %v1654 = vld [vmem:[#allocation6 + $0x8] sm:$0xff]
      %v1655 = vld [vmem:[#allocation6 + $0x10] sm:$0xff]
      %v1656 = vld [vmem:[#allocation6 + $0x18] sm:$0xff]
      %v1657 = vld [vmem:[#allocation6 + $0x20] sm:$0xff]
      %v1658 = vld [vmem:[#allocation6 + $0x28] sm:$0xff]
      %v1659 = vld [vmem:[#allocation6 + $0x30] sm:$0xff]
      %v1660 = vld [vmem:[#allocation6 + $0x38] sm:$0xff]
      %v1661 = vld [vmem:[#allocation6 + $0x40] sm:$0xff]
      %v1662 = vld [vmem:[#allocation6 + $0x48] sm:$0xff]
      %v1663 = vld [vmem:[#allocation6 + $0x50] sm:$0xff]
      %v1664 = vld [vmem:[#allocation6 + $0x58] sm:$0xff]
      %v1665 = vld [vmem:[#allocation6 + $0x60] sm:$0xff]
      %v1666 = vld [vmem:[#allocation6 + $0x68] sm:$0xff]
      %v1667 = vld [vmem:[#allocation6 + $0x70] sm:$0xff]
      %v1668 = vld [vmem:[#allocation6 + $0x78] sm:$0xff]
      %v1669 = vld [vmem:[%s1] sm:$0xf]
      %v1670 = vld [vmem:[%s1 + $0x4] sm:$0xf]
      %v1671 = vld [vmem:[%s1 + $0x8] sm:$0xf]
      %v1672 = vld [vmem:[%s1 + $0xc] sm:$0x3]
      %v1673 = vld [vmem:[%s2] sm:$0x1]
      %v1675 = vlaneseq
      %v1676 = vshrl.u32 %v1675, 7
      %v1677 = vsub.s32 0, %v1676
      %v1678 = vrot.slane %v1673, %v1677
      %v1684 = vunpack.c.l.b16 %v1669
      %v1685 = vunpack.c.l.b16 %v1670
      %v1686 = vunpack.c.l.b16 %v1671
      %v1687 = vunpack.c.l.b16 %v1672
      %v1688 = vpack.c.b16 %v1685, %v1684
      %v1689 = vpack.c.b16 %v1687, %v1686
      %vm1691 = vcmask 220160
      %v1693 = vsel %vm1691, %v1653, 0
      %v1696 = vsel %vm1691, %v1654, 0
      %v1699 = vsel %vm1691, %v1655, 0
      %v1702 = vsel %vm1691, %v1656, 0
      %v1705 = vsel %vm1691, %v1657, 0
      %v1708 = vsel %vm1691, %v1658, 0
      %v1711 = vsel %vm1691, %v1659, 0
      %v1714 = vsel %vm1691, %v1660, 0
      %v1717 = vsel %vm1691, %v1661, 0
      %v1720 = vsel %vm1691, %v1662, 0
      %v1723 = vsel %vm1691, %v1663, 0
      %v1726 = vsel %vm1691, %v1664, 0
      %v1729 = vsel %vm1691, %v1665, 0
      %v1732 = vsel %vm1691, %v1666, 0
      %v1735 = vsel %vm1691, %v1667, 0
      %v1738 = vsel %vm1691, %v1668, 0
      %vm1740 = vcmask 1044480
      %vm1741 = vcmask 1045504
      %v1742 = vsel %vm1740, 4294967295, 65535
      %v1743 = vsel %vm1741, %v1742, 0
      %v1745 = vand.u32 %v1689, %v1743
      %1747 = vmatprep.subr.bf16.mxu0 0
      %1748 = vmatpush1.bf16.msra.mxu0 %v1688
      %1749 = vmatprep.subr.bf16.mxu0 0
      %1750 = vmatpush1.bf16.msra.mxu0 %v1745
      %1751 = vmatprep.subr.bf16.mxu0 0
      %1752 = vmatpush1.bf16.msra.mxu0 0
      %1753 = vmatprep.subr.bf16.mxu0 0
      %1754 = vmatpush1.bf16.msra.mxu0 0
      %1755 = vmatprep.subr.bf16.mxu0 0
      %1756 = vmatpush1.bf16.msra.mxu0 0
      %1757 = vmatprep.subr.bf16.mxu0 0
      %1758 = vmatpush1.bf16.msra.mxu0 0
      %1759 = vmatprep.subr.bf16.mxu0 0
      %1760 = vmatpush1.bf16.msra.mxu0 0
      %1761 = vmatprep.subr.bf16.mxu0 0
      %1762 = vmatpush1.bf16.msra.mxu0 0
      %1763 = vmatprep.subr.bf16.mxu0 0
      %1764 = vmatpush1.bf16.msra.mxu0 0
      %1765 = vmatprep.subr.bf16.mxu0 0
      %1766 = vmatpush1.bf16.msra.mxu0 0
      %1767 = vmatprep.subr.bf16.mxu0 0
      %1768 = vmatpush1.bf16.msra.mxu0 0
      %1769 = vmatprep.subr.bf16.mxu0 0
      %1770 = vmatpush1.bf16.msra.mxu0 0
      %1771 = vmatprep.subr.bf16.mxu0 0
      %1772 = vmatpush1.bf16.msra.mxu0 0
      %1773 = vmatprep.subr.bf16.mxu0 0
      %1774 = vmatpush1.bf16.msra.mxu0 0
      %1775 = vmatprep.subr.bf16.mxu0 0
      %1776 = vmatpush1.bf16.msra.mxu0 0
      %1777 = vmatprep.subr.bf16.mxu0 0
      %1778 = vmatpush1.bf16.msra.mxu0 0
      %1779 = vmatprep.mubr.bf16.mxu0 0
      %1780 = vmatmul.mubr.bf16.gmra.mrb[0].mxu0 %v1693
      %v1781 = vpop.f32.mrb[0].mxu0
      %v1782 = vadd.f32 %v1678, %v1781
      %v1783 = vpop.f32.mrb[0].mxu0
      %v1784 = vpop.f32.mrb[0].mxu0
      %v1785 = vadd.f32 %v1678, %v1784
      %v1786 = vpop.f32.mrb[0].mxu0
      %1787 = vmatprep.mubr.bf16.mxu0 0
      %1788 = vmatmul.mubr.bf16.gmra.mrb[0].mxu0 %v1696
      %v1789 = vpop.f32.mrb[0].mxu0
      %v1790 = vadd.f32 %v1678, %v1789
      %v1791 = vpop.f32.mrb[0].mxu0
      %v1792 = vpop.f32.mrb[0].mxu0
      %v1793 = vadd.f32 %v1678, %v1792
      %v1794 = vpop.f32.mrb[0].mxu0
      %1795 = vmatprep.mubr.bf16.mxu0 0
      %1796 = vmatmul.mubr.bf16.gmra.mrb[0].mxu0 %v1699
      %v1797 = vpop.f32.mrb[0].mxu0
      %v1798 = vadd.f32 %v1678, %v1797
      %v1799 = vpop.f32.mrb[0].mxu0
      %v1800 = vpop.f32.mrb[0].mxu0
      %v1801 = vadd.f32 %v1678, %v1800
      %v1802 = vpop.f32.mrb[0].mxu0
      %1803 = vmatprep.mubr.bf16.mxu0 0
      %1804 = vmatmul.mubr.bf16.gmra.mrb[0].mxu0 %v1702
      %v1805 = vpop.f32.mrb[0].mxu0
      %v1806 = vadd.f32 %v1678, %v1805
      %v1807 = vpop.f32.mrb[0].mxu0
      %v1808 = vpop.f32.mrb[0].mxu0
      %v1809 = vadd.f32 %v1678, %v1808
      %v1810 = vpop.f32.mrb[0].mxu0
      %1811 = vmatprep.mubr.bf16.mxu0 0
      %1812 = vmatmul.mubr.bf16.gmra.mrb[0].mxu0 %v1705
      %v1813 = vpop.f32.mrb[0].mxu0
      %v1814 = vadd.f32 %v1678, %v1813
      %v1815 = vpop.f32.mrb[0].mxu0
      %v1816 = vpop.f32.mrb[0].mxu0
      %v1817 = vadd.f32 %v1678, %v1816
      %v1818 = vpop.f32.mrb[0].mxu0
      %1819 = vmatprep.mubr.bf16.mxu0 0
      %1820 = vmatmul.mubr.bf16.gmra.mrb[0].mxu0 %v1708
      %v1821 = vpop.f32.mrb[0].mxu0
      %v1822 = vadd.f32 %v1678, %v1821
      %v1823 = vpop.f32.mrb[0].mxu0
      %v1824 = vpop.f32.mrb[0].mxu0
      %v1825 = vadd.f32 %v1678, %v1824
      %v1826 = vpop.f32.mrb[0].mxu0
      %1827 = vmatprep.mubr.bf16.mxu0 0
      %1828 = vmatmul.mubr.bf16.gmra.mrb[0].mxu0 %v1711
      %v1829 = vpop.f32.mrb[0].mxu0
      %v1830 = vadd.f32 %v1678, %v1829
      %v1831 = vpop.f32.mrb[0].mxu0
      %v1832 = vpop.f32.mrb[0].mxu0
      %v1833 = vadd.f32 %v1678, %v1832
      %v1834 = vpop.f32.mrb[0].mxu0
      %1835 = vmatprep.mubr.bf16.mxu0 0
      %1836 = vmatmul.mubr.bf16.gmra.mrb[0].mxu0 %v1714
      %v1837 = vpop.f32.mrb[0].mxu0
      %v1838 = vadd.f32 %v1678, %v1837
      %v1839 = vpop.f32.mrb[0].mxu0
      %v1840 = vpop.f32.mrb[0].mxu0
      %v1841 = vadd.f32 %v1678, %v1840
      %v1842 = vpop.f32.mrb[0].mxu0
      %1843 = vmatprep.mubr.bf16.mxu0 0
      %1844 = vmatmul.mubr.bf16.gmra.mrb[0].mxu0 %v1717
      %v1845 = vpop.f32.mrb[0].mxu0
      %v1846 = vadd.f32 %v1678, %v1845
      %v1847 = vpop.f32.mrb[0].mxu0
      %v1848 = vpop.f32.mrb[0].mxu0
      %v1849 = vadd.f32 %v1678, %v1848
      %v1850 = vpop.f32.mrb[0].mxu0
      %1851 = vmatprep.mubr.bf16.mxu0 0
      %1852 = vmatmul.mubr.bf16.gmra.mrb[0].mxu0 %v1720
      %v1853 = vpop.f32.mrb[0].mxu0
      %v1854 = vadd.f32 %v1678, %v1853
      %v1855 = vpop.f32.mrb[0].mxu0
      %v1856 = vpop.f32.mrb[0].mxu0
      %v1857 = vadd.f32 %v1678, %v1856
      %v1858 = vpop.f32.mrb[0].mxu0
      %1859 = vmatprep.mubr.bf16.mxu0 0
      %1860 = vmatmul.mubr.bf16.gmra.mrb[0].mxu0 %v1723
      %v1861 = vpop.f32.mrb[0].mxu0
      %v1862 = vadd.f32 %v1678, %v1861
      %v1863 = vpop.f32.mrb[0].mxu0
      %v1864 = vpop.f32.mrb[0].mxu0
      %v1865 = vadd.f32 %v1678, %v1864
      %v1866 = vpop.f32.mrb[0].mxu0
      %1867 = vmatprep.mubr.bf16.mxu0 0
      %1868 = vmatmul.mubr.bf16.gmra.mrb[0].mxu0 %v1726
      %v1869 = vpop.f32.mrb[0].mxu0
      %v1870 = vadd.f32 %v1678, %v1869
      %v1871 = vpop.f32.mrb[0].mxu0
      %v1872 = vpop.f32.mrb[0].mxu0
      %v1873 = vadd.f32 %v1678, %v1872
      %v1874 = vpop.f32.mrb[0].mxu0
      %1875 = vmatprep.mubr.bf16.mxu0 0
      %1876 = vmatmul.mubr.bf16.gmra.mrb[0].mxu0 %v1729
      %v1877 = vpop.f32.mrb[0].mxu0
      %v1878 = vadd.f32 %v1678, %v1877
      %v1879 = vpop.f32.mrb[0].mxu0
      %v1880 = vpop.f32.mrb[0].mxu0
      %v1881 = vadd.f32 %v1678, %v1880
      %v1882 = vpop.f32.mrb[0].mxu0
      %1883 = vmatprep.mubr.bf16.mxu0 0
      %1884 = vmatmul.mubr.bf16.gmra.mrb[0].mxu0 %v1732
      %v1885 = vpop.f32.mrb[0].mxu0
      %v1886 = vadd.f32 %v1678, %v1885
      %v1887 = vpop.f32.mrb[0].mxu0
      %v1888 = vpop.f32.mrb[0].mxu0
      %v1889 = vadd.f32 %v1678, %v1888
      %v1890 = vpop.f32.mrb[0].mxu0
      %1891 = vmatprep.mubr.bf16.mxu0 0
      %1892 = vmatmul.mubr.bf16.gmra.mrb[0].mxu0 %v1735
      %v1893 = vpop.f32.mrb[0].mxu0
      %v1894 = vadd.f32 %v1678, %v1893
      %v1895 = vpop.f32.mrb[0].mxu0
      %v1896 = vpop.f32.mrb[0].mxu0
      %v1897 = vadd.f32 %v1678, %v1896
      %v1898 = vpop.f32.mrb[0].mxu0
      %1899 = vmatprep.mubr.bf16.mxu0 0
      %1900 = vmatmul.mubr.bf16.gmra.mrb[0].mxu0 %v1738
      %v1901 = vpop.f32.mrb[0].mxu0
      %v1902 = vadd.f32 %v1678, %v1901
      %v1903 = vpop.f32.mrb[0].mxu0
      %v1904 = vpop.f32.mrb[0].mxu0
      %v1905 = vadd.f32 %v1678, %v1904
      %v1906 = vpop.f32.mrb[0].mxu0
      %1907 = vdwg.mxu0
      %v1908 = vmax.f32 %v1782, 0.0
      %v1909 = vmax.f32 %v1785, 0.0
      %v1910 = vmax.f32 %v1790, 0.0
      %v1911 = vmax.f32 %v1793, 0.0
      %v1912 = vmax.f32 %v1798, 0.0
      %v1913 = vmax.f32 %v1801, 0.0
      %v1914 = vmax.f32 %v1806, 0.0
      %v1915 = vmax.f32 %v1809, 0.0
      %v1916 = vmax.f32 %v1814, 0.0
      %v1917 = vmax.f32 %v1817, 0.0
      %v1918 = vmax.f32 %v1822, 0.0
      %v1919 = vmax.f32 %v1825, 0.0
      %v1920 = vmax.f32 %v1830, 0.0
      %v1921 = vmax.f32 %v1833, 0.0
      %v1922 = vmax.f32 %v1838, 0.0
      %v1923 = vmax.f32 %v1841, 0.0
      %v1924 = vmax.f32 %v1846, 0.0
      %v1925 = vmax.f32 %v1849, 0.0
      %v1926 = vmax.f32 %v1854, 0.0
      %v1927 = vmax.f32 %v1857, 0.0
      %v1928 = vmax.f32 %v1862, 0.0
      %v1929 = vmax.f32 %v1865, 0.0
      %v1930 = vmax.f32 %v1870, 0.0
      %v1931 = vmax.f32 %v1873, 0.0
      %v1932 = vmax.f32 %v1878, 0.0
      %v1933 = vmax.f32 %v1881, 0.0
      %v1934 = vmax.f32 %v1886, 0.0
      %v1935 = vmax.f32 %v1889, 0.0
      %v1936 = vmax.f32 %v1894, 0.0
      %v1937 = vmax.f32 %v1897, 0.0
      %v1938 = vmax.f32 %v1902, 0.0
      %v1939 = vmax.f32 %v1905, 0.0
      %vm1940 = vcmask 130048
      %1941 = vst.msk [vmem:[#allocation3] sm:$0xff] %vm1940, 0.0
      %1942 = vst.msk [vmem:[#allocation3 + $0x8] sm:$0xff] %vm1940, 0.0
      %1943 = vst.msk [vmem:[#allocation3 + $0x10] sm:$0xff] %vm1940, 0.0
      %vm1944 = vcmask 122880
      %1945 = vst.msk [vmem:[#allocation3 + $0x18] sm:$0x1] %vm1944, 0.0
      %1946 = vst.msk [vmem:[#allocation3 + $0x20] sm:$0xff] %vm1940, 0.0
      %1947 = vst.msk [vmem:[#allocation3 + $0x28] sm:$0xff] %vm1940, 0.0
      %1948 = vst.msk [vmem:[#allocation3 + $0x30] sm:$0xff] %vm1940, 0.0
      %1949 = vst.msk [vmem:[#allocation3 + $0x38] sm:$0x1] %vm1944, 0.0
      %1950 = vst.msk [vmem:[#allocation3 + $0x40] sm:$0xff] %vm1940, 0.0
      %1951 = vst.msk [vmem:[#allocation3 + $0x48] sm:$0xff] %vm1940, 0.0
      %1952 = vst.msk [vmem:[#allocation3 + $0x50] sm:$0xff] %vm1940, 0.0
      %1953 = vst.msk [vmem:[#allocation3 + $0x58] sm:$0x1] %vm1944, 0.0
      %1954 = vst.msk [vmem:[#allocation3 + $0x60] sm:$0xff] %vm1940, 0.0
      %1955 = vst.msk [vmem:[#allocation3 + $0x68] sm:$0xff] %vm1940, 0.0
      %1956 = vst.msk [vmem:[#allocation3 + $0x70] sm:$0xff] %vm1940, 0.0
      %1957 = vst.msk [vmem:[#allocation3 + $0x78] sm:$0x1] %vm1944, 0.0
      %1958 = vst.msk [vmem:[#allocation3 + $0x80] sm:$0xff] %vm1940, 0.0
      %1959 = vst.msk [vmem:[#allocation3 + $0x88] sm:$0xff] %vm1940, 0.0
      %1960 = vst.msk [vmem:[#allocation3 + $0x90] sm:$0xff] %vm1940, 0.0
      %1961 = vst.msk [vmem:[#allocation3 + $0x98] sm:$0x1] %vm1944, 0.0
      %1962 = vst.msk [vmem:[#allocation3 + $0xa0] sm:$0xff] %vm1940, 0.0
      %1963 = vst.msk [vmem:[#allocation3 + $0xa8] sm:$0xff] %vm1940, 0.0
      %1964 = vst.msk [vmem:[#allocation3 + $0xb0] sm:$0xff] %vm1940, 0.0
      %1965 = vst.msk [vmem:[#allocation3 + $0xb8] sm:$0x1] %vm1944, 0.0
      %1966 = vst.msk [vmem:[#allocation3 + $0xc0] sm:$0xff] %vm1940, 0.0
      %1967 = vst.msk [vmem:[#allocation3 + $0xc8] sm:$0xff] %vm1940, 0.0
      %1968 = vst.msk [vmem:[#allocation3 + $0xd0] sm:$0xff] %vm1940, 0.0
      %1969 = vst.msk [vmem:[#allocation3 + $0xd8] sm:$0x1] %vm1944, 0.0
      %1970 = vst.msk [vmem:[#allocation3 + $0xe0] sm:$0xff] %vm1940, 0.0
      %1971 = vst.msk [vmem:[#allocation3 + $0xe8] sm:$0xff] %vm1940, 0.0
      %1972 = vst.msk [vmem:[#allocation3 + $0xf0] sm:$0xff] %vm1940, 0.0
      %1973 = vst.msk [vmem:[#allocation3 + $0xf8] sm:$0x1] %vm1944, 0.0
      %1974 = vst.msk [vmem:[#allocation3 + $0x100] sm:$0xff] %vm1940, 0.0
      %1975 = vst.msk [vmem:[#allocation3 + $0x108] sm:$0xff] %vm1940, 0.0
      %1976 = vst.msk [vmem:[#allocation3 + $0x110] sm:$0xff] %vm1940, 0.0
      %1977 = vst.msk [vmem:[#allocation3 + $0x118] sm:$0x1] %vm1944, 0.0
      %1978 = vst.msk [vmem:[#allocation3 + $0x120] sm:$0xff] %vm1940, 0.0
      %1979 = vst.msk [vmem:[#allocation3 + $0x128] sm:$0xff] %vm1940, 0.0
      %1980 = vst.msk [vmem:[#allocation3 + $0x130] sm:$0xff] %vm1940, 0.0
      %1981 = vst.msk [vmem:[#allocation3 + $0x138] sm:$0x1] %vm1944, 0.0
      %1982 = vst.msk [vmem:[#allocation3 + $0x140] sm:$0xff] %vm1940, 0.0
      %1983 = vst.msk [vmem:[#allocation3 + $0x148] sm:$0xff] %vm1940, 0.0
      %1984 = vst.msk [vmem:[#allocation3 + $0x150] sm:$0xff] %vm1940, 0.0
      %1985 = vst.msk [vmem:[#allocation3 + $0x158] sm:$0x1] %vm1944, 0.0
      %1986 = vst.msk [vmem:[#allocation3 + $0x160] sm:$0xff] %vm1940, 0.0
      %1987 = vst.msk [vmem:[#allocation3 + $0x168] sm:$0xff] %vm1940, 0.0
      %1988 = vst.msk [vmem:[#allocation3 + $0x170] sm:$0xff] %vm1940, 0.0
      %1989 = vst.msk [vmem:[#allocation3 + $0x178] sm:$0x1] %vm1944, 0.0
      %1990 = vst.msk [vmem:[#allocation3 + $0x180] sm:$0xff] %vm1940, 0.0
      %1991 = vst.msk [vmem:[#allocation3 + $0x188] sm:$0xff] %vm1940, 0.0
      %1992 = vst.msk [vmem:[#allocation3 + $0x190] sm:$0xff] %vm1940, 0.0
      %1993 = vst.msk [vmem:[#allocation3 + $0x198] sm:$0x1] %vm1944, 0.0
      %1994 = vst.msk [vmem:[#allocation3 + $0x1a0] sm:$0xff] %vm1940, 0.0
      %1995 = vst.msk [vmem:[#allocation3 + $0x1a8] sm:$0xff] %vm1940, 0.0
      %1996 = vst.msk [vmem:[#allocation3 + $0x1b0] sm:$0xff] %vm1940, 0.0
      %1997 = vst.msk [vmem:[#allocation3 + $0x1b8] sm:$0x1] %vm1944, 0.0
      %1998 = vst.msk [vmem:[#allocation3 + $0x1c0] sm:$0xff] %vm1940, 0.0
      %1999 = vst.msk [vmem:[#allocation3 + $0x1c8] sm:$0xff] %vm1940, 0.0
      %2000 = vst.msk [vmem:[#allocation3 + $0x1d0] sm:$0xff] %vm1940, 0.0
      %2001 = vst.msk [vmem:[#allocation3 + $0x1d8] sm:$0x1] %vm1944, 0.0
      %2002 = vst.msk [vmem:[#allocation3 + $0x1e0] sm:$0xff] %vm1940, 0.0
      %2003 = vst.msk [vmem:[#allocation3 + $0x1e8] sm:$0xff] %vm1940, 0.0
      %2004 = vst.msk [vmem:[#allocation3 + $0x1f0] sm:$0xff] %vm1940, 0.0
      %2005 = vst.msk [vmem:[#allocation3 + $0x1f8] sm:$0x1] %vm1944, 0.0
      %2006 = vst.msk [vmem:[#allocation3 + $0x200] sm:$0xff] %vm1940, 0.0
      %2007 = vst.msk [vmem:[#allocation3 + $0x208] sm:$0xff] %vm1940, 0.0
      %2008 = vst.msk [vmem:[#allocation3 + $0x210] sm:$0xff] %vm1940, 0.0
      %2009 = vst.msk [vmem:[#allocation3 + $0x218] sm:$0x1] %vm1944, 0.0
      %2010 = vst.msk [vmem:[#allocation3 + $0x220] sm:$0xff] %vm1940, 0.0
      %2011 = vst.msk [vmem:[#allocation3 + $0x228] sm:$0xff] %vm1940, 0.0
      %2012 = vst.msk [vmem:[#allocation3 + $0x230] sm:$0xff] %vm1940, 0.0
      %2013 = vst.msk [vmem:[#allocation3 + $0x238] sm:$0x1] %vm1944, 0.0
      %2014 = vst.msk [vmem:[#allocation3 + $0x240] sm:$0xff] %vm1940, 0.0
      %2015 = vst.msk [vmem:[#allocation3 + $0x248] sm:$0xff] %vm1940, 0.0
      %2016 = vst.msk [vmem:[#allocation3 + $0x250] sm:$0xff] %vm1940, 0.0
      %2017 = vst.msk [vmem:[#allocation3 + $0x258] sm:$0x1] %vm1944, 0.0
      %2018 = vst.msk [vmem:[#allocation3 + $0x260] sm:$0xff] %vm1940, 0.0
      %2019 = vst.msk [vmem:[#allocation3 + $0x268] sm:$0xff] %vm1940, 0.0
      %2020 = vst.msk [vmem:[#allocation3 + $0x270] sm:$0xff] %vm1940, 0.0
      %2021 = vst.msk [vmem:[#allocation3 + $0x278] sm:$0x1] %vm1944, 0.0
      %2022 = vst.msk [vmem:[#allocation3 + $0x280] sm:$0xff] %vm1940, 0.0
      %2023 = vst.msk [vmem:[#allocation3 + $0x288] sm:$0xff] %vm1940, 0.0
      %2024 = vst.msk [vmem:[#allocation3 + $0x290] sm:$0xff] %vm1940, 0.0
      %2025 = vst.msk [vmem:[#allocation3 + $0x298] sm:$0x1] %vm1944, 0.0
      %2026 = vst.msk [vmem:[#allocation3 + $0x2a0] sm:$0xff] %vm1940, 0.0
      %2027 = vst.msk [vmem:[#allocation3 + $0x2a8] sm:$0xff] %vm1940, 0.0
      %2028 = vst.msk [vmem:[#allocation3 + $0x2b0] sm:$0xff] %vm1940, 0.0
      %2029 = vst.msk [vmem:[#allocation3 + $0x2b8] sm:$0x1] %vm1944, 0.0
      %2030 = vst.msk [vmem:[#allocation3 + $0x2c0] sm:$0xff] %vm1940, 0.0
      %2031 = vst.msk [vmem:[#allocation3 + $0x2c8] sm:$0xff] %vm1940, 0.0
      %2032 = vst.msk [vmem:[#allocation3 + $0x2d0] sm:$0xff] %vm1940, 0.0
      %2033 = vst.msk [vmem:[#allocation3 + $0x2d8] sm:$0x1] %vm1944, 0.0
      %2034 = vst.msk [vmem:[#allocation3 + $0x2e0] sm:$0xff] %vm1940, 0.0
      %2035 = vst.msk [vmem:[#allocation3 + $0x2e8] sm:$0xff] %vm1940, 0.0
      %2036 = vst.msk [vmem:[#allocation3 + $0x2f0] sm:$0xff] %vm1940, 0.0
      %2037 = vst.msk [vmem:[#allocation3 + $0x2f8] sm:$0x1] %vm1944, 0.0
      %2038 = vst.msk [vmem:[#allocation3 + $0x300] sm:$0xff] %vm1940, 0.0
      %2039 = vst.msk [vmem:[#allocation3 + $0x308] sm:$0xff] %vm1940, 0.0
      %2040 = vst.msk [vmem:[#allocation3 + $0x310] sm:$0xff] %vm1940, 0.0
      %2041 = vst.msk [vmem:[#allocation3 + $0x318] sm:$0x1] %vm1944, 0.0
      %s2042 = scalar_lea.vmem [#allocation3], 256
      %2043 = vst.msk [vmem:[%s2042 + $0x8] sm:$0xff] %vm1940, %v1908
      %2044 = vst.msk [vmem:[%s2042 + $0x10] sm:$0xff] %vm1940, %v1909
      %2045 = vst.msk [vmem:[%s2042 + $0x28] sm:$0xff] %vm1940, %v1910
      %2046 = vst.msk [vmem:[%s2042 + $0x30] sm:$0xff] %vm1940, %v1911
      %2047 = vst.msk [vmem:[%s2042 + $0x48] sm:$0xff] %vm1940, %v1912
      %2048 = vst.msk [vmem:[%s2042 + $0x50] sm:$0xff] %vm1940, %v1913
      %2049 = vst.msk [vmem:[%s2042 + $0x68] sm:$0xff] %vm1940, %v1914
      %2050 = vst.msk [vmem:[%s2042 + $0x70] sm:$0xff] %vm1940, %v1915
      %2051 = vst.msk [vmem:[%s2042 + $0x88] sm:$0xff] %vm1940, %v1916
      %2052 = vst.msk [vmem:[%s2042 + $0x90] sm:$0xff] %vm1940, %v1917
      %2053 = vst.msk [vmem:[%s2042 + $0xa8] sm:$0xff] %vm1940, %v1918
      %2054 = vst.msk [vmem:[%s2042 + $0xb0] sm:$0xff] %vm1940, %v1919
      %2055 = vst.msk [vmem:[%s2042 + $0xc8] sm:$0xff] %vm1940, %v1920
      %2056 = vst.msk [vmem:[%s2042 + $0xd0] sm:$0xff] %vm1940, %v1921
      %2057 = vst.msk [vmem:[%s2042 + $0xe8] sm:$0xff] %vm1940, %v1922
      %2058 = vst.msk [vmem:[%s2042 + $0xf0] sm:$0xff] %vm1940, %v1923
      %2059 = vst.msk [vmem:[%s2042 + $0x108] sm:$0xff] %vm1940, %v1924
      %2060 = vst.msk [vmem:[%s2042 + $0x110] sm:$0xff] %vm1940, %v1925
      %2061 = vst.msk [vmem:[%s2042 + $0x128] sm:$0xff] %vm1940, %v1926
      %2062 = vst.msk [vmem:[%s2042 + $0x130] sm:$0xff] %vm1940, %v1927
      %2063 = vst.msk [vmem:[%s2042 + $0x148] sm:$0xff] %vm1940, %v1928
      %2064 = vst.msk [vmem:[%s2042 + $0x150] sm:$0xff] %vm1940, %v1929
      %2065 = vst.msk [vmem:[%s2042 + $0x168] sm:$0xff] %vm1940, %v1930
      %2066 = vst.msk [vmem:[%s2042 + $0x170] sm:$0xff] %vm1940, %v1931
      %2067 = vst.msk [vmem:[%s2042 + $0x188] sm:$0xff] %vm1940, %v1932
      %2068 = vst.msk [vmem:[%s2042 + $0x190] sm:$0xff] %vm1940, %v1933
      %2069 = vst.msk [vmem:[%s2042 + $0x1a8] sm:$0xff] %vm1940, %v1934
      %2070 = vst.msk [vmem:[%s2042 + $0x1b0] sm:$0xff] %vm1940, %v1935
      %2071 = vst.msk [vmem:[%s2042 + $0x1c8] sm:$0xff] %vm1940, %v1936
      %2072 = vst.msk [vmem:[%s2042 + $0x1d0] sm:$0xff] %vm1940, %v1937
      %2073 = vst.msk [vmem:[%s2042 + $0x1e8] sm:$0xff] %vm1940, %v1938
      %2074 = vst.msk [vmem:[%s2042 + $0x1f0] sm:$0xff] %vm1940, %v1939
      %s2075 = scalar_lea.vmem [#allocation3], 224
      %v2076 = vld [vmem:[%s2075 + $0x7] sm:$0xff]
      %v2077 = vld [vmem:[%s2075 + $0xf] sm:$0xff]
      %v2078 = vld [vmem:[%s2075 + $0x27] sm:$0xff]
      %v2079 = vld [vmem:[%s2075 + $0x2f] sm:$0xff]
      %v2080 = vld [vmem:[%s2075 + $0x47] sm:$0xff]
      %v2081 = vld [vmem:[%s2075 + $0x4f] sm:$0xff]
      %v2082 = vld [vmem:[%s2075 + $0x67] sm:$0xff]
      %v2083 = vld [vmem:[%s2075 + $0x6f] sm:$0xff]
      %v2084 = vld [vmem:[%s2075 + $0x87] sm:$0xff]
      %v2085 = vld [vmem:[%s2075 + $0x8f] sm:$0xff]
      %v2086 = vld [vmem:[%s2075 + $0xa7] sm:$0xff]
      %v2087 = vld [vmem:[%s2075 + $0xaf] sm:$0xff]
      %v2088 = vld [vmem:[%s2075 + $0xc7] sm:$0xff]
      %v2089 = vld [vmem:[%s2075 + $0xcf] sm:$0xff]
      %v2090 = vld [vmem:[%s2075 + $0xe7] sm:$0xff]
      %v2091 = vld [vmem:[%s2075 + $0xef] sm:$0xff]
      %v2092 = vld [vmem:[%s2075 + $0x107] sm:$0xff]
      %v2093 = vld [vmem:[%s2075 + $0x10f] sm:$0xff]
      %v2094 = vld [vmem:[%s2075 + $0x127] sm:$0xff]
      %v2095 = vld [vmem:[%s2075 + $0x12f] sm:$0xff]
      %v2096 = vld [vmem:[%s2075 + $0x147] sm:$0xff]
      %v2097 = vld [vmem:[%s2075 + $0x14f] sm:$0xff]
      %v2098 = vld [vmem:[%s2075 + $0x167] sm:$0xff]
      %v2099 = vld [vmem:[%s2075 + $0x16f] sm:$0xff]
      %v2100 = vld [vmem:[%s2075 + $0x187] sm:$0xff]
      %v2101 = vld [vmem:[%s2075 + $0x18f] sm:$0xff]
      %v2102 = vld [vmem:[%s2075 + $0x1a7] sm:$0xff]
      %v2103 = vld [vmem:[%s2075 + $0x1af] sm:$0xff]
      %v2104 = vld [vmem:[%s2075 + $0x1c7] sm:$0xff]
      %v2105 = vld [vmem:[%s2075 + $0x1cf] sm:$0xff]
      %v2106 = vld [vmem:[%s2075 + $0x1e7] sm:$0xff]
      %v2107 = vld [vmem:[%s2075 + $0x1ef] sm:$0xff]
      %v2108 = vpack.c.bf16 %v2077, %v2076
      %v2109 = vpack.c.bf16 %v2079, %v2078
      %v2110 = vpack.c.bf16 %v2081, %v2080
      %v2111 = vpack.c.bf16 %v2083, %v2082
      %v2112 = vpack.c.bf16 %v2085, %v2084
      %v2113 = vpack.c.bf16 %v2087, %v2086
      %v2114 = vpack.c.bf16 %v2089, %v2088
      %v2115 = vpack.c.bf16 %v2091, %v2090
      %v2116 = vpack.c.bf16 %v2093, %v2092
      %v2117 = vpack.c.bf16 %v2095, %v2094
      %v2118 = vpack.c.bf16 %v2097, %v2096
      %v2119 = vpack.c.bf16 %v2099, %v2098
      %v2120 = vpack.c.bf16 %v2101, %v2100
      %v2121 = vpack.c.bf16 %v2103, %v2102
      %v2122 = vpack.c.bf16 %v2105, %v2104
      %v2123 = vpack.c.bf16 %v2107, %v2106
      %2124 = vst.msk [vmem:[#allocation7] sm:$0xff] %vm1940, %v2108
      %2125 = vst.msk [vmem:[#allocation7 + $0x10] sm:$0xff] %vm1940, %v2109
      %2126 = vst.msk [vmem:[#allocation7 + $0x20] sm:$0xff] %vm1940, %v2110
      %2127 = vst.msk [vmem:[#allocation7 + $0x30] sm:$0xff] %vm1940, %v2111
      %2128 = vst.msk [vmem:[#allocation7 + $0x40] sm:$0xff] %vm1940, %v2112
      %2129 = vst.msk [vmem:[#allocation7 + $0x50] sm:$0xff] %vm1940, %v2113
      %2130 = vst.msk [vmem:[#allocation7 + $0x60] sm:$0xff] %vm1940, %v2114
      %2131 = vst.msk [vmem:[#allocation7 + $0x70] sm:$0xff] %vm1940, %v2115
      %2132 = vst.msk [vmem:[#allocation7 + $0x80] sm:$0xff] %vm1940, %v2116
      %2133 = vst.msk [vmem:[#allocation7 + $0x90] sm:$0xff] %vm1940, %v2117
      %2134 = vst.msk [vmem:[#allocation7 + $0xa0] sm:$0xff] %vm1940, %v2118
      %2135 = vst.msk [vmem:[#allocation7 + $0xb0] sm:$0xff] %vm1940, %v2119
      %2136 = vst.msk [vmem:[#allocation7 + $0xc0] sm:$0xff] %vm1940, %v2120
      %2137 = vst.msk [vmem:[#allocation7 + $0xd0] sm:$0xff] %vm1940, %v2121
      %2138 = vst.msk [vmem:[#allocation7 + $0xe0] sm:$0xff] %vm1940, %v2122
      %2139 = vst.msk [vmem:[#allocation7 + $0xf0] sm:$0xff] %vm1940, %v2123
      %v2140 = vld [vmem:[%s2075 + $0x8] sm:$0xff]
      %v2141 = vld [vmem:[%s2075 + $0x10] sm:$0xff]
      %v2142 = vld [vmem:[%s2075 + $0x28] sm:$0xff]
      %v2143 = vld [vmem:[%s2075 + $0x30] sm:$0xff]
      %v2144 = vld [vmem:[%s2075 + $0x48] sm:$0xff]
      %v2145 = vld [vmem:[%s2075 + $0x50] sm:$0xff]
      %v2146 = vld [vmem:[%s2075 + $0x68] sm:$0xff]
      %v2147 = vld [vmem:[%s2075 + $0x70] sm:$0xff]
      %v2148 = vld [vmem:[%s2075 + $0x88] sm:$0xff]
      %v2149 = vld [vmem:[%s2075 + $0x90] sm:$0xff]
      %v2150 = vld [vmem:[%s2075 + $0xa8] sm:$0xff]
      %v2151 = vld [vmem:[%s2075 + $0xb0] sm:$0xff]
      %v2152 = vld [vmem:[%s2075 + $0xc8] sm:$0xff]
      %v2153 = vld [vmem:[%s2075 + $0xd0] sm:$0xff]
      %v2154 = vld [vmem:[%s2075 + $0xe8] sm:$0xff]
      %v2155 = vld [vmem:[%s2075 + $0xf0] sm:$0xff]
      %v2156 = vld [vmem:[%s2075 + $0x108] sm:$0xff]
      %v2157 = vld [vmem:[%s2075 + $0x110] sm:$0xff]
      %v2158 = vld [vmem:[%s2075 + $0x128] sm:$0xff]
      %v2159 = vld [vmem:[%s2075 + $0x130] sm:$0xff]
      %v2160 = vld [vmem:[%s2075 + $0x148] sm:$0xff]
      %v2161 = vld [vmem:[%s2075 + $0x150] sm:$0xff]
      %v2162 = vld [vmem:[%s2075 + $0x168] sm:$0xff]
      %v2163 = vld [vmem:[%s2075 + $0x170] sm:$0xff]
      %v2164 = vld [vmem:[%s2075 + $0x188] sm:$0xff]
      %v2165 = vld [vmem:[%s2075 + $0x190] sm:$0xff]
      %v2166 = vld [vmem:[%s2075 + $0x1a8] sm:$0xff]
      %v2167 = vld [vmem:[%s2075 + $0x1b0] sm:$0xff]
      %v2168 = vld [vmem:[%s2075 + $0x1c8] sm:$0xff]
      %v2169 = vld [vmem:[%s2075 + $0x1d0] sm:$0xff]
      %v2170 = vld [vmem:[%s2075 + $0x1e8] sm:$0xff]
      %v2171 = vld [vmem:[%s2075 + $0x1f0] sm:$0xff]
      %v2172 = vpack.c.bf16 %v2141, %v2140
      %v2173 = vpack.c.bf16 %v2143, %v2142
      %v2174 = vpack.c.bf16 %v2145, %v2144
      %v2175 = vpack.c.bf16 %v2147, %v2146
      %v2176 = vpack.c.bf16 %v2149, %v2148
      %v2177 = vpack.c.bf16 %v2151, %v2150
      %v2178 = vpack.c.bf16 %v2153, %v2152
      %v2179 = vpack.c.bf16 %v2155, %v2154
      %v2180 = vpack.c.bf16 %v2157, %v2156
      %v2181 = vpack.c.bf16 %v2159, %v2158
      %v2182 = vpack.c.bf16 %v2161, %v2160
      %v2183 = vpack.c.bf16 %v2163, %v2162
      %v2184 = vpack.c.bf16 %v2165, %v2164
      %v2185 = vpack.c.bf16 %v2167, %v2166
      %v2186 = vpack.c.bf16 %v2169, %v2168
      %v2187 = vpack.c.bf16 %v2171, %v2170
      %2204 = vrot.lane.b32.xlu0 %v2172, 16
      %v2205 = vpop.permute.xlu0 %2204
      %2206 = vrot.lane.b32.xlu0 %v2173, 16
      %v2207 = vpop.permute.xlu0 %2206
      %2208 = vrot.lane.b32.xlu0 %v2174, 16
      %v2209 = vpop.permute.xlu0 %2208
      %2210 = vrot.lane.b32.xlu0 %v2175, 16
      %v2211 = vpop.permute.xlu0 %2210
      %2212 = vrot.lane.b32.xlu0 %v2176, 16
      %v2213 = vpop.permute.xlu0 %2212
      %2214 = vrot.lane.b32.xlu0 %v2177, 16
      %v2215 = vpop.permute.xlu0 %2214
      %2216 = vrot.lane.b32.xlu0 %v2178, 16
      %v2217 = vpop.permute.xlu0 %2216
      %2218 = vrot.lane.b32.xlu0 %v2179, 16
      %v2219 = vpop.permute.xlu0 %2218
      %2220 = vrot.lane.b32.xlu0 %v2180, 16
      %v2221 = vpop.permute.xlu0 %2220
      %2222 = vrot.lane.b32.xlu0 %v2181, 16
      %v2223 = vpop.permute.xlu0 %2222
      %2224 = vrot.lane.b32.xlu0 %v2182, 16
      %v2225 = vpop.permute.xlu0 %2224
      %2226 = vrot.lane.b32.xlu0 %v2183, 16
      %v2227 = vpop.permute.xlu0 %2226
      %2228 = vrot.lane.b32.xlu0 %v2184, 16
      %v2229 = vpop.permute.xlu0 %2228
      %2230 = vrot.lane.b32.xlu0 %v2185, 16
      %v2231 = vpop.permute.xlu0 %2230
      %2232 = vrot.lane.b32.xlu0 %v2186, 16
      %v2233 = vpop.permute.xlu0 %2232
      %2234 = vrot.lane.b32.xlu0 %v2187, 16
      %v2235 = vpop.permute.xlu0 %2234
      %vm2252 = vcmask 261248
      %2253 = vst.msk [vmem:[#allocation7] sm:$0xff] %vm2252, %v2205
      %2254 = vst.msk [vmem:[#allocation7 + $0x10] sm:$0xff] %vm2252, %v2207
      %2255 = vst.msk [vmem:[#allocation7 + $0x20] sm:$0xff] %vm2252, %v2209
      %2256 = vst.msk [vmem:[#allocation7 + $0x30] sm:$0xff] %vm2252, %v2211
      %2257 = vst.msk [vmem:[#allocation7 + $0x40] sm:$0xff] %vm2252, %v2213
      %2258 = vst.msk [vmem:[#allocation7 + $0x50] sm:$0xff] %vm2252, %v2215
      %2259 = vst.msk [vmem:[#allocation7 + $0x60] sm:$0xff] %vm2252, %v2217
      %2260 = vst.msk [vmem:[#allocation7 + $0x70] sm:$0xff] %vm2252, %v2219
      %2261 = vst.msk [vmem:[#allocation7 + $0x80] sm:$0xff] %vm2252, %v2221
      %2262 = vst.msk [vmem:[#allocation7 + $0x90] sm:$0xff] %vm2252, %v2223
      %2263 = vst.msk [vmem:[#allocation7 + $0xa0] sm:$0xff] %vm2252, %v2225
      %2264 = vst.msk [vmem:[#allocation7 + $0xb0] sm:$0xff] %vm2252, %v2227
      %2265 = vst.msk [vmem:[#allocation7 + $0xc0] sm:$0xff] %vm2252, %v2229
      %2266 = vst.msk [vmem:[#allocation7 + $0xd0] sm:$0xff] %vm2252, %v2231
      %2267 = vst.msk [vmem:[#allocation7 + $0xe0] sm:$0xff] %vm2252, %v2233
      %2268 = vst.msk [vmem:[#allocation7 + $0xf0] sm:$0xff] %vm2252, %v2235
      %v2269 = vld [vmem:[%s2075 + $0x9] sm:$0xff]
      %v2270 = vld [vmem:[%s2075 + $0x11] sm:$0xff]
      %v2271 = vld [vmem:[%s2075 + $0x29] sm:$0xff]
      %v2272 = vld [vmem:[%s2075 + $0x31] sm:$0xff]
      %v2273 = vld [vmem:[%s2075 + $0x49] sm:$0xff]
      %v2274 = vld [vmem:[%s2075 + $0x51] sm:$0xff]
      %v2275 = vld [vmem:[%s2075 + $0x69] sm:$0xff]
      %v2276 = vld [vmem:[%s2075 + $0x71] sm:$0xff]
      %v2277 = vld [vmem:[%s2075 + $0x89] sm:$0xff]
      %v2278 = vld [vmem:[%s2075 + $0x91] sm:$0xff]
      %v2279 = vld [vmem:[%s2075 + $0xa9] sm:$0xff]
      %v2280 = vld [vmem:[%s2075 + $0xb1] sm:$0xff]
      %v2281 = vld [vmem:[%s2075 + $0xc9] sm:$0xff]
      %v2282 = vld [vmem:[%s2075 + $0xd1] sm:$0xff]
      %v2283 = vld [vmem:[%s2075 + $0xe9] sm:$0xff]
      %v2284 = vld [vmem:[%s2075 + $0xf1] sm:$0xff]
      %v2285 = vld [vmem:[%s2075 + $0x109] sm:$0xff]
      %v2286 = vld [vmem:[%s2075 + $0x111] sm:$0xff]
      %v2287 = vld [vmem:[%s2075 + $0x129] sm:$0xff]
      %v2288 = vld [vmem:[%s2075 + $0x131] sm:$0xff]
      %v2289 = vld [vmem:[%s2075 + $0x149] sm:$0xff]
      %v2290 = vld [vmem:[%s2075 + $0x151] sm:$0xff]
      %v2291 = vld [vmem:[%s2075 + $0x169] sm:$0xff]
      %v2292 = vld [vmem:[%s2075 + $0x171] sm:$0xff]
      %v2293 = vld [vmem:[%s2075 + $0x189] sm:$0xff]
      %v2294 = vld [vmem:[%s2075 + $0x191] sm:$0xff]
      %v2295 = vld [vmem:[%s2075 + $0x1a9] sm:$0xff]
      %v2296 = vld [vmem:[%s2075 + $0x1b1] sm:$0xff]
      %v2297 = vld [vmem:[%s2075 + $0x1c9] sm:$0xff]
      %v2298 = vld [vmem:[%s2075 + $0x1d1] sm:$0xff]
      %v2299 = vld [vmem:[%s2075 + $0x1e9] sm:$0xff]
      %v2300 = vld [vmem:[%s2075 + $0x1f1] sm:$0xff]
      %v2301 = vpack.c.bf16 %v2270, %v2269
      %v2302 = vpack.c.bf16 %v2272, %v2271
      %v2303 = vpack.c.bf16 %v2274, %v2273
      %v2304 = vpack.c.bf16 %v2276, %v2275
      %v2305 = vpack.c.bf16 %v2278, %v2277
      %v2306 = vpack.c.bf16 %v2280, %v2279
      %v2307 = vpack.c.bf16 %v2282, %v2281
      %v2308 = vpack.c.bf16 %v2284, %v2283
      %v2309 = vpack.c.bf16 %v2286, %v2285
      %v2310 = vpack.c.bf16 %v2288, %v2287
      %v2311 = vpack.c.bf16 %v2290, %v2289
      %v2312 = vpack.c.bf16 %v2292, %v2291
      %v2313 = vpack.c.bf16 %v2294, %v2293
      %v2314 = vpack.c.bf16 %v2296, %v2295
      %v2315 = vpack.c.bf16 %v2298, %v2297
      %v2316 = vpack.c.bf16 %v2300, %v2299
      %2333 = vrot.lane.b32.xlu0 %v2301, 32
      %v2334 = vpop.permute.xlu0 %2333
      %2335 = vrot.lane.b32.xlu0 %v2302, 32
      %v2336 = vpop.permute.xlu0 %2335
      %2337 = vrot.lane.b32.xlu0 %v2303, 32
      %v2338 = vpop.permute.xlu0 %2337
      %2339 = vrot.lane.b32.xlu0 %v2304, 32
      %v2340 = vpop.permute.xlu0 %2339
      %2341 = vrot.lane.b32.xlu0 %v2305, 32
      %v2342 = vpop.permute.xlu0 %2341
      %2343 = vrot.lane.b32.xlu0 %v2306, 32
      %v2344 = vpop.permute.xlu0 %2343
      %2345 = vrot.lane.b32.xlu0 %v2307, 32
      %v2346 = vpop.permute.xlu0 %2345
      %2347 = vrot.lane.b32.xlu0 %v2308, 32
      %v2348 = vpop.permute.xlu0 %2347
      %2349 = vrot.lane.b32.xlu0 %v2309, 32
      %v2350 = vpop.permute.xlu0 %2349
      %2351 = vrot.lane.b32.xlu0 %v2310, 32
      %v2352 = vpop.permute.xlu0 %2351
      %2353 = vrot.lane.b32.xlu0 %v2311, 32
      %v2354 = vpop.permute.xlu0 %2353
      %2355 = vrot.lane.b32.xlu0 %v2312, 32
      %v2356 = vpop.permute.xlu0 %2355
      %2357 = vrot.lane.b32.xlu0 %v2313, 32
      %v2358 = vpop.permute.xlu0 %2357
      %2359 = vrot.lane.b32.xlu0 %v2314, 32
      %v2360 = vpop.permute.xlu0 %2359
      %2361 = vrot.lane.b32.xlu0 %v2315, 32
      %v2362 = vpop.permute.xlu0 %2361
      %2363 = vrot.lane.b32.xlu0 %v2316, 32
      %v2364 = vpop.permute.xlu0 %2363
      %vm2381 = vcmask 392448
      %2382 = vst.msk [vmem:[#allocation7] sm:$0xff] %vm2381, %v2334
      %2383 = vst.msk [vmem:[#allocation7 + $0x10] sm:$0xff] %vm2381, %v2336
      %2384 = vst.msk [vmem:[#allocation7 + $0x20] sm:$0xff] %vm2381, %v2338
      %2385 = vst.msk [vmem:[#allocation7 + $0x30] sm:$0xff] %vm2381, %v2340
      %2386 = vst.msk [vmem:[#allocation7 + $0x40] sm:$0xff] %vm2381, %v2342
      %2387 = vst.msk [vmem:[#allocation7 + $0x50] sm:$0xff] %vm2381, %v2344
      %2388 = vst.msk [vmem:[#allocation7 + $0x60] sm:$0xff] %vm2381, %v2346
      %2389 = vst.msk [vmem:[#allocation7 + $0x70] sm:$0xff] %vm2381, %v2348
      %2390 = vst.msk [vmem:[#allocation7 + $0x80] sm:$0xff] %vm2381, %v2350
      %2391 = vst.msk [vmem:[#allocation7 + $0x90] sm:$0xff] %vm2381, %v2352
      %2392 = vst.msk [vmem:[#allocation7 + $0xa0] sm:$0xff] %vm2381, %v2354
      %2393 = vst.msk [vmem:[#allocation7 + $0xb0] sm:$0xff] %vm2381, %v2356
      %2394 = vst.msk [vmem:[#allocation7 + $0xc0] sm:$0xff] %vm2381, %v2358
      %2395 = vst.msk [vmem:[#allocation7 + $0xd0] sm:$0xff] %vm2381, %v2360
      %2396 = vst.msk [vmem:[#allocation7 + $0xe0] sm:$0xff] %vm2381, %v2362
      %2397 = vst.msk [vmem:[#allocation7 + $0xf0] sm:$0xff] %vm2381, %v2364
      %v2398 = vld [vmem:[%s2042 + $0x7] sm:$0xff]
      %v2399 = vld [vmem:[%s2042 + $0xf] sm:$0xff]
      %v2400 = vld [vmem:[%s2042 + $0x27] sm:$0xff]
      %v2401 = vld [vmem:[%s2042 + $0x2f] sm:$0xff]
      %v2402 = vld [vmem:[%s2042 + $0x47] sm:$0xff]
      %v2403 = vld [vmem:[%s2042 + $0x4f] sm:$0xff]
      %v2404 = vld [vmem:[%s2042 + $0x67] sm:$0xff]
      %v2405 = vld [vmem:[%s2042 + $0x6f] sm:$0xff]
      %v2406 = vld [vmem:[%s2042 + $0x87] sm:$0xff]
      %v2407 = vld [vmem:[%s2042 + $0x8f] sm:$0xff]
      %v2408 = vld [vmem:[%s2042 + $0xa7] sm:$0xff]
      %v2409 = vld [vmem:[%s2042 + $0xaf] sm:$0xff]
      %v2410 = vld [vmem:[%s2042 + $0xc7] sm:$0xff]
      %v2411 = vld [vmem:[%s2042 + $0xcf] sm:$0xff]
      %v2412 = vld [vmem:[%s2042 + $0xe7] sm:$0xff]
      %v2413 = vld [vmem:[%s2042 + $0xef] sm:$0xff]
      %v2414 = vld [vmem:[%s2042 + $0x107] sm:$0xff]
      %v2415 = vld [vmem:[%s2042 + $0x10f] sm:$0xff]
      %v2416 = vld [vmem:[%s2042 + $0x127] sm:$0xff]
      %v2417 = vld [vmem:[%s2042 + $0x12f] sm:$0xff]
      %v2418 = vld [vmem:[%s2042 + $0x147] sm:$0xff]
      %v2419 = vld [vmem:[%s2042 + $0x14f] sm:$0xff]
      %v2420 = vld [vmem:[%s2042 + $0x167] sm:$0xff]
      %v2421 = vld [vmem:[%s2042 + $0x16f] sm:$0xff]
      %v2422 = vld [vmem:[%s2042 + $0x187] sm:$0xff]
      %v2423 = vld [vmem:[%s2042 + $0x18f] sm:$0xff]
      %v2424 = vld [vmem:[%s2042 + $0x1a7] sm:$0xff]
      %v2425 = vld [vmem:[%s2042 + $0x1af] sm:$0xff]
      %v2426 = vld [vmem:[%s2042 + $0x1c7] sm:$0xff]
      %v2427 = vld [vmem:[%s2042 + $0x1cf] sm:$0xff]
      %v2428 = vld [vmem:[%s2042 + $0x1e7] sm:$0xff]
      %v2429 = vld [vmem:[%s2042 + $0x1ef] sm:$0xff]
      %v2430 = vpack.c.bf16 %v2399, %v2398
      %v2431 = vpack.c.bf16 %v2401, %v2400
      %v2432 = vpack.c.bf16 %v2403, %v2402
      %v2433 = vpack.c.bf16 %v2405, %v2404
      %v2434 = vpack.c.bf16 %v2407, %v2406
      %v2435 = vpack.c.bf16 %v2409, %v2408
      %v2436 = vpack.c.bf16 %v2411, %v2410
      %v2437 = vpack.c.bf16 %v2413, %v2412
      %v2438 = vpack.c.bf16 %v2415, %v2414
      %v2439 = vpack.c.bf16 %v2417, %v2416
      %v2440 = vpack.c.bf16 %v2419, %v2418
      %v2441 = vpack.c.bf16 %v2421, %v2420
      %v2442 = vpack.c.bf16 %v2423, %v2422
      %v2443 = vpack.c.bf16 %v2425, %v2424
      %v2444 = vpack.c.bf16 %v2427, %v2426
      %v2445 = vpack.c.bf16 %v2429, %v2428
      %2462 = vrot.lane.b32.xlu0 %v2430, 48
      %v2463 = vpop.permute.xlu0 %2462
      %2464 = vrot.lane.b32.xlu0 %v2431, 48
      %v2465 = vpop.permute.xlu0 %2464
      %2466 = vrot.lane.b32.xlu0 %v2432, 48
      %v2467 = vpop.permute.xlu0 %2466
      %2468 = vrot.lane.b32.xlu0 %v2433, 48
      %v2469 = vpop.permute.xlu0 %2468
      %2470 = vrot.lane.b32.xlu0 %v2434, 48
      %v2471 = vpop.permute.xlu0 %2470
      %2472 = vrot.lane.b32.xlu0 %v2435, 48
      %v2473 = vpop.permute.xlu0 %2472
      %2474 = vrot.lane.b32.xlu0 %v2436, 48
      %v2475 = vpop.permute.xlu0 %2474
      %2476 = vrot.lane.b32.xlu0 %v2437, 48
      %v2477 = vpop.permute.xlu0 %2476
      %2478 = vrot.lane.b32.xlu0 %v2438, 48
      %v2479 = vpop.permute.xlu0 %2478
      %2480 = vrot.lane.b32.xlu0 %v2439, 48
      %v2481 = vpop.permute.xlu0 %2480
      %2482 = vrot.lane.b32.xlu0 %v2440, 48
      %v2483 = vpop.permute.xlu0 %2482
      %2484 = vrot.lane.b32.xlu0 %v2441, 48
      %v2485 = vpop.permute.xlu0 %2484
      %2486 = vrot.lane.b32.xlu0 %v2442, 48
      %v2487 = vpop.permute.xlu0 %2486
      %2488 = vrot.lane.b32.xlu0 %v2443, 48
      %v2489 = vpop.permute.xlu0 %2488
      %2490 = vrot.lane.b32.xlu0 %v2444, 48
      %v2491 = vpop.permute.xlu0 %2490
      %2492 = vrot.lane.b32.xlu0 %v2445, 48
      %v2493 = vpop.permute.xlu0 %2492
      %vm2510 = vcmask 523648
      %2511 = vst.msk [vmem:[#allocation7] sm:$0xff] %vm2510, %v2463
      %2512 = vst.msk [vmem:[#allocation7 + $0x10] sm:$0xff] %vm2510, %v2465
      %2513 = vst.msk [vmem:[#allocation7 + $0x20] sm:$0xff] %vm2510, %v2467
      %2514 = vst.msk [vmem:[#allocation7 + $0x30] sm:$0xff] %vm2510, %v2469
      %2515 = vst.msk [vmem:[#allocation7 + $0x40] sm:$0xff] %vm2510, %v2471
      %2516 = vst.msk [vmem:[#allocation7 + $0x50] sm:$0xff] %vm2510, %v2473
      %2517 = vst.msk [vmem:[#allocation7 + $0x60] sm:$0xff] %vm2510, %v2475
      %2518 = vst.msk [vmem:[#allocation7 + $0x70] sm:$0xff] %vm2510, %v2477
      %2519 = vst.msk [vmem:[#allocation7 + $0x80] sm:$0xff] %vm2510, %v2479
      %2520 = vst.msk [vmem:[#allocation7 + $0x90] sm:$0xff] %vm2510, %v2481
      %2521 = vst.msk [vmem:[#allocation7 + $0xa0] sm:$0xff] %vm2510, %v2483
      %2522 = vst.msk [vmem:[#allocation7 + $0xb0] sm:$0xff] %vm2510, %v2485
      %2523 = vst.msk [vmem:[#allocation7 + $0xc0] sm:$0xff] %vm2510, %v2487
      %2524 = vst.msk [vmem:[#allocation7 + $0xd0] sm:$0xff] %vm2510, %v2489
      %2525 = vst.msk [vmem:[#allocation7 + $0xe0] sm:$0xff] %vm2510, %v2491
      %2526 = vst.msk [vmem:[#allocation7 + $0xf0] sm:$0xff] %vm2510, %v2493
      %v2527 = vld [vmem:[%s2042 + $0x8] sm:$0xff]
      %v2528 = vld [vmem:[%s2042 + $0x10] sm:$0xff]
      %v2529 = vld [vmem:[%s2042 + $0x28] sm:$0xff]
      %v2530 = vld [vmem:[%s2042 + $0x30] sm:$0xff]
      %v2531 = vld [vmem:[%s2042 + $0x48] sm:$0xff]
      %v2532 = vld [vmem:[%s2042 + $0x50] sm:$0xff]
      %v2533 = vld [vmem:[%s2042 + $0x68] sm:$0xff]
      %v2534 = vld [vmem:[%s2042 + $0x70] sm:$0xff]
      %v2535 = vld [vmem:[%s2042 + $0x88] sm:$0xff]
      %v2536 = vld [vmem:[%s2042 + $0x90] sm:$0xff]
      %v2537 = vld [vmem:[%s2042 + $0xa8] sm:$0xff]
      %v2538 = vld [vmem:[%s2042 + $0xb0] sm:$0xff]
      %v2539 = vld [vmem:[%s2042 + $0xc8] sm:$0xff]
      %v2540 = vld [vmem:[%s2042 + $0xd0] sm:$0xff]
      %v2541 = vld [vmem:[%s2042 + $0xe8] sm:$0xff]
      %v2542 = vld [vmem:[%s2042 + $0xf0] sm:$0xff]
      %v2543 = vld [vmem:[%s2042 + $0x108] sm:$0xff]
      %v2544 = vld [vmem:[%s2042 + $0x110] sm:$0xff]
      %v2545 = vld [vmem:[%s2042 + $0x128] sm:$0xff]
      %v2546 = vld [vmem:[%s2042 + $0x130] sm:$0xff]
      %v2547 = vld [vmem:[%s2042 + $0x148] sm:$0xff]
      %v2548 = vld [vmem:[%s2042 + $0x150] sm:$0xff]
      %v2549 = vld [vmem:[%s2042 + $0x168] sm:$0xff]
      %v2550 = vld [vmem:[%s2042 + $0x170] sm:$0xff]
      %v2551 = vld [vmem:[%s2042 + $0x188] sm:$0xff]
      %v2552 = vld [vmem:[%s2042 + $0x190] sm:$0xff]
      %v2553 = vld [vmem:[%s2042 + $0x1a8] sm:$0xff]
      %v2554 = vld [vmem:[%s2042 + $0x1b0] sm:$0xff]
      %v2555 = vld [vmem:[%s2042 + $0x1c8] sm:$0xff]
      %v2556 = vld [vmem:[%s2042 + $0x1d0] sm:$0xff]
      %v2557 = vld [vmem:[%s2042 + $0x1e8] sm:$0xff]
      %v2558 = vld [vmem:[%s2042 + $0x1f0] sm:$0xff]
      %v2559 = vpack.c.bf16 %v2528, %v2527
      %v2560 = vpack.c.bf16 %v2530, %v2529
      %v2561 = vpack.c.bf16 %v2532, %v2531
      %v2562 = vpack.c.bf16 %v2534, %v2533
      %v2563 = vpack.c.bf16 %v2536, %v2535
      %v2564 = vpack.c.bf16 %v2538, %v2537
      %v2565 = vpack.c.bf16 %v2540, %v2539
      %v2566 = vpack.c.bf16 %v2542, %v2541
      %v2567 = vpack.c.bf16 %v2544, %v2543
      %v2568 = vpack.c.bf16 %v2546, %v2545
      %v2569 = vpack.c.bf16 %v2548, %v2547
      %v2570 = vpack.c.bf16 %v2550, %v2549
      %v2571 = vpack.c.bf16 %v2552, %v2551
      %v2572 = vpack.c.bf16 %v2554, %v2553
      %v2573 = vpack.c.bf16 %v2556, %v2555
      %v2574 = vpack.c.bf16 %v2558, %v2557
      %2591 = vrot.lane.b32.xlu0 %v2559, 64
      %v2592 = vpop.permute.xlu0 %2591
      %2593 = vrot.lane.b32.xlu0 %v2560, 64
      %v2594 = vpop.permute.xlu0 %2593
      %2595 = vrot.lane.b32.xlu0 %v2561, 64
      %v2596 = vpop.permute.xlu0 %2595
      %2597 = vrot.lane.b32.xlu0 %v2562, 64
      %v2598 = vpop.permute.xlu0 %2597
      %2599 = vrot.lane.b32.xlu0 %v2563, 64
      %v2600 = vpop.permute.xlu0 %2599
      %2601 = vrot.lane.b32.xlu0 %v2564, 64
      %v2602 = vpop.permute.xlu0 %2601
      %2603 = vrot.lane.b32.xlu0 %v2565, 64
      %v2604 = vpop.permute.xlu0 %2603
      %2605 = vrot.lane.b32.xlu0 %v2566, 64
      %v2606 = vpop.permute.xlu0 %2605
      %2607 = vrot.lane.b32.xlu0 %v2567, 64
      %v2608 = vpop.permute.xlu0 %2607
      %2609 = vrot.lane.b32.xlu0 %v2568, 64
      %v2610 = vpop.permute.xlu0 %2609
      %2611 = vrot.lane.b32.xlu0 %v2569, 64
      %v2612 = vpop.permute.xlu0 %2611
      %2613 = vrot.lane.b32.xlu0 %v2570, 64
      %v2614 = vpop.permute.xlu0 %2613
      %2615 = vrot.lane.b32.xlu0 %v2571, 64
      %v2616 = vpop.permute.xlu0 %2615
      %2617 = vrot.lane.b32.xlu0 %v2572, 64
      %v2618 = vpop.permute.xlu0 %2617
      %2619 = vrot.lane.b32.xlu0 %v2573, 64
      %v2620 = vpop.permute.xlu0 %2619
      %2621 = vrot.lane.b32.xlu0 %v2574, 64
      %v2622 = vpop.permute.xlu0 %2621
      %vm2639 = vcmask 654848
      %2640 = vst.msk [vmem:[#allocation7] sm:$0xff] %vm2639, %v2592
      %2641 = vst.msk [vmem:[#allocation7 + $0x10] sm:$0xff] %vm2639, %v2594
      %2642 = vst.msk [vmem:[#allocation7 + $0x20] sm:$0xff] %vm2639, %v2596
      %2643 = vst.msk [vmem:[#allocation7 + $0x30] sm:$0xff] %vm2639, %v2598
      %2644 = vst.msk [vmem:[#allocation7 + $0x40] sm:$0xff] %vm2639, %v2600
      %2645 = vst.msk [vmem:[#allocation7 + $0x50] sm:$0xff] %vm2639, %v2602
      %2646 = vst.msk [vmem:[#allocation7 + $0x60] sm:$0xff] %vm2639, %v2604
      %2647 = vst.msk [vmem:[#allocation7 + $0x70] sm:$0xff] %vm2639, %v2606
      %2648 = vst.msk [vmem:[#allocation7 + $0x80] sm:$0xff] %vm2639, %v2608
      %2649 = vst.msk [vmem:[#allocation7 + $0x90] sm:$0xff] %vm2639, %v2610
      %2650 = vst.msk [vmem:[#allocation7 + $0xa0] sm:$0xff] %vm2639, %v2612
      %2651 = vst.msk [vmem:[#allocation7 + $0xb0] sm:$0xff] %vm2639, %v2614
      %2652 = vst.msk [vmem:[#allocation7 + $0xc0] sm:$0xff] %vm2639, %v2616
      %2653 = vst.msk [vmem:[#allocation7 + $0xd0] sm:$0xff] %vm2639, %v2618
      %2654 = vst.msk [vmem:[#allocation7 + $0xe0] sm:$0xff] %vm2639, %v2620
      %2655 = vst.msk [vmem:[#allocation7 + $0xf0] sm:$0xff] %vm2639, %v2622
      %v2656 = vld [vmem:[%s2042 + $0x9] sm:$0xff]
      %v2657 = vld [vmem:[%s2042 + $0x11] sm:$0xff]
      %v2658 = vld [vmem:[%s2042 + $0x29] sm:$0xff]
      %v2659 = vld [vmem:[%s2042 + $0x31] sm:$0xff]
      %v2660 = vld [vmem:[%s2042 + $0x49] sm:$0xff]
      %v2661 = vld [vmem:[%s2042 + $0x51] sm:$0xff]
      %v2662 = vld [vmem:[%s2042 + $0x69] sm:$0xff]
      %v2663 = vld [vmem:[%s2042 + $0x71] sm:$0xff]
      %v2664 = vld [vmem:[%s2042 + $0x89] sm:$0xff]
      %v2665 = vld [vmem:[%s2042 + $0x91] sm:$0xff]
      %v2666 = vld [vmem:[%s2042 + $0xa9] sm:$0xff]
      %v2667 = vld [vmem:[%s2042 + $0xb1] sm:$0xff]
      %v2668 = vld [vmem:[%s2042 + $0xc9] sm:$0xff]
      %v2669 = vld [vmem:[%s2042 + $0xd1] sm:$0xff]
      %v2670 = vld [vmem:[%s2042 + $0xe9] sm:$0xff]
      %v2671 = vld [vmem:[%s2042 + $0xf1] sm:$0xff]
      %v2672 = vld [vmem:[%s2042 + $0x109] sm:$0xff]
      %v2673 = vld [vmem:[%s2042 + $0x111] sm:$0xff]
      %v2674 = vld [vmem:[%s2042 + $0x129] sm:$0xff]
      %v2675 = vld [vmem:[%s2042 + $0x131] sm:$0xff]
      %v2676 = vld [vmem:[%s2042 + $0x149] sm:$0xff]
      %v2677 = vld [vmem:[%s2042 + $0x151] sm:$0xff]
      %v2678 = vld [vmem:[%s2042 + $0x169] sm:$0xff]
      %v2679 = vld [vmem:[%s2042 + $0x171] sm:$0xff]
      %v2680 = vld [vmem:[%s2042 + $0x189] sm:$0xff]
      %v2681 = vld [vmem:[%s2042 + $0x191] sm:$0xff]
      %v2682 = vld [vmem:[%s2042 + $0x1a9] sm:$0xff]
      %v2683 = vld [vmem:[%s2042 + $0x1b1] sm:$0xff]
      %v2684 = vld [vmem:[%s2042 + $0x1c9] sm:$0xff]
      %v2685 = vld [vmem:[%s2042 + $0x1d1] sm:$0xff]
      %v2686 = vld [vmem:[%s2042 + $0x1e9] sm:$0xff]
      %v2687 = vld [vmem:[%s2042 + $0x1f1] sm:$0xff]
      %v2688 = vpack.c.bf16 %v2657, %v2656
      %v2689 = vpack.c.bf16 %v2659, %v2658
      %v2690 = vpack.c.bf16 %v2661, %v2660
      %v2691 = vpack.c.bf16 %v2663, %v2662
      %v2692 = vpack.c.bf16 %v2665, %v2664
      %v2693 = vpack.c.bf16 %v2667, %v2666
      %v2694 = vpack.c.bf16 %v2669, %v2668
      %v2695 = vpack.c.bf16 %v2671, %v2670
      %v2696 = vpack.c.bf16 %v2673, %v2672
      %v2697 = vpack.c.bf16 %v2675, %v2674
      %v2698 = vpack.c.bf16 %v2677, %v2676
      %v2699 = vpack.c.bf16 %v2679, %v2678
      %v2700 = vpack.c.bf16 %v2681, %v2680
      %v2701 = vpack.c.bf16 %v2683, %v2682
      %v2702 = vpack.c.bf16 %v2685, %v2684
      %v2703 = vpack.c.bf16 %v2687, %v2686
      %2720 = vrot.lane.b32.xlu0 %v2688, 80
      %v2721 = vpop.permute.xlu0 %2720
      %2722 = vrot.lane.b32.xlu0 %v2689, 80
      %v2723 = vpop.permute.xlu0 %2722
      %2724 = vrot.lane.b32.xlu0 %v2690, 80
      %v2725 = vpop.permute.xlu0 %2724
      %2726 = vrot.lane.b32.xlu0 %v2691, 80
      %v2727 = vpop.permute.xlu0 %2726
      %2728 = vrot.lane.b32.xlu0 %v2692, 80
      %v2729 = vpop.permute.xlu0 %2728
      %2730 = vrot.lane.b32.xlu0 %v2693, 80
      %v2731 = vpop.permute.xlu0 %2730
      %2732 = vrot.lane.b32.xlu0 %v2694, 80
      %v2733 = vpop.permute.xlu0 %2732
      %2734 = vrot.lane.b32.xlu0 %v2695, 80
      %v2735 = vpop.permute.xlu0 %2734
      %2736 = vrot.lane.b32.xlu0 %v2696, 80
      %v2737 = vpop.permute.xlu0 %2736
      %2738 = vrot.lane.b32.xlu0 %v2697, 80
      %v2739 = vpop.permute.xlu0 %2738
      %2740 = vrot.lane.b32.xlu0 %v2698, 80
      %v2741 = vpop.permute.xlu0 %2740
      %2742 = vrot.lane.b32.xlu0 %v2699, 80
      %v2743 = vpop.permute.xlu0 %2742
      %2744 = vrot.lane.b32.xlu0 %v2700, 80
      %v2745 = vpop.permute.xlu0 %2744
      %2746 = vrot.lane.b32.xlu0 %v2701, 80
      %v2747 = vpop.permute.xlu0 %2746
      %2748 = vrot.lane.b32.xlu0 %v2702, 80
      %v2749 = vpop.permute.xlu0 %2748
      %2750 = vrot.lane.b32.xlu0 %v2703, 80
      %v2751 = vpop.permute.xlu0 %2750
      %vm2768 = vcmask 786048
      %2769 = vst.msk [vmem:[#allocation7] sm:$0xff] %vm2768, %v2721
      %2770 = vst.msk [vmem:[#allocation7 + $0x10] sm:$0xff] %vm2768, %v2723
      %2771 = vst.msk [vmem:[#allocation7 + $0x20] sm:$0xff] %vm2768, %v2725
      %2772 = vst.msk [vmem:[#allocation7 + $0x30] sm:$0xff] %vm2768, %v2727
      %2773 = vst.msk [vmem:[#allocation7 + $0x40] sm:$0xff] %vm2768, %v2729
      %2774 = vst.msk [vmem:[#allocation7 + $0x50] sm:$0xff] %vm2768, %v2731
      %2775 = vst.msk [vmem:[#allocation7 + $0x60] sm:$0xff] %vm2768, %v2733
      %2776 = vst.msk [vmem:[#allocation7 + $0x70] sm:$0xff] %vm2768, %v2735
      %2777 = vst.msk [vmem:[#allocation7 + $0x80] sm:$0xff] %vm2768, %v2737
      %2778 = vst.msk [vmem:[#allocation7 + $0x90] sm:$0xff] %vm2768, %v2739
      %2779 = vst.msk [vmem:[#allocation7 + $0xa0] sm:$0xff] %vm2768, %v2741
      %2780 = vst.msk [vmem:[#allocation7 + $0xb0] sm:$0xff] %vm2768, %v2743
      %2781 = vst.msk [vmem:[#allocation7 + $0xc0] sm:$0xff] %vm2768, %v2745
      %2782 = vst.msk [vmem:[#allocation7 + $0xd0] sm:$0xff] %vm2768, %v2747
      %2783 = vst.msk [vmem:[#allocation7 + $0xe0] sm:$0xff] %vm2768, %v2749
      %2784 = vst.msk [vmem:[#allocation7 + $0xf0] sm:$0xff] %vm2768, %v2751
      %s2785 = scalar_lea.vmem [#allocation3], 288
      %v2786 = vld [vmem:[%s2785 + $0x7] sm:$0xff]
      %v2787 = vld [vmem:[%s2785 + $0xf] sm:$0xff]
      %v2788 = vld [vmem:[%s2785 + $0x27] sm:$0xff]
      %v2789 = vld [vmem:[%s2785 + $0x2f] sm:$0xff]
      %v2790 = vld [vmem:[%s2785 + $0x47] sm:$0xff]
      %v2791 = vld [vmem:[%s2785 + $0x4f] sm:$0xff]
      %v2792 = vld [vmem:[%s2785 + $0x67] sm:$0xff]
      %v2793 = vld [vmem:[%s2785 + $0x6f] sm:$0xff]
      %v2794 = vld [vmem:[%s2785 + $0x87] sm:$0xff]
      %v2795 = vld [vmem:[%s2785 + $0x8f] sm:$0xff]
      %v2796 = vld [vmem:[%s2785 + $0xa7] sm:$0xff]
      %v2797 = vld [vmem:[%s2785 + $0xaf] sm:$0xff]
      %v2798 = vld [vmem:[%s2785 + $0xc7] sm:$0xff]
      %v2799 = vld [vmem:[%s2785 + $0xcf] sm:$0xff]
      %v2800 = vld [vmem:[%s2785 + $0xe7] sm:$0xff]
      %v2801 = vld [vmem:[%s2785 + $0xef] sm:$0xff]
      %v2802 = vld [vmem:[%s2785 + $0x107] sm:$0xff]
      %v2803 = vld [vmem:[%s2785 + $0x10f] sm:$0xff]
      %v2804 = vld [vmem:[%s2785 + $0x127] sm:$0xff]
      %v2805 = vld [vmem:[%s2785 + $0x12f] sm:$0xff]
      %v2806 = vld [vmem:[%s2785 + $0x147] sm:$0xff]
      %v2807 = vld [vmem:[%s2785 + $0x14f] sm:$0xff]
      %v2808 = vld [vmem:[%s2785 + $0x167] sm:$0xff]
      %v2809 = vld [vmem:[%s2785 + $0x16f] sm:$0xff]
      %v2810 = vld [vmem:[%s2785 + $0x187] sm:$0xff]
      %v2811 = vld [vmem:[%s2785 + $0x18f] sm:$0xff]
      %v2812 = vld [vmem:[%s2785 + $0x1a7] sm:$0xff]
      %v2813 = vld [vmem:[%s2785 + $0x1af] sm:$0xff]
      %v2814 = vld [vmem:[%s2785 + $0x1c7] sm:$0xff]
      %v2815 = vld [vmem:[%s2785 + $0x1cf] sm:$0xff]
      %v2816 = vld [vmem:[%s2785 + $0x1e7] sm:$0xff]
      %v2817 = vld [vmem:[%s2785 + $0x1ef] sm:$0xff]
      %v2818 = vpack.c.bf16 %v2787, %v2786
      %v2819 = vpack.c.bf16 %v2789, %v2788
      %v2820 = vpack.c.bf16 %v2791, %v2790
      %v2821 = vpack.c.bf16 %v2793, %v2792
      %v2822 = vpack.c.bf16 %v2795, %v2794
      %v2823 = vpack.c.bf16 %v2797, %v2796
      %v2824 = vpack.c.bf16 %v2799, %v2798
      %v2825 = vpack.c.bf16 %v2801, %v2800
      %v2826 = vpack.c.bf16 %v2803, %v2802
      %v2827 = vpack.c.bf16 %v2805, %v2804
      %v2828 = vpack.c.bf16 %v2807, %v2806
      %v2829 = vpack.c.bf16 %v2809, %v2808
      %v2830 = vpack.c.bf16 %v2811, %v2810
      %v2831 = vpack.c.bf16 %v2813, %v2812
      %v2832 = vpack.c.bf16 %v2815, %v2814
      %v2833 = vpack.c.bf16 %v2817, %v2816
      %2850 = vrot.lane.b32.xlu0 %v2818, 96
      %v2851 = vpop.permute.xlu0 %2850
      %2852 = vrot.lane.b32.xlu0 %v2819, 96
      %v2853 = vpop.permute.xlu0 %2852
      %2854 = vrot.lane.b32.xlu0 %v2820, 96
      %v2855 = vpop.permute.xlu0 %2854
      %2856 = vrot.lane.b32.xlu0 %v2821, 96
      %v2857 = vpop.permute.xlu0 %2856
      %2858 = vrot.lane.b32.xlu0 %v2822, 96
      %v2859 = vpop.permute.xlu0 %2858
      %2860 = vrot.lane.b32.xlu0 %v2823, 96
      %v2861 = vpop.permute.xlu0 %2860
      %2862 = vrot.lane.b32.xlu0 %v2824, 96
      %v2863 = vpop.permute.xlu0 %2862
      %2864 = vrot.lane.b32.xlu0 %v2825, 96
      %v2865 = vpop.permute.xlu0 %2864
      %2866 = vrot.lane.b32.xlu0 %v2826, 96
      %v2867 = vpop.permute.xlu0 %2866
      %2868 = vrot.lane.b32.xlu0 %v2827, 96
      %v2869 = vpop.permute.xlu0 %2868
      %2870 = vrot.lane.b32.xlu0 %v2828, 96
      %v2871 = vpop.permute.xlu0 %2870
      %2872 = vrot.lane.b32.xlu0 %v2829, 96
      %v2873 = vpop.permute.xlu0 %2872
      %2874 = vrot.lane.b32.xlu0 %v2830, 96
      %v2875 = vpop.permute.xlu0 %2874
      %2876 = vrot.lane.b32.xlu0 %v2831, 96
      %v2877 = vpop.permute.xlu0 %2876
      %2878 = vrot.lane.b32.xlu0 %v2832, 96
      %v2879 = vpop.permute.xlu0 %2878
      %2880 = vrot.lane.b32.xlu0 %v2833, 96
      %v2881 = vpop.permute.xlu0 %2880
      %vm2898 = vcmask 917248
      %2899 = vst.msk [vmem:[#allocation7] sm:$0xff] %vm2898, %v2851
      %2900 = vst.msk [vmem:[#allocation7 + $0x10] sm:$0xff] %vm2898, %v2853
      %2901 = vst.msk [vmem:[#allocation7 + $0x20] sm:$0xff] %vm2898, %v2855
      %2902 = vst.msk [vmem:[#allocation7 + $0x30] sm:$0xff] %vm2898, %v2857
      %2903 = vst.msk [vmem:[#allocation7 + $0x40] sm:$0xff] %vm2898, %v2859
      %2904 = vst.msk [vmem:[#allocation7 + $0x50] sm:$0xff] %vm2898, %v2861
      %2905 = vst.msk [vmem:[#allocation7 + $0x60] sm:$0xff] %vm2898, %v2863
      %2906 = vst.msk [vmem:[#allocation7 + $0x70] sm:$0xff] %vm2898, %v2865
      %2907 = vst.msk [vmem:[#allocation7 + $0x80] sm:$0xff] %vm2898, %v2867
      %2908 = vst.msk [vmem:[#allocation7 + $0x90] sm:$0xff] %vm2898, %v2869
      %2909 = vst.msk [vmem:[#allocation7 + $0xa0] sm:$0xff] %vm2898, %v2871
      %2910 = vst.msk [vmem:[#allocation7 + $0xb0] sm:$0xff] %vm2898, %v2873
      %2911 = vst.msk [vmem:[#allocation7 + $0xc0] sm:$0xff] %vm2898, %v2875
      %2912 = vst.msk [vmem:[#allocation7 + $0xd0] sm:$0xff] %vm2898, %v2877
      %2913 = vst.msk [vmem:[#allocation7 + $0xe0] sm:$0xff] %vm2898, %v2879
      %2914 = vst.msk [vmem:[#allocation7 + $0xf0] sm:$0xff] %vm2898, %v2881
      %v2915 = vld [vmem:[%s2785 + $0x8] sm:$0xff]
      %v2916 = vld [vmem:[%s2785 + $0x10] sm:$0xff]
      %v2917 = vld [vmem:[%s2785 + $0x28] sm:$0xff]
      %v2918 = vld [vmem:[%s2785 + $0x30] sm:$0xff]
      %v2919 = vld [vmem:[%s2785 + $0x48] sm:$0xff]
      %v2920 = vld [vmem:[%s2785 + $0x50] sm:$0xff]
      %v2921 = vld [vmem:[%s2785 + $0x68] sm:$0xff]
      %v2922 = vld [vmem:[%s2785 + $0x70] sm:$0xff]
      %v2923 = vld [vmem:[%s2785 + $0x88] sm:$0xff]
      %v2924 = vld [vmem:[%s2785 + $0x90] sm:$0xff]
      %v2925 = vld [vmem:[%s2785 + $0xa8] sm:$0xff]
      %v2926 = vld [vmem:[%s2785 + $0xb0] sm:$0xff]
      %v2927 = vld [vmem:[%s2785 + $0xc8] sm:$0xff]
      %v2928 = vld [vmem:[%s2785 + $0xd0] sm:$0xff]
      %v2929 = vld [vmem:[%s2785 + $0xe8] sm:$0xff]
      %v2930 = vld [vmem:[%s2785 + $0xf0] sm:$0xff]
      %v2931 = vld [vmem:[%s2785 + $0x108] sm:$0xff]
      %v2932 = vld [vmem:[%s2785 + $0x110] sm:$0xff]
      %v2933 = vld [vmem:[%s2785 + $0x128] sm:$0xff]
      %v2934 = vld [vmem:[%s2785 + $0x130] sm:$0xff]
      %v2935 = vld [vmem:[%s2785 + $0x148] sm:$0xff]
      %v2936 = vld [vmem:[%s2785 + $0x150] sm:$0xff]
      %v2937 = vld [vmem:[%s2785 + $0x168] sm:$0xff]
      %v2938 = vld [vmem:[%s2785 + $0x170] sm:$0xff]
      %v2939 = vld [vmem:[%s2785 + $0x188] sm:$0xff]
      %v2940 = vld [vmem:[%s2785 + $0x190] sm:$0xff]
      %v2941 = vld [vmem:[%s2785 + $0x1a8] sm:$0xff]
      %v2942 = vld [vmem:[%s2785 + $0x1b0] sm:$0xff]
      %v2943 = vld [vmem:[%s2785 + $0x1c8] sm:$0xff]
      %v2944 = vld [vmem:[%s2785 + $0x1d0] sm:$0xff]
      %v2945 = vld [vmem:[%s2785 + $0x1e8] sm:$0xff]
      %v2946 = vld [vmem:[%s2785 + $0x1f0] sm:$0xff]
      %v2947 = vpack.c.bf16 %v2916, %v2915
      %v2948 = vpack.c.bf16 %v2918, %v2917
      %v2949 = vpack.c.bf16 %v2920, %v2919
      %v2950 = vpack.c.bf16 %v2922, %v2921
      %v2951 = vpack.c.bf16 %v2924, %v2923
      %v2952 = vpack.c.bf16 %v2926, %v2925
      %v2953 = vpack.c.bf16 %v2928, %v2927
      %v2954 = vpack.c.bf16 %v2930, %v2929
      %v2955 = vpack.c.bf16 %v2932, %v2931
      %v2956 = vpack.c.bf16 %v2934, %v2933
      %v2957 = vpack.c.bf16 %v2936, %v2935
      %v2958 = vpack.c.bf16 %v2938, %v2937
      %v2959 = vpack.c.bf16 %v2940, %v2939
      %v2960 = vpack.c.bf16 %v2942, %v2941
      %v2961 = vpack.c.bf16 %v2944, %v2943
      %v2962 = vpack.c.bf16 %v2946, %v2945
      %2979 = vrot.lane.b32.xlu0 %v2947, 112
      %v2980 = vpop.permute.xlu0 %2979
      %2981 = vrot.lane.b32.xlu0 %v2948, 112
      %v2982 = vpop.permute.xlu0 %2981
      %2983 = vrot.lane.b32.xlu0 %v2949, 112
      %v2984 = vpop.permute.xlu0 %2983
      %2985 = vrot.lane.b32.xlu0 %v2950, 112
      %v2986 = vpop.permute.xlu0 %2985
      %2987 = vrot.lane.b32.xlu0 %v2951, 112
      %v2988 = vpop.permute.xlu0 %2987
      %2989 = vrot.lane.b32.xlu0 %v2952, 112
      %v2990 = vpop.permute.xlu0 %2989
      %2991 = vrot.lane.b32.xlu0 %v2953, 112
      %v2992 = vpop.permute.xlu0 %2991
      %2993 = vrot.lane.b32.xlu0 %v2954, 112
      %v2994 = vpop.permute.xlu0 %2993
      %2995 = vrot.lane.b32.xlu0 %v2955, 112
      %v2996 = vpop.permute.xlu0 %2995
      %2997 = vrot.lane.b32.xlu0 %v2956, 112
      %v2998 = vpop.permute.xlu0 %2997
      %2999 = vrot.lane.b32.xlu0 %v2957, 112
      %v3000 = vpop.permute.xlu0 %2999
      %3001 = vrot.lane.b32.xlu0 %v2958, 112
      %v3002 = vpop.permute.xlu0 %3001
      %3003 = vrot.lane.b32.xlu0 %v2959, 112
      %v3004 = vpop.permute.xlu0 %3003
      %3005 = vrot.lane.b32.xlu0 %v2960, 112
      %v3006 = vpop.permute.xlu0 %3005
      %3007 = vrot.lane.b32.xlu0 %v2961, 112
      %v3008 = vpop.permute.xlu0 %3007
      %3009 = vrot.lane.b32.xlu0 %v2962, 112
      %v3010 = vpop.permute.xlu0 %3009
      %vm3027 = vcmask 1048448
      %3028 = vst.msk [vmem:[#allocation7] sm:$0xff] %vm3027, %v2980
      %3029 = vst.msk [vmem:[#allocation7 + $0x10] sm:$0xff] %vm3027, %v2982
      %3030 = vst.msk [vmem:[#allocation7 + $0x20] sm:$0xff] %vm3027, %v2984
      %3031 = vst.msk [vmem:[#allocation7 + $0x30] sm:$0xff] %vm3027, %v2986
      %3032 = vst.msk [vmem:[#allocation7 + $0x40] sm:$0xff] %vm3027, %v2988
      %3033 = vst.msk [vmem:[#allocation7 + $0x50] sm:$0xff] %vm3027, %v2990
      %3034 = vst.msk [vmem:[#allocation7 + $0x60] sm:$0xff] %vm3027, %v2992
      %3035 = vst.msk [vmem:[#allocation7 + $0x70] sm:$0xff] %vm3027, %v2994
      %3036 = vst.msk [vmem:[#allocation7 + $0x80] sm:$0xff] %vm3027, %v2996
      %3037 = vst.msk [vmem:[#allocation7 + $0x90] sm:$0xff] %vm3027, %v2998
      %3038 = vst.msk [vmem:[#allocation7 + $0xa0] sm:$0xff] %vm3027, %v3000
      %3039 = vst.msk [vmem:[#allocation7 + $0xb0] sm:$0xff] %vm3027, %v3002
      %3040 = vst.msk [vmem:[#allocation7 + $0xc0] sm:$0xff] %vm3027, %v3004
      %3041 = vst.msk [vmem:[#allocation7 + $0xd0] sm:$0xff] %vm3027, %v3006
      %3042 = vst.msk [vmem:[#allocation7 + $0xe0] sm:$0xff] %vm3027, %v3008
      %3043 = vst.msk [vmem:[#allocation7 + $0xf0] sm:$0xff] %vm3027, %v3010
      %v3044 = vld [vmem:[%s2785 + $0x9] sm:$0xff]
      %v3045 = vld [vmem:[%s2785 + $0x11] sm:$0xff]
      %v3046 = vld [vmem:[%s2785 + $0x29] sm:$0xff]
      %v3047 = vld [vmem:[%s2785 + $0x31] sm:$0xff]
      %v3048 = vld [vmem:[%s2785 + $0x49] sm:$0xff]
      %v3049 = vld [vmem:[%s2785 + $0x51] sm:$0xff]
      %v3050 = vld [vmem:[%s2785 + $0x69] sm:$0xff]
      %v3051 = vld [vmem:[%s2785 + $0x71] sm:$0xff]
      %v3052 = vld [vmem:[%s2785 + $0x89] sm:$0xff]
      %v3053 = vld [vmem:[%s2785 + $0x91] sm:$0xff]
      %v3054 = vld [vmem:[%s2785 + $0xa9] sm:$0xff]
      %v3055 = vld [vmem:[%s2785 + $0xb1] sm:$0xff]
      %v3056 = vld [vmem:[%s2785 + $0xc9] sm:$0xff]
      %v3057 = vld [vmem:[%s2785 + $0xd1] sm:$0xff]
      %v3058 = vld [vmem:[%s2785 + $0xe9] sm:$0xff]
      %v3059 = vld [vmem:[%s2785 + $0xf1] sm:$0xff]
      %v3060 = vld [vmem:[%s2785 + $0x109] sm:$0xff]
      %v3061 = vld [vmem:[%s2785 + $0x111] sm:$0xff]
      %v3062 = vld [vmem:[%s2785 + $0x129] sm:$0xff]
      %v3063 = vld [vmem:[%s2785 + $0x131] sm:$0xff]
      %v3064 = vld [vmem:[%s2785 + $0x149] sm:$0xff]
      %v3065 = vld [vmem:[%s2785 + $0x151] sm:$0xff]
      %v3066 = vld [vmem:[%s2785 + $0x169] sm:$0xff]
      %v3067 = vld [vmem:[%s2785 + $0x171] sm:$0xff]
      %v3068 = vld [vmem:[%s2785 + $0x189] sm:$0xff]
      %v3069 = vld [vmem:[%s2785 + $0x191] sm:$0xff]
      %v3070 = vld [vmem:[%s2785 + $0x1a9] sm:$0xff]
      %v3071 = vld [vmem:[%s2785 + $0x1b1] sm:$0xff]
      %v3072 = vld [vmem:[%s2785 + $0x1c9] sm:$0xff]
      %v3073 = vld [vmem:[%s2785 + $0x1d1] sm:$0xff]
      %v3074 = vld [vmem:[%s2785 + $0x1e9] sm:$0xff]
      %v3075 = vld [vmem:[%s2785 + $0x1f1] sm:$0xff]
      %v3076 = vpack.c.bf16 %v3045, %v3044
      %v3077 = vpack.c.bf16 %v3047, %v3046
      %v3078 = vpack.c.bf16 %v3049, %v3048
      %v3079 = vpack.c.bf16 %v3051, %v3050
      %v3080 = vpack.c.bf16 %v3053, %v3052
      %v3081 = vpack.c.bf16 %v3055, %v3054
      %v3082 = vpack.c.bf16 %v3057, %v3056
      %v3083 = vpack.c.bf16 %v3059, %v3058
      %v3084 = vpack.c.bf16 %v3061, %v3060
      %v3085 = vpack.c.bf16 %v3063, %v3062
      %v3086 = vpack.c.bf16 %v3065, %v3064
      %v3087 = vpack.c.bf16 %v3067, %v3066
      %v3088 = vpack.c.bf16 %v3069, %v3068
      %v3089 = vpack.c.bf16 %v3071, %v3070
      %v3090 = vpack.c.bf16 %v3073, %v3072
      %v3091 = vpack.c.bf16 %v3075, %v3074
      %3092 = vst.msk [vmem:[#allocation7 + $0x8] sm:$0xff] %vm1940, %v3076
      %3093 = vst.msk [vmem:[#allocation7 + $0x18] sm:$0xff] %vm1940, %v3077
      %3094 = vst.msk [vmem:[#allocation7 + $0x28] sm:$0xff] %vm1940, %v3078
      %3095 = vst.msk [vmem:[#allocation7 + $0x38] sm:$0xff] %vm1940, %v3079
      %3096 = vst.msk [vmem:[#allocation7 + $0x48] sm:$0xff] %vm1940, %v3080
      %3097 = vst.msk [vmem:[#allocation7 + $0x58] sm:$0xff] %vm1940, %v3081
      %3098 = vst.msk [vmem:[#allocation7 + $0x68] sm:$0xff] %vm1940, %v3082
      %3099 = vst.msk [vmem:[#allocation7 + $0x78] sm:$0xff] %vm1940, %v3083
      %3100 = vst.msk [vmem:[#allocation7 + $0x88] sm:$0xff] %vm1940, %v3084
      %3101 = vst.msk [vmem:[#allocation7 + $0x98] sm:$0xff] %vm1940, %v3085
      %3102 = vst.msk [vmem:[#allocation7 + $0xa8] sm:$0xff] %vm1940, %v3086
      %3103 = vst.msk [vmem:[#allocation7 + $0xb8] sm:$0xff] %vm1940, %v3087
      %3104 = vst.msk [vmem:[#allocation7 + $0xc8] sm:$0xff] %vm1940, %v3088
      %3105 = vst.msk [vmem:[#allocation7 + $0xd8] sm:$0xff] %vm1940, %v3089
      %3106 = vst.msk [vmem:[#allocation7 + $0xe8] sm:$0xff] %vm1940, %v3090
      %3107 = vst.msk [vmem:[#allocation7 + $0xf8] sm:$0xff] %vm1940, %v3091
      %v3108 = vld [vmem:[#allocation7] sm:$0xff]
      %v3109 = vld [vmem:[#allocation7 + $0x8] sm:$0xff]
      %v3110 = vld [vmem:[#allocation7 + $0x10] sm:$0xff]
      %v3111 = vld [vmem:[#allocation7 + $0x18] sm:$0xff]
      %v3112 = vld [vmem:[#allocation7 + $0x20] sm:$0xff]
      %v3113 = vld [vmem:[#allocation7 + $0x28] sm:$0xff]
      %v3114 = vld [vmem:[#allocation7 + $0x30] sm:$0xff]
      %v3115 = vld [vmem:[#allocation7 + $0x38] sm:$0xff]
      %v3116 = vld [vmem:[#allocation7 + $0x40] sm:$0xff]
      %v3117 = vld [vmem:[#allocation7 + $0x48] sm:$0xff]
      %v3118 = vld [vmem:[#allocation7 + $0x50] sm:$0xff]
      %v3119 = vld [vmem:[#allocation7 + $0x58] sm:$0xff]
      %v3120 = vld [vmem:[#allocation7 + $0x60] sm:$0xff]
      %v3121 = vld [vmem:[#allocation7 + $0x68] sm:$0xff]
      %v3122 = vld [vmem:[#allocation7 + $0x70] sm:$0xff]
      %v3123 = vld [vmem:[#allocation7 + $0x78] sm:$0xff]
      %v3124 = vld [vmem:[#allocation7 + $0x80] sm:$0xff]
      %v3125 = vld [vmem:[#allocation7 + $0x88] sm:$0xff]
      %v3126 = vld [vmem:[#allocation7 + $0x90] sm:$0xff]
      %v3127 = vld [vmem:[#allocation7 + $0x98] sm:$0xff]
      %v3128 = vld [vmem:[#allocation7 + $0xa0] sm:$0xff]
      %v3129 = vld [vmem:[#allocation7 + $0xa8] sm:$0xff]
      %v3130 = vld [vmem:[#allocation7 + $0xb0] sm:$0xff]
      %v3131 = vld [vmem:[#allocation7 + $0xb8] sm:$0xff]
      %v3132 = vld [vmem:[#allocation7 + $0xc0] sm:$0xff]
      %v3133 = vld [vmem:[#allocation7 + $0xc8] sm:$0xff]
      %v3134 = vld [vmem:[#allocation7 + $0xd0] sm:$0xff]
      %v3135 = vld [vmem:[#allocation7 + $0xd8] sm:$0xff]
      %v3136 = vld [vmem:[#allocation7 + $0xe0] sm:$0xff]
      %v3137 = vld [vmem:[#allocation7 + $0xe8] sm:$0xff]
      %v3138 = vld [vmem:[#allocation7 + $0xf0] sm:$0xff]
      %v3139 = vld [vmem:[#allocation7 + $0xf8] sm:$0xff]
      %v3140 = vld [vmem:[%s3] sm:$0xf]
      %v3141 = vld [vmem:[%s3 + $0x4] sm:$0xf]
      %v3142 = vld [vmem:[%s3 + $0x8] sm:$0xf]
      %v3143 = vld [vmem:[%s3 + $0xc] sm:$0xf]
      %v3144 = vld [vmem:[%s3 + $0x10] sm:$0xf]
      %v3145 = vld [vmem:[%s3 + $0x14] sm:$0xf]
      %v3146 = vld [vmem:[%s3 + $0x18] sm:$0xf]
      %v3147 = vld [vmem:[%s3 + $0x1c] sm:$0xf]
      %v3148 = vld [vmem:[%s3 + $0x20] sm:$0xf]
      %v3149 = vld [vmem:[%s3 + $0x24] sm:$0xf]
      %v3150 = vld [vmem:[%s3 + $0x28] sm:$0xf]
      %v3151 = vld [vmem:[%s3 + $0x2c] sm:$0xf]
      %v3152 = vld [vmem:[%s3 + $0x30] sm:$0xf]
      %v3153 = vld [vmem:[%s3 + $0x34] sm:$0xf]
      %v3154 = vld [vmem:[%s3 + $0x38] sm:$0xf]
      %v3155 = vld [vmem:[%s3 + $0x3c] sm:$0xf]
      %v3156 = vld [vmem:[%s3 + $0x40] sm:$0xf]
      %v3157 = vld [vmem:[%s3 + $0x44] sm:$0xf]
      %v3158 = vld [vmem:[%s4] sm:$0x1]
      %v3160 = vlaneseq
      %v3161 = vshrl.u32 %v3160, 7
      %v3162 = vsub.s32 0, %v3161
      %v3163 = vrot.slane %v3158, %v3162
      %v3183 = vunpack.c.l.b16 %v3140
      %v3184 = vunpack.c.l.b16 %v3141
      %v3185 = vunpack.c.l.b16 %v3142
      %v3186 = vunpack.c.l.b16 %v3143
      %v3187 = vunpack.c.l.b16 %v3144
      %v3188 = vunpack.c.l.b16 %v3145
      %v3189 = vunpack.c.l.b16 %v3146
      %v3190 = vunpack.c.l.b16 %v3147
      %v3191 = vunpack.c.l.b16 %v3148
      %v3192 = vunpack.c.l.b16 %v3149
      %v3193 = vunpack.c.l.b16 %v3150
      %v3194 = vunpack.c.l.b16 %v3151
      %v3195 = vunpack.c.l.b16 %v3152
      %v3196 = vunpack.c.l.b16 %v3153
      %v3197 = vunpack.c.l.b16 %v3154
      %v3198 = vunpack.c.l.b16 %v3155
      %v3199 = vunpack.c.l.b16 %v3156
      %v3200 = vunpack.c.l.b16 %v3157
      %v3201 = vpack.c.b16 %v3184, %v3183
      %v3202 = vpack.c.b16 %v3186, %v3185
      %v3203 = vpack.c.b16 %v3188, %v3187
      %v3204 = vpack.c.b16 %v3190, %v3189
      %v3205 = vpack.c.b16 %v3192, %v3191
      %v3206 = vpack.c.b16 %v3194, %v3193
      %v3207 = vpack.c.b16 %v3196, %v3195
      %v3208 = vpack.c.b16 %v3198, %v3197
      %v3209 = vpack.c.b16 %v3200, %v3199
      %v3220 = vsel %vm1940, %v3109, 0
      %v3223 = vsel %vm1940, %v3111, 0
      %v3226 = vsel %vm1940, %v3113, 0
      %v3229 = vsel %vm1940, %v3115, 0
      %v3232 = vsel %vm1940, %v3117, 0
      %v3235 = vsel %vm1940, %v3119, 0
      %v3238 = vsel %vm1940, %v3121, 0
      %v3241 = vsel %vm1940, %v3123, 0
      %v3244 = vsel %vm1940, %v3125, 0
      %v3247 = vsel %vm1940, %v3127, 0
      %v3250 = vsel %vm1940, %v3129, 0
      %v3253 = vsel %vm1940, %v3131, 0
      %v3256 = vsel %vm1940, %v3133, 0
      %v3259 = vsel %vm1940, %v3135, 0
      %v3262 = vsel %vm1940, %v3137, 0
      %v3265 = vsel %vm1940, %v3139, 0
      %3267 = vmatprep.subr.bf16.mxu0 0
      %3268 = vmatpush1.bf16.msra.mxu0 %v3201
      %3269 = vmatprep.subr.bf16.mxu0 0
      %3270 = vmatpush1.bf16.msra.mxu0 %v3202
      %3271 = vmatprep.subr.bf16.mxu0 0
      %3272 = vmatpush1.bf16.msra.mxu0 %v3203
      %3273 = vmatprep.subr.bf16.mxu0 0
      %3274 = vmatpush1.bf16.msra.mxu0 %v3204
      %3275 = vmatprep.subr.bf16.mxu0 0
      %3276 = vmatpush1.bf16.msra.mxu0 %v3205
      %3277 = vmatprep.subr.bf16.mxu0 0
      %3278 = vmatpush1.bf16.msra.mxu0 %v3206
      %3279 = vmatprep.subr.bf16.mxu0 0
      %3280 = vmatpush1.bf16.msra.mxu0 %v3207
      %3281 = vmatprep.subr.bf16.mxu0 0
      %3282 = vmatpush1.bf16.msra.mxu0 %v3208
      %3283 = vmatprep.subr.bf16.mxu0 0
      %3284 = vmatpush1.bf16.msra.mxu0 %v3209
      %3285 = vmatprep.subr.bf16.mxu0 0
      %3286 = vmatpush1.bf16.msra.mxu0 0
      %3287 = vmatprep.subr.bf16.mxu0 0
      %3288 = vmatpush1.bf16.msra.mxu0 0
      %3289 = vmatprep.subr.bf16.mxu0 0
      %3290 = vmatpush1.bf16.msra.mxu0 0
      %3291 = vmatprep.subr.bf16.mxu0 0
      %3292 = vmatpush1.bf16.msra.mxu0 0
      %3293 = vmatprep.subr.bf16.mxu0 0
      %3294 = vmatpush1.bf16.msra.mxu0 0
      %3295 = vmatprep.subr.bf16.mxu0 0
      %3296 = vmatpush1.bf16.msra.mxu0 0
      %3297 = vmatprep.subr.bf16.mxu0 0
      %3298 = vmatpush1.bf16.msra.mxu0 0
      %3299 = vmatprep.mubr.bf16.mxu0 %v3220
      %3300 = vmatmul.mubr.bf16.gmra.mrb[0].mxu0 %v3108
      %v3301 = vpop.f32.mrb[0].mxu0
      %v3302 = vadd.f32 %v3163, %v3301
      %v3303 = vpop.f32.mrb[0].mxu0
      %v3304 = vpop.f32.mrb[0].mxu0
      %v3305 = vadd.f32 %v3163, %v3304
      %v3306 = vpop.f32.mrb[0].mxu0
      %3307 = vmatprep.mubr.bf16.mxu0 %v3223
      %3308 = vmatmul.mubr.bf16.gmra.mrb[0].mxu0 %v3110
      %v3309 = vpop.f32.mrb[0].mxu0
      %v3310 = vadd.f32 %v3163, %v3309
      %v3311 = vpop.f32.mrb[0].mxu0
      %v3312 = vpop.f32.mrb[0].mxu0
      %v3313 = vadd.f32 %v3163, %v3312
      %v3314 = vpop.f32.mrb[0].mxu0
      %3315 = vmatprep.mubr.bf16.mxu0 %v3226
      %3316 = vmatmul.mubr.bf16.gmra.mrb[0].mxu0 %v3112
      %v3317 = vpop.f32.mrb[0].mxu0
      %v3318 = vadd.f32 %v3163, %v3317
      %v3319 = vpop.f32.mrb[0].mxu0
      %v3320 = vpop.f32.mrb[0].mxu0
      %v3321 = vadd.f32 %v3163, %v3320
      %v3322 = vpop.f32.mrb[0].mxu0
      %3323 = vmatprep.mubr.bf16.mxu0 %v3229
      %3324 = vmatmul.mubr.bf16.gmra.mrb[0].mxu0 %v3114
      %v3325 = vpop.f32.mrb[0].mxu0
      %v3326 = vadd.f32 %v3163, %v3325
      %v3327 = vpop.f32.mrb[0].mxu0
      %v3328 = vpop.f32.mrb[0].mxu0
      %v3329 = vadd.f32 %v3163, %v3328
      %v3330 = vpop.f32.mrb[0].mxu0
      %3331 = vmatprep.mubr.bf16.mxu0 %v3232
      %3332 = vmatmul.mubr.bf16.gmra.mrb[0].mxu0 %v3116
      %v3333 = vpop.f32.mrb[0].mxu0
      %v3334 = vadd.f32 %v3163, %v3333
      %v3335 = vpop.f32.mrb[0].mxu0
      %v3336 = vpop.f32.mrb[0].mxu0
      %v3337 = vadd.f32 %v3163, %v3336
      %v3338 = vpop.f32.mrb[0].mxu0
      %3339 = vmatprep.mubr.bf16.mxu0 %v3235
      %3340 = vmatmul.mubr.bf16.gmra.mrb[0].mxu0 %v3118
      %v3341 = vpop.f32.mrb[0].mxu0
      %v3342 = vadd.f32 %v3163, %v3341
      %v3343 = vpop.f32.mrb[0].mxu0
      %v3344 = vpop.f32.mrb[0].mxu0
      %v3345 = vadd.f32 %v3163, %v3344
      %v3346 = vpop.f32.mrb[0].mxu0
      %3347 = vmatprep.mubr.bf16.mxu0 %v3238
      %3348 = vmatmul.mubr.bf16.gmra.mrb[0].mxu0 %v3120
      %v3349 = vpop.f32.mrb[0].mxu0
      %v3350 = vadd.f32 %v3163, %v3349
      %v3351 = vpop.f32.mrb[0].mxu0
      %v3352 = vpop.f32.mrb[0].mxu0
      %v3353 = vadd.f32 %v3163, %v3352
      %v3354 = vpop.f32.mrb[0].mxu0
      %3355 = vmatprep.mubr.bf16.mxu0 %v3241
      %3356 = vmatmul.mubr.bf16.gmra.mrb[0].mxu0 %v3122
      %v3357 = vpop.f32.mrb[0].mxu0
      %v3358 = vadd.f32 %v3163, %v3357
      %v3359 = vpop.f32.mrb[0].mxu0
      %v3360 = vpop.f32.mrb[0].mxu0
      %v3361 = vadd.f32 %v3163, %v3360
      %v3362 = vpop.f32.mrb[0].mxu0
      %3363 = vmatprep.mubr.bf16.mxu0 %v3244
      %3364 = vmatmul.mubr.bf16.gmra.mrb[0].mxu0 %v3124
      %v3365 = vpop.f32.mrb[0].mxu0
      %v3366 = vadd.f32 %v3163, %v3365
      %v3367 = vpop.f32.mrb[0].mxu0
      %v3368 = vpop.f32.mrb[0].mxu0
      %v3369 = vadd.f32 %v3163, %v3368
      %v3370 = vpop.f32.mrb[0].mxu0
      %3371 = vmatprep.mubr.bf16.mxu0 %v3247
      %3372 = vmatmul.mubr.bf16.gmra.mrb[0].mxu0 %v3126
      %v3373 = vpop.f32.mrb[0].mxu0
      %v3374 = vadd.f32 %v3163, %v3373
      %v3375 = vpop.f32.mrb[0].mxu0
      %v3376 = vpop.f32.mrb[0].mxu0
      %v3377 = vadd.f32 %v3163, %v3376
      %v3378 = vpop.f32.mrb[0].mxu0
      %3379 = vmatprep.mubr.bf16.mxu0 %v3250
      %3380 = vmatmul.mubr.bf16.gmra.mrb[0].mxu0 %v3128
      %v3381 = vpop.f32.mrb[0].mxu0
      %v3382 = vadd.f32 %v3163, %v3381
      %v3383 = vpop.f32.mrb[0].mxu0
      %v3384 = vpop.f32.mrb[0].mxu0
      %v3385 = vadd.f32 %v3163, %v3384
      %v3386 = vpop.f32.mrb[0].mxu0
      %3387 = vmatprep.mubr.bf16.mxu0 %v3253
      %3388 = vmatmul.mubr.bf16.gmra.mrb[0].mxu0 %v3130
      %v3389 = vpop.f32.mrb[0].mxu0
      %v3390 = vadd.f32 %v3163, %v3389
      %v3391 = vpop.f32.mrb[0].mxu0
      %v3392 = vpop.f32.mrb[0].mxu0
      %v3393 = vadd.f32 %v3163, %v3392
      %v3394 = vpop.f32.mrb[0].mxu0
      %3395 = vmatprep.mubr.bf16.mxu0 %v3256
      %3396 = vmatmul.mubr.bf16.gmra.mrb[0].mxu0 %v3132
      %v3397 = vpop.f32.mrb[0].mxu0
      %v3398 = vadd.f32 %v3163, %v3397
      %v3399 = vpop.f32.mrb[0].mxu0
      %v3400 = vpop.f32.mrb[0].mxu0
      %v3401 = vadd.f32 %v3163, %v3400
      %v3402 = vpop.f32.mrb[0].mxu0
      %3403 = vmatprep.mubr.bf16.mxu0 %v3259
      %3404 = vmatmul.mubr.bf16.gmra.mrb[0].mxu0 %v3134
      %v3405 = vpop.f32.mrb[0].mxu0
      %v3406 = vadd.f32 %v3163, %v3405
      %v3407 = vpop.f32.mrb[0].mxu0
      %v3408 = vpop.f32.mrb[0].mxu0
      %v3409 = vadd.f32 %v3163, %v3408
      %v3410 = vpop.f32.mrb[0].mxu0
      %3411 = vmatprep.mubr.bf16.mxu0 %v3262
      %3412 = vmatmul.mubr.bf16.gmra.mrb[0].mxu0 %v3136
      %v3413 = vpop.f32.mrb[0].mxu0
      %v3414 = vadd.f32 %v3163, %v3413
      %v3415 = vpop.f32.mrb[0].mxu0
      %v3416 = vpop.f32.mrb[0].mxu0
      %v3417 = vadd.f32 %v3163, %v3416
      %v3418 = vpop.f32.mrb[0].mxu0
      %3419 = vmatprep.mubr.bf16.mxu0 %v3265
      %3420 = vmatmul.mubr.bf16.gmra.mrb[0].mxu0 %v3138
      %v3421 = vpop.f32.mrb[0].mxu0
      %v3422 = vadd.f32 %v3163, %v3421
      %v3423 = vpop.f32.mrb[0].mxu0
      %v3424 = vpop.f32.mrb[0].mxu0
      %v3425 = vadd.f32 %v3163, %v3424
      %v3426 = vpop.f32.mrb[0].mxu0
      %3427 = vdwg.mxu0
      %v3428 = vmax.f32 %v3302, 0.0
      %v3429 = vmax.f32 %v3305, 0.0
      %v3430 = vmax.f32 %v3310, 0.0
      %v3431 = vmax.f32 %v3313, 0.0
      %v3432 = vmax.f32 %v3318, 0.0
      %v3433 = vmax.f32 %v3321, 0.0
      %v3434 = vmax.f32 %v3326, 0.0
      %v3435 = vmax.f32 %v3329, 0.0
      %v3436 = vmax.f32 %v3334, 0.0
      %v3437 = vmax.f32 %v3337, 0.0
      %v3438 = vmax.f32 %v3342, 0.0
      %v3439 = vmax.f32 %v3345, 0.0
      %v3440 = vmax.f32 %v3350, 0.0
      %v3441 = vmax.f32 %v3353, 0.0
      %v3442 = vmax.f32 %v3358, 0.0
      %v3443 = vmax.f32 %v3361, 0.0
      %v3444 = vmax.f32 %v3366, 0.0
      %v3445 = vmax.f32 %v3369, 0.0
      %v3446 = vmax.f32 %v3374, 0.0
      %v3447 = vmax.f32 %v3377, 0.0
      %v3448 = vmax.f32 %v3382, 0.0
      %v3449 = vmax.f32 %v3385, 0.0
      %v3450 = vmax.f32 %v3390, 0.0
      %v3451 = vmax.f32 %v3393, 0.0
      %v3452 = vmax.f32 %v3398, 0.0
      %v3453 = vmax.f32 %v3401, 0.0
      %v3454 = vmax.f32 %v3406, 0.0
      %v3455 = vmax.f32 %v3409, 0.0
      %v3456 = vmax.f32 %v3414, 0.0
      %v3457 = vmax.f32 %v3417, 0.0
      %v3458 = vmax.f32 %v3422, 0.0
      %v3459 = vmax.f32 %v3425, 0.0
      %vm3460 = vcmask 261120
      %3461 = vst.msk [vmem:[#allocation10] sm:$0xff] %vm3460, 0.0
      %3462 = vst.msk [vmem:[#allocation10 + $0x8] sm:$0xff] %vm3460, 0.0
      %3463 = vst.msk [vmem:[#allocation10 + $0x10] sm:$0xff] %vm3460, 0.0
      %3464 = vst.msk [vmem:[#allocation10 + $0x18] sm:$0xff] %vm3460, 0.0
      %3465 = vst.msk [vmem:[#allocation10 + $0x20] sm:$0xff] %vm3460, 0.0
      %3466 = vst.msk [vmem:[#allocation10 + $0x28] sm:$0xff] %vm3460, 0.0
      %3467 = vst.msk [vmem:[#allocation10 + $0x30] sm:$0xff] %vm3460, 0.0
      %3468 = vst.msk [vmem:[#allocation10 + $0x38] sm:$0xff] %vm3460, 0.0
      %3469 = vst.msk [vmem:[#allocation10 + $0x40] sm:$0xff] %vm3460, 0.0
      %3470 = vst.msk [vmem:[#allocation10 + $0x48] sm:$0xff] %vm3460, 0.0
      %3471 = vst.msk [vmem:[#allocation10 + $0x50] sm:$0xff] %vm3460, 0.0
      %3472 = vst.msk [vmem:[#allocation10 + $0x58] sm:$0xff] %vm3460, 0.0
      %3473 = vst.msk [vmem:[#allocation10 + $0x60] sm:$0xff] %vm3460, 0.0
      %3474 = vst.msk [vmem:[#allocation10 + $0x68] sm:$0xff] %vm3460, 0.0
      %3475 = vst.msk [vmem:[#allocation10 + $0x70] sm:$0xff] %vm3460, 0.0
      %3476 = vst.msk [vmem:[#allocation10 + $0x78] sm:$0xff] %vm3460, 0.0
      %3477 = vst.msk [vmem:[#allocation10 + $0x80] sm:$0xff] %vm3460, 0.0
      %3478 = vst.msk [vmem:[#allocation10 + $0x88] sm:$0xff] %vm3460, 0.0
      %3479 = vst.msk [vmem:[#allocation10 + $0x90] sm:$0xff] %vm3460, 0.0
      %3480 = vst.msk [vmem:[#allocation10 + $0x98] sm:$0xff] %vm3460, 0.0
      %3481 = vst.msk [vmem:[#allocation10 + $0xa0] sm:$0xff] %vm3460, 0.0
      %3482 = vst.msk [vmem:[#allocation10 + $0xa8] sm:$0xff] %vm3460, 0.0
      %3483 = vst.msk [vmem:[#allocation10 + $0xb0] sm:$0xff] %vm3460, 0.0
      %3484 = vst.msk [vmem:[#allocation10 + $0xb8] sm:$0xff] %vm3460, 0.0
      %3485 = vst.msk [vmem:[#allocation10 + $0xc0] sm:$0xff] %vm3460, 0.0
      %3486 = vst.msk [vmem:[#allocation10 + $0xc8] sm:$0xff] %vm3460, 0.0
      %3487 = vst.msk [vmem:[#allocation10 + $0xd0] sm:$0xff] %vm3460, 0.0
      %3488 = vst.msk [vmem:[#allocation10 + $0xd8] sm:$0xff] %vm3460, 0.0
      %3489 = vst.msk [vmem:[#allocation10 + $0xe0] sm:$0xff] %vm3460, 0.0
      %3490 = vst.msk [vmem:[#allocation10 + $0xe8] sm:$0xff] %vm3460, 0.0
      %3491 = vst.msk [vmem:[#allocation10 + $0xf0] sm:$0xff] %vm3460, 0.0
      %3492 = vst.msk [vmem:[#allocation10 + $0xf8] sm:$0xff] %vm3460, 0.0
      %3493 = vst.msk [vmem:[#allocation10 + $0x100] sm:$0xff] %vm3460, 0.0
      %3494 = vst.msk [vmem:[#allocation10 + $0x108] sm:$0xff] %vm3460, 0.0
      %3495 = vst.msk [vmem:[#allocation10 + $0x110] sm:$0xff] %vm3460, 0.0
      %3496 = vst.msk [vmem:[#allocation10] sm:$0xff] %vm3460, %v3428
      %3497 = vst.msk [vmem:[#allocation10 + $0x8] sm:$0xff] %vm3460, %v3429
      %3498 = vst.msk [vmem:[#allocation10 + $0x10] sm:$0xff] %vm3460, %v3430
      %3499 = vst.msk [vmem:[#allocation10 + $0x18] sm:$0xff] %vm3460, %v3431
      %3500 = vst.msk [vmem:[#allocation10 + $0x20] sm:$0xff] %vm3460, %v3432
      %3501 = vst.msk [vmem:[#allocation10 + $0x28] sm:$0xff] %vm3460, %v3433
      %3502 = vst.msk [vmem:[#allocation10 + $0x30] sm:$0xff] %vm3460, %v3434
      %3503 = vst.msk [vmem:[#allocation10 + $0x38] sm:$0xff] %vm3460, %v3435
      %3504 = vst.msk [vmem:[#allocation10 + $0x40] sm:$0xff] %vm3460, %v3436
      %3505 = vst.msk [vmem:[#allocation10 + $0x48] sm:$0xff] %vm3460, %v3437
      %3506 = vst.msk [vmem:[#allocation10 + $0x50] sm:$0xff] %vm3460, %v3438
      %3507 = vst.msk [vmem:[#allocation10 + $0x58] sm:$0xff] %vm3460, %v3439
      %3508 = vst.msk [vmem:[#allocation10 + $0x60] sm:$0xff] %vm3460, %v3440
      %3509 = vst.msk [vmem:[#allocation10 + $0x68] sm:$0xff] %vm3460, %v3441
      %3510 = vst.msk [vmem:[#allocation10 + $0x70] sm:$0xff] %vm3460, %v3442
      %3511 = vst.msk [vmem:[#allocation10 + $0x78] sm:$0xff] %vm3460, %v3443
      %3512 = vst.msk [vmem:[#allocation10 + $0x80] sm:$0xff] %vm3460, %v3444
      %3513 = vst.msk [vmem:[#allocation10 + $0x88] sm:$0xff] %vm3460, %v3445
      %3514 = vst.msk [vmem:[#allocation10 + $0x90] sm:$0xff] %vm3460, %v3446
      %3515 = vst.msk [vmem:[#allocation10 + $0x98] sm:$0xff] %vm3460, %v3447
      %3516 = vst.msk [vmem:[#allocation10 + $0xa0] sm:$0xff] %vm3460, %v3448
      %3517 = vst.msk [vmem:[#allocation10 + $0xa8] sm:$0xff] %vm3460, %v3449
      %3518 = vst.msk [vmem:[#allocation10 + $0xb0] sm:$0xff] %vm3460, %v3450
      %3519 = vst.msk [vmem:[#allocation10 + $0xb8] sm:$0xff] %vm3460, %v3451
      %3520 = vst.msk [vmem:[#allocation10 + $0xc0] sm:$0xff] %vm3460, %v3452
      %3521 = vst.msk [vmem:[#allocation10 + $0xc8] sm:$0xff] %vm3460, %v3453
      %3522 = vst.msk [vmem:[#allocation10 + $0xd0] sm:$0xff] %vm3460, %v3454
      %3523 = vst.msk [vmem:[#allocation10 + $0xd8] sm:$0xff] %vm3460, %v3455
      %3524 = vst.msk [vmem:[#allocation10 + $0xe0] sm:$0xff] %vm3460, %v3456
      %3525 = vst.msk [vmem:[#allocation10 + $0xe8] sm:$0xff] %vm3460, %v3457
      %3526 = vst.msk [vmem:[#allocation10 + $0xf0] sm:$0xff] %vm3460, %v3458
      %3527 = vst.msk [vmem:[#allocation10 + $0xf8] sm:$0xff] %vm3460, %v3459
      %v3528 = vld [vmem:[#allocation10] sm:$0xff]
      %v3529 = vld [vmem:[#allocation10 + $0x8] sm:$0xff]
      %v3530 = vld [vmem:[#allocation10 + $0x10] sm:$0xff]
      %v3531 = vld [vmem:[#allocation10 + $0x18] sm:$0xff]
      %v3532 = vld [vmem:[#allocation10 + $0x20] sm:$0xff]
      %v3533 = vld [vmem:[#allocation10 + $0x28] sm:$0xff]
      %v3534 = vld [vmem:[#allocation10 + $0x30] sm:$0xff]
      %v3535 = vld [vmem:[#allocation10 + $0x38] sm:$0xff]
      %v3536 = vld [vmem:[#allocation10 + $0x40] sm:$0xff]
      %v3537 = vld [vmem:[#allocation10 + $0x48] sm:$0xff]
      %v3538 = vld [vmem:[#allocation10 + $0x50] sm:$0xff]
      %v3539 = vld [vmem:[#allocation10 + $0x58] sm:$0xff]
      %v3540 = vld [vmem:[#allocation10 + $0x60] sm:$0xff]
      %v3541 = vld [vmem:[#allocation10 + $0x68] sm:$0xff]
      %v3542 = vld [vmem:[#allocation10 + $0x70] sm:$0xff]
      %v3543 = vld [vmem:[#allocation10 + $0x78] sm:$0xff]
      %v3544 = vld [vmem:[#allocation10 + $0x80] sm:$0xff]
      %v3545 = vld [vmem:[#allocation10 + $0x88] sm:$0xff]
      %v3546 = vld [vmem:[#allocation10 + $0x90] sm:$0xff]
      %v3547 = vld [vmem:[#allocation10 + $0x98] sm:$0xff]
      %v3548 = vld [vmem:[#allocation10 + $0xa0] sm:$0xff]
      %v3549 = vld [vmem:[#allocation10 + $0xa8] sm:$0xff]
      %v3550 = vld [vmem:[#allocation10 + $0xb0] sm:$0xff]
      %v3551 = vld [vmem:[#allocation10 + $0xb8] sm:$0xff]
      %v3552 = vld [vmem:[#allocation10 + $0xc0] sm:$0xff]
      %v3553 = vld [vmem:[#allocation10 + $0xc8] sm:$0xff]
      %v3554 = vld [vmem:[#allocation10 + $0xd0] sm:$0xff]
      %v3555 = vld [vmem:[#allocation10 + $0xd8] sm:$0xff]
      %v3556 = vld [vmem:[#allocation10 + $0xe0] sm:$0xff]
      %v3557 = vld [vmem:[#allocation10 + $0xe8] sm:$0xff]
      %v3558 = vld [vmem:[#allocation10 + $0xf0] sm:$0xff]
      %v3559 = vld [vmem:[#allocation10 + $0xf8] sm:$0xff]
      %v3560 = vld [vmem:[#allocation10 + $0x1] sm:$0xff]
      %v3561 = vld [vmem:[#allocation10 + $0x9] sm:$0xff]
      %v3562 = vld [vmem:[#allocation10 + $0x11] sm:$0xff]
      %v3563 = vld [vmem:[#allocation10 + $0x19] sm:$0xff]
      %v3564 = vld [vmem:[#allocation10 + $0x21] sm:$0xff]
      %v3565 = vld [vmem:[#allocation10 + $0x29] sm:$0xff]
      %v3566 = vld [vmem:[#allocation10 + $0x31] sm:$0xff]
      %v3567 = vld [vmem:[#allocation10 + $0x39] sm:$0xff]
      %v3568 = vld [vmem:[#allocation10 + $0x41] sm:$0xff]
      %v3569 = vld [vmem:[#allocation10 + $0x49] sm:$0xff]
      %v3570 = vld [vmem:[#allocation10 + $0x51] sm:$0xff]
      %v3571 = vld [vmem:[#allocation10 + $0x59] sm:$0xff]
      %v3572 = vld [vmem:[#allocation10 + $0x61] sm:$0xff]
      %v3573 = vld [vmem:[#allocation10 + $0x69] sm:$0xff]
      %v3574 = vld [vmem:[#allocation10 + $0x71] sm:$0xff]
      %v3575 = vld [vmem:[#allocation10 + $0x79] sm:$0xff]
      %v3576 = vld [vmem:[#allocation10 + $0x81] sm:$0xff]
      %v3577 = vld [vmem:[#allocation10 + $0x89] sm:$0xff]
      %v3578 = vld [vmem:[#allocation10 + $0x91] sm:$0xff]
      %v3579 = vld [vmem:[#allocation10 + $0x99] sm:$0xff]
      %v3580 = vld [vmem:[#allocation10 + $0xa1] sm:$0xff]
      %v3581 = vld [vmem:[#allocation10 + $0xa9] sm:$0xff]
      %v3582 = vld [vmem:[#allocation10 + $0xb1] sm:$0xff]
      %v3583 = vld [vmem:[#allocation10 + $0xb9] sm:$0xff]
      %v3584 = vld [vmem:[#allocation10 + $0xc1] sm:$0xff]
      %v3585 = vld [vmem:[#allocation10 + $0xc9] sm:$0xff]
      %v3586 = vld [vmem:[#allocation10 + $0xd1] sm:$0xff]
      %v3587 = vld [vmem:[#allocation10 + $0xd9] sm:$0xff]
      %v3588 = vld [vmem:[#allocation10 + $0xe1] sm:$0xff]
      %v3589 = vld [vmem:[#allocation10 + $0xe9] sm:$0xff]
      %v3590 = vld [vmem:[#allocation10 + $0xf1] sm:$0xff]
      %v3591 = vld [vmem:[#allocation10 + $0xf9] sm:$0xff]
      %v3592 = vmax.f32 %v3528, %v3560
      %v3593 = vmax.f32 %v3529, %v3561
      %v3594 = vmax.f32 %v3530, %v3562
      %v3595 = vmax.f32 %v3531, %v3563
      %v3596 = vmax.f32 %v3532, %v3564
      %v3597 = vmax.f32 %v3533, %v3565
      %v3598 = vmax.f32 %v3534, %v3566
      %v3599 = vmax.f32 %v3535, %v3567
      %v3600 = vmax.f32 %v3536, %v3568
      %v3601 = vmax.f32 %v3537, %v3569
      %v3602 = vmax.f32 %v3538, %v3570
      %v3603 = vmax.f32 %v3539, %v3571
      %v3604 = vmax.f32 %v3540, %v3572
      %v3605 = vmax.f32 %v3541, %v3573
      %v3606 = vmax.f32 %v3542, %v3574
      %v3607 = vmax.f32 %v3543, %v3575
      %v3608 = vmax.f32 %v3544, %v3576
      %v3609 = vmax.f32 %v3545, %v3577
      %v3610 = vmax.f32 %v3546, %v3578
      %v3611 = vmax.f32 %v3547, %v3579
      %v3612 = vmax.f32 %v3548, %v3580
      %v3613 = vmax.f32 %v3549, %v3581
      %v3614 = vmax.f32 %v3550, %v3582
      %v3615 = vmax.f32 %v3551, %v3583
      %v3616 = vmax.f32 %v3552, %v3584
      %v3617 = vmax.f32 %v3553, %v3585
      %v3618 = vmax.f32 %v3554, %v3586
      %v3619 = vmax.f32 %v3555, %v3587
      %v3620 = vmax.f32 %v3556, %v3588
      %v3621 = vmax.f32 %v3557, %v3589
      %v3622 = vmax.f32 %v3558, %v3590
      %v3623 = vmax.f32 %v3559, %v3591
      %v3624 = vld [vmem:[#allocation10 + $0x100] sm:$0xff]
      %v3625 = vld [vmem:[#allocation10 + $0x108] sm:$0xff]
      %v3626 = vld [vmem:[#allocation10 + $0x101] sm:$0xff]
      %v3627 = vld [vmem:[#allocation10 + $0x109] sm:$0xff]
      %v3628 = vmax.f32 %v3624, %v3626
      %v3629 = vmax.f32 %v3625, %v3627
      %v3630 = vmax.f32 %v3592, %v3594
      %v3631 = vmax.f32 %v3593, %v3595
      %v3632 = vmax.f32 %v3594, %v3596
      %v3633 = vmax.f32 %v3595, %v3597
      %v3634 = vmax.f32 %v3596, %v3598
      %v3635 = vmax.f32 %v3597, %v3599
      %v3636 = vmax.f32 %v3598, %v3600
      %v3637 = vmax.f32 %v3599, %v3601
      %v3638 = vmax.f32 %v3600, %v3602
      %v3639 = vmax.f32 %v3601, %v3603
      %v3640 = vmax.f32 %v3602, %v3604
      %v3641 = vmax.f32 %v3603, %v3605
      %v3642 = vmax.f32 %v3604, %v3606
      %v3643 = vmax.f32 %v3605, %v3607
      %v3644 = vmax.f32 %v3606, %v3608
      %v3645 = vmax.f32 %v3607, %v3609
      %v3646 = vmax.f32 %v3608, %v3610
      %v3647 = vmax.f32 %v3609, %v3611
      %v3648 = vmax.f32 %v3610, %v3612
      %v3649 = vmax.f32 %v3611, %v3613
      %v3650 = vmax.f32 %v3612, %v3614
      %v3651 = vmax.f32 %v3613, %v3615
      %v3652 = vmax.f32 %v3614, %v3616
      %v3653 = vmax.f32 %v3615, %v3617
      %v3654 = vmax.f32 %v3616, %v3618
      %v3655 = vmax.f32 %v3617, %v3619
      %v3656 = vmax.f32 %v3618, %v3620
      %v3657 = vmax.f32 %v3619, %v3621
      %v3658 = vmax.f32 %v3620, %v3622
      %v3659 = vmax.f32 %v3621, %v3623
      %v3660 = vmax.f32 %v3622, %v3628
      %v3661 = vmax.f32 %v3623, %v3629
      %v3662 = vld [vmem:[%s9] sm:$0xff]
      %v3663 = vld [vmem:[%s9 + $0x8] sm:$0xff]
      %v3664 = vld [vmem:[%s9 + $0x10] sm:$0xff]
      %v3665 = vld [vmem:[%s9 + $0x18] sm:$0xff]
      %v3666 = vld [vmem:[%s9 + $0x20] sm:$0xff]
      %v3667 = vld [vmem:[%s9 + $0x28] sm:$0xff]
      %v3668 = vld [vmem:[%s9 + $0x30] sm:$0xff]
      %v3669 = vld [vmem:[%s9 + $0x38] sm:$0xff]
      %v3670 = vld [vmem:[%s9 + $0x40] sm:$0xff]
      %v3671 = vld [vmem:[%s9 + $0x48] sm:$0xff]
      %v3672 = vld [vmem:[%s9 + $0x50] sm:$0xff]
      %v3673 = vld [vmem:[%s9 + $0x58] sm:$0xff]
      %v3674 = vld [vmem:[%s9 + $0x60] sm:$0xff]
      %v3675 = vld [vmem:[%s9 + $0x68] sm:$0xff]
      %v3676 = vld [vmem:[%s9 + $0x70] sm:$0xff]
      %v3677 = vld [vmem:[%s9 + $0x78] sm:$0xff]
      %3678 = vmatprep.subr.mxu0 0.0
      %3679 = vmatpush1.msra.mxu0 %v3630
      %3680 = vmatprep.subr.mxu0 0.0
      %3681 = vmatpush1.msra.mxu0 %v3631
      %3682 = vmatprep.subr.mxu0 0.0
      %3683 = vmatpush1.msra.mxu0 %v3632
      %3684 = vmatprep.subr.mxu0 0.0
      %3685 = vmatpush1.msra.mxu0 %v3633
      %3686 = vmatprep.subr.mxu0 0.0
      %3687 = vmatpush1.msra.mxu0 %v3634
      %3688 = vmatprep.subr.mxu0 0.0
      %3689 = vmatpush1.msra.mxu0 %v3635
      %3690 = vmatprep.subr.mxu0 0.0
      %3691 = vmatpush1.msra.mxu0 %v3636
      %3692 = vmatprep.subr.mxu0 0.0
      %3693 = vmatpush1.msra.mxu0 %v3637
      %3694 = vmatprep.subr.mxu0 0.0
      %3695 = vmatpush1.msra.mxu0 %v3638
      %3696 = vmatprep.subr.mxu0 0.0
      %3697 = vmatpush1.msra.mxu0 %v3639
      %3698 = vmatprep.subr.mxu0 0.0
      %3699 = vmatpush1.msra.mxu0 %v3640
      %3700 = vmatprep.subr.mxu0 0.0
      %3701 = vmatpush1.msra.mxu0 %v3641
      %3702 = vmatprep.subr.mxu0 0.0
      %3703 = vmatpush1.msra.mxu0 %v3642
      %3704 = vmatprep.subr.mxu0 0.0
      %3705 = vmatpush1.msra.mxu0 %v3643
      %3706 = vmatprep.subr.mxu0 0.0
      %3707 = vmatpush1.msra.mxu0 %v3644
      %3708 = vmatprep.subr.mxu0 0.0
      %3709 = vmatpush1.msra.mxu0 %v3645
      %3710 = vmatprep.subr.mxu0 0.0
      %3711 = vmatpush1.msra.mxu0 %v3646
      %3712 = vmatprep.subr.mxu0 0.0
      %3713 = vmatpush1.msra.mxu0 %v3647
      %3714 = vmatprep.subr.mxu0 0.0
      %3715 = vmatpush1.msra.mxu0 %v3648
      %3716 = vmatprep.subr.mxu0 0.0
      %3717 = vmatpush1.msra.mxu0 %v3649
      %3718 = vmatprep.subr.mxu0 0.0
      %3719 = vmatpush1.msra.mxu0 %v3650
      %3720 = vmatprep.subr.mxu0 0.0
      %3721 = vmatpush1.msra.mxu0 %v3651
      %3722 = vmatprep.subr.mxu0 0.0
      %3723 = vmatpush1.msra.mxu0 %v3652
      %3724 = vmatprep.subr.mxu0 0.0
      %3725 = vmatpush1.msra.mxu0 %v3653
      %3726 = vmatprep.subr.mxu0 0.0
      %3727 = vmatpush1.msra.mxu0 %v3654
      %3728 = vmatprep.subr.mxu0 0.0
      %3729 = vmatpush1.msra.mxu0 %v3655
      %3730 = vmatprep.subr.mxu0 0.0
      %3731 = vmatpush1.msra.mxu0 %v3656
      %3732 = vmatprep.subr.mxu0 0.0
      %3733 = vmatpush1.msra.mxu0 %v3657
      %3734 = vmatprep.subr.mxu0 0.0
      %3735 = vmatpush1.msra.mxu0 %v3658
      %3736 = vmatprep.subr.mxu0 0.0
      %3737 = vmatpush1.msra.mxu0 %v3659
      %3738 = vmatprep.subr.mxu0 0.0
      %3739 = vmatpush1.msra.mxu0 %v3660
      %3740 = vmatprep.subr.mxu0 0.0
      %3741 = vmatpush1.msra.mxu0 %v3661
      %3742 = vmatprep.mubr.f32.mxu0 %v3663
      %3743 = vmatmul.mubr.f32.gmra.mrb[0].mxu0 %v3662
      %v3744 = vpop.f32.mrb[0].mxu0
      %v3745 = vadd.f32 0.0, %v3744
      %v3746 = vpop.f32.mrb[0].mxu0
      %3747 = vmatprep.mubr.f32.mxu0 %v3665
      %3748 = vmatmul.mubr.f32.gmra.mrb[0].mxu0 %v3664
      %v3749 = vpop.f32.mrb[0].mxu0
      %v3750 = vadd.f32 0.0, %v3749
      %v3751 = vpop.f32.mrb[0].mxu0
      %3752 = vmatprep.mubr.f32.mxu0 %v3667
      %3753 = vmatmul.mubr.f32.gmra.mrb[0].mxu0 %v3666
      %v3754 = vpop.f32.mrb[0].mxu0
      %v3755 = vadd.f32 0.0, %v3754
      %v3756 = vpop.f32.mrb[0].mxu0
      %3757 = vmatprep.mubr.f32.mxu0 %v3669
      %3758 = vmatmul.mubr.f32.gmra.mrb[0].mxu0 %v3668
      %v3759 = vpop.f32.mrb[0].mxu0
      %v3760 = vadd.f32 0.0, %v3759
      %v3761 = vpop.f32.mrb[0].mxu0
      %3762 = vmatprep.mubr.f32.mxu0 %v3671
      %3763 = vmatmul.mubr.f32.gmra.mrb[0].mxu0 %v3670
      %v3764 = vpop.f32.mrb[0].mxu0
      %v3765 = vadd.f32 0.0, %v3764
      %v3766 = vpop.f32.mrb[0].mxu0
      %3767 = vmatprep.mubr.f32.mxu0 %v3673
      %3768 = vmatmul.mubr.f32.gmra.mrb[0].mxu0 %v3672
      %v3769 = vpop.f32.mrb[0].mxu0
      %v3770 = vadd.f32 0.0, %v3769
      %v3771 = vpop.f32.mrb[0].mxu0
      %3772 = vmatprep.mubr.f32.mxu0 %v3675
      %3773 = vmatmul.mubr.f32.gmra.mrb[0].mxu0 %v3674
      %v3774 = vpop.f32.mrb[0].mxu0
      %v3775 = vadd.f32 0.0, %v3774
      %v3776 = vpop.f32.mrb[0].mxu0
      %3777 = vmatprep.mubr.f32.mxu0 %v3677
      %3778 = vmatmul.mubr.f32.gmra.mrb[0].mxu0 %v3676
      %v3779 = vpop.f32.mrb[0].mxu0
      %v3780 = vadd.f32 0.0, %v3779
      %v3781 = vpop.f32.mrb[0].mxu0
      %3782 = vdwg.mxu0
      %3783 = vst.msk [vmem:[#allocation4] sm:$0xff] %vm3460, 0.0
      %3784 = vst.msk [vmem:[#allocation4 + $0x8] sm:$0xff] %vm3460, 0.0
      %vm3785 = vcmask 253952
      %3786 = vst.msk [vmem:[#allocation4 + $0x10] sm:$0x1] %vm3785, 0.0
      %3787 = vst.msk [vmem:[#allocation4 + $0x18] sm:$0xff] %vm3460, 0.0
      %3788 = vst.msk [vmem:[#allocation4 + $0x20] sm:$0xff] %vm3460, 0.0
      %3789 = vst.msk [vmem:[#allocation4 + $0x28] sm:$0x1] %vm3785, 0.0
      %3790 = vst.msk [vmem:[#allocation4 + $0x30] sm:$0xff] %vm3460, 0.0
      %3791 = vst.msk [vmem:[#allocation4 + $0x38] sm:$0xff] %vm3460, 0.0
      %3792 = vst.msk [vmem:[#allocation4 + $0x40] sm:$0x1] %vm3785, 0.0
      %3793 = vst.msk [vmem:[#allocation4 + $0x48] sm:$0xff] %vm3460, 0.0
      %3794 = vst.msk [vmem:[#allocation4 + $0x50] sm:$0xff] %vm3460, 0.0
      %3795 = vst.msk [vmem:[#allocation4 + $0x58] sm:$0x1] %vm3785, 0.0
      %3796 = vst.msk [vmem:[#allocation4 + $0x60] sm:$0xff] %vm3460, 0.0
      %3797 = vst.msk [vmem:[#allocation4 + $0x68] sm:$0xff] %vm3460, 0.0
      %3798 = vst.msk [vmem:[#allocation4 + $0x70] sm:$0x1] %vm3785, 0.0
      %3799 = vst.msk [vmem:[#allocation4 + $0x78] sm:$0xff] %vm3460, 0.0
      %3800 = vst.msk [vmem:[#allocation4 + $0x80] sm:$0xff] %vm3460, 0.0
      %3801 = vst.msk [vmem:[#allocation4 + $0x88] sm:$0x1] %vm3785, 0.0
      %3802 = vst.msk [vmem:[#allocation4 + $0x90] sm:$0xff] %vm3460, 0.0
      %3803 = vst.msk [vmem:[#allocation4 + $0x98] sm:$0xff] %vm3460, 0.0
      %3804 = vst.msk [vmem:[#allocation4 + $0xa0] sm:$0x1] %vm3785, 0.0
      %3805 = vst.msk [vmem:[#allocation4 + $0xa8] sm:$0xff] %vm3460, 0.0
      %3806 = vst.msk [vmem:[#allocation4 + $0xb0] sm:$0xff] %vm3460, 0.0
      %3807 = vst.msk [vmem:[#allocation4 + $0xb8] sm:$0x1] %vm3785, 0.0
      %3808 = vst.msk [vmem:[#allocation4 + $0xc0] sm:$0xff] %vm3460, 0.0
      %3809 = vst.msk [vmem:[#allocation4 + $0xc8] sm:$0xff] %vm3460, 0.0
      %3810 = vst.msk [vmem:[#allocation4 + $0xd0] sm:$0x1] %vm3785, 0.0
      %3811 = vst.msk [vmem:[#allocation4 + $0xd8] sm:$0xff] %vm3460, 0.0
      %3812 = vst.msk [vmem:[#allocation4 + $0xe0] sm:$0xff] %vm3460, 0.0
      %3813 = vst.msk [vmem:[#allocation4 + $0xe8] sm:$0x1] %vm3785, 0.0
      %3814 = vst.msk [vmem:[#allocation4 + $0xf0] sm:$0xff] %vm3460, 0.0
      %3815 = vst.msk [vmem:[#allocation4 + $0xf8] sm:$0xff] %vm3460, 0.0
      %3816 = vst.msk [vmem:[#allocation4 + $0x100] sm:$0x1] %vm3785, 0.0
      %3817 = vst.msk [vmem:[#allocation4 + $0x108] sm:$0xff] %vm3460, 0.0
      %3818 = vst.msk [vmem:[#allocation4 + $0x110] sm:$0xff] %vm3460, 0.0
      %3819 = vst.msk [vmem:[#allocation4 + $0x118] sm:$0x1] %vm3785, 0.0
      %3820 = vst.msk [vmem:[#allocation4 + $0x120] sm:$0xff] %vm3460, 0.0
      %3821 = vst.msk [vmem:[#allocation4 + $0x128] sm:$0xff] %vm3460, 0.0
      %3822 = vst.msk [vmem:[#allocation4 + $0x130] sm:$0x1] %vm3785, 0.0
      %3823 = vst.msk [vmem:[#allocation4 + $0x138] sm:$0xff] %vm3460, 0.0
      %3824 = vst.msk [vmem:[#allocation4 + $0x140] sm:$0xff] %vm3460, 0.0
      %3825 = vst.msk [vmem:[#allocation4 + $0x148] sm:$0x1] %vm3785, 0.0
      %3826 = vst.msk [vmem:[#allocation4 + $0x150] sm:$0xff] %vm3460, 0.0
      %3827 = vst.msk [vmem:[#allocation4 + $0x158] sm:$0xff] %vm3460, 0.0
      %3828 = vst.msk [vmem:[#allocation4 + $0x160] sm:$0x1] %vm3785, 0.0
      %3829 = vst.msk [vmem:[#allocation4 + $0x168] sm:$0xff] %vm3460, 0.0
      %3830 = vst.msk [vmem:[#allocation4 + $0x170] sm:$0xff] %vm3460, 0.0
      %3831 = vst.msk [vmem:[#allocation4 + $0x178] sm:$0x1] %vm3785, 0.0
      %3832 = vst.msk [vmem:[#allocation4 + $0x180] sm:$0xff] %vm3460, 0.0
      %3833 = vst.msk [vmem:[#allocation4 + $0x188] sm:$0xff] %vm3460, 0.0
      %3834 = vst.msk [vmem:[#allocation4 + $0x190] sm:$0x1] %vm3785, 0.0
      %s3835 = scalar_lea.vmem [#allocation4], 192
      %3836 = vst.msk [vmem:[%s3835 + $0x8] sm:$0xff] %vm3460, %v3745
      %3837 = vst.msk [vmem:[%s3835 + $0x20] sm:$0xff] %vm3460, %v3750
      %3838 = vst.msk [vmem:[%s3835 + $0x38] sm:$0xff] %vm3460, %v3755
      %3839 = vst.msk [vmem:[%s3835 + $0x50] sm:$0xff] %vm3460, %v3760
      %3840 = vst.msk [vmem:[%s3835 + $0x68] sm:$0xff] %vm3460, %v3765
      %3841 = vst.msk [vmem:[%s3835 + $0x80] sm:$0xff] %vm3460, %v3770
      %3842 = vst.msk [vmem:[%s3835 + $0x98] sm:$0xff] %vm3460, %v3775
      %3843 = vst.msk [vmem:[%s3835 + $0xb0] sm:$0xff] %vm3460, %v3780
      %s3844 = scalar_lea.vmem [#allocation4], 168
      %v3845 = vld [vmem:[%s3844 + $0x7] sm:$0xff]
      %v3846 = vld [vmem:[%s3844 + $0x1f] sm:$0xff]
      %v3847 = vld [vmem:[%s3844 + $0x37] sm:$0xff]
      %v3848 = vld [vmem:[%s3844 + $0x4f] sm:$0xff]
      %v3849 = vld [vmem:[%s3844 + $0x67] sm:$0xff]
      %v3850 = vld [vmem:[%s3844 + $0x7f] sm:$0xff]
      %v3851 = vld [vmem:[%s3844 + $0x97] sm:$0xff]
      %v3852 = vld [vmem:[%s3844 + $0xaf] sm:$0xff]
      %3853 = vst.msk [vmem:[#allocation8] sm:$0xff] %vm3460, %v3845
      %3854 = vst.msk [vmem:[#allocation8 + $0x18] sm:$0xff] %vm3460, %v3846
      %3855 = vst.msk [vmem:[#allocation8 + $0x30] sm:$0xff] %vm3460, %v3847
      %3856 = vst.msk [vmem:[#allocation8 + $0x48] sm:$0xff] %vm3460, %v3848
      %3857 = vst.msk [vmem:[#allocation8 + $0x60] sm:$0xff] %vm3460, %v3849
      %3858 = vst.msk [vmem:[#allocation8 + $0x78] sm:$0xff] %vm3460, %v3850
      %3859 = vst.msk [vmem:[#allocation8 + $0x90] sm:$0xff] %vm3460, %v3851
      %3860 = vst.msk [vmem:[#allocation8 + $0xa8] sm:$0xff] %vm3460, %v3852
      %v3861 = vld [vmem:[%s3844 + $0x8] sm:$0xff]
      %v3862 = vld [vmem:[%s3844 + $0x20] sm:$0xff]
      %v3863 = vld [vmem:[%s3844 + $0x38] sm:$0xff]
      %v3864 = vld [vmem:[%s3844 + $0x50] sm:$0xff]
      %v3865 = vld [vmem:[%s3844 + $0x68] sm:$0xff]
      %v3866 = vld [vmem:[%s3844 + $0x80] sm:$0xff]
      %v3867 = vld [vmem:[%s3844 + $0x98] sm:$0xff]
      %v3868 = vld [vmem:[%s3844 + $0xb0] sm:$0xff]
      %3877 = vrot.lane.b32.xlu0 %v3861, 32
      %v3878 = vpop.permute.xlu0 %3877
      %3879 = vrot.lane.b32.xlu0 %v3862, 32
      %v3880 = vpop.permute.xlu0 %3879
      %3881 = vrot.lane.b32.xlu0 %v3863, 32
      %v3882 = vpop.permute.xlu0 %3881
      %3883 = vrot.lane.b32.xlu0 %v3864, 32
      %v3884 = vpop.permute.xlu0 %3883
      %3885 = vrot.lane.b32.xlu0 %v3865, 32
      %v3886 = vpop.permute.xlu0 %3885
      %3887 = vrot.lane.b32.xlu0 %v3866, 32
      %v3888 = vpop.permute.xlu0 %3887
      %3889 = vrot.lane.b32.xlu0 %v3867, 32
      %v3890 = vpop.permute.xlu0 %3889
      %3891 = vrot.lane.b32.xlu0 %v3868, 32
      %v3892 = vpop.permute.xlu0 %3891
      %vm3901 = vcmask 523520
      %3902 = vst.msk [vmem:[#allocation8] sm:$0xff] %vm3901, %v3878
      %3903 = vst.msk [vmem:[#allocation8 + $0x18] sm:$0xff] %vm3901, %v3880
      %3904 = vst.msk [vmem:[#allocation8 + $0x30] sm:$0xff] %vm3901, %v3882
      %3905 = vst.msk [vmem:[#allocation8 + $0x48] sm:$0xff] %vm3901, %v3884
      %3906 = vst.msk [vmem:[#allocation8 + $0x60] sm:$0xff] %vm3901, %v3886
      %3907 = vst.msk [vmem:[#allocation8 + $0x78] sm:$0xff] %vm3901, %v3888
      %3908 = vst.msk [vmem:[#allocation8 + $0x90] sm:$0xff] %vm3901, %v3890
      %3909 = vst.msk [vmem:[#allocation8 + $0xa8] sm:$0xff] %vm3901, %v3892
      %v3910 = vld [vmem:[%s3844 + $0x9] sm:$0xff]
      %v3911 = vld [vmem:[%s3844 + $0x21] sm:$0xff]
      %v3912 = vld [vmem:[%s3844 + $0x39] sm:$0xff]
      %v3913 = vld [vmem:[%s3844 + $0x51] sm:$0xff]
      %v3914 = vld [vmem:[%s3844 + $0x69] sm:$0xff]
      %v3915 = vld [vmem:[%s3844 + $0x81] sm:$0xff]
      %v3916 = vld [vmem:[%s3844 + $0x99] sm:$0xff]
      %v3917 = vld [vmem:[%s3844 + $0xb1] sm:$0xff]
      %3926 = vrot.lane.b32.xlu0 %v3910, 64
      %v3927 = vpop.permute.xlu0 %3926
      %3928 = vrot.lane.b32.xlu0 %v3911, 64
      %v3929 = vpop.permute.xlu0 %3928
      %3930 = vrot.lane.b32.xlu0 %v3912, 64
      %v3931 = vpop.permute.xlu0 %3930
      %3932 = vrot.lane.b32.xlu0 %v3913, 64
      %v3933 = vpop.permute.xlu0 %3932
      %3934 = vrot.lane.b32.xlu0 %v3914, 64
      %v3935 = vpop.permute.xlu0 %3934
      %3936 = vrot.lane.b32.xlu0 %v3915, 64
      %v3937 = vpop.permute.xlu0 %3936
      %3938 = vrot.lane.b32.xlu0 %v3916, 64
      %v3939 = vpop.permute.xlu0 %3938
      %3940 = vrot.lane.b32.xlu0 %v3917, 64
      %v3941 = vpop.permute.xlu0 %3940
      %vm3950 = vcmask 785920
      %3951 = vst.msk [vmem:[#allocation8] sm:$0xff] %vm3950, %v3927
      %3952 = vst.msk [vmem:[#allocation8 + $0x18] sm:$0xff] %vm3950, %v3929
      %3953 = vst.msk [vmem:[#allocation8 + $0x30] sm:$0xff] %vm3950, %v3931
      %3954 = vst.msk [vmem:[#allocation8 + $0x48] sm:$0xff] %vm3950, %v3933
      %3955 = vst.msk [vmem:[#allocation8 + $0x60] sm:$0xff] %vm3950, %v3935
      %3956 = vst.msk [vmem:[#allocation8 + $0x78] sm:$0xff] %vm3950, %v3937
      %3957 = vst.msk [vmem:[#allocation8 + $0x90] sm:$0xff] %vm3950, %v3939
      %3958 = vst.msk [vmem:[#allocation8 + $0xa8] sm:$0xff] %vm3950, %v3941
      %v3959 = vld [vmem:[%s3835 + $0x7] sm:$0xff]
      %v3960 = vld [vmem:[%s3835 + $0x1f] sm:$0xff]
      %v3961 = vld [vmem:[%s3835 + $0x37] sm:$0xff]
      %v3962 = vld [vmem:[%s3835 + $0x4f] sm:$0xff]
      %v3963 = vld [vmem:[%s3835 + $0x67] sm:$0xff]
      %v3964 = vld [vmem:[%s3835 + $0x7f] sm:$0xff]
      %v3965 = vld [vmem:[%s3835 + $0x97] sm:$0xff]
      %v3966 = vld [vmem:[%s3835 + $0xaf] sm:$0xff]
      %3975 = vrot.lane.b32.xlu0 %v3959, 96
      %v3976 = vpop.permute.xlu0 %3975
      %3977 = vrot.lane.b32.xlu0 %v3960, 96
      %v3978 = vpop.permute.xlu0 %3977
      %3979 = vrot.lane.b32.xlu0 %v3961, 96
      %v3980 = vpop.permute.xlu0 %3979
      %3981 = vrot.lane.b32.xlu0 %v3962, 96
      %v3982 = vpop.permute.xlu0 %3981
      %3983 = vrot.lane.b32.xlu0 %v3963, 96
      %v3984 = vpop.permute.xlu0 %3983
      %3985 = vrot.lane.b32.xlu0 %v3964, 96
      %v3986 = vpop.permute.xlu0 %3985
      %3987 = vrot.lane.b32.xlu0 %v3965, 96
      %v3988 = vpop.permute.xlu0 %3987
      %3989 = vrot.lane.b32.xlu0 %v3966, 96
      %v3990 = vpop.permute.xlu0 %3989
      %vm3999 = vcmask 1048320
      %4000 = vst.msk [vmem:[#allocation8] sm:$0xff] %vm3999, %v3976
      %4001 = vst.msk [vmem:[#allocation8 + $0x18] sm:$0xff] %vm3999, %v3978
      %4002 = vst.msk [vmem:[#allocation8 + $0x30] sm:$0xff] %vm3999, %v3980
      %4003 = vst.msk [vmem:[#allocation8 + $0x48] sm:$0xff] %vm3999, %v3982
      %4004 = vst.msk [vmem:[#allocation8 + $0x60] sm:$0xff] %vm3999, %v3984
      %4005 = vst.msk [vmem:[#allocation8 + $0x78] sm:$0xff] %vm3999, %v3986
      %4006 = vst.msk [vmem:[#allocation8 + $0x90] sm:$0xff] %vm3999, %v3988
      %4007 = vst.msk [vmem:[#allocation8 + $0xa8] sm:$0xff] %vm3999, %v3990
      %v4008 = vld [vmem:[%s3835 + $0x8] sm:$0xff]
      %v4009 = vld [vmem:[%s3835 + $0x20] sm:$0xff]
      %v4010 = vld [vmem:[%s3835 + $0x38] sm:$0xff]
      %v4011 = vld [vmem:[%s3835 + $0x50] sm:$0xff]
      %v4012 = vld [vmem:[%s3835 + $0x68] sm:$0xff]
      %v4013 = vld [vmem:[%s3835 + $0x80] sm:$0xff]
      %v4014 = vld [vmem:[%s3835 + $0x98] sm:$0xff]
      %v4015 = vld [vmem:[%s3835 + $0xb0] sm:$0xff]
      %4016 = vst.msk [vmem:[#allocation8 + $0x8] sm:$0xff] %vm3460, %v4008
      %4017 = vst.msk [vmem:[#allocation8 + $0x20] sm:$0xff] %vm3460, %v4009
      %4018 = vst.msk [vmem:[#allocation8 + $0x38] sm:$0xff] %vm3460, %v4010
      %4019 = vst.msk [vmem:[#allocation8 + $0x50] sm:$0xff] %vm3460, %v4011
      %4020 = vst.msk [vmem:[#allocation8 + $0x68] sm:$0xff] %vm3460, %v4012
      %4021 = vst.msk [vmem:[#allocation8 + $0x80] sm:$0xff] %vm3460, %v4013
      %4022 = vst.msk [vmem:[#allocation8 + $0x98] sm:$0xff] %vm3460, %v4014
      %4023 = vst.msk [vmem:[#allocation8 + $0xb0] sm:$0xff] %vm3460, %v4015
      %v4024 = vld [vmem:[%s3835 + $0x9] sm:$0xff]
      %v4025 = vld [vmem:[%s3835 + $0x21] sm:$0xff]
      %v4026 = vld [vmem:[%s3835 + $0x39] sm:$0xff]
      %v4027 = vld [vmem:[%s3835 + $0x51] sm:$0xff]
      %v4028 = vld [vmem:[%s3835 + $0x69] sm:$0xff]
      %v4029 = vld [vmem:[%s3835 + $0x81] sm:$0xff]
      %v4030 = vld [vmem:[%s3835 + $0x99] sm:$0xff]
      %v4031 = vld [vmem:[%s3835 + $0xb1] sm:$0xff]
      %4040 = vrot.lane.b32.xlu0 %v4024, 32
      %v4041 = vpop.permute.xlu0 %4040
      %4042 = vrot.lane.b32.xlu0 %v4025, 32
      %v4043 = vpop.permute.xlu0 %4042
      %4044 = vrot.lane.b32.xlu0 %v4026, 32
      %v4045 = vpop.permute.xlu0 %4044
      %4046 = vrot.lane.b32.xlu0 %v4027, 32
      %v4047 = vpop.permute.xlu0 %4046
      %4048 = vrot.lane.b32.xlu0 %v4028, 32
      %v4049 = vpop.permute.xlu0 %4048
      %4050 = vrot.lane.b32.xlu0 %v4029, 32
      %v4051 = vpop.permute.xlu0 %4050
      %4052 = vrot.lane.b32.xlu0 %v4030, 32
      %v4053 = vpop.permute.xlu0 %4052
      %4054 = vrot.lane.b32.xlu0 %v4031, 32
      %v4055 = vpop.permute.xlu0 %4054
      %4064 = vst.msk [vmem:[#allocation8 + $0x8] sm:$0xff] %vm3901, %v4041
      %4065 = vst.msk [vmem:[#allocation8 + $0x20] sm:$0xff] %vm3901, %v4043
      %4066 = vst.msk [vmem:[#allocation8 + $0x38] sm:$0xff] %vm3901, %v4045
      %4067 = vst.msk [vmem:[#allocation8 + $0x50] sm:$0xff] %vm3901, %v4047
      %4068 = vst.msk [vmem:[#allocation8 + $0x68] sm:$0xff] %vm3901, %v4049
      %4069 = vst.msk [vmem:[#allocation8 + $0x80] sm:$0xff] %vm3901, %v4051
      %4070 = vst.msk [vmem:[#allocation8 + $0x98] sm:$0xff] %vm3901, %v4053
      %4071 = vst.msk [vmem:[#allocation8 + $0xb0] sm:$0xff] %vm3901, %v4055
      %s4072 = scalar_lea.vmem [#allocation4], 216
      %v4073 = vld [vmem:[%s4072 + $0x7] sm:$0xff]
      %v4074 = vld [vmem:[%s4072 + $0x1f] sm:$0xff]
      %v4075 = vld [vmem:[%s4072 + $0x37] sm:$0xff]
      %v4076 = vld [vmem:[%s4072 + $0x4f] sm:$0xff]
      %v4077 = vld [vmem:[%s4072 + $0x67] sm:$0xff]
      %v4078 = vld [vmem:[%s4072 + $0x7f] sm:$0xff]
      %v4079 = vld [vmem:[%s4072 + $0x97] sm:$0xff]
      %v4080 = vld [vmem:[%s4072 + $0xaf] sm:$0xff]
      %4089 = vrot.lane.b32.xlu0 %v4073, 64
      %v4090 = vpop.permute.xlu0 %4089
      %4091 = vrot.lane.b32.xlu0 %v4074, 64
      %v4092 = vpop.permute.xlu0 %4091
      %4093 = vrot.lane.b32.xlu0 %v4075, 64
      %v4094 = vpop.permute.xlu0 %4093
      %4095 = vrot.lane.b32.xlu0 %v4076, 64
      %v4096 = vpop.permute.xlu0 %4095
      %4097 = vrot.lane.b32.xlu0 %v4077, 64
      %v4098 = vpop.permute.xlu0 %4097
      %4099 = vrot.lane.b32.xlu0 %v4078, 64
      %v4100 = vpop.permute.xlu0 %4099
      %4101 = vrot.lane.b32.xlu0 %v4079, 64
      %v4102 = vpop.permute.xlu0 %4101
      %4103 = vrot.lane.b32.xlu0 %v4080, 64
      %v4104 = vpop.permute.xlu0 %4103
      %4113 = vst.msk [vmem:[#allocation8 + $0x8] sm:$0xff] %vm3950, %v4090
      %4114 = vst.msk [vmem:[#allocation8 + $0x20] sm:$0xff] %vm3950, %v4092
      %4115 = vst.msk [vmem:[#allocation8 + $0x38] sm:$0xff] %vm3950, %v4094
      %4116 = vst.msk [vmem:[#allocation8 + $0x50] sm:$0xff] %vm3950, %v4096
      %4117 = vst.msk [vmem:[#allocation8 + $0x68] sm:$0xff] %vm3950, %v4098
      %4118 = vst.msk [vmem:[#allocation8 + $0x80] sm:$0xff] %vm3950, %v4100
      %4119 = vst.msk [vmem:[#allocation8 + $0x98] sm:$0xff] %vm3950, %v4102
      %4120 = vst.msk [vmem:[#allocation8 + $0xb0] sm:$0xff] %vm3950, %v4104
      %v4121 = vld [vmem:[%s4072 + $0x8] sm:$0xff]
      %v4122 = vld [vmem:[%s4072 + $0x20] sm:$0xff]
      %v4123 = vld [vmem:[%s4072 + $0x38] sm:$0xff]
      %v4124 = vld [vmem:[%s4072 + $0x50] sm:$0xff]
      %v4125 = vld [vmem:[%s4072 + $0x68] sm:$0xff]
      %v4126 = vld [vmem:[%s4072 + $0x80] sm:$0xff]
      %v4127 = vld [vmem:[%s4072 + $0x98] sm:$0xff]
      %v4128 = vld [vmem:[%s4072 + $0xb0] sm:$0xff]
      %4137 = vrot.lane.b32.xlu0 %v4121, 96
      %v4138 = vpop.permute.xlu0 %4137
      %4139 = vrot.lane.b32.xlu0 %v4122, 96
      %v4140 = vpop.permute.xlu0 %4139
      %4141 = vrot.lane.b32.xlu0 %v4123, 96
      %v4142 = vpop.permute.xlu0 %4141
      %4143 = vrot.lane.b32.xlu0 %v4124, 96
      %v4144 = vpop.permute.xlu0 %4143
      %4145 = vrot.lane.b32.xlu0 %v4125, 96
      %v4146 = vpop.permute.xlu0 %4145
      %4147 = vrot.lane.b32.xlu0 %v4126, 96
      %v4148 = vpop.permute.xlu0 %4147
      %4149 = vrot.lane.b32.xlu0 %v4127, 96
      %v4150 = vpop.permute.xlu0 %4149
      %4151 = vrot.lane.b32.xlu0 %v4128, 96
      %v4152 = vpop.permute.xlu0 %4151
      %4161 = vst.msk [vmem:[#allocation8 + $0x8] sm:$0xff] %vm3999, %v4138
      %4162 = vst.msk [vmem:[#allocation8 + $0x20] sm:$0xff] %vm3999, %v4140
      %4163 = vst.msk [vmem:[#allocation8 + $0x38] sm:$0xff] %vm3999, %v4142
      %4164 = vst.msk [vmem:[#allocation8 + $0x50] sm:$0xff] %vm3999, %v4144
      %4165 = vst.msk [vmem:[#allocation8 + $0x68] sm:$0xff] %vm3999, %v4146
      %4166 = vst.msk [vmem:[#allocation8 + $0x80] sm:$0xff] %vm3999, %v4148
      %4167 = vst.msk [vmem:[#allocation8 + $0x98] sm:$0xff] %vm3999, %v4150
      %4168 = vst.msk [vmem:[#allocation8 + $0xb0] sm:$0xff] %vm3999, %v4152
      %v4169 = vld [vmem:[%s4072 + $0x9] sm:$0xff]
      %v4170 = vld [vmem:[%s4072 + $0x21] sm:$0xff]
      %v4171 = vld [vmem:[%s4072 + $0x39] sm:$0xff]
      %v4172 = vld [vmem:[%s4072 + $0x51] sm:$0xff]
      %v4173 = vld [vmem:[%s4072 + $0x69] sm:$0xff]
      %v4174 = vld [vmem:[%s4072 + $0x81] sm:$0xff]
      %v4175 = vld [vmem:[%s4072 + $0x99] sm:$0xff]
      %v4176 = vld [vmem:[%s4072 + $0xb1] sm:$0xff]
      %4177 = vst.msk [vmem:[#allocation8 + $0x10] sm:$0xff] %vm3460, %v4169
      %4178 = vst.msk [vmem:[#allocation8 + $0x28] sm:$0xff] %vm3460, %v4170
      %4179 = vst.msk [vmem:[#allocation8 + $0x40] sm:$0xff] %vm3460, %v4171
      %4180 = vst.msk [vmem:[#allocation8 + $0x58] sm:$0xff] %vm3460, %v4172
      %4181 = vst.msk [vmem:[#allocation8 + $0x70] sm:$0xff] %vm3460, %v4173
      %4182 = vst.msk [vmem:[#allocation8 + $0x88] sm:$0xff] %vm3460, %v4174
      %4183 = vst.msk [vmem:[#allocation8 + $0xa0] sm:$0xff] %vm3460, %v4175
      %4184 = vst.msk [vmem:[#allocation8 + $0xb8] sm:$0xff] %vm3460, %v4176
      %v4185 = vld [vmem:[#allocation8] sm:$0xff]
      %v4186 = vld [vmem:[#allocation8 + $0x8] sm:$0xff]
      %v4187 = vld [vmem:[#allocation8 + $0x10] sm:$0xff]
      %v4188 = vld [vmem:[#allocation8 + $0x18] sm:$0xff]
      %v4189 = vld [vmem:[#allocation8 + $0x20] sm:$0xff]
      %v4190 = vld [vmem:[#allocation8 + $0x28] sm:$0xff]
      %v4191 = vld [vmem:[#allocation8 + $0x30] sm:$0xff]
      %v4192 = vld [vmem:[#allocation8 + $0x38] sm:$0xff]
      %v4193 = vld [vmem:[#allocation8 + $0x40] sm:$0xff]
      %v4194 = vld [vmem:[#allocation8 + $0x48] sm:$0xff]
      %v4195 = vld [vmem:[#allocation8 + $0x50] sm:$0xff]
      %v4196 = vld [vmem:[#allocation8 + $0x58] sm:$0xff]
      %v4197 = vld [vmem:[#allocation8 + $0x60] sm:$0xff]
      %v4198 = vld [vmem:[#allocation8 + $0x68] sm:$0xff]
      %v4199 = vld [vmem:[#allocation8 + $0x70] sm:$0xff]
      %v4200 = vld [vmem:[#allocation8 + $0x78] sm:$0xff]
      %v4201 = vld [vmem:[#allocation8 + $0x80] sm:$0xff]
      %v4202 = vld [vmem:[#allocation8 + $0x88] sm:$0xff]
      %v4203 = vld [vmem:[#allocation8 + $0x90] sm:$0xff]
      %v4204 = vld [vmem:[#allocation8 + $0x98] sm:$0xff]
      %v4205 = vld [vmem:[#allocation8 + $0xa0] sm:$0xff]
      %v4206 = vld [vmem:[#allocation8 + $0xa8] sm:$0xff]
      %v4207 = vld [vmem:[#allocation8 + $0xb0] sm:$0xff]
      %v4208 = vld [vmem:[#allocation8 + $0xb8] sm:$0xff]
      %v4209 = vpack.c.bf16 %v4188, %v4185
      %v4210 = vpack.c.bf16 %v4189, %v4186
      %v4211 = vpack.c.bf16 %v4190, %v4187
      %v4212 = vpack.c.bf16 %v4194, %v4191
      %v4213 = vpack.c.bf16 %v4195, %v4192
      %v4214 = vpack.c.bf16 %v4196, %v4193
      %v4215 = vpack.c.bf16 %v4200, %v4197
      %v4216 = vpack.c.bf16 %v4201, %v4198
      %v4217 = vpack.c.bf16 %v4202, %v4199
      %v4218 = vpack.c.bf16 %v4206, %v4203
      %v4219 = vpack.c.bf16 %v4207, %v4204
      %v4220 = vpack.c.bf16 %v4208, %v4205
      %v4221 = vld [vmem:[%s5] sm:$0xf]
      %v4222 = vld [vmem:[%s5 + $0x4] sm:$0xf]
      %v4223 = vld [vmem:[%s5 + $0x8] sm:$0xf]
      %v4224 = vld [vmem:[%s5 + $0xc] sm:$0xf]
      %v4225 = vld [vmem:[%s5 + $0x10] sm:$0xf]
      %v4226 = vld [vmem:[%s5 + $0x14] sm:$0xf]
      %v4227 = vld [vmem:[%s5 + $0x18] sm:$0xf]
      %v4228 = vld [vmem:[%s5 + $0x1c] sm:$0xf]
      %v4229 = vld [vmem:[%s5 + $0x20] sm:$0xf]
      %v4230 = vld [vmem:[%s5 + $0x24] sm:$0xf]
      %v4231 = vld [vmem:[%s5 + $0x28] sm:$0xf]
      %v4232 = vld [vmem:[%s5 + $0x2c] sm:$0xf]
      %v4233 = vld [vmem:[%s5 + $0x30] sm:$0xf]
      %v4234 = vld [vmem:[%s5 + $0x34] sm:$0xf]
      %v4235 = vld [vmem:[%s5 + $0x38] sm:$0xf]
      %v4236 = vld [vmem:[%s5 + $0x3c] sm:$0xf]
      %v4237 = vld [vmem:[%s5 + $0x40] sm:$0xf]
      %v4238 = vld [vmem:[%s5 + $0x44] sm:$0xf]
      %v4239 = vld [vmem:[%s5 + $0x48] sm:$0xf]
      %v4240 = vld [vmem:[%s5 + $0x4c] sm:$0xf]
      %v4241 = vld [vmem:[%s5 + $0x50] sm:$0xf]
      %v4242 = vld [vmem:[%s5 + $0x54] sm:$0xf]
      %v4243 = vld [vmem:[%s5 + $0x58] sm:$0xf]
      %v4244 = vld [vmem:[%s5 + $0x5c] sm:$0xf]
      %v4245 = vld [vmem:[%s5 + $0x60] sm:$0xf]
      %v4246 = vld [vmem:[%s5 + $0x64] sm:$0xf]
      %v4247 = vld [vmem:[%s5 + $0x68] sm:$0xf]
      %v4248 = vld [vmem:[%s5 + $0x6c] sm:$0xf]
      %v4249 = vld [vmem:[%s5 + $0x70] sm:$0xf]
      %v4250 = vld [vmem:[%s5 + $0x74] sm:$0xf]
      %v4251 = vld [vmem:[%s5 + $0x78] sm:$0xf]
      %v4252 = vld [vmem:[%s5 + $0x7c] sm:$0xf]
      %v4253 = vld [vmem:[%s5 + $0x80] sm:$0xf]
      %v4254 = vld [vmem:[%s5 + $0x84] sm:$0xf]
      %v4255 = vld [vmem:[%s5 + $0x88] sm:$0xf]
      %v4256 = vld [vmem:[%s5 + $0x8c] sm:$0xf]
      %v4257 = vld [vmem:[%s6] sm:$0x1]
      %v4259 = vlaneseq
      %v4260 = vshrl.u32 %v4259, 7
      %v4261 = vsub.s32 0, %v4260
      %v4262 = vrot.slane %v4257, %v4261
      %v4300 = vunpack.c.l.b16 %v4221
      %v4301 = vunpack.c.l.b16 %v4222
      %v4302 = vunpack.c.l.b16 %v4223
      %v4303 = vunpack.c.l.b16 %v4224
      %v4304 = vunpack.c.l.b16 %v4225
      %v4305 = vunpack.c.l.b16 %v4226
      %v4306 = vunpack.c.l.b16 %v4227
      %v4307 = vunpack.c.l.b16 %v4228
      %v4308 = vunpack.c.l.b16 %v4229
      %v4309 = vunpack.c.l.b16 %v4230
      %v4310 = vunpack.c.l.b16 %v4231
      %v4311 = vunpack.c.l.b16 %v4232
      %v4312 = vunpack.c.l.b16 %v4233
      %v4313 = vunpack.c.l.b16 %v4234
      %v4314 = vunpack.c.l.b16 %v4235
      %v4315 = vunpack.c.l.b16 %v4236
      %v4316 = vunpack.c.l.b16 %v4237
      %v4317 = vunpack.c.l.b16 %v4238
      %v4318 = vunpack.c.l.b16 %v4239
      %v4319 = vunpack.c.l.b16 %v4240
      %v4320 = vunpack.c.l.b16 %v4241
      %v4321 = vunpack.c.l.b16 %v4242
      %v4322 = vunpack.c.l.b16 %v4243
      %v4323 = vunpack.c.l.b16 %v4244
      %v4324 = vunpack.c.l.b16 %v4245
      %v4325 = vunpack.c.l.b16 %v4246
      %v4326 = vunpack.c.l.b16 %v4247
      %v4327 = vunpack.c.l.b16 %v4248
      %v4328 = vunpack.c.l.b16 %v4249
      %v4329 = vunpack.c.l.b16 %v4250
      %v4330 = vunpack.c.l.b16 %v4251
      %v4331 = vunpack.c.l.b16 %v4252
      %v4332 = vunpack.c.l.b16 %v4253
      %v4333 = vunpack.c.l.b16 %v4254
      %v4334 = vunpack.c.l.b16 %v4255
      %v4335 = vunpack.c.l.b16 %v4256
      %v4336 = vpack.c.b16 %v4301, %v4300
      %v4337 = vpack.c.b16 %v4303, %v4302
      %v4338 = vpack.c.b16 %v4305, %v4304
      %v4339 = vpack.c.b16 %v4307, %v4306
      %v4340 = vpack.c.b16 %v4309, %v4308
      %v4341 = vpack.c.b16 %v4311, %v4310
      %v4342 = vpack.c.b16 %v4313, %v4312
      %v4343 = vpack.c.b16 %v4315, %v4314
      %v4344 = vpack.c.b16 %v4317, %v4316
      %v4345 = vpack.c.b16 %v4319, %v4318
      %v4346 = vpack.c.b16 %v4321, %v4320
      %v4347 = vpack.c.b16 %v4323, %v4322
      %v4348 = vpack.c.b16 %v4325, %v4324
      %v4349 = vpack.c.b16 %v4327, %v4326
      %v4350 = vpack.c.b16 %v4329, %v4328
      %v4351 = vpack.c.b16 %v4331, %v4330
      %v4352 = vpack.c.b16 %v4333, %v4332
      %v4353 = vpack.c.b16 %v4335, %v4334
      %v4373 = vsel %vm3460, %v4211, 0
      %v4376 = vsel %vm3460, %v4214, 0
      %v4379 = vsel %vm3460, %v4217, 0
      %v4382 = vsel %vm3460, %v4220, 0
      %4384 = vmatprep.subr.bf16.mxu0 0
      %4385 = vmatpush1.bf16.msra.mxu0 %v4336
      %4386 = vmatprep.subr.bf16.mxu0 0
      %4387 = vmatpush1.bf16.msra.mxu0 %v4337
      %4388 = vmatprep.subr.bf16.mxu0 0
      %4389 = vmatpush1.bf16.msra.mxu0 %v4338
      %4390 = vmatprep.subr.bf16.mxu0 0
      %4391 = vmatpush1.bf16.msra.mxu0 %v4339
      %4392 = vmatprep.subr.bf16.mxu0 0
      %4393 = vmatpush1.bf16.msra.mxu0 %v4340
      %4394 = vmatprep.subr.bf16.mxu0 0
      %4395 = vmatpush1.bf16.msra.mxu0 %v4341
      %4396 = vmatprep.subr.bf16.mxu0 0
      %4397 = vmatpush1.bf16.msra.mxu0 %v4342
      %4398 = vmatprep.subr.bf16.mxu0 0
      %4399 = vmatpush1.bf16.msra.mxu0 %v4343
      %4400 = vmatprep.subr.bf16.mxu0 0
      %4401 = vmatpush1.bf16.msra.mxu0 %v4344
      %4402 = vmatprep.subr.bf16.mxu0 0
      %4403 = vmatpush1.bf16.msra.mxu0 %v4345
      %4404 = vmatprep.subr.bf16.mxu0 0
      %4405 = vmatpush1.bf16.msra.mxu0 %v4346
      %4406 = vmatprep.subr.bf16.mxu0 0
      %4407 = vmatpush1.bf16.msra.mxu0 %v4347
      %4408 = vmatprep.subr.bf16.mxu0 0
      %4409 = vmatpush1.bf16.msra.mxu0 %v4348
      %4410 = vmatprep.subr.bf16.mxu0 0
      %4411 = vmatpush1.bf16.msra.mxu0 %v4349
      %4412 = vmatprep.subr.bf16.mxu0 0
      %4413 = vmatpush1.bf16.msra.mxu0 %v4350
      %4414 = vmatprep.subr.bf16.mxu0 0
      %4415 = vmatpush1.bf16.msra.mxu0 %v4351
      %4416 = vmatprep.mubr.bf16.mxu0 %v4210
      %4417 = vmatmul.mubr.bf16.gmra.mrb[0].mxu0 %v4209
      %v4418 = vpop.f32.mrb[0].mxu0
      %v4419 = vadd.f32 %v4262, %v4418
      %v4420 = vpop.f32.mrb[0].mxu0
      %v4421 = vpop.f32.mrb[0].mxu0
      %v4422 = vadd.f32 %v4262, %v4421
      %v4423 = vpop.f32.mrb[0].mxu0
      %4424 = vmatprep.mubr.bf16.mxu0 %v4213
      %4425 = vmatmul.mubr.bf16.gmra.mrb[0].mxu0 %v4212
      %v4426 = vpop.f32.mrb[0].mxu0
      %v4427 = vadd.f32 %v4262, %v4426
      %v4428 = vpop.f32.mrb[0].mxu0
      %v4429 = vpop.f32.mrb[0].mxu0
      %v4430 = vadd.f32 %v4262, %v4429
      %v4431 = vpop.f32.mrb[0].mxu0
      %4432 = vmatprep.mubr.bf16.mxu0 %v4216
      %4433 = vmatmul.mubr.bf16.gmra.mrb[0].mxu0 %v4215
      %v4434 = vpop.f32.mrb[0].mxu0
      %v4435 = vadd.f32 %v4262, %v4434
      %v4436 = vpop.f32.mrb[0].mxu0
      %v4437 = vpop.f32.mrb[0].mxu0
      %v4438 = vadd.f32 %v4262, %v4437
      %v4439 = vpop.f32.mrb[0].mxu0
      %4440 = vmatprep.mubr.bf16.mxu0 %v4219
      %4441 = vmatmul.mubr.bf16.gmra.mrb[0].mxu0 %v4218
      %v4442 = vpop.f32.mrb[0].mxu0
      %v4443 = vadd.f32 %v4262, %v4442
      %v4444 = vpop.f32.mrb[0].mxu0
      %v4445 = vpop.f32.mrb[0].mxu0
      %v4446 = vadd.f32 %v4262, %v4445
      %v4447 = vpop.f32.mrb[0].mxu0
      %4448 = vdwg.mxu0
      %4449 = vmatprep.subr.bf16.mxu0 0
      %4450 = vmatpush1.bf16.msra.mxu0 %v4352
      %4451 = vmatprep.subr.bf16.mxu0 0
      %4452 = vmatpush1.bf16.msra.mxu0 %v4353
      %4453 = vmatprep.subr.bf16.mxu0 0
      %4454 = vmatpush1.bf16.msra.mxu0 0
      %4455 = vmatprep.subr.bf16.mxu0 0
      %4456 = vmatpush1.bf16.msra.mxu0 0
      %4457 = vmatprep.subr.bf16.mxu0 0
      %4458 = vmatpush1.bf16.msra.mxu0 0
      %4459 = vmatprep.subr.bf16.mxu0 0
      %4460 = vmatpush1.bf16.msra.mxu0 0
      %4461 = vmatprep.subr.bf16.mxu0 0
      %4462 = vmatpush1.bf16.msra.mxu0 0
      %4463 = vmatprep.subr.bf16.mxu0 0
      %4464 = vmatpush1.bf16.msra.mxu0 0
      %4465 = vmatprep.subr.bf16.mxu0 0
      %4466 = vmatpush1.bf16.msra.mxu0 0
      %4467 = vmatprep.subr.bf16.mxu0 0
      %4468 = vmatpush1.bf16.msra.mxu0 0
      %4469 = vmatprep.subr.bf16.mxu0 0
      %4470 = vmatpush1.bf16.msra.mxu0 0
      %4471 = vmatprep.subr.bf16.mxu0 0
      %4472 = vmatpush1.bf16.msra.mxu0 0
      %4473 = vmatprep.subr.bf16.mxu0 0
      %4474 = vmatpush1.bf16.msra.mxu0 0
      %4475 = vmatprep.subr.bf16.mxu0 0
      %4476 = vmatpush1.bf16.msra.mxu0 0
      %4477 = vmatprep.subr.bf16.mxu0 0
      %4478 = vmatpush1.bf16.msra.mxu0 0
      %4479 = vmatprep.subr.bf16.mxu0 0
      %4480 = vmatpush1.bf16.msra.mxu0 0
      %4481 = vmatprep.mubr.bf16.mxu0 0
      %4482 = vmatmul.mubr.bf16.gmra.mrb[0].mxu0 %v4373
      %v4483 = vpop.f32.mrb[0].mxu0
      %v4484 = vadd.f32 %v4419, %v4483
      %v4485 = vpop.f32.mrb[0].mxu0
      %v4486 = vpop.f32.mrb[0].mxu0
      %v4487 = vadd.f32 %v4422, %v4486
      %v4488 = vpop.f32.mrb[0].mxu0
      %4489 = vmatprep.mubr.bf16.mxu0 0
      %4490 = vmatmul.mubr.bf16.gmra.mrb[0].mxu0 %v4376
      %v4491 = vpop.f32.mrb[0].mxu0
      %v4492 = vadd.f32 %v4427, %v4491
      %v4493 = vpop.f32.mrb[0].mxu0
      %v4494 = vpop.f32.mrb[0].mxu0
      %v4495 = vadd.f32 %v4430, %v4494
      %v4496 = vpop.f32.mrb[0].mxu0
      %4497 = vmatprep.mubr.bf16.mxu0 0
      %4498 = vmatmul.mubr.bf16.gmra.mrb[0].mxu0 %v4379
      %v4499 = vpop.f32.mrb[0].mxu0
      %v4500 = vadd.f32 %v4435, %v4499
      %v4501 = vpop.f32.mrb[0].mxu0
      %v4502 = vpop.f32.mrb[0].mxu0
      %v4503 = vadd.f32 %v4438, %v4502
      %v4504 = vpop.f32.mrb[0].mxu0
      %4505 = vmatprep.mubr.bf16.mxu0 0
      %4506 = vmatmul.mubr.bf16.gmra.mrb[0].mxu0 %v4382
      %v4507 = vpop.f32.mrb[0].mxu0
      %v4508 = vadd.f32 %v4443, %v4507
      %v4509 = vpop.f32.mrb[0].mxu0
      %v4510 = vpop.f32.mrb[0].mxu0
      %v4511 = vadd.f32 %v4446, %v4510
      %v4512 = vpop.f32.mrb[0].mxu0
      %4513 = vdwg.mxu0
      %v4514 = vmax.f32 %v4484, 0.0
      %v4515 = vmax.f32 %v4487, 0.0
      %v4516 = vmax.f32 %v4492, 0.0
      %v4517 = vmax.f32 %v4495, 0.0
      %v4518 = vmax.f32 %v4500, 0.0
      %v4519 = vmax.f32 %v4503, 0.0
      %v4520 = vmax.f32 %v4508, 0.0
      %v4521 = vmax.f32 %v4511, 0.0
      %v4522 = vld [vmem:[%s10] sm:$0xff]
      %v4523 = vld [vmem:[%s10 + $0x8] sm:$0xff]
      %v4524 = vld [vmem:[%s10 + $0x10] sm:$0xff]
      %v4525 = vld [vmem:[%s10 + $0x18] sm:$0xff]
      %v4526 = vld [vmem:[%s10 + $0x20] sm:$0xff]
      %v4527 = vld [vmem:[%s10 + $0x28] sm:$0xff]
      %v4528 = vld [vmem:[%s10 + $0x30] sm:$0xff]
      %v4529 = vld [vmem:[%s10 + $0x38] sm:$0xff]
      %v4530 = vld [vmem:[%s10 + $0x40] sm:$0xff]
      %v4531 = vld [vmem:[%s10 + $0x48] sm:$0xff]
      %v4532 = vld [vmem:[%s10 + $0x50] sm:$0xff]
      %v4533 = vld [vmem:[%s10 + $0x58] sm:$0xff]
      %v4534 = vld [vmem:[%s10 + $0x60] sm:$0xff]
      %v4535 = vld [vmem:[%s10 + $0x68] sm:$0xff]
      %v4536 = vld [vmem:[%s10 + $0x70] sm:$0xff]
      %v4537 = vld [vmem:[%s10 + $0x78] sm:$0xff]
      %v4538 = vld [vmem:[%s10 + $0x80] sm:$0xff]
      %v4539 = vld [vmem:[%s10 + $0x88] sm:$0xff]
      %v4540 = vld [vmem:[%s10 + $0x90] sm:$0xff]
      %v4541 = vld [vmem:[%s10 + $0x98] sm:$0xff]
      %v4542 = vld [vmem:[%s10 + $0xa0] sm:$0xff]
      %v4543 = vld [vmem:[%s10 + $0xa8] sm:$0xff]
      %v4544 = vld [vmem:[%s10 + $0xb0] sm:$0xff]
      %v4545 = vld [vmem:[%s10 + $0xb8] sm:$0xff]
      %v4546 = vld [vmem:[%s10 + $0xc0] sm:$0xff]
      %v4547 = vld [vmem:[%s10 + $0xc8] sm:$0xff]
      %v4548 = vld [vmem:[%s10 + $0xd0] sm:$0xff]
      %v4549 = vld [vmem:[%s10 + $0xd8] sm:$0xff]
      %v4550 = vld [vmem:[%s10 + $0xe0] sm:$0xff]
      %v4551 = vld [vmem:[%s10 + $0xe8] sm:$0xff]
      %v4552 = vld [vmem:[%s10 + $0xf0] sm:$0xff]
      %v4553 = vld [vmem:[%s10 + $0xf8] sm:$0xff]
      %vm4554 = vcmask 523264
      %v4556 = vsel %vm4554, %v4522, 0
      %v4559 = vsel %vm4554, %v4523, 0
      %v4562 = vsel %vm4554, %v4524, 0
      %v4565 = vsel %vm4554, %v4525, 0
      %v4568 = vsel %vm4554, %v4526, 0
      %v4571 = vsel %vm4554, %v4527, 0
      %v4574 = vsel %vm4554, %v4528, 0
      %v4577 = vsel %vm4554, %v4529, 0
      %v4580 = vsel %vm4554, %v4530, 0
      %v4583 = vsel %vm4554, %v4531, 0
      %v4586 = vsel %vm4554, %v4532, 0
      %v4589 = vsel %vm4554, %v4533, 0
      %v4592 = vsel %vm4554, %v4534, 0
      %v4595 = vsel %vm4554, %v4535, 0
      %v4598 = vsel %vm4554, %v4536, 0
      %v4601 = vsel %vm4554, %v4537, 0
      %v4604 = vsel %vm4554, %v4538, 0
      %v4607 = vsel %vm4554, %v4539, 0
      %v4610 = vsel %vm4554, %v4540, 0
      %v4613 = vsel %vm4554, %v4541, 0
      %v4616 = vsel %vm4554, %v4542, 0
      %v4619 = vsel %vm4554, %v4543, 0
      %v4622 = vsel %vm4554, %v4544, 0
      %v4625 = vsel %vm4554, %v4545, 0
      %v4628 = vsel %vm4554, %v4546, 0
      %v4631 = vsel %vm4554, %v4547, 0
      %v4634 = vsel %vm4554, %v4548, 0
      %v4637 = vsel %vm4554, %v4549, 0
      %v4640 = vsel %vm4554, %v4550, 0
      %v4643 = vsel %vm4554, %v4551, 0
      %v4646 = vsel %vm4554, %v4552, 0
      %v4649 = vsel %vm4554, %v4553, 0
      %4651 = vmatprep.subr.mxu0 0.0
      %4652 = vmatpush1.msra.mxu0 %v4514
      %4653 = vmatprep.subr.mxu0 0.0
      %4654 = vmatpush1.msra.mxu0 %v4515
      %4655 = vmatprep.subr.mxu0 0.0
      %4656 = vmatpush1.msra.mxu0 %v4516
      %4657 = vmatprep.subr.mxu0 0.0
      %4658 = vmatpush1.msra.mxu0 %v4517
      %4659 = vmatprep.subr.mxu0 0.0
      %4660 = vmatpush1.msra.mxu0 %v4518
      %4661 = vmatprep.subr.mxu0 0.0
      %4662 = vmatpush1.msra.mxu0 %v4519
      %4663 = vmatprep.subr.mxu0 0.0
      %4664 = vmatpush1.msra.mxu0 %v4520
      %4665 = vmatprep.subr.mxu0 0.0
      %4666 = vmatpush1.msra.mxu0 %v4521
      %4667 = vmatprep.subr.mxu0 0.0
      %4668 = vmatpush1.msra.mxu0 0.0
      %4669 = vmatprep.subr.mxu0 0.0
      %4670 = vmatpush1.msra.mxu0 0.0
      %4671 = vmatprep.subr.mxu0 0.0
      %4672 = vmatpush1.msra.mxu0 0.0
      %4673 = vmatprep.subr.mxu0 0.0
      %4674 = vmatpush1.msra.mxu0 0.0
      %4675 = vmatprep.subr.mxu0 0.0
      %4676 = vmatpush1.msra.mxu0 0.0
      %4677 = vmatprep.subr.mxu0 0.0
      %4678 = vmatpush1.msra.mxu0 0.0
      %4679 = vmatprep.subr.mxu0 0.0
      %4680 = vmatpush1.msra.mxu0 0.0
      %4681 = vmatprep.subr.mxu0 0.0
      %4682 = vmatpush1.msra.mxu0 0.0
      %4683 = vmatprep.subr.mxu0 0.0
      %4684 = vmatpush1.msra.mxu0 0.0
      %4685 = vmatprep.subr.mxu0 0.0
      %4686 = vmatpush1.msra.mxu0 0.0
      %4687 = vmatprep.subr.mxu0 0.0
      %4688 = vmatpush1.msra.mxu0 0.0
      %4689 = vmatprep.subr.mxu0 0.0
      %4690 = vmatpush1.msra.mxu0 0.0
      %4691 = vmatprep.subr.mxu0 0.0
      %4692 = vmatpush1.msra.mxu0 0.0
      %4693 = vmatprep.subr.mxu0 0.0
      %4694 = vmatpush1.msra.mxu0 0.0
      %4695 = vmatprep.subr.mxu0 0.0
      %4696 = vmatpush1.msra.mxu0 0.0
      %4697 = vmatprep.subr.mxu0 0.0
      %4698 = vmatpush1.msra.mxu0 0.0
      %4699 = vmatprep.subr.mxu0 0.0
      %4700 = vmatpush1.msra.mxu0 0.0
      %4701 = vmatprep.subr.mxu0 0.0
      %4702 = vmatpush1.msra.mxu0 0.0
      %4703 = vmatprep.subr.mxu0 0.0
      %4704 = vmatpush1.msra.mxu0 0.0
      %4705 = vmatprep.subr.mxu0 0.0
      %4706 = vmatpush1.msra.mxu0 0.0
      %4707 = vmatprep.subr.mxu0 0.0
      %4708 = vmatpush1.msra.mxu0 0.0
      %4709 = vmatprep.subr.mxu0 0.0
      %4710 = vmatpush1.msra.mxu0 0.0
      %4711 = vmatprep.subr.mxu0 0.0
      %4712 = vmatpush1.msra.mxu0 0.0
      %4713 = vmatprep.subr.mxu0 0.0
      %4714 = vmatpush1.msra.mxu0 0.0
      %4715 = vmatprep.mubr.f32.mxu0 0.0
      %4716 = vmatmul.mubr.f32.gmra.mrb[0].mxu0 %v4556
      %v4717 = vpop.f32.mrb[0].mxu0
      %v4718 = vadd.f32 0.0, %v4717
      %v4719 = vpop.f32.mrb[0].mxu0
      %4720 = vmatprep.mubr.f32.mxu0 0.0
      %4721 = vmatmul.mubr.f32.gmra.mrb[0].mxu0 %v4559
      %v4722 = vpop.f32.mrb[0].mxu0
      %v4723 = vadd.f32 0.0, %v4722
      %v4724 = vpop.f32.mrb[0].mxu0
      %4725 = vmatprep.mubr.f32.mxu0 0.0
      %4726 = vmatmul.mubr.f32.gmra.mrb[0].mxu0 %v4562
      %v4727 = vpop.f32.mrb[0].mxu0
      %v4728 = vadd.f32 0.0, %v4727
      %v4729 = vpop.f32.mrb[0].mxu0
      %4730 = vmatprep.mubr.f32.mxu0 0.0
      %4731 = vmatmul.mubr.f32.gmra.mrb[0].mxu0 %v4565
      %v4732 = vpop.f32.mrb[0].mxu0
      %v4733 = vadd.f32 0.0, %v4732
      %v4734 = vpop.f32.mrb[0].mxu0
      %4735 = vmatprep.mubr.f32.mxu0 0.0
      %4736 = vmatmul.mubr.f32.gmra.mrb[0].mxu0 %v4568
      %v4737 = vpop.f32.mrb[0].mxu0
      %v4738 = vadd.f32 0.0, %v4737
      %v4739 = vpop.f32.mrb[0].mxu0
      %4740 = vmatprep.mubr.f32.mxu0 0.0
      %4741 = vmatmul.mubr.f32.gmra.mrb[0].mxu0 %v4571
      %v4742 = vpop.f32.mrb[0].mxu0
      %v4743 = vadd.f32 0.0, %v4742
      %v4744 = vpop.f32.mrb[0].mxu0
      %4745 = vmatprep.mubr.f32.mxu0 0.0
      %4746 = vmatmul.mubr.f32.gmra.mrb[0].mxu0 %v4574
      %v4747 = vpop.f32.mrb[0].mxu0
      %v4748 = vadd.f32 0.0, %v4747
      %v4749 = vpop.f32.mrb[0].mxu0
      %4750 = vmatprep.mubr.f32.mxu0 0.0
      %4751 = vmatmul.mubr.f32.gmra.mrb[0].mxu0 %v4577
      %v4752 = vpop.f32.mrb[0].mxu0
      %v4753 = vadd.f32 0.0, %v4752
      %v4754 = vpop.f32.mrb[0].mxu0
      %4755 = vmatprep.mubr.f32.mxu0 0.0
      %4756 = vmatmul.mubr.f32.gmra.mrb[0].mxu0 %v4580
      %v4757 = vpop.f32.mrb[0].mxu0
      %v4758 = vadd.f32 0.0, %v4757
      %v4759 = vpop.f32.mrb[0].mxu0
      %4760 = vmatprep.mubr.f32.mxu0 0.0
      %4761 = vmatmul.mubr.f32.gmra.mrb[0].mxu0 %v4583
      %v4762 = vpop.f32.mrb[0].mxu0
      %v4763 = vadd.f32 0.0, %v4762
      %v4764 = vpop.f32.mrb[0].mxu0
      %4765 = vmatprep.mubr.f32.mxu0 0.0
      %4766 = vmatmul.mubr.f32.gmra.mrb[0].mxu0 %v4586
      %v4767 = vpop.f32.mrb[0].mxu0
      %v4768 = vadd.f32 0.0, %v4767
      %v4769 = vpop.f32.mrb[0].mxu0
      %4770 = vmatprep.mubr.f32.mxu0 0.0
      %4771 = vmatmul.mubr.f32.gmra.mrb[0].mxu0 %v4589
      %v4772 = vpop.f32.mrb[0].mxu0
      %v4773 = vadd.f32 0.0, %v4772
      %v4774 = vpop.f32.mrb[0].mxu0
      %4775 = vmatprep.mubr.f32.mxu0 0.0
      %4776 = vmatmul.mubr.f32.gmra.mrb[0].mxu0 %v4592
      %v4777 = vpop.f32.mrb[0].mxu0
      %v4778 = vadd.f32 0.0, %v4777
      %v4779 = vpop.f32.mrb[0].mxu0
      %4780 = vmatprep.mubr.f32.mxu0 0.0
      %4781 = vmatmul.mubr.f32.gmra.mrb[0].mxu0 %v4595
      %v4782 = vpop.f32.mrb[0].mxu0
      %v4783 = vadd.f32 0.0, %v4782
      %v4784 = vpop.f32.mrb[0].mxu0
      %4785 = vmatprep.mubr.f32.mxu0 0.0
      %4786 = vmatmul.mubr.f32.gmra.mrb[0].mxu0 %v4598
      %v4787 = vpop.f32.mrb[0].mxu0
      %v4788 = vadd.f32 0.0, %v4787
      %v4789 = vpop.f32.mrb[0].mxu0
      %4790 = vmatprep.mubr.f32.mxu0 0.0
      %4791 = vmatmul.mubr.f32.gmra.mrb[0].mxu0 %v4601
      %v4792 = vpop.f32.mrb[0].mxu0
      %v4793 = vadd.f32 0.0, %v4792
      %v4794 = vpop.f32.mrb[0].mxu0
      %4795 = vmatprep.mubr.f32.mxu0 0.0
      %4796 = vmatmul.mubr.f32.gmra.mrb[0].mxu0 %v4604
      %v4797 = vpop.f32.mrb[0].mxu0
      %v4798 = vadd.f32 0.0, %v4797
      %v4799 = vpop.f32.mrb[0].mxu0
      %4800 = vmatprep.mubr.f32.mxu0 0.0
      %4801 = vmatmul.mubr.f32.gmra.mrb[0].mxu0 %v4607
      %v4802 = vpop.f32.mrb[0].mxu0
      %v4803 = vadd.f32 0.0, %v4802
      %v4804 = vpop.f32.mrb[0].mxu0
      %4805 = vmatprep.mubr.f32.mxu0 0.0
      %4806 = vmatmul.mubr.f32.gmra.mrb[0].mxu0 %v4610
      %v4807 = vpop.f32.mrb[0].mxu0
      %v4808 = vadd.f32 0.0, %v4807
      %v4809 = vpop.f32.mrb[0].mxu0
      %4810 = vmatprep.mubr.f32.mxu0 0.0
      %4811 = vmatmul.mubr.f32.gmra.mrb[0].mxu0 %v4613
      %v4812 = vpop.f32.mrb[0].mxu0
      %v4813 = vadd.f32 0.0, %v4812
      %v4814 = vpop.f32.mrb[0].mxu0
      %4815 = vmatprep.mubr.f32.mxu0 0.0
      %4816 = vmatmul.mubr.f32.gmra.mrb[0].mxu0 %v4616
      %v4817 = vpop.f32.mrb[0].mxu0
      %v4818 = vadd.f32 0.0, %v4817
      %v4819 = vpop.f32.mrb[0].mxu0
      %4820 = vmatprep.mubr.f32.mxu0 0.0
      %4821 = vmatmul.mubr.f32.gmra.mrb[0].mxu0 %v4619
      %v4822 = vpop.f32.mrb[0].mxu0
      %v4823 = vadd.f32 0.0, %v4822
      %v4824 = vpop.f32.mrb[0].mxu0
      %4825 = vmatprep.mubr.f32.mxu0 0.0
      %4826 = vmatmul.mubr.f32.gmra.mrb[0].mxu0 %v4622
      %v4827 = vpop.f32.mrb[0].mxu0
      %v4828 = vadd.f32 0.0, %v4827
      %v4829 = vpop.f32.mrb[0].mxu0
      %4830 = vmatprep.mubr.f32.mxu0 0.0
      %4831 = vmatmul.mubr.f32.gmra.mrb[0].mxu0 %v4625
      %v4832 = vpop.f32.mrb[0].mxu0
      %v4833 = vadd.f32 0.0, %v4832
      %v4834 = vpop.f32.mrb[0].mxu0
      %4835 = vmatprep.mubr.f32.mxu0 0.0
      %4836 = vmatmul.mubr.f32.gmra.mrb[0].mxu0 %v4628
      %v4837 = vpop.f32.mrb[0].mxu0
      %v4838 = vadd.f32 0.0, %v4837
      %v4839 = vpop.f32.mrb[0].mxu0
      %4840 = vmatprep.mubr.f32.mxu0 0.0
      %4841 = vmatmul.mubr.f32.gmra.mrb[0].mxu0 %v4631
      %v4842 = vpop.f32.mrb[0].mxu0
      %v4843 = vadd.f32 0.0, %v4842
      %v4844 = vpop.f32.mrb[0].mxu0
      %4845 = vmatprep.mubr.f32.mxu0 0.0
      %4846 = vmatmul.mubr.f32.gmra.mrb[0].mxu0 %v4634
      %v4847 = vpop.f32.mrb[0].mxu0
      %v4848 = vadd.f32 0.0, %v4847
      %v4849 = vpop.f32.mrb[0].mxu0
      %4850 = vmatprep.mubr.f32.mxu0 0.0
      %4851 = vmatmul.mubr.f32.gmra.mrb[0].mxu0 %v4637
      %v4852 = vpop.f32.mrb[0].mxu0
      %v4853 = vadd.f32 0.0, %v4852
      %v4854 = vpop.f32.mrb[0].mxu0
      %4855 = vmatprep.mubr.f32.mxu0 0.0
      %4856 = vmatmul.mubr.f32.gmra.mrb[0].mxu0 %v4640
      %v4857 = vpop.f32.mrb[0].mxu0
      %v4858 = vadd.f32 0.0, %v4857
      %v4859 = vpop.f32.mrb[0].mxu0
      %4860 = vmatprep.mubr.f32.mxu0 0.0
      %4861 = vmatmul.mubr.f32.gmra.mrb[0].mxu0 %v4643
      %v4862 = vpop.f32.mrb[0].mxu0
      %v4863 = vadd.f32 0.0, %v4862
      %v4864 = vpop.f32.mrb[0].mxu0
      %4865 = vmatprep.mubr.f32.mxu0 0.0
      %4866 = vmatmul.mubr.f32.gmra.mrb[0].mxu0 %v4646
      %v4867 = vpop.f32.mrb[0].mxu0
      %v4868 = vadd.f32 0.0, %v4867
      %v4869 = vpop.f32.mrb[0].mxu0
      %4870 = vmatprep.mubr.f32.mxu0 0.0
      %4871 = vmatmul.mubr.f32.gmra.mrb[0].mxu0 %v4649
      %v4872 = vpop.f32.mrb[0].mxu0
      %v4873 = vadd.f32 0.0, %v4872
      %v4874 = vpop.f32.mrb[0].mxu0
      %4875 = vdwg.mxu0
      %4876 = vst.msk [vmem:[#allocation5] sm:$0xff] %vm1940, 0.0
      %4877 = vst.msk [vmem:[#allocation5 + $0x8] sm:$0xff] %vm1940, 0.0
      %4878 = vst.msk [vmem:[#allocation5 + $0x10] sm:$0xff] %vm1940, 0.0
      %vm4879 = vcmask 123904
      %4880 = vst.msk [vmem:[#allocation5 + $0x18] sm:$0x3] %vm4879, 0.0
      %4881 = vst.msk [vmem:[#allocation5 + $0x20] sm:$0xff] %vm1940, 0.0
      %4882 = vst.msk [vmem:[#allocation5 + $0x28] sm:$0xff] %vm1940, 0.0
      %4883 = vst.msk [vmem:[#allocation5 + $0x30] sm:$0xff] %vm1940, 0.0
      %4884 = vst.msk [vmem:[#allocation5 + $0x38] sm:$0x3] %vm4879, 0.0
      %4885 = vst.msk [vmem:[#allocation5 + $0x40] sm:$0xff] %vm1940, 0.0
      %4886 = vst.msk [vmem:[#allocation5 + $0x48] sm:$0xff] %vm1940, 0.0
      %4887 = vst.msk [vmem:[#allocation5 + $0x50] sm:$0xff] %vm1940, 0.0
      %4888 = vst.msk [vmem:[#allocation5 + $0x58] sm:$0x3] %vm4879, 0.0
      %4889 = vst.msk [vmem:[#allocation5 + $0x60] sm:$0xff] %vm1940, 0.0
      %4890 = vst.msk [vmem:[#allocation5 + $0x68] sm:$0xff] %vm1940, 0.0
      %4891 = vst.msk [vmem:[#allocation5 + $0x70] sm:$0xff] %vm1940, 0.0
      %4892 = vst.msk [vmem:[#allocation5 + $0x78] sm:$0x3] %vm4879, 0.0
      %4893 = vst.msk [vmem:[#allocation5 + $0x80] sm:$0xff] %vm1940, 0.0
      %4894 = vst.msk [vmem:[#allocation5 + $0x88] sm:$0xff] %vm1940, 0.0
      %4895 = vst.msk [vmem:[#allocation5 + $0x90] sm:$0xff] %vm1940, 0.0
      %4896 = vst.msk [vmem:[#allocation5 + $0x98] sm:$0x3] %vm4879, 0.0
      %4897 = vst.msk [vmem:[#allocation5 + $0xa0] sm:$0xff] %vm1940, 0.0
      %4898 = vst.msk [vmem:[#allocation5 + $0xa8] sm:$0xff] %vm1940, 0.0
      %4899 = vst.msk [vmem:[#allocation5 + $0xb0] sm:$0xff] %vm1940, 0.0
      %4900 = vst.msk [vmem:[#allocation5 + $0xb8] sm:$0x3] %vm4879, 0.0
      %4901 = vst.msk [vmem:[#allocation5 + $0xc0] sm:$0xff] %vm1940, 0.0
      %4902 = vst.msk [vmem:[#allocation5 + $0xc8] sm:$0xff] %vm1940, 0.0
      %4903 = vst.msk [vmem:[#allocation5 + $0xd0] sm:$0xff] %vm1940, 0.0
      %4904 = vst.msk [vmem:[#allocation5 + $0xd8] sm:$0x3] %vm4879, 0.0
      %4905 = vst.msk [vmem:[#allocation5 + $0xe0] sm:$0xff] %vm1940, 0.0
      %4906 = vst.msk [vmem:[#allocation5 + $0xe8] sm:$0xff] %vm1940, 0.0
      %4907 = vst.msk [vmem:[#allocation5 + $0xf0] sm:$0xff] %vm1940, 0.0
      %4908 = vst.msk [vmem:[#allocation5 + $0xf8] sm:$0x3] %vm4879, 0.0
      %4909 = vst.msk [vmem:[#allocation5 + $0x100] sm:$0xff] %vm1940, 0.0
      %4910 = vst.msk [vmem:[#allocation5 + $0x108] sm:$0xff] %vm1940, 0.0
      %4911 = vst.msk [vmem:[#allocation5 + $0x110] sm:$0xff] %vm1940, 0.0
      %4912 = vst.msk [vmem:[#allocation5 + $0x118] sm:$0x3] %vm4879, 0.0
      %4913 = vst.msk [vmem:[#allocation5 + $0x120] sm:$0xff] %vm1940, 0.0
      %4914 = vst.msk [vmem:[#allocation5 + $0x128] sm:$0xff] %vm1940, 0.0
      %4915 = vst.msk [vmem:[#allocation5 + $0x130] sm:$0xff] %vm1940, 0.0
      %4916 = vst.msk [vmem:[#allocation5 + $0x138] sm:$0x3] %vm4879, 0.0
      %4917 = vst.msk [vmem:[#allocation5 + $0x140] sm:$0xff] %vm1940, 0.0
      %4918 = vst.msk [vmem:[#allocation5 + $0x148] sm:$0xff] %vm1940, 0.0
      %4919 = vst.msk [vmem:[#allocation5 + $0x150] sm:$0xff] %vm1940, 0.0
      %4920 = vst.msk [vmem:[#allocation5 + $0x158] sm:$0x3] %vm4879, 0.0
      %4921 = vst.msk [vmem:[#allocation5 + $0x160] sm:$0xff] %vm1940, 0.0
      %4922 = vst.msk [vmem:[#allocation5 + $0x168] sm:$0xff] %vm1940, 0.0
      %4923 = vst.msk [vmem:[#allocation5 + $0x170] sm:$0xff] %vm1940, 0.0
      %4924 = vst.msk [vmem:[#allocation5 + $0x178] sm:$0x3] %vm4879, 0.0
      %4925 = vst.msk [vmem:[#allocation5 + $0x180] sm:$0xff] %vm1940, 0.0
      %4926 = vst.msk [vmem:[#allocation5 + $0x188] sm:$0xff] %vm1940, 0.0
      %4927 = vst.msk [vmem:[#allocation5 + $0x190] sm:$0xff] %vm1940, 0.0
      %4928 = vst.msk [vmem:[#allocation5 + $0x198] sm:$0x3] %vm4879, 0.0
      %4929 = vst.msk [vmem:[#allocation5 + $0x1a0] sm:$0xff] %vm1940, 0.0
      %4930 = vst.msk [vmem:[#allocation5 + $0x1a8] sm:$0xff] %vm1940, 0.0
      %4931 = vst.msk [vmem:[#allocation5 + $0x1b0] sm:$0xff] %vm1940, 0.0
      %4932 = vst.msk [vmem:[#allocation5 + $0x1b8] sm:$0x3] %vm4879, 0.0
      %4933 = vst.msk [vmem:[#allocation5 + $0x1c0] sm:$0xff] %vm1940, 0.0
      %4934 = vst.msk [vmem:[#allocation5 + $0x1c8] sm:$0xff] %vm1940, 0.0
      %4935 = vst.msk [vmem:[#allocation5 + $0x1d0] sm:$0xff] %vm1940, 0.0
      %4936 = vst.msk [vmem:[#allocation5 + $0x1d8] sm:$0x3] %vm4879, 0.0
      %4937 = vst.msk [vmem:[#allocation5 + $0x1e0] sm:$0xff] %vm1940, 0.0
      %4938 = vst.msk [vmem:[#allocation5 + $0x1e8] sm:$0xff] %vm1940, 0.0
      %4939 = vst.msk [vmem:[#allocation5 + $0x1f0] sm:$0xff] %vm1940, 0.0
      %4940 = vst.msk [vmem:[#allocation5 + $0x1f8] sm:$0x3] %vm4879, 0.0
      %4941 = vst.msk [vmem:[#allocation5 + $0x200] sm:$0xff] %vm1940, 0.0
      %4942 = vst.msk [vmem:[#allocation5 + $0x208] sm:$0xff] %vm1940, 0.0
      %4943 = vst.msk [vmem:[#allocation5 + $0x210] sm:$0xff] %vm1940, 0.0
      %4944 = vst.msk [vmem:[#allocation5 + $0x218] sm:$0x3] %vm4879, 0.0
      %4945 = vst.msk [vmem:[#allocation5 + $0x220] sm:$0xff] %vm1940, 0.0
      %4946 = vst.msk [vmem:[#allocation5 + $0x228] sm:$0xff] %vm1940, 0.0
      %4947 = vst.msk [vmem:[#allocation5 + $0x230] sm:$0xff] %vm1940, 0.0
      %4948 = vst.msk [vmem:[#allocation5 + $0x238] sm:$0x3] %vm4879, 0.0
      %4949 = vst.msk [vmem:[#allocation5 + $0x240] sm:$0xff] %vm1940, 0.0
      %4950 = vst.msk [vmem:[#allocation5 + $0x248] sm:$0xff] %vm1940, 0.0
      %4951 = vst.msk [vmem:[#allocation5 + $0x250] sm:$0xff] %vm1940, 0.0
      %4952 = vst.msk [vmem:[#allocation5 + $0x258] sm:$0x3] %vm4879, 0.0
      %4953 = vst.msk [vmem:[#allocation5 + $0x260] sm:$0xff] %vm1940, 0.0
      %4954 = vst.msk [vmem:[#allocation5 + $0x268] sm:$0xff] %vm1940, 0.0
      %4955 = vst.msk [vmem:[#allocation5 + $0x270] sm:$0xff] %vm1940, 0.0
      %4956 = vst.msk [vmem:[#allocation5 + $0x278] sm:$0x3] %vm4879, 0.0
      %4957 = vst.msk [vmem:[#allocation5 + $0x280] sm:$0xff] %vm1940, 0.0
      %4958 = vst.msk [vmem:[#allocation5 + $0x288] sm:$0xff] %vm1940, 0.0
      %4959 = vst.msk [vmem:[#allocation5 + $0x290] sm:$0xff] %vm1940, 0.0
      %4960 = vst.msk [vmem:[#allocation5 + $0x298] sm:$0x3] %vm4879, 0.0
      %4961 = vst.msk [vmem:[#allocation5 + $0x2a0] sm:$0xff] %vm1940, 0.0
      %4962 = vst.msk [vmem:[#allocation5 + $0x2a8] sm:$0xff] %vm1940, 0.0
      %4963 = vst.msk [vmem:[#allocation5 + $0x2b0] sm:$0xff] %vm1940, 0.0
      %4964 = vst.msk [vmem:[#allocation5 + $0x2b8] sm:$0x3] %vm4879, 0.0
      %4965 = vst.msk [vmem:[#allocation5 + $0x2c0] sm:$0xff] %vm1940, 0.0
      %4966 = vst.msk [vmem:[#allocation5 + $0x2c8] sm:$0xff] %vm1940, 0.0
      %4967 = vst.msk [vmem:[#allocation5 + $0x2d0] sm:$0xff] %vm1940, 0.0
      %4968 = vst.msk [vmem:[#allocation5 + $0x2d8] sm:$0x3] %vm4879, 0.0
      %4969 = vst.msk [vmem:[#allocation5 + $0x2e0] sm:$0xff] %vm1940, 0.0
      %4970 = vst.msk [vmem:[#allocation5 + $0x2e8] sm:$0xff] %vm1940, 0.0
      %4971 = vst.msk [vmem:[#allocation5 + $0x2f0] sm:$0xff] %vm1940, 0.0
      %4972 = vst.msk [vmem:[#allocation5 + $0x2f8] sm:$0x3] %vm4879, 0.0
      %4973 = vst.msk [vmem:[#allocation5 + $0x300] sm:$0xff] %vm1940, 0.0
      %4974 = vst.msk [vmem:[#allocation5 + $0x308] sm:$0xff] %vm1940, 0.0
      %4975 = vst.msk [vmem:[#allocation5 + $0x310] sm:$0xff] %vm1940, 0.0
      %4976 = vst.msk [vmem:[#allocation5 + $0x318] sm:$0x3] %vm4879, 0.0
      %4977 = vst.msk [vmem:[#allocation5 + $0x320] sm:$0xff] %vm1940, 0.0
      %4978 = vst.msk [vmem:[#allocation5 + $0x328] sm:$0xff] %vm1940, 0.0
      %4979 = vst.msk [vmem:[#allocation5 + $0x330] sm:$0xff] %vm1940, 0.0
      %4980 = vst.msk [vmem:[#allocation5 + $0x338] sm:$0x3] %vm4879, 0.0
      %s4981 = scalar_lea.vmem [#allocation5], 256
      %4982 = vst.msk [vmem:[%s4981 + $0x8] sm:$0xff] %vm1940, %v4718
      %4983 = vst.msk [vmem:[%s4981 + $0x10] sm:$0xff] %vm1940, %v4723
      %4984 = vst.msk [vmem:[%s4981 + $0x28] sm:$0xff] %vm1940, %v4728
      %4985 = vst.msk [vmem:[%s4981 + $0x30] sm:$0xff] %vm1940, %v4733
      %4986 = vst.msk [vmem:[%s4981 + $0x48] sm:$0xff] %vm1940, %v4738
      %4987 = vst.msk [vmem:[%s4981 + $0x50] sm:$0xff] %vm1940, %v4743
      %4988 = vst.msk [vmem:[%s4981 + $0x68] sm:$0xff] %vm1940, %v4748
      %4989 = vst.msk [vmem:[%s4981 + $0x70] sm:$0xff] %vm1940, %v4753
      %4990 = vst.msk [vmem:[%s4981 + $0x88] sm:$0xff] %vm1940, %v4758
      %4991 = vst.msk [vmem:[%s4981 + $0x90] sm:$0xff] %vm1940, %v4763
      %4992 = vst.msk [vmem:[%s4981 + $0xa8] sm:$0xff] %vm1940, %v4768
      %4993 = vst.msk [vmem:[%s4981 + $0xb0] sm:$0xff] %vm1940, %v4773
      %4994 = vst.msk [vmem:[%s4981 + $0xc8] sm:$0xff] %vm1940, %v4778
      %4995 = vst.msk [vmem:[%s4981 + $0xd0] sm:$0xff] %vm1940, %v4783
      %4996 = vst.msk [vmem:[%s4981 + $0xe8] sm:$0xff] %vm1940, %v4788
      %4997 = vst.msk [vmem:[%s4981 + $0xf0] sm:$0xff] %vm1940, %v4793
      %4998 = vst.msk [vmem:[%s4981 + $0x108] sm:$0xff] %vm1940, %v4798
      %4999 = vst.msk [vmem:[%s4981 + $0x110] sm:$0xff] %vm1940, %v4803
      %5000 = vst.msk [vmem:[%s4981 + $0x128] sm:$0xff] %vm1940, %v4808
      %5001 = vst.msk [vmem:[%s4981 + $0x130] sm:$0xff] %vm1940, %v4813
      %5002 = vst.msk [vmem:[%s4981 + $0x148] sm:$0xff] %vm1940, %v4818
      %5003 = vst.msk [vmem:[%s4981 + $0x150] sm:$0xff] %vm1940, %v4823
      %5004 = vst.msk [vmem:[%s4981 + $0x168] sm:$0xff] %vm1940, %v4828
      %5005 = vst.msk [vmem:[%s4981 + $0x170] sm:$0xff] %vm1940, %v4833
      %5006 = vst.msk [vmem:[%s4981 + $0x188] sm:$0xff] %vm1940, %v4838
      %5007 = vst.msk [vmem:[%s4981 + $0x190] sm:$0xff] %vm1940, %v4843
      %5008 = vst.msk [vmem:[%s4981 + $0x1a8] sm:$0xff] %vm1940, %v4848
      %5009 = vst.msk [vmem:[%s4981 + $0x1b0] sm:$0xff] %vm1940, %v4853
      %5010 = vst.msk [vmem:[%s4981 + $0x1c8] sm:$0xff] %vm1940, %v4858
      %5011 = vst.msk [vmem:[%s4981 + $0x1d0] sm:$0xff] %vm1940, %v4863
      %5012 = vst.msk [vmem:[%s4981 + $0x1e8] sm:$0xff] %vm1940, %v4868
      %5013 = vst.msk [vmem:[%s4981 + $0x1f0] sm:$0xff] %vm1940, %v4873
      %s5014 = scalar_lea.vmem [#allocation5], 192
      %v5015 = vld [vmem:[%s5014 + $0x6] sm:$0xff]
      %v5016 = vld [vmem:[%s5014 + $0xe] sm:$0xff]
      %v5017 = vld [vmem:[%s5014 + $0x26] sm:$0xff]
      %v5018 = vld [vmem:[%s5014 + $0x2e] sm:$0xff]
      %v5019 = vld [vmem:[%s5014 + $0x46] sm:$0xff]
      %v5020 = vld [vmem:[%s5014 + $0x4e] sm:$0xff]
      %v5021 = vld [vmem:[%s5014 + $0x66] sm:$0xff]
      %v5022 = vld [vmem:[%s5014 + $0x6e] sm:$0xff]
      %v5023 = vld [vmem:[%s5014 + $0x86] sm:$0xff]
      %v5024 = vld [vmem:[%s5014 + $0x8e] sm:$0xff]
      %v5025 = vld [vmem:[%s5014 + $0xa6] sm:$0xff]
      %v5026 = vld [vmem:[%s5014 + $0xae] sm:$0xff]
      %v5027 = vld [vmem:[%s5014 + $0xc6] sm:$0xff]
      %v5028 = vld [vmem:[%s5014 + $0xce] sm:$0xff]
      %v5029 = vld [vmem:[%s5014 + $0xe6] sm:$0xff]
      %v5030 = vld [vmem:[%s5014 + $0xee] sm:$0xff]
      %v5031 = vld [vmem:[%s5014 + $0x106] sm:$0xff]
      %v5032 = vld [vmem:[%s5014 + $0x10e] sm:$0xff]
      %v5033 = vld [vmem:[%s5014 + $0x126] sm:$0xff]
      %v5034 = vld [vmem:[%s5014 + $0x12e] sm:$0xff]
      %v5035 = vld [vmem:[%s5014 + $0x146] sm:$0xff]
      %v5036 = vld [vmem:[%s5014 + $0x14e] sm:$0xff]
      %v5037 = vld [vmem:[%s5014 + $0x166] sm:$0xff]
      %v5038 = vld [vmem:[%s5014 + $0x16e] sm:$0xff]
      %v5039 = vld [vmem:[%s5014 + $0x186] sm:$0xff]
      %v5040 = vld [vmem:[%s5014 + $0x18e] sm:$0xff]
      %v5041 = vld [vmem:[%s5014 + $0x1a6] sm:$0xff]
      %v5042 = vld [vmem:[%s5014 + $0x1ae] sm:$0xff]
      %v5043 = vld [vmem:[%s5014 + $0x1c6] sm:$0xff]
      %v5044 = vld [vmem:[%s5014 + $0x1ce] sm:$0xff]
      %v5045 = vld [vmem:[%s5014 + $0x1e6] sm:$0xff]
      %v5046 = vld [vmem:[%s5014 + $0x1ee] sm:$0xff]
      %v5047 = vpack.c.bf16 %v5016, %v5015
      %v5048 = vpack.c.bf16 %v5018, %v5017
      %v5049 = vpack.c.bf16 %v5020, %v5019
      %v5050 = vpack.c.bf16 %v5022, %v5021
      %v5051 = vpack.c.bf16 %v5024, %v5023
      %v5052 = vpack.c.bf16 %v5026, %v5025
      %v5053 = vpack.c.bf16 %v5028, %v5027
      %v5054 = vpack.c.bf16 %v5030, %v5029
      %v5055 = vpack.c.bf16 %v5032, %v5031
      %v5056 = vpack.c.bf16 %v5034, %v5033
      %v5057 = vpack.c.bf16 %v5036, %v5035
      %v5058 = vpack.c.bf16 %v5038, %v5037
      %v5059 = vpack.c.bf16 %v5040, %v5039
      %v5060 = vpack.c.bf16 %v5042, %v5041
      %v5061 = vpack.c.bf16 %v5044, %v5043
      %v5062 = vpack.c.bf16 %v5046, %v5045
      %5063 = vst.msk [vmem:[#allocation9] sm:$0xff] %vm1940, %v5047
      %5064 = vst.msk [vmem:[#allocation9 + $0x20] sm:$0xff] %vm1940, %v5048
      %5065 = vst.msk [vmem:[#allocation9 + $0x40] sm:$0xff] %vm1940, %v5049
      %5066 = vst.msk [vmem:[#allocation9 + $0x60] sm:$0xff] %vm1940, %v5050
      %5067 = vst.msk [vmem:[#allocation9 + $0x80] sm:$0xff] %vm1940, %v5051
      %5068 = vst.msk [vmem:[#allocation9 + $0xa0] sm:$0xff] %vm1940, %v5052
      %5069 = vst.msk [vmem:[#allocation9 + $0xc0] sm:$0xff] %vm1940, %v5053
      %5070 = vst.msk [vmem:[#allocation9 + $0xe0] sm:$0xff] %vm1940, %v5054
      %5071 = vst.msk [vmem:[#allocation9 + $0x100] sm:$0xff] %vm1940, %v5055
      %5072 = vst.msk [vmem:[#allocation9 + $0x120] sm:$0xff] %vm1940, %v5056
      %5073 = vst.msk [vmem:[#allocation9 + $0x140] sm:$0xff] %vm1940, %v5057
      %5074 = vst.msk [vmem:[#allocation9 + $0x160] sm:$0xff] %vm1940, %v5058
      %5075 = vst.msk [vmem:[#allocation9 + $0x180] sm:$0xff] %vm1940, %v5059
      %5076 = vst.msk [vmem:[#allocation9 + $0x1a0] sm:$0xff] %vm1940, %v5060
      %5077 = vst.msk [vmem:[#allocation9 + $0x1c0] sm:$0xff] %vm1940, %v5061
      %5078 = vst.msk [vmem:[#allocation9 + $0x1e0] sm:$0xff] %vm1940, %v5062
      %v5079 = vld [vmem:[%s5014 + $0x7] sm:$0xff]
      %v5080 = vld [vmem:[%s5014 + $0xf] sm:$0xff]
      %v5081 = vld [vmem:[%s5014 + $0x27] sm:$0xff]
      %v5082 = vld [vmem:[%s5014 + $0x2f] sm:$0xff]
      %v5083 = vld [vmem:[%s5014 + $0x47] sm:$0xff]
      %v5084 = vld [vmem:[%s5014 + $0x4f] sm:$0xff]
      %v5085 = vld [vmem:[%s5014 + $0x67] sm:$0xff]
      %v5086 = vld [vmem:[%s5014 + $0x6f] sm:$0xff]
      %v5087 = vld [vmem:[%s5014 + $0x87] sm:$0xff]
      %v5088 = vld [vmem:[%s5014 + $0x8f] sm:$0xff]
      %v5089 = vld [vmem:[%s5014 + $0xa7] sm:$0xff]
      %v5090 = vld [vmem:[%s5014 + $0xaf] sm:$0xff]
      %v5091 = vld [vmem:[%s5014 + $0xc7] sm:$0xff]
      %v5092 = vld [vmem:[%s5014 + $0xcf] sm:$0xff]
      %v5093 = vld [vmem:[%s5014 + $0xe7] sm:$0xff]
      %v5094 = vld [vmem:[%s5014 + $0xef] sm:$0xff]
      %v5095 = vld [vmem:[%s5014 + $0x107] sm:$0xff]
      %v5096 = vld [vmem:[%s5014 + $0x10f] sm:$0xff]
      %v5097 = vld [vmem:[%s5014 + $0x127] sm:$0xff]
      %v5098 = vld [vmem:[%s5014 + $0x12f] sm:$0xff]
      %v5099 = vld [vmem:[%s5014 + $0x147] sm:$0xff]
      %v5100 = vld [vmem:[%s5014 + $0x14f] sm:$0xff]
      %v5101 = vld [vmem:[%s5014 + $0x167] sm:$0xff]
      %v5102 = vld [vmem:[%s5014 + $0x16f] sm:$0xff]
      %v5103 = vld [vmem:[%s5014 + $0x187] sm:$0xff]
      %v5104 = vld [vmem:[%s5014 + $0x18f] sm:$0xff]
      %v5105 = vld [vmem:[%s5014 + $0x1a7] sm:$0xff]
      %v5106 = vld [vmem:[%s5014 + $0x1af] sm:$0xff]
      %v5107 = vld [vmem:[%s5014 + $0x1c7] sm:$0xff]
      %v5108 = vld [vmem:[%s5014 + $0x1cf] sm:$0xff]
      %v5109 = vld [vmem:[%s5014 + $0x1e7] sm:$0xff]
      %v5110 = vld [vmem:[%s5014 + $0x1ef] sm:$0xff]
      %v5111 = vpack.c.bf16 %v5080, %v5079
      %v5112 = vpack.c.bf16 %v5082, %v5081
      %v5113 = vpack.c.bf16 %v5084, %v5083
      %v5114 = vpack.c.bf16 %v5086, %v5085
      %v5115 = vpack.c.bf16 %v5088, %v5087
      %v5116 = vpack.c.bf16 %v5090, %v5089
      %v5117 = vpack.c.bf16 %v5092, %v5091
      %v5118 = vpack.c.bf16 %v5094, %v5093
      %v5119 = vpack.c.bf16 %v5096, %v5095
      %v5120 = vpack.c.bf16 %v5098, %v5097
      %v5121 = vpack.c.bf16 %v5100, %v5099
      %v5122 = vpack.c.bf16 %v5102, %v5101
      %v5123 = vpack.c.bf16 %v5104, %v5103
      %v5124 = vpack.c.bf16 %v5106, %v5105
      %v5125 = vpack.c.bf16 %v5108, %v5107
      %v5126 = vpack.c.bf16 %v5110, %v5109
      %5143 = vrot.lane.b32.xlu0 %v5111, 16
      %v5144 = vpop.permute.xlu0 %5143
      %5145 = vrot.lane.b32.xlu0 %v5112, 16
      %v5146 = vpop.permute.xlu0 %5145
      %5147 = vrot.lane.b32.xlu0 %v5113, 16
      %v5148 = vpop.permute.xlu0 %5147
      %5149 = vrot.lane.b32.xlu0 %v5114, 16
      %v5150 = vpop.permute.xlu0 %5149
      %5151 = vrot.lane.b32.xlu0 %v5115, 16
      %v5152 = vpop.permute.xlu0 %5151
      %5153 = vrot.lane.b32.xlu0 %v5116, 16
      %v5154 = vpop.permute.xlu0 %5153
      %5155 = vrot.lane.b32.xlu0 %v5117, 16
      %v5156 = vpop.permute.xlu0 %5155
      %5157 = vrot.lane.b32.xlu0 %v5118, 16
      %v5158 = vpop.permute.xlu0 %5157
      %5159 = vrot.lane.b32.xlu0 %v5119, 16
      %v5160 = vpop.permute.xlu0 %5159
      %5161 = vrot.lane.b32.xlu0 %v5120, 16
      %v5162 = vpop.permute.xlu0 %5161
      %5163 = vrot.lane.b32.xlu0 %v5121, 16
      %v5164 = vpop.permute.xlu0 %5163
      %5165 = vrot.lane.b32.xlu0 %v5122, 16
      %v5166 = vpop.permute.xlu0 %5165
      %5167 = vrot.lane.b32.xlu0 %v5123, 16
      %v5168 = vpop.permute.xlu0 %5167
      %5169 = vrot.lane.b32.xlu0 %v5124, 16
      %v5170 = vpop.permute.xlu0 %5169
      %5171 = vrot.lane.b32.xlu0 %v5125, 16
      %v5172 = vpop.permute.xlu0 %5171
      %5173 = vrot.lane.b32.xlu0 %v5126, 16
      %v5174 = vpop.permute.xlu0 %5173
      %5191 = vst.msk [vmem:[#allocation9] sm:$0xff] %vm2252, %v5144
      %5192 = vst.msk [vmem:[#allocation9 + $0x20] sm:$0xff] %vm2252, %v5146
      %5193 = vst.msk [vmem:[#allocation9 + $0x40] sm:$0xff] %vm2252, %v5148
      %5194 = vst.msk [vmem:[#allocation9 + $0x60] sm:$0xff] %vm2252, %v5150
      %5195 = vst.msk [vmem:[#allocation9 + $0x80] sm:$0xff] %vm2252, %v5152
      %5196 = vst.msk [vmem:[#allocation9 + $0xa0] sm:$0xff] %vm2252, %v5154
      %5197 = vst.msk [vmem:[#allocation9 + $0xc0] sm:$0xff] %vm2252, %v5156
      %5198 = vst.msk [vmem:[#allocation9 + $0xe0] sm:$0xff] %vm2252, %v5158
      %5199 = vst.msk [vmem:[#allocation9 + $0x100] sm:$0xff] %vm2252, %v5160
      %5200 = vst.msk [vmem:[#allocation9 + $0x120] sm:$0xff] %vm2252, %v5162
      %5201 = vst.msk [vmem:[#allocation9 + $0x140] sm:$0xff] %vm2252, %v5164
      %5202 = vst.msk [vmem:[#allocation9 + $0x160] sm:$0xff] %vm2252, %v5166
      %5203 = vst.msk [vmem:[#allocation9 + $0x180] sm:$0xff] %vm2252, %v5168
      %5204 = vst.msk [vmem:[#allocation9 + $0x1a0] sm:$0xff] %vm2252, %v5170
      %5205 = vst.msk [vmem:[#allocation9 + $0x1c0] sm:$0xff] %vm2252, %v5172
      %5206 = vst.msk [vmem:[#allocation9 + $0x1e0] sm:$0xff] %vm2252, %v5174
      %v5207 = vld [vmem:[%s5014 + $0x8] sm:$0xff]
      %v5208 = vld [vmem:[%s5014 + $0x10] sm:$0xff]
      %v5209 = vld [vmem:[%s5014 + $0x28] sm:$0xff]
      %v5210 = vld [vmem:[%s5014 + $0x30] sm:$0xff]
      %v5211 = vld [vmem:[%s5014 + $0x48] sm:$0xff]
      %v5212 = vld [vmem:[%s5014 + $0x50] sm:$0xff]
      %v5213 = vld [vmem:[%s5014 + $0x68] sm:$0xff]
      %v5214 = vld [vmem:[%s5014 + $0x70] sm:$0xff]
      %v5215 = vld [vmem:[%s5014 + $0x88] sm:$0xff]
      %v5216 = vld [vmem:[%s5014 + $0x90] sm:$0xff]
      %v5217 = vld [vmem:[%s5014 + $0xa8] sm:$0xff]
      %v5218 = vld [vmem:[%s5014 + $0xb0] sm:$0xff]
      %v5219 = vld [vmem:[%s5014 + $0xc8] sm:$0xff]
      %v5220 = vld [vmem:[%s5014 + $0xd0] sm:$0xff]
      %v5221 = vld [vmem:[%s5014 + $0xe8] sm:$0xff]
      %v5222 = vld [vmem:[%s5014 + $0xf0] sm:$0xff]
      %v5223 = vld [vmem:[%s5014 + $0x108] sm:$0xff]
      %v5224 = vld [vmem:[%s5014 + $0x110] sm:$0xff]
      %v5225 = vld [vmem:[%s5014 + $0x128] sm:$0xff]
      %v5226 = vld [vmem:[%s5014 + $0x130] sm:$0xff]
      %v5227 = vld [vmem:[%s5014 + $0x148] sm:$0xff]
      %v5228 = vld [vmem:[%s5014 + $0x150] sm:$0xff]
      %v5229 = vld [vmem:[%s5014 + $0x168] sm:$0xff]
      %v5230 = vld [vmem:[%s5014 + $0x170] sm:$0xff]
      %v5231 = vld [vmem:[%s5014 + $0x188] sm:$0xff]
      %v5232 = vld [vmem:[%s5014 + $0x190] sm:$0xff]
      %v5233 = vld [vmem:[%s5014 + $0x1a8] sm:$0xff]
      %v5234 = vld [vmem:[%s5014 + $0x1b0] sm:$0xff]
      %v5235 = vld [vmem:[%s5014 + $0x1c8] sm:$0xff]
      %v5236 = vld [vmem:[%s5014 + $0x1d0] sm:$0xff]
      %v5237 = vld [vmem:[%s5014 + $0x1e8] sm:$0xff]
      %v5238 = vld [vmem:[%s5014 + $0x1f0] sm:$0xff]
      %v5239 = vpack.c.bf16 %v5208, %v5207
      %v5240 = vpack.c.bf16 %v5210, %v5209
      %v5241 = vpack.c.bf16 %v5212, %v5211
      %v5242 = vpack.c.bf16 %v5214, %v5213
      %v5243 = vpack.c.bf16 %v5216, %v5215
      %v5244 = vpack.c.bf16 %v5218, %v5217
      %v5245 = vpack.c.bf16 %v5220, %v5219
      %v5246 = vpack.c.bf16 %v5222, %v5221
      %v5247 = vpack.c.bf16 %v5224, %v5223
      %v5248 = vpack.c.bf16 %v5226, %v5225
      %v5249 = vpack.c.bf16 %v5228, %v5227
      %v5250 = vpack.c.bf16 %v5230, %v5229
      %v5251 = vpack.c.bf16 %v5232, %v5231
      %v5252 = vpack.c.bf16 %v5234, %v5233
      %v5253 = vpack.c.bf16 %v5236, %v5235
      %v5254 = vpack.c.bf16 %v5238, %v5237
      %5271 = vrot.lane.b32.xlu0 %v5239, 32
      %v5272 = vpop.permute.xlu0 %5271
      %5273 = vrot.lane.b32.xlu0 %v5240, 32
      %v5274 = vpop.permute.xlu0 %5273
      %5275 = vrot.lane.b32.xlu0 %v5241, 32
      %v5276 = vpop.permute.xlu0 %5275
      %5277 = vrot.lane.b32.xlu0 %v5242, 32
      %v5278 = vpop.permute.xlu0 %5277
      %5279 = vrot.lane.b32.xlu0 %v5243, 32
      %v5280 = vpop.permute.xlu0 %5279
      %5281 = vrot.lane.b32.xlu0 %v5244, 32
      %v5282 = vpop.permute.xlu0 %5281
      %5283 = vrot.lane.b32.xlu0 %v5245, 32
      %v5284 = vpop.permute.xlu0 %5283
      %5285 = vrot.lane.b32.xlu0 %v5246, 32
      %v5286 = vpop.permute.xlu0 %5285
      %5287 = vrot.lane.b32.xlu0 %v5247, 32
      %v5288 = vpop.permute.xlu0 %5287
      %5289 = vrot.lane.b32.xlu0 %v5248, 32
      %v5290 = vpop.permute.xlu0 %5289
      %5291 = vrot.lane.b32.xlu0 %v5249, 32
      %v5292 = vpop.permute.xlu0 %5291
      %5293 = vrot.lane.b32.xlu0 %v5250, 32
      %v5294 = vpop.permute.xlu0 %5293
      %5295 = vrot.lane.b32.xlu0 %v5251, 32
      %v5296 = vpop.permute.xlu0 %5295
      %5297 = vrot.lane.b32.xlu0 %v5252, 32
      %v5298 = vpop.permute.xlu0 %5297
      %5299 = vrot.lane.b32.xlu0 %v5253, 32
      %v5300 = vpop.permute.xlu0 %5299
      %5301 = vrot.lane.b32.xlu0 %v5254, 32
      %v5302 = vpop.permute.xlu0 %5301
      %5319 = vst.msk [vmem:[#allocation9] sm:$0xff] %vm2381, %v5272
      %5320 = vst.msk [vmem:[#allocation9 + $0x20] sm:$0xff] %vm2381, %v5274
      %5321 = vst.msk [vmem:[#allocation9 + $0x40] sm:$0xff] %vm2381, %v5276
      %5322 = vst.msk [vmem:[#allocation9 + $0x60] sm:$0xff] %vm2381, %v5278
      %5323 = vst.msk [vmem:[#allocation9 + $0x80] sm:$0xff] %vm2381, %v5280
      %5324 = vst.msk [vmem:[#allocation9 + $0xa0] sm:$0xff] %vm2381, %v5282
      %5325 = vst.msk [vmem:[#allocation9 + $0xc0] sm:$0xff] %vm2381, %v5284
      %5326 = vst.msk [vmem:[#allocation9 + $0xe0] sm:$0xff] %vm2381, %v5286
      %5327 = vst.msk [vmem:[#allocation9 + $0x100] sm:$0xff] %vm2381, %v5288
      %5328 = vst.msk [vmem:[#allocation9 + $0x120] sm:$0xff] %vm2381, %v5290
      %5329 = vst.msk [vmem:[#allocation9 + $0x140] sm:$0xff] %vm2381, %v5292
      %5330 = vst.msk [vmem:[#allocation9 + $0x160] sm:$0xff] %vm2381, %v5294
      %5331 = vst.msk [vmem:[#allocation9 + $0x180] sm:$0xff] %vm2381, %v5296
      %5332 = vst.msk [vmem:[#allocation9 + $0x1a0] sm:$0xff] %vm2381, %v5298
      %5333 = vst.msk [vmem:[#allocation9 + $0x1c0] sm:$0xff] %vm2381, %v5300
      %5334 = vst.msk [vmem:[#allocation9 + $0x1e0] sm:$0xff] %vm2381, %v5302
      %v5335 = vld [vmem:[%s5014 + $0x9] sm:$0xff]
      %v5336 = vld [vmem:[%s5014 + $0x11] sm:$0xff]
      %v5337 = vld [vmem:[%s5014 + $0x29] sm:$0xff]
      %v5338 = vld [vmem:[%s5014 + $0x31] sm:$0xff]
      %v5339 = vld [vmem:[%s5014 + $0x49] sm:$0xff]
      %v5340 = vld [vmem:[%s5014 + $0x51] sm:$0xff]
      %v5341 = vld [vmem:[%s5014 + $0x69] sm:$0xff]
      %v5342 = vld [vmem:[%s5014 + $0x71] sm:$0xff]
      %v5343 = vld [vmem:[%s5014 + $0x89] sm:$0xff]
      %v5344 = vld [vmem:[%s5014 + $0x91] sm:$0xff]
      %v5345 = vld [vmem:[%s5014 + $0xa9] sm:$0xff]
      %v5346 = vld [vmem:[%s5014 + $0xb1] sm:$0xff]
      %v5347 = vld [vmem:[%s5014 + $0xc9] sm:$0xff]
      %v5348 = vld [vmem:[%s5014 + $0xd1] sm:$0xff]
      %v5349 = vld [vmem:[%s5014 + $0xe9] sm:$0xff]
      %v5350 = vld [vmem:[%s5014 + $0xf1] sm:$0xff]
      %v5351 = vld [vmem:[%s5014 + $0x109] sm:$0xff]
      %v5352 = vld [vmem:[%s5014 + $0x111] sm:$0xff]
      %v5353 = vld [vmem:[%s5014 + $0x129] sm:$0xff]
      %v5354 = vld [vmem:[%s5014 + $0x131] sm:$0xff]
      %v5355 = vld [vmem:[%s5014 + $0x149] sm:$0xff]
      %v5356 = vld [vmem:[%s5014 + $0x151] sm:$0xff]
      %v5357 = vld [vmem:[%s5014 + $0x169] sm:$0xff]
      %v5358 = vld [vmem:[%s5014 + $0x171] sm:$0xff]
      %v5359 = vld [vmem:[%s5014 + $0x189] sm:$0xff]
      %v5360 = vld [vmem:[%s5014 + $0x191] sm:$0xff]
      %v5361 = vld [vmem:[%s5014 + $0x1a9] sm:$0xff]
      %v5362 = vld [vmem:[%s5014 + $0x1b1] sm:$0xff]
      %v5363 = vld [vmem:[%s5014 + $0x1c9] sm:$0xff]
      %v5364 = vld [vmem:[%s5014 + $0x1d1] sm:$0xff]
      %v5365 = vld [vmem:[%s5014 + $0x1e9] sm:$0xff]
      %v5366 = vld [vmem:[%s5014 + $0x1f1] sm:$0xff]
      %v5367 = vpack.c.bf16 %v5336, %v5335
      %v5368 = vpack.c.bf16 %v5338, %v5337
      %v5369 = vpack.c.bf16 %v5340, %v5339
      %v5370 = vpack.c.bf16 %v5342, %v5341
      %v5371 = vpack.c.bf16 %v5344, %v5343
      %v5372 = vpack.c.bf16 %v5346, %v5345
      %v5373 = vpack.c.bf16 %v5348, %v5347
      %v5374 = vpack.c.bf16 %v5350, %v5349
      %v5375 = vpack.c.bf16 %v5352, %v5351
      %v5376 = vpack.c.bf16 %v5354, %v5353
      %v5377 = vpack.c.bf16 %v5356, %v5355
      %v5378 = vpack.c.bf16 %v5358, %v5357
      %v5379 = vpack.c.bf16 %v5360, %v5359
      %v5380 = vpack.c.bf16 %v5362, %v5361
      %v5381 = vpack.c.bf16 %v5364, %v5363
      %v5382 = vpack.c.bf16 %v5366, %v5365
      %5399 = vrot.lane.b32.xlu0 %v5367, 48
      %v5400 = vpop.permute.xlu0 %5399
      %5401 = vrot.lane.b32.xlu0 %v5368, 48
      %v5402 = vpop.permute.xlu0 %5401
      %5403 = vrot.lane.b32.xlu0 %v5369, 48
      %v5404 = vpop.permute.xlu0 %5403
      %5405 = vrot.lane.b32.xlu0 %v5370, 48
      %v5406 = vpop.permute.xlu0 %5405
      %5407 = vrot.lane.b32.xlu0 %v5371, 48
      %v5408 = vpop.permute.xlu0 %5407
      %5409 = vrot.lane.b32.xlu0 %v5372, 48
      %v5410 = vpop.permute.xlu0 %5409
      %5411 = vrot.lane.b32.xlu0 %v5373, 48
      %v5412 = vpop.permute.xlu0 %5411
      %5413 = vrot.lane.b32.xlu0 %v5374, 48
      %v5414 = vpop.permute.xlu0 %5413
      %5415 = vrot.lane.b32.xlu0 %v5375, 48
      %v5416 = vpop.permute.xlu0 %5415
      %5417 = vrot.lane.b32.xlu0 %v5376, 48
      %v5418 = vpop.permute.xlu0 %5417
      %5419 = vrot.lane.b32.xlu0 %v5377, 48
      %v5420 = vpop.permute.xlu0 %5419
      %5421 = vrot.lane.b32.xlu0 %v5378, 48
      %v5422 = vpop.permute.xlu0 %5421
      %5423 = vrot.lane.b32.xlu0 %v5379, 48
      %v5424 = vpop.permute.xlu0 %5423
      %5425 = vrot.lane.b32.xlu0 %v5380, 48
      %v5426 = vpop.permute.xlu0 %5425
      %5427 = vrot.lane.b32.xlu0 %v5381, 48
      %v5428 = vpop.permute.xlu0 %5427
      %5429 = vrot.lane.b32.xlu0 %v5382, 48
      %v5430 = vpop.permute.xlu0 %5429
      %5447 = vst.msk [vmem:[#allocation9] sm:$0xff] %vm2510, %v5400
      %5448 = vst.msk [vmem:[#allocation9 + $0x20] sm:$0xff] %vm2510, %v5402
      %5449 = vst.msk [vmem:[#allocation9 + $0x40] sm:$0xff] %vm2510, %v5404
      %5450 = vst.msk [vmem:[#allocation9 + $0x60] sm:$0xff] %vm2510, %v5406
      %5451 = vst.msk [vmem:[#allocation9 + $0x80] sm:$0xff] %vm2510, %v5408
      %5452 = vst.msk [vmem:[#allocation9 + $0xa0] sm:$0xff] %vm2510, %v5410
      %5453 = vst.msk [vmem:[#allocation9 + $0xc0] sm:$0xff] %vm2510, %v5412
      %5454 = vst.msk [vmem:[#allocation9 + $0xe0] sm:$0xff] %vm2510, %v5414
      %5455 = vst.msk [vmem:[#allocation9 + $0x100] sm:$0xff] %vm2510, %v5416
      %5456 = vst.msk [vmem:[#allocation9 + $0x120] sm:$0xff] %vm2510, %v5418
      %5457 = vst.msk [vmem:[#allocation9 + $0x140] sm:$0xff] %vm2510, %v5420
      %5458 = vst.msk [vmem:[#allocation9 + $0x160] sm:$0xff] %vm2510, %v5422
      %5459 = vst.msk [vmem:[#allocation9 + $0x180] sm:$0xff] %vm2510, %v5424
      %5460 = vst.msk [vmem:[#allocation9 + $0x1a0] sm:$0xff] %vm2510, %v5426
      %5461 = vst.msk [vmem:[#allocation9 + $0x1c0] sm:$0xff] %vm2510, %v5428
      %5462 = vst.msk [vmem:[#allocation9 + $0x1e0] sm:$0xff] %vm2510, %v5430
      %v5463 = vld [vmem:[%s5014 + $0xa] sm:$0xff]
      %v5464 = vld [vmem:[%s5014 + $0x12] sm:$0xff]
      %v5465 = vld [vmem:[%s5014 + $0x2a] sm:$0xff]
      %v5466 = vld [vmem:[%s5014 + $0x32] sm:$0xff]
      %v5467 = vld [vmem:[%s5014 + $0x4a] sm:$0xff]
      %v5468 = vld [vmem:[%s5014 + $0x52] sm:$0xff]
      %v5469 = vld [vmem:[%s5014 + $0x6a] sm:$0xff]
      %v5470 = vld [vmem:[%s5014 + $0x72] sm:$0xff]
      %v5471 = vld [vmem:[%s5014 + $0x8a] sm:$0xff]
      %v5472 = vld [vmem:[%s5014 + $0x92] sm:$0xff]
      %v5473 = vld [vmem:[%s5014 + $0xaa] sm:$0xff]
      %v5474 = vld [vmem:[%s5014 + $0xb2] sm:$0xff]
      %v5475 = vld [vmem:[%s5014 + $0xca] sm:$0xff]
      %v5476 = vld [vmem:[%s5014 + $0xd2] sm:$0xff]
      %v5477 = vld [vmem:[%s5014 + $0xea] sm:$0xff]
      %v5478 = vld [vmem:[%s5014 + $0xf2] sm:$0xff]
      %v5479 = vld [vmem:[%s5014 + $0x10a] sm:$0xff]
      %v5480 = vld [vmem:[%s5014 + $0x112] sm:$0xff]
      %v5481 = vld [vmem:[%s5014 + $0x12a] sm:$0xff]
      %v5482 = vld [vmem:[%s5014 + $0x132] sm:$0xff]
      %v5483 = vld [vmem:[%s5014 + $0x14a] sm:$0xff]
      %v5484 = vld [vmem:[%s5014 + $0x152] sm:$0xff]
      %v5485 = vld [vmem:[%s5014 + $0x16a] sm:$0xff]
      %v5486 = vld [vmem:[%s5014 + $0x172] sm:$0xff]
      %v5487 = vld [vmem:[%s5014 + $0x18a] sm:$0xff]
      %v5488 = vld [vmem:[%s5014 + $0x192] sm:$0xff]
      %v5489 = vld [vmem:[%s5014 + $0x1aa] sm:$0xff]
      %v5490 = vld [vmem:[%s5014 + $0x1b2] sm:$0xff]
      %v5491 = vld [vmem:[%s5014 + $0x1ca] sm:$0xff]
      %v5492 = vld [vmem:[%s5014 + $0x1d2] sm:$0xff]
      %v5493 = vld [vmem:[%s5014 + $0x1ea] sm:$0xff]
      %v5494 = vld [vmem:[%s5014 + $0x1f2] sm:$0xff]
      %v5495 = vpack.c.bf16 %v5464, %v5463
      %v5496 = vpack.c.bf16 %v5466, %v5465
      %v5497 = vpack.c.bf16 %v5468, %v5467
      %v5498 = vpack.c.bf16 %v5470, %v5469
      %v5499 = vpack.c.bf16 %v5472, %v5471
      %v5500 = vpack.c.bf16 %v5474, %v5473
      %v5501 = vpack.c.bf16 %v5476, %v5475
      %v5502 = vpack.c.bf16 %v5478, %v5477
      %v5503 = vpack.c.bf16 %v5480, %v5479
      %v5504 = vpack.c.bf16 %v5482, %v5481
      %v5505 = vpack.c.bf16 %v5484, %v5483
      %v5506 = vpack.c.bf16 %v5486, %v5485
      %v5507 = vpack.c.bf16 %v5488, %v5487
      %v5508 = vpack.c.bf16 %v5490, %v5489
      %v5509 = vpack.c.bf16 %v5492, %v5491
      %v5510 = vpack.c.bf16 %v5494, %v5493
      %5527 = vrot.lane.b32.xlu0 %v5495, 64
      %v5528 = vpop.permute.xlu0 %5527
      %5529 = vrot.lane.b32.xlu0 %v5496, 64
      %v5530 = vpop.permute.xlu0 %5529
      %5531 = vrot.lane.b32.xlu0 %v5497, 64
      %v5532 = vpop.permute.xlu0 %5531
      %5533 = vrot.lane.b32.xlu0 %v5498, 64
      %v5534 = vpop.permute.xlu0 %5533
      %5535 = vrot.lane.b32.xlu0 %v5499, 64
      %v5536 = vpop.permute.xlu0 %5535
      %5537 = vrot.lane.b32.xlu0 %v5500, 64
      %v5538 = vpop.permute.xlu0 %5537
      %5539 = vrot.lane.b32.xlu0 %v5501, 64
      %v5540 = vpop.permute.xlu0 %5539
      %5541 = vrot.lane.b32.xlu0 %v5502, 64
      %v5542 = vpop.permute.xlu0 %5541
      %5543 = vrot.lane.b32.xlu0 %v5503, 64
      %v5544 = vpop.permute.xlu0 %5543
      %5545 = vrot.lane.b32.xlu0 %v5504, 64
      %v5546 = vpop.permute.xlu0 %5545
      %5547 = vrot.lane.b32.xlu0 %v5505, 64
      %v5548 = vpop.permute.xlu0 %5547
      %5549 = vrot.lane.b32.xlu0 %v5506, 64
      %v5550 = vpop.permute.xlu0 %5549
      %5551 = vrot.lane.b32.xlu0 %v5507, 64
      %v5552 = vpop.permute.xlu0 %5551
      %5553 = vrot.lane.b32.xlu0 %v5508, 64
      %v5554 = vpop.permute.xlu0 %5553
      %5555 = vrot.lane.b32.xlu0 %v5509, 64
      %v5556 = vpop.permute.xlu0 %5555
      %5557 = vrot.lane.b32.xlu0 %v5510, 64
      %v5558 = vpop.permute.xlu0 %5557
      %5575 = vst.msk [vmem:[#allocation9] sm:$0xff] %vm2639, %v5528
      %5576 = vst.msk [vmem:[#allocation9 + $0x20] sm:$0xff] %vm2639, %v5530
      %5577 = vst.msk [vmem:[#allocation9 + $0x40] sm:$0xff] %vm2639, %v5532
      %5578 = vst.msk [vmem:[#allocation9 + $0x60] sm:$0xff] %vm2639, %v5534
      %5579 = vst.msk [vmem:[#allocation9 + $0x80] sm:$0xff] %vm2639, %v5536
      %5580 = vst.msk [vmem:[#allocation9 + $0xa0] sm:$0xff] %vm2639, %v5538
      %5581 = vst.msk [vmem:[#allocation9 + $0xc0] sm:$0xff] %vm2639, %v5540
      %5582 = vst.msk [vmem:[#allocation9 + $0xe0] sm:$0xff] %vm2639, %v5542
      %5583 = vst.msk [vmem:[#allocation9 + $0x100] sm:$0xff] %vm2639, %v5544
      %5584 = vst.msk [vmem:[#allocation9 + $0x120] sm:$0xff] %vm2639, %v5546
      %5585 = vst.msk [vmem:[#allocation9 + $0x140] sm:$0xff] %vm2639, %v5548
      %5586 = vst.msk [vmem:[#allocation9 + $0x160] sm:$0xff] %vm2639, %v5550
      %5587 = vst.msk [vmem:[#allocation9 + $0x180] sm:$0xff] %vm2639, %v5552
      %5588 = vst.msk [vmem:[#allocation9 + $0x1a0] sm:$0xff] %vm2639, %v5554
      %5589 = vst.msk [vmem:[#allocation9 + $0x1c0] sm:$0xff] %vm2639, %v5556
      %5590 = vst.msk [vmem:[#allocation9 + $0x1e0] sm:$0xff] %vm2639, %v5558
      %s5591 = scalar_lea.vmem [#allocation5], 224
      %v5592 = vld [vmem:[%s5591 + $0x6] sm:$0xff]
      %v5593 = vld [vmem:[%s5591 + $0xe] sm:$0xff]
      %v5594 = vld [vmem:[%s5591 + $0x26] sm:$0xff]
      %v5595 = vld [vmem:[%s5591 + $0x2e] sm:$0xff]
      %v5596 = vld [vmem:[%s5591 + $0x46] sm:$0xff]
      %v5597 = vld [vmem:[%s5591 + $0x4e] sm:$0xff]
      %v5598 = vld [vmem:[%s5591 + $0x66] sm:$0xff]
      %v5599 = vld [vmem:[%s5591 + $0x6e] sm:$0xff]
      %v5600 = vld [vmem:[%s5591 + $0x86] sm:$0xff]
      %v5601 = vld [vmem:[%s5591 + $0x8e] sm:$0xff]
      %v5602 = vld [vmem:[%s5591 + $0xa6] sm:$0xff]
      %v5603 = vld [vmem:[%s5591 + $0xae] sm:$0xff]
      %v5604 = vld [vmem:[%s5591 + $0xc6] sm:$0xff]
      %v5605 = vld [vmem:[%s5591 + $0xce] sm:$0xff]
      %v5606 = vld [vmem:[%s5591 + $0xe6] sm:$0xff]
      %v5607 = vld [vmem:[%s5591 + $0xee] sm:$0xff]
      %v5608 = vld [vmem:[%s5591 + $0x106] sm:$0xff]
      %v5609 = vld [vmem:[%s5591 + $0x10e] sm:$0xff]
      %v5610 = vld [vmem:[%s5591 + $0x126] sm:$0xff]
      %v5611 = vld [vmem:[%s5591 + $0x12e] sm:$0xff]
      %v5612 = vld [vmem:[%s5591 + $0x146] sm:$0xff]
      %v5613 = vld [vmem:[%s5591 + $0x14e] sm:$0xff]
      %v5614 = vld [vmem:[%s5591 + $0x166] sm:$0xff]
      %v5615 = vld [vmem:[%s5591 + $0x16e] sm:$0xff]
      %v5616 = vld [vmem:[%s5591 + $0x186] sm:$0xff]
      %v5617 = vld [vmem:[%s5591 + $0x18e] sm:$0xff]
      %v5618 = vld [vmem:[%s5591 + $0x1a6] sm:$0xff]
      %v5619 = vld [vmem:[%s5591 + $0x1ae] sm:$0xff]
      %v5620 = vld [vmem:[%s5591 + $0x1c6] sm:$0xff]
      %v5621 = vld [vmem:[%s5591 + $0x1ce] sm:$0xff]
      %v5622 = vld [vmem:[%s5591 + $0x1e6] sm:$0xff]
      %v5623 = vld [vmem:[%s5591 + $0x1ee] sm:$0xff]
      %v5624 = vpack.c.bf16 %v5593, %v5592
      %v5625 = vpack.c.bf16 %v5595, %v5594
      %v5626 = vpack.c.bf16 %v5597, %v5596
      %v5627 = vpack.c.bf16 %v5599, %v5598
      %v5628 = vpack.c.bf16 %v5601, %v5600
      %v5629 = vpack.c.bf16 %v5603, %v5602
      %v5630 = vpack.c.bf16 %v5605, %v5604
      %v5631 = vpack.c.bf16 %v5607, %v5606
      %v5632 = vpack.c.bf16 %v5609, %v5608
      %v5633 = vpack.c.bf16 %v5611, %v5610
      %v5634 = vpack.c.bf16 %v5613, %v5612
      %v5635 = vpack.c.bf16 %v5615, %v5614
      %v5636 = vpack.c.bf16 %v5617, %v5616
      %v5637 = vpack.c.bf16 %v5619, %v5618
      %v5638 = vpack.c.bf16 %v5621, %v5620
      %v5639 = vpack.c.bf16 %v5623, %v5622
      %5656 = vrot.lane.b32.xlu0 %v5624, 80
      %v5657 = vpop.permute.xlu0 %5656
      %5658 = vrot.lane.b32.xlu0 %v5625, 80
      %v5659 = vpop.permute.xlu0 %5658
      %5660 = vrot.lane.b32.xlu0 %v5626, 80
      %v5661 = vpop.permute.xlu0 %5660
      %5662 = vrot.lane.b32.xlu0 %v5627, 80
      %v5663 = vpop.permute.xlu0 %5662
      %5664 = vrot.lane.b32.xlu0 %v5628, 80
      %v5665 = vpop.permute.xlu0 %5664
      %5666 = vrot.lane.b32.xlu0 %v5629, 80
      %v5667 = vpop.permute.xlu0 %5666
      %5668 = vrot.lane.b32.xlu0 %v5630, 80
      %v5669 = vpop.permute.xlu0 %5668
      %5670 = vrot.lane.b32.xlu0 %v5631, 80
      %v5671 = vpop.permute.xlu0 %5670
      %5672 = vrot.lane.b32.xlu0 %v5632, 80
      %v5673 = vpop.permute.xlu0 %5672
      %5674 = vrot.lane.b32.xlu0 %v5633, 80
      %v5675 = vpop.permute.xlu0 %5674
      %5676 = vrot.lane.b32.xlu0 %v5634, 80
      %v5677 = vpop.permute.xlu0 %5676
      %5678 = vrot.lane.b32.xlu0 %v5635, 80
      %v5679 = vpop.permute.xlu0 %5678
      %5680 = vrot.lane.b32.xlu0 %v5636, 80
      %v5681 = vpop.permute.xlu0 %5680
      %5682 = vrot.lane.b32.xlu0 %v5637, 80
      %v5683 = vpop.permute.xlu0 %5682
      %5684 = vrot.lane.b32.xlu0 %v5638, 80
      %v5685 = vpop.permute.xlu0 %5684
      %5686 = vrot.lane.b32.xlu0 %v5639, 80
      %v5687 = vpop.permute.xlu0 %5686
      %5704 = vst.msk [vmem:[#allocation9] sm:$0xff] %vm2768, %v5657
      %5705 = vst.msk [vmem:[#allocation9 + $0x20] sm:$0xff] %vm2768, %v5659
      %5706 = vst.msk [vmem:[#allocation9 + $0x40] sm:$0xff] %vm2768, %v5661
      %5707 = vst.msk [vmem:[#allocation9 + $0x60] sm:$0xff] %vm2768, %v5663
      %5708 = vst.msk [vmem:[#allocation9 + $0x80] sm:$0xff] %vm2768, %v5665
      %5709 = vst.msk [vmem:[#allocation9 + $0xa0] sm:$0xff] %vm2768, %v5667
      %5710 = vst.msk [vmem:[#allocation9 + $0xc0] sm:$0xff] %vm2768, %v5669
      %5711 = vst.msk [vmem:[#allocation9 + $0xe0] sm:$0xff] %vm2768, %v5671
      %5712 = vst.msk [vmem:[#allocation9 + $0x100] sm:$0xff] %vm2768, %v5673
      %5713 = vst.msk [vmem:[#allocation9 + $0x120] sm:$0xff] %vm2768, %v5675
      %5714 = vst.msk [vmem:[#allocation9 + $0x140] sm:$0xff] %vm2768, %v5677
      %5715 = vst.msk [vmem:[#allocation9 + $0x160] sm:$0xff] %vm2768, %v5679
      %5716 = vst.msk [vmem:[#allocation9 + $0x180] sm:$0xff] %vm2768, %v5681
      %5717 = vst.msk [vmem:[#allocation9 + $0x1a0] sm:$0xff] %vm2768, %v5683
      %5718 = vst.msk [vmem:[#allocation9 + $0x1c0] sm:$0xff] %vm2768, %v5685
      %5719 = vst.msk [vmem:[#allocation9 + $0x1e0] sm:$0xff] %vm2768, %v5687
      %v5720 = vld [vmem:[%s5591 + $0x7] sm:$0xff]
      %v5721 = vld [vmem:[%s5591 + $0xf] sm:$0xff]
      %v5722 = vld [vmem:[%s5591 + $0x27] sm:$0xff]
      %v5723 = vld [vmem:[%s5591 + $0x2f] sm:$0xff]
      %v5724 = vld [vmem:[%s5591 + $0x47] sm:$0xff]
      %v5725 = vld [vmem:[%s5591 + $0x4f] sm:$0xff]
      %v5726 = vld [vmem:[%s5591 + $0x67] sm:$0xff]
      %v5727 = vld [vmem:[%s5591 + $0x6f] sm:$0xff]
      %v5728 = vld [vmem:[%s5591 + $0x87] sm:$0xff]
      %v5729 = vld [vmem:[%s5591 + $0x8f] sm:$0xff]
      %v5730 = vld [vmem:[%s5591 + $0xa7] sm:$0xff]
      %v5731 = vld [vmem:[%s5591 + $0xaf] sm:$0xff]
      %v5732 = vld [vmem:[%s5591 + $0xc7] sm:$0xff]
      %v5733 = vld [vmem:[%s5591 + $0xcf] sm:$0xff]
      %v5734 = vld [vmem:[%s5591 + $0xe7] sm:$0xff]
      %v5735 = vld [vmem:[%s5591 + $0xef] sm:$0xff]
      %v5736 = vld [vmem:[%s5591 + $0x107] sm:$0xff]
      %v5737 = vld [vmem:[%s5591 + $0x10f] sm:$0xff]
      %v5738 = vld [vmem:[%s5591 + $0x127] sm:$0xff]
      %v5739 = vld [vmem:[%s5591 + $0x12f] sm:$0xff]
      %v5740 = vld [vmem:[%s5591 + $0x147] sm:$0xff]
      %v5741 = vld [vmem:[%s5591 + $0x14f] sm:$0xff]
      %v5742 = vld [vmem:[%s5591 + $0x167] sm:$0xff]
      %v5743 = vld [vmem:[%s5591 + $0x16f] sm:$0xff]
      %v5744 = vld [vmem:[%s5591 + $0x187] sm:$0xff]
      %v5745 = vld [vmem:[%s5591 + $0x18f] sm:$0xff]
      %v5746 = vld [vmem:[%s5591 + $0x1a7] sm:$0xff]
      %v5747 = vld [vmem:[%s5591 + $0x1af] sm:$0xff]
      %v5748 = vld [vmem:[%s5591 + $0x1c7] sm:$0xff]
      %v5749 = vld [vmem:[%s5591 + $0x1cf] sm:$0xff]
      %v5750 = vld [vmem:[%s5591 + $0x1e7] sm:$0xff]
      %v5751 = vld [vmem:[%s5591 + $0x1ef] sm:$0xff]
      %v5752 = vpack.c.bf16 %v5721, %v5720
      %v5753 = vpack.c.bf16 %v5723, %v5722
      %v5754 = vpack.c.bf16 %v5725, %v5724
      %v5755 = vpack.c.bf16 %v5727, %v5726
      %v5756 = vpack.c.bf16 %v5729, %v5728
      %v5757 = vpack.c.bf16 %v5731, %v5730
      %v5758 = vpack.c.bf16 %v5733, %v5732
      %v5759 = vpack.c.bf16 %v5735, %v5734
      %v5760 = vpack.c.bf16 %v5737, %v5736
      %v5761 = vpack.c.bf16 %v5739, %v5738
      %v5762 = vpack.c.bf16 %v5741, %v5740
      %v5763 = vpack.c.bf16 %v5743, %v5742
      %v5764 = vpack.c.bf16 %v5745, %v5744
      %v5765 = vpack.c.bf16 %v5747, %v5746
      %v5766 = vpack.c.bf16 %v5749, %v5748
      %v5767 = vpack.c.bf16 %v5751, %v5750
      %5784 = vrot.lane.b32.xlu0 %v5752, 96
      %v5785 = vpop.permute.xlu0 %5784
      %5786 = vrot.lane.b32.xlu0 %v5753, 96
      %v5787 = vpop.permute.xlu0 %5786
      %5788 = vrot.lane.b32.xlu0 %v5754, 96
      %v5789 = vpop.permute.xlu0 %5788
      %5790 = vrot.lane.b32.xlu0 %v5755, 96
      %v5791 = vpop.permute.xlu0 %5790
      %5792 = vrot.lane.b32.xlu0 %v5756, 96
      %v5793 = vpop.permute.xlu0 %5792
      %5794 = vrot.lane.b32.xlu0 %v5757, 96
      %v5795 = vpop.permute.xlu0 %5794
      %5796 = vrot.lane.b32.xlu0 %v5758, 96
      %v5797 = vpop.permute.xlu0 %5796
      %5798 = vrot.lane.b32.xlu0 %v5759, 96
      %v5799 = vpop.permute.xlu0 %5798
      %5800 = vrot.lane.b32.xlu0 %v5760, 96
      %v5801 = vpop.permute.xlu0 %5800
      %5802 = vrot.lane.b32.xlu0 %v5761, 96
      %v5803 = vpop.permute.xlu0 %5802
      %5804 = vrot.lane.b32.xlu0 %v5762, 96
      %v5805 = vpop.permute.xlu0 %5804
      %5806 = vrot.lane.b32.xlu0 %v5763, 96
      %v5807 = vpop.permute.xlu0 %5806
      %5808 = vrot.lane.b32.xlu0 %v5764, 96
      %v5809 = vpop.permute.xlu0 %5808
      %5810 = vrot.lane.b32.xlu0 %v5765, 96
      %v5811 = vpop.permute.xlu0 %5810
      %5812 = vrot.lane.b32.xlu0 %v5766, 96
      %v5813 = vpop.permute.xlu0 %5812
      %5814 = vrot.lane.b32.xlu0 %v5767, 96
      %v5815 = vpop.permute.xlu0 %5814
      %5832 = vst.msk [vmem:[#allocation9] sm:$0xff] %vm2898, %v5785
      %5833 = vst.msk [vmem:[#allocation9 + $0x20] sm:$0xff] %vm2898, %v5787
      %5834 = vst.msk [vmem:[#allocation9 + $0x40] sm:$0xff] %vm2898, %v5789
      %5835 = vst.msk [vmem:[#allocation9 + $0x60] sm:$0xff] %vm2898, %v5791
      %5836 = vst.msk [vmem:[#allocation9 + $0x80] sm:$0xff] %vm2898, %v5793
      %5837 = vst.msk [vmem:[#allocation9 + $0xa0] sm:$0xff] %vm2898, %v5795
      %5838 = vst.msk [vmem:[#allocation9 + $0xc0] sm:$0xff] %vm2898, %v5797
      %5839 = vst.msk [vmem:[#allocation9 + $0xe0] sm:$0xff] %vm2898, %v5799
      %5840 = vst.msk [vmem:[#allocation9 + $0x100] sm:$0xff] %vm2898, %v5801
      %5841 = vst.msk [vmem:[#allocation9 + $0x120] sm:$0xff] %vm2898, %v5803
      %5842 = vst.msk [vmem:[#allocation9 + $0x140] sm:$0xff] %vm2898, %v5805
      %5843 = vst.msk [vmem:[#allocation9 + $0x160] sm:$0xff] %vm2898, %v5807
      %5844 = vst.msk [vmem:[#allocation9 + $0x180] sm:$0xff] %vm2898, %v5809
      %5845 = vst.msk [vmem:[#allocation9 + $0x1a0] sm:$0xff] %vm2898, %v5811
      %5846 = vst.msk [vmem:[#allocation9 + $0x1c0] sm:$0xff] %vm2898, %v5813
      %5847 = vst.msk [vmem:[#allocation9 + $0x1e0] sm:$0xff] %vm2898, %v5815
      %v5848 = vld [vmem:[%s5591 + $0x8] sm:$0xff]
      %v5849 = vld [vmem:[%s5591 + $0x10] sm:$0xff]
      %v5850 = vld [vmem:[%s5591 + $0x28] sm:$0xff]
      %v5851 = vld [vmem:[%s5591 + $0x30] sm:$0xff]
      %v5852 = vld [vmem:[%s5591 + $0x48] sm:$0xff]
      %v5853 = vld [vmem:[%s5591 + $0x50] sm:$0xff]
      %v5854 = vld [vmem:[%s5591 + $0x68] sm:$0xff]
      %v5855 = vld [vmem:[%s5591 + $0x70] sm:$0xff]
      %v5856 = vld [vmem:[%s5591 + $0x88] sm:$0xff]
      %v5857 = vld [vmem:[%s5591 + $0x90] sm:$0xff]
      %v5858 = vld [vmem:[%s5591 + $0xa8] sm:$0xff]
      %v5859 = vld [vmem:[%s5591 + $0xb0] sm:$0xff]
      %v5860 = vld [vmem:[%s5591 + $0xc8] sm:$0xff]
      %v5861 = vld [vmem:[%s5591 + $0xd0] sm:$0xff]
      %v5862 = vld [vmem:[%s5591 + $0xe8] sm:$0xff]
      %v5863 = vld [vmem:[%s5591 + $0xf0] sm:$0xff]
      %v5864 = vld [vmem:[%s5591 + $0x108] sm:$0xff]
      %v5865 = vld [vmem:[%s5591 + $0x110] sm:$0xff]
      %v5866 = vld [vmem:[%s5591 + $0x128] sm:$0xff]
      %v5867 = vld [vmem:[%s5591 + $0x130] sm:$0xff]
      %v5868 = vld [vmem:[%s5591 + $0x148] sm:$0xff]
      %v5869 = vld [vmem:[%s5591 + $0x150] sm:$0xff]
      %v5870 = vld [vmem:[%s5591 + $0x168] sm:$0xff]
      %v5871 = vld [vmem:[%s5591 + $0x170] sm:$0xff]
      %v5872 = vld [vmem:[%s5591 + $0x188] sm:$0xff]
      %v5873 = vld [vmem:[%s5591 + $0x190] sm:$0xff]
      %v5874 = vld [vmem:[%s5591 + $0x1a8] sm:$0xff]
      %v5875 = vld [vmem:[%s5591 + $0x1b0] sm:$0xff]
      %v5876 = vld [vmem:[%s5591 + $0x1c8] sm:$0xff]
      %v5877 = vld [vmem:[%s5591 + $0x1d0] sm:$0xff]
      %v5878 = vld [vmem:[%s5591 + $0x1e8] sm:$0xff]
      %v5879 = vld [vmem:[%s5591 + $0x1f0] sm:$0xff]
      %v5880 = vpack.c.bf16 %v5849, %v5848
      %v5881 = vpack.c.bf16 %v5851, %v5850
      %v5882 = vpack.c.bf16 %v5853, %v5852
      %v5883 = vpack.c.bf16 %v5855, %v5854
      %v5884 = vpack.c.bf16 %v5857, %v5856
      %v5885 = vpack.c.bf16 %v5859, %v5858
      %v5886 = vpack.c.bf16 %v5861, %v5860
      %v5887 = vpack.c.bf16 %v5863, %v5862
      %v5888 = vpack.c.bf16 %v5865, %v5864
      %v5889 = vpack.c.bf16 %v5867, %v5866
      %v5890 = vpack.c.bf16 %v5869, %v5868
      %v5891 = vpack.c.bf16 %v5871, %v5870
      %v5892 = vpack.c.bf16 %v5873, %v5872
      %v5893 = vpack.c.bf16 %v5875, %v5874
      %v5894 = vpack.c.bf16 %v5877, %v5876
      %v5895 = vpack.c.bf16 %v5879, %v5878
      %5912 = vrot.lane.b32.xlu0 %v5880, 112
      %v5913 = vpop.permute.xlu0 %5912
      %5914 = vrot.lane.b32.xlu0 %v5881, 112
      %v5915 = vpop.permute.xlu0 %5914
      %5916 = vrot.lane.b32.xlu0 %v5882, 112
      %v5917 = vpop.permute.xlu0 %5916
      %5918 = vrot.lane.b32.xlu0 %v5883, 112
      %v5919 = vpop.permute.xlu0 %5918
      %5920 = vrot.lane.b32.xlu0 %v5884, 112
      %v5921 = vpop.permute.xlu0 %5920
      %5922 = vrot.lane.b32.xlu0 %v5885, 112
      %v5923 = vpop.permute.xlu0 %5922
      %5924 = vrot.lane.b32.xlu0 %v5886, 112
      %v5925 = vpop.permute.xlu0 %5924
      %5926 = vrot.lane.b32.xlu0 %v5887, 112
      %v5927 = vpop.permute.xlu0 %5926
      %5928 = vrot.lane.b32.xlu0 %v5888, 112
      %v5929 = vpop.permute.xlu0 %5928
      %5930 = vrot.lane.b32.xlu0 %v5889, 112
      %v5931 = vpop.permute.xlu0 %5930
      %5932 = vrot.lane.b32.xlu0 %v5890, 112
      %v5933 = vpop.permute.xlu0 %5932
      %5934 = vrot.lane.b32.xlu0 %v5891, 112
      %v5935 = vpop.permute.xlu0 %5934
      %5936 = vrot.lane.b32.xlu0 %v5892, 112
      %v5937 = vpop.permute.xlu0 %5936
      %5938 = vrot.lane.b32.xlu0 %v5893, 112
      %v5939 = vpop.permute.xlu0 %5938
      %5940 = vrot.lane.b32.xlu0 %v5894, 112
      %v5941 = vpop.permute.xlu0 %5940
      %5942 = vrot.lane.b32.xlu0 %v5895, 112
      %v5943 = vpop.permute.xlu0 %5942
      %5960 = vst.msk [vmem:[#allocation9] sm:$0xff] %vm3027, %v5913
      %5961 = vst.msk [vmem:[#allocation9 + $0x20] sm:$0xff] %vm3027, %v5915
      %5962 = vst.msk [vmem:[#allocation9 + $0x40] sm:$0xff] %vm3027, %v5917
      %5963 = vst.msk [vmem:[#allocation9 + $0x60] sm:$0xff] %vm3027, %v5919
      %5964 = vst.msk [vmem:[#allocation9 + $0x80] sm:$0xff] %vm3027, %v5921
      %5965 = vst.msk [vmem:[#allocation9 + $0xa0] sm:$0xff] %vm3027, %v5923
      %5966 = vst.msk [vmem:[#allocation9 + $0xc0] sm:$0xff] %vm3027, %v5925
      %5967 = vst.msk [vmem:[#allocation9 + $0xe0] sm:$0xff] %vm3027, %v5927
      %5968 = vst.msk [vmem:[#allocation9 + $0x100] sm:$0xff] %vm3027, %v5929
      %5969 = vst.msk [vmem:[#allocation9 + $0x120] sm:$0xff] %vm3027, %v5931
      %5970 = vst.msk [vmem:[#allocation9 + $0x140] sm:$0xff] %vm3027, %v5933
      %5971 = vst.msk [vmem:[#allocation9 + $0x160] sm:$0xff] %vm3027, %v5935
      %5972 = vst.msk [vmem:[#allocation9 + $0x180] sm:$0xff] %vm3027, %v5937
      %5973 = vst.msk [vmem:[#allocation9 + $0x1a0] sm:$0xff] %vm3027, %v5939
      %5974 = vst.msk [vmem:[#allocation9 + $0x1c0] sm:$0xff] %vm3027, %v5941
      %5975 = vst.msk [vmem:[#allocation9 + $0x1e0] sm:$0xff] %vm3027, %v5943
      %v5976 = vld [vmem:[%s5591 + $0x9] sm:$0xff]
      %v5977 = vld [vmem:[%s5591 + $0x11] sm:$0xff]
      %v5978 = vld [vmem:[%s5591 + $0x29] sm:$0xff]
      %v5979 = vld [vmem:[%s5591 + $0x31] sm:$0xff]
      %v5980 = vld [vmem:[%s5591 + $0x49] sm:$0xff]
      %v5981 = vld [vmem:[%s5591 + $0x51] sm:$0xff]
      %v5982 = vld [vmem:[%s5591 + $0x69] sm:$0xff]
      %v5983 = vld [vmem:[%s5591 + $0x71] sm:$0xff]
      %v5984 = vld [vmem:[%s5591 + $0x89] sm:$0xff]
      %v5985 = vld [vmem:[%s5591 + $0x91] sm:$0xff]
      %v5986 = vld [vmem:[%s5591 + $0xa9] sm:$0xff]
      %v5987 = vld [vmem:[%s5591 + $0xb1] sm:$0xff]
      %v5988 = vld [vmem:[%s5591 + $0xc9] sm:$0xff]
      %v5989 = vld [vmem:[%s5591 + $0xd1] sm:$0xff]
      %v5990 = vld [vmem:[%s5591 + $0xe9] sm:$0xff]
      %v5991 = vld [vmem:[%s5591 + $0xf1] sm:$0xff]
      %v5992 = vld [vmem:[%s5591 + $0x109] sm:$0xff]
      %v5993 = vld [vmem:[%s5591 + $0x111] sm:$0xff]
      %v5994 = vld [vmem:[%s5591 + $0x129] sm:$0xff]
      %v5995 = vld [vmem:[%s5591 + $0x131] sm:$0xff]
      %v5996 = vld [vmem:[%s5591 + $0x149] sm:$0xff]
      %v5997 = vld [vmem:[%s5591 + $0x151] sm:$0xff]
      %v5998 = vld [vmem:[%s5591 + $0x169] sm:$0xff]
      %v5999 = vld [vmem:[%s5591 + $0x171] sm:$0xff]
      %v6000 = vld [vmem:[%s5591 + $0x189] sm:$0xff]
      %v6001 = vld [vmem:[%s5591 + $0x191] sm:$0xff]
      %v6002 = vld [vmem:[%s5591 + $0x1a9] sm:$0xff]
      %v6003 = vld [vmem:[%s5591 + $0x1b1] sm:$0xff]
      %v6004 = vld [vmem:[%s5591 + $0x1c9] sm:$0xff]
      %v6005 = vld [vmem:[%s5591 + $0x1d1] sm:$0xff]
      %v6006 = vld [vmem:[%s5591 + $0x1e9] sm:$0xff]
      %v6007 = vld [vmem:[%s5591 + $0x1f1] sm:$0xff]
      %v6008 = vpack.c.bf16 %v5977, %v5976
      %v6009 = vpack.c.bf16 %v5979, %v5978
      %v6010 = vpack.c.bf16 %v5981, %v5980
      %v6011 = vpack.c.bf16 %v5983, %v5982
      %v6012 = vpack.c.bf16 %v5985, %v5984
      %v6013 = vpack.c.bf16 %v5987, %v5986
      %v6014 = vpack.c.bf16 %v5989, %v5988
      %v6015 = vpack.c.bf16 %v5991, %v5990
      %v6016 = vpack.c.bf16 %v5993, %v5992
      %v6017 = vpack.c.bf16 %v5995, %v5994
      %v6018 = vpack.c.bf16 %v5997, %v5996
      %v6019 = vpack.c.bf16 %v5999, %v5998
      %v6020 = vpack.c.bf16 %v6001, %v6000
      %v6021 = vpack.c.bf16 %v6003, %v6002
      %v6022 = vpack.c.bf16 %v6005, %v6004
      %v6023 = vpack.c.bf16 %v6007, %v6006
      %6024 = vst.msk [vmem:[#allocation9 + $0x8] sm:$0xff] %vm1940, %v6008
      %6025 = vst.msk [vmem:[#allocation9 + $0x28] sm:$0xff] %vm1940, %v6009
      %6026 = vst.msk [vmem:[#allocation9 + $0x48] sm:$0xff] %vm1940, %v6010
      %6027 = vst.msk [vmem:[#allocation9 + $0x68] sm:$0xff] %vm1940, %v6011
      %6028 = vst.msk [vmem:[#allocation9 + $0x88] sm:$0xff] %vm1940, %v6012
      %6029 = vst.msk [vmem:[#allocation9 + $0xa8] sm:$0xff] %vm1940, %v6013
      %6030 = vst.msk [vmem:[#allocation9 + $0xc8] sm:$0xff] %vm1940, %v6014
      %6031 = vst.msk [vmem:[#allocation9 + $0xe8] sm:$0xff] %vm1940, %v6015
      %6032 = vst.msk [vmem:[#allocation9 + $0x108] sm:$0xff] %vm1940, %v6016
      %6033 = vst.msk [vmem:[#allocation9 + $0x128] sm:$0xff] %vm1940, %v6017
      %6034 = vst.msk [vmem:[#allocation9 + $0x148] sm:$0xff] %vm1940, %v6018
      %6035 = vst.msk [vmem:[#allocation9 + $0x168] sm:$0xff] %vm1940, %v6019
      %6036 = vst.msk [vmem:[#allocation9 + $0x188] sm:$0xff] %vm1940, %v6020
      %6037 = vst.msk [vmem:[#allocation9 + $0x1a8] sm:$0xff] %vm1940, %v6021
      %6038 = vst.msk [vmem:[#allocation9 + $0x1c8] sm:$0xff] %vm1940, %v6022
      %6039 = vst.msk [vmem:[#allocation9 + $0x1e8] sm:$0xff] %vm1940, %v6023
      %v6040 = vld [vmem:[%s5591 + $0xa] sm:$0xff]
      %v6041 = vld [vmem:[%s5591 + $0x12] sm:$0xff]
      %v6042 = vld [vmem:[%s5591 + $0x2a] sm:$0xff]
      %v6043 = vld [vmem:[%s5591 + $0x32] sm:$0xff]
      %v6044 = vld [vmem:[%s5591 + $0x4a] sm:$0xff]
      %v6045 = vld [vmem:[%s5591 + $0x52] sm:$0xff]
      %v6046 = vld [vmem:[%s5591 + $0x6a] sm:$0xff]
      %v6047 = vld [vmem:[%s5591 + $0x72] sm:$0xff]
      %v6048 = vld [vmem:[%s5591 + $0x8a] sm:$0xff]
      %v6049 = vld [vmem:[%s5591 + $0x92] sm:$0xff]
      %v6050 = vld [vmem:[%s5591 + $0xaa] sm:$0xff]
      %v6051 = vld [vmem:[%s5591 + $0xb2] sm:$0xff]
      %v6052 = vld [vmem:[%s5591 + $0xca] sm:$0xff]
      %v6053 = vld [vmem:[%s5591 + $0xd2] sm:$0xff]
      %v6054 = vld [vmem:[%s5591 + $0xea] sm:$0xff]
      %v6055 = vld [vmem:[%s5591 + $0xf2] sm:$0xff]
      %v6056 = vld [vmem:[%s5591 + $0x10a] sm:$0xff]
      %v6057 = vld [vmem:[%s5591 + $0x112] sm:$0xff]
      %v6058 = vld [vmem:[%s5591 + $0x12a] sm:$0xff]
      %v6059 = vld [vmem:[%s5591 + $0x132] sm:$0xff]
      %v6060 = vld [vmem:[%s5591 + $0x14a] sm:$0xff]
      %v6061 = vld [vmem:[%s5591 + $0x152] sm:$0xff]
      %v6062 = vld [vmem:[%s5591 + $0x16a] sm:$0xff]
      %v6063 = vld [vmem:[%s5591 + $0x172] sm:$0xff]
      %v6064 = vld [vmem:[%s5591 + $0x18a] sm:$0xff]
      %v6065 = vld [vmem:[%s5591 + $0x192] sm:$0xff]
      %v6066 = vld [vmem:[%s5591 + $0x1aa] sm:$0xff]
      %v6067 = vld [vmem:[%s5591 + $0x1b2] sm:$0xff]
      %v6068 = vld [vmem:[%s5591 + $0x1ca] sm:$0xff]
      %v6069 = vld [vmem:[%s5591 + $0x1d2] sm:$0xff]
      %v6070 = vld [vmem:[%s5591 + $0x1ea] sm:$0xff]
      %v6071 = vld [vmem:[%s5591 + $0x1f2] sm:$0xff]
      %v6072 = vpack.c.bf16 %v6041, %v6040
      %v6073 = vpack.c.bf16 %v6043, %v6042
      %v6074 = vpack.c.bf16 %v6045, %v6044
      %v6075 = vpack.c.bf16 %v6047, %v6046
      %v6076 = vpack.c.bf16 %v6049, %v6048
      %v6077 = vpack.c.bf16 %v6051, %v6050
      %v6078 = vpack.c.bf16 %v6053, %v6052
      %v6079 = vpack.c.bf16 %v6055, %v6054
      %v6080 = vpack.c.bf16 %v6057, %v6056
      %v6081 = vpack.c.bf16 %v6059, %v6058
      %v6082 = vpack.c.bf16 %v6061, %v6060
      %v6083 = vpack.c.bf16 %v6063, %v6062
      %v6084 = vpack.c.bf16 %v6065, %v6064
      %v6085 = vpack.c.bf16 %v6067, %v6066
      %v6086 = vpack.c.bf16 %v6069, %v6068
      %v6087 = vpack.c.bf16 %v6071, %v6070
      %6104 = vrot.lane.b32.xlu0 %v6072, 16
      %v6105 = vpop.permute.xlu0 %6104
      %6106 = vrot.lane.b32.xlu0 %v6073, 16
      %v6107 = vpop.permute.xlu0 %6106
      %6108 = vrot.lane.b32.xlu0 %v6074, 16
      %v6109 = vpop.permute.xlu0 %6108
      %6110 = vrot.lane.b32.xlu0 %v6075, 16
      %v6111 = vpop.permute.xlu0 %6110
      %6112 = vrot.lane.b32.xlu0 %v6076, 16
      %v6113 = vpop.permute.xlu0 %6112
      %6114 = vrot.lane.b32.xlu0 %v6077, 16
      %v6115 = vpop.permute.xlu0 %6114
      %6116 = vrot.lane.b32.xlu0 %v6078, 16
      %v6117 = vpop.permute.xlu0 %6116
      %6118 = vrot.lane.b32.xlu0 %v6079, 16
      %v6119 = vpop.permute.xlu0 %6118
      %6120 = vrot.lane.b32.xlu0 %v6080, 16
      %v6121 = vpop.permute.xlu0 %6120
      %6122 = vrot.lane.b32.xlu0 %v6081, 16
      %v6123 = vpop.permute.xlu0 %6122
      %6124 = vrot.lane.b32.xlu0 %v6082, 16
      %v6125 = vpop.permute.xlu0 %6124
      %6126 = vrot.lane.b32.xlu0 %v6083, 16
      %v6127 = vpop.permute.xlu0 %6126
      %6128 = vrot.lane.b32.xlu0 %v6084, 16
      %v6129 = vpop.permute.xlu0 %6128
      %6130 = vrot.lane.b32.xlu0 %v6085, 16
      %v6131 = vpop.permute.xlu0 %6130
      %6132 = vrot.lane.b32.xlu0 %v6086, 16
      %v6133 = vpop.permute.xlu0 %6132
      %6134 = vrot.lane.b32.xlu0 %v6087, 16
      %v6135 = vpop.permute.xlu0 %6134
      %6152 = vst.msk [vmem:[#allocation9 + $0x8] sm:$0xff] %vm2252, %v6105
      %6153 = vst.msk [vmem:[#allocation9 + $0x28] sm:$0xff] %vm2252, %v6107
      %6154 = vst.msk [vmem:[#allocation9 + $0x48] sm:$0xff] %vm2252, %v6109
      %6155 = vst.msk [vmem:[#allocation9 + $0x68] sm:$0xff] %vm2252, %v6111
      %6156 = vst.msk [vmem:[#allocation9 + $0x88] sm:$0xff] %vm2252, %v6113
      %6157 = vst.msk [vmem:[#allocation9 + $0xa8] sm:$0xff] %vm2252, %v6115
      %6158 = vst.msk [vmem:[#allocation9 + $0xc8] sm:$0xff] %vm2252, %v6117
      %6159 = vst.msk [vmem:[#allocation9 + $0xe8] sm:$0xff] %vm2252, %v6119
      %6160 = vst.msk [vmem:[#allocation9 + $0x108] sm:$0xff] %vm2252, %v6121
      %6161 = vst.msk [vmem:[#allocation9 + $0x128] sm:$0xff] %vm2252, %v6123
      %6162 = vst.msk [vmem:[#allocation9 + $0x148] sm:$0xff] %vm2252, %v6125
      %6163 = vst.msk [vmem:[#allocation9 + $0x168] sm:$0xff] %vm2252, %v6127
      %6164 = vst.msk [vmem:[#allocation9 + $0x188] sm:$0xff] %vm2252, %v6129
      %6165 = vst.msk [vmem:[#allocation9 + $0x1a8] sm:$0xff] %vm2252, %v6131
      %6166 = vst.msk [vmem:[#allocation9 + $0x1c8] sm:$0xff] %vm2252, %v6133
      %6167 = vst.msk [vmem:[#allocation9 + $0x1e8] sm:$0xff] %vm2252, %v6135
      %v6168 = vld [vmem:[%s4981 + $0x6] sm:$0xff]
      %v6169 = vld [vmem:[%s4981 + $0xe] sm:$0xff]
      %v6170 = vld [vmem:[%s4981 + $0x26] sm:$0xff]
      %v6171 = vld [vmem:[%s4981 + $0x2e] sm:$0xff]
      %v6172 = vld [vmem:[%s4981 + $0x46] sm:$0xff]
      %v6173 = vld [vmem:[%s4981 + $0x4e] sm:$0xff]
      %v6174 = vld [vmem:[%s4981 + $0x66] sm:$0xff]
      %v6175 = vld [vmem:[%s4981 + $0x6e] sm:$0xff]
      %v6176 = vld [vmem:[%s4981 + $0x86] sm:$0xff]
      %v6177 = vld [vmem:[%s4981 + $0x8e] sm:$0xff]
      %v6178 = vld [vmem:[%s4981 + $0xa6] sm:$0xff]
      %v6179 = vld [vmem:[%s4981 + $0xae] sm:$0xff]
      %v6180 = vld [vmem:[%s4981 + $0xc6] sm:$0xff]
      %v6181 = vld [vmem:[%s4981 + $0xce] sm:$0xff]
      %v6182 = vld [vmem:[%s4981 + $0xe6] sm:$0xff]
      %v6183 = vld [vmem:[%s4981 + $0xee] sm:$0xff]
      %v6184 = vld [vmem:[%s4981 + $0x106] sm:$0xff]
      %v6185 = vld [vmem:[%s4981 + $0x10e] sm:$0xff]
      %v6186 = vld [vmem:[%s4981 + $0x126] sm:$0xff]
      %v6187 = vld [vmem:[%s4981 + $0x12e] sm:$0xff]
      %v6188 = vld [vmem:[%s4981 + $0x146] sm:$0xff]
      %v6189 = vld [vmem:[%s4981 + $0x14e] sm:$0xff]
      %v6190 = vld [vmem:[%s4981 + $0x166] sm:$0xff]
      %v6191 = vld [vmem:[%s4981 + $0x16e] sm:$0xff]
      %v6192 = vld [vmem:[%s4981 + $0x186] sm:$0xff]
      %v6193 = vld [vmem:[%s4981 + $0x18e] sm:$0xff]
      %v6194 = vld [vmem:[%s4981 + $0x1a6] sm:$0xff]
      %v6195 = vld [vmem:[%s4981 + $0x1ae] sm:$0xff]
      %v6196 = vld [vmem:[%s4981 + $0x1c6] sm:$0xff]
      %v6197 = vld [vmem:[%s4981 + $0x1ce] sm:$0xff]
      %v6198 = vld [vmem:[%s4981 + $0x1e6] sm:$0xff]
      %v6199 = vld [vmem:[%s4981 + $0x1ee] sm:$0xff]
      %v6200 = vpack.c.bf16 %v6169, %v6168
      %v6201 = vpack.c.bf16 %v6171, %v6170
      %v6202 = vpack.c.bf16 %v6173, %v6172
      %v6203 = vpack.c.bf16 %v6175, %v6174
      %v6204 = vpack.c.bf16 %v6177, %v6176
      %v6205 = vpack.c.bf16 %v6179, %v6178
      %v6206 = vpack.c.bf16 %v6181, %v6180
      %v6207 = vpack.c.bf16 %v6183, %v6182
      %v6208 = vpack.c.bf16 %v6185, %v6184
      %v6209 = vpack.c.bf16 %v6187, %v6186
      %v6210 = vpack.c.bf16 %v6189, %v6188
      %v6211 = vpack.c.bf16 %v6191, %v6190
      %v6212 = vpack.c.bf16 %v6193, %v6192
      %v6213 = vpack.c.bf16 %v6195, %v6194
      %v6214 = vpack.c.bf16 %v6197, %v6196
      %v6215 = vpack.c.bf16 %v6199, %v6198
      %6232 = vrot.lane.b32.xlu0 %v6200, 32
      %v6233 = vpop.permute.xlu0 %6232
      %6234 = vrot.lane.b32.xlu0 %v6201, 32
      %v6235 = vpop.permute.xlu0 %6234
      %6236 = vrot.lane.b32.xlu0 %v6202, 32
      %v6237 = vpop.permute.xlu0 %6236
      %6238 = vrot.lane.b32.xlu0 %v6203, 32
      %v6239 = vpop.permute.xlu0 %6238
      %6240 = vrot.lane.b32.xlu0 %v6204, 32
      %v6241 = vpop.permute.xlu0 %6240
      %6242 = vrot.lane.b32.xlu0 %v6205, 32
      %v6243 = vpop.permute.xlu0 %6242
      %6244 = vrot.lane.b32.xlu0 %v6206, 32
      %v6245 = vpop.permute.xlu0 %6244
      %6246 = vrot.lane.b32.xlu0 %v6207, 32
      %v6247 = vpop.permute.xlu0 %6246
      %6248 = vrot.lane.b32.xlu0 %v6208, 32
      %v6249 = vpop.permute.xlu0 %6248
      %6250 = vrot.lane.b32.xlu0 %v6209, 32
      %v6251 = vpop.permute.xlu0 %6250
      %6252 = vrot.lane.b32.xlu0 %v6210, 32
      %v6253 = vpop.permute.xlu0 %6252
      %6254 = vrot.lane.b32.xlu0 %v6211, 32
      %v6255 = vpop.permute.xlu0 %6254
      %6256 = vrot.lane.b32.xlu0 %v6212, 32
      %v6257 = vpop.permute.xlu0 %6256
      %6258 = vrot.lane.b32.xlu0 %v6213, 32
      %v6259 = vpop.permute.xlu0 %6258
      %6260 = vrot.lane.b32.xlu0 %v6214, 32
      %v6261 = vpop.permute.xlu0 %6260
      %6262 = vrot.lane.b32.xlu0 %v6215, 32
      %v6263 = vpop.permute.xlu0 %6262
      %6280 = vst.msk [vmem:[#allocation9 + $0x8] sm:$0xff] %vm2381, %v6233
      %6281 = vst.msk [vmem:[#allocation9 + $0x28] sm:$0xff] %vm2381, %v6235
      %6282 = vst.msk [vmem:[#allocation9 + $0x48] sm:$0xff] %vm2381, %v6237
      %6283 = vst.msk [vmem:[#allocation9 + $0x68] sm:$0xff] %vm2381, %v6239
      %6284 = vst.msk [vmem:[#allocation9 + $0x88] sm:$0xff] %vm2381, %v6241
      %6285 = vst.msk [vmem:[#allocation9 + $0xa8] sm:$0xff] %vm2381, %v6243
      %6286 = vst.msk [vmem:[#allocation9 + $0xc8] sm:$0xff] %vm2381, %v6245
      %6287 = vst.msk [vmem:[#allocation9 + $0xe8] sm:$0xff] %vm2381, %v6247
      %6288 = vst.msk [vmem:[#allocation9 + $0x108] sm:$0xff] %vm2381, %v6249
      %6289 = vst.msk [vmem:[#allocation9 + $0x128] sm:$0xff] %vm2381, %v6251
      %6290 = vst.msk [vmem:[#allocation9 + $0x148] sm:$0xff] %vm2381, %v6253
      %6291 = vst.msk [vmem:[#allocation9 + $0x168] sm:$0xff] %vm2381, %v6255
      %6292 = vst.msk [vmem:[#allocation9 + $0x188] sm:$0xff] %vm2381, %v6257
      %6293 = vst.msk [vmem:[#allocation9 + $0x1a8] sm:$0xff] %vm2381, %v6259
      %6294 = vst.msk [vmem:[#allocation9 + $0x1c8] sm:$0xff] %vm2381, %v6261
      %6295 = vst.msk [vmem:[#allocation9 + $0x1e8] sm:$0xff] %vm2381, %v6263
      %v6296 = vld [vmem:[%s4981 + $0x7] sm:$0xff]
      %v6297 = vld [vmem:[%s4981 + $0xf] sm:$0xff]
      %v6298 = vld [vmem:[%s4981 + $0x27] sm:$0xff]
      %v6299 = vld [vmem:[%s4981 + $0x2f] sm:$0xff]
      %v6300 = vld [vmem:[%s4981 + $0x47] sm:$0xff]
      %v6301 = vld [vmem:[%s4981 + $0x4f] sm:$0xff]
      %v6302 = vld [vmem:[%s4981 + $0x67] sm:$0xff]
      %v6303 = vld [vmem:[%s4981 + $0x6f] sm:$0xff]
      %v6304 = vld [vmem:[%s4981 + $0x87] sm:$0xff]
      %v6305 = vld [vmem:[%s4981 + $0x8f] sm:$0xff]
      %v6306 = vld [vmem:[%s4981 + $0xa7] sm:$0xff]
      %v6307 = vld [vmem:[%s4981 + $0xaf] sm:$0xff]
      %v6308 = vld [vmem:[%s4981 + $0xc7] sm:$0xff]
      %v6309 = vld [vmem:[%s4981 + $0xcf] sm:$0xff]
      %v6310 = vld [vmem:[%s4981 + $0xe7] sm:$0xff]
      %v6311 = vld [vmem:[%s4981 + $0xef] sm:$0xff]
      %v6312 = vld [vmem:[%s4981 + $0x107] sm:$0xff]
      %v6313 = vld [vmem:[%s4981 + $0x10f] sm:$0xff]
      %v6314 = vld [vmem:[%s4981 + $0x127] sm:$0xff]
      %v6315 = vld [vmem:[%s4981 + $0x12f] sm:$0xff]
      %v6316 = vld [vmem:[%s4981 + $0x147] sm:$0xff]
      %v6317 = vld [vmem:[%s4981 + $0x14f] sm:$0xff]
      %v6318 = vld [vmem:[%s4981 + $0x167] sm:$0xff]
      %v6319 = vld [vmem:[%s4981 + $0x16f] sm:$0xff]
      %v6320 = vld [vmem:[%s4981 + $0x187] sm:$0xff]
      %v6321 = vld [vmem:[%s4981 + $0x18f] sm:$0xff]
      %v6322 = vld [vmem:[%s4981 + $0x1a7] sm:$0xff]
      %v6323 = vld [vmem:[%s4981 + $0x1af] sm:$0xff]
      %v6324 = vld [vmem:[%s4981 + $0x1c7] sm:$0xff]
      %v6325 = vld [vmem:[%s4981 + $0x1cf] sm:$0xff]
      %v6326 = vld [vmem:[%s4981 + $0x1e7] sm:$0xff]
      %v6327 = vld [vmem:[%s4981 + $0x1ef] sm:$0xff]
      %v6328 = vpack.c.bf16 %v6297, %v6296
      %v6329 = vpack.c.bf16 %v6299, %v6298
      %v6330 = vpack.c.bf16 %v6301, %v6300
      %v6331 = vpack.c.bf16 %v6303, %v6302
      %v6332 = vpack.c.bf16 %v6305, %v6304
      %v6333 = vpack.c.bf16 %v6307, %v6306
      %v6334 = vpack.c.bf16 %v6309, %v6308
      %v6335 = vpack.c.bf16 %v6311, %v6310
      %v6336 = vpack.c.bf16 %v6313, %v6312
      %v6337 = vpack.c.bf16 %v6315, %v6314
      %v6338 = vpack.c.bf16 %v6317, %v6316
      %v6339 = vpack.c.bf16 %v6319, %v6318
      %v6340 = vpack.c.bf16 %v6321, %v6320
      %v6341 = vpack.c.bf16 %v6323, %v6322
      %v6342 = vpack.c.bf16 %v6325, %v6324
      %v6343 = vpack.c.bf16 %v6327, %v6326
      %6360 = vrot.lane.b32.xlu0 %v6328, 48
      %v6361 = vpop.permute.xlu0 %6360
      %6362 = vrot.lane.b32.xlu0 %v6329, 48
      %v6363 = vpop.permute.xlu0 %6362
      %6364 = vrot.lane.b32.xlu0 %v6330, 48
      %v6365 = vpop.permute.xlu0 %6364
      %6366 = vrot.lane.b32.xlu0 %v6331, 48
      %v6367 = vpop.permute.xlu0 %6366
      %6368 = vrot.lane.b32.xlu0 %v6332, 48
      %v6369 = vpop.permute.xlu0 %6368
      %6370 = vrot.lane.b32.xlu0 %v6333, 48
      %v6371 = vpop.permute.xlu0 %6370
      %6372 = vrot.lane.b32.xlu0 %v6334, 48
      %v6373 = vpop.permute.xlu0 %6372
      %6374 = vrot.lane.b32.xlu0 %v6335, 48
      %v6375 = vpop.permute.xlu0 %6374
      %6376 = vrot.lane.b32.xlu0 %v6336, 48
      %v6377 = vpop.permute.xlu0 %6376
      %6378 = vrot.lane.b32.xlu0 %v6337, 48
      %v6379 = vpop.permute.xlu0 %6378
      %6380 = vrot.lane.b32.xlu0 %v6338, 48
      %v6381 = vpop.permute.xlu0 %6380
      %6382 = vrot.lane.b32.xlu0 %v6339, 48
      %v6383 = vpop.permute.xlu0 %6382
      %6384 = vrot.lane.b32.xlu0 %v6340, 48
      %v6385 = vpop.permute.xlu0 %6384
      %6386 = vrot.lane.b32.xlu0 %v6341, 48
      %v6387 = vpop.permute.xlu0 %6386
      %6388 = vrot.lane.b32.xlu0 %v6342, 48
      %v6389 = vpop.permute.xlu0 %6388
      %6390 = vrot.lane.b32.xlu0 %v6343, 48
      %v6391 = vpop.permute.xlu0 %6390
      %6408 = vst.msk [vmem:[#allocation9 + $0x8] sm:$0xff] %vm2510, %v6361
      %6409 = vst.msk [vmem:[#allocation9 + $0x28] sm:$0xff] %vm2510, %v6363
      %6410 = vst.msk [vmem:[#allocation9 + $0x48] sm:$0xff] %vm2510, %v6365
      %6411 = vst.msk [vmem:[#allocation9 + $0x68] sm:$0xff] %vm2510, %v6367
      %6412 = vst.msk [vmem:[#allocation9 + $0x88] sm:$0xff] %vm2510, %v6369
      %6413 = vst.msk [vmem:[#allocation9 + $0xa8] sm:$0xff] %vm2510, %v6371
      %6414 = vst.msk [vmem:[#allocation9 + $0xc8] sm:$0xff] %vm2510, %v6373
      %6415 = vst.msk [vmem:[#allocation9 + $0xe8] sm:$0xff] %vm2510, %v6375
      %6416 = vst.msk [vmem:[#allocation9 + $0x108] sm:$0xff] %vm2510, %v6377
      %6417 = vst.msk [vmem:[#allocation9 + $0x128] sm:$0xff] %vm2510, %v6379
      %6418 = vst.msk [vmem:[#allocation9 + $0x148] sm:$0xff] %vm2510, %v6381
      %6419 = vst.msk [vmem:[#allocation9 + $0x168] sm:$0xff] %vm2510, %v6383
      %6420 = vst.msk [vmem:[#allocation9 + $0x188] sm:$0xff] %vm2510, %v6385
      %6421 = vst.msk [vmem:[#allocation9 + $0x1a8] sm:$0xff] %vm2510, %v6387
      %6422 = vst.msk [vmem:[#allocation9 + $0x1c8] sm:$0xff] %vm2510, %v6389
      %6423 = vst.msk [vmem:[#allocation9 + $0x1e8] sm:$0xff] %vm2510, %v6391
      %v6424 = vld [vmem:[%s4981 + $0x8] sm:$0xff]
      %v6425 = vld [vmem:[%s4981 + $0x10] sm:$0xff]
      %v6426 = vld [vmem:[%s4981 + $0x28] sm:$0xff]
      %v6427 = vld [vmem:[%s4981 + $0x30] sm:$0xff]
      %v6428 = vld [vmem:[%s4981 + $0x48] sm:$0xff]
      %v6429 = vld [vmem:[%s4981 + $0x50] sm:$0xff]
      %v6430 = vld [vmem:[%s4981 + $0x68] sm:$0xff]
      %v6431 = vld [vmem:[%s4981 + $0x70] sm:$0xff]
      %v6432 = vld [vmem:[%s4981 + $0x88] sm:$0xff]
      %v6433 = vld [vmem:[%s4981 + $0x90] sm:$0xff]
      %v6434 = vld [vmem:[%s4981 + $0xa8] sm:$0xff]
      %v6435 = vld [vmem:[%s4981 + $0xb0] sm:$0xff]
      %v6436 = vld [vmem:[%s4981 + $0xc8] sm:$0xff]
      %v6437 = vld [vmem:[%s4981 + $0xd0] sm:$0xff]
      %v6438 = vld [vmem:[%s4981 + $0xe8] sm:$0xff]
      %v6439 = vld [vmem:[%s4981 + $0xf0] sm:$0xff]
      %v6440 = vld [vmem:[%s4981 + $0x108] sm:$0xff]
      %v6441 = vld [vmem:[%s4981 + $0x110] sm:$0xff]
      %v6442 = vld [vmem:[%s4981 + $0x128] sm:$0xff]
      %v6443 = vld [vmem:[%s4981 + $0x130] sm:$0xff]
      %v6444 = vld [vmem:[%s4981 + $0x148] sm:$0xff]
      %v6445 = vld [vmem:[%s4981 + $0x150] sm:$0xff]
      %v6446 = vld [vmem:[%s4981 + $0x168] sm:$0xff]
      %v6447 = vld [vmem:[%s4981 + $0x170] sm:$0xff]
      %v6448 = vld [vmem:[%s4981 + $0x188] sm:$0xff]
      %v6449 = vld [vmem:[%s4981 + $0x190] sm:$0xff]
      %v6450 = vld [vmem:[%s4981 + $0x1a8] sm:$0xff]
      %v6451 = vld [vmem:[%s4981 + $0x1b0] sm:$0xff]
      %v6452 = vld [vmem:[%s4981 + $0x1c8] sm:$0xff]
      %v6453 = vld [vmem:[%s4981 + $0x1d0] sm:$0xff]
      %v6454 = vld [vmem:[%s4981 + $0x1e8] sm:$0xff]
      %v6455 = vld [vmem:[%s4981 + $0x1f0] sm:$0xff]
      %v6456 = vpack.c.bf16 %v6425, %v6424
      %v6457 = vpack.c.bf16 %v6427, %v6426
      %v6458 = vpack.c.bf16 %v6429, %v6428
      %v6459 = vpack.c.bf16 %v6431, %v6430
      %v6460 = vpack.c.bf16 %v6433, %v6432
      %v6461 = vpack.c.bf16 %v6435, %v6434
      %v6462 = vpack.c.bf16 %v6437, %v6436
      %v6463 = vpack.c.bf16 %v6439, %v6438
      %v6464 = vpack.c.bf16 %v6441, %v6440
      %v6465 = vpack.c.bf16 %v6443, %v6442
      %v6466 = vpack.c.bf16 %v6445, %v6444
      %v6467 = vpack.c.bf16 %v6447, %v6446
      %v6468 = vpack.c.bf16 %v6449, %v6448
      %v6469 = vpack.c.bf16 %v6451, %v6450
      %v6470 = vpack.c.bf16 %v6453, %v6452
      %v6471 = vpack.c.bf16 %v6455, %v6454
      %6488 = vrot.lane.b32.xlu0 %v6456, 64
      %v6489 = vpop.permute.xlu0 %6488
      %6490 = vrot.lane.b32.xlu0 %v6457, 64
      %v6491 = vpop.permute.xlu0 %6490
      %6492 = vrot.lane.b32.xlu0 %v6458, 64
      %v6493 = vpop.permute.xlu0 %6492
      %6494 = vrot.lane.b32.xlu0 %v6459, 64
      %v6495 = vpop.permute.xlu0 %6494
      %6496 = vrot.lane.b32.xlu0 %v6460, 64
      %v6497 = vpop.permute.xlu0 %6496
      %6498 = vrot.lane.b32.xlu0 %v6461, 64
      %v6499 = vpop.permute.xlu0 %6498
      %6500 = vrot.lane.b32.xlu0 %v6462, 64
      %v6501 = vpop.permute.xlu0 %6500
      %6502 = vrot.lane.b32.xlu0 %v6463, 64
      %v6503 = vpop.permute.xlu0 %6502
      %6504 = vrot.lane.b32.xlu0 %v6464, 64
      %v6505 = vpop.permute.xlu0 %6504
      %6506 = vrot.lane.b32.xlu0 %v6465, 64
      %v6507 = vpop.permute.xlu0 %6506
      %6508 = vrot.lane.b32.xlu0 %v6466, 64
      %v6509 = vpop.permute.xlu0 %6508
      %6510 = vrot.lane.b32.xlu0 %v6467, 64
      %v6511 = vpop.permute.xlu0 %6510
      %6512 = vrot.lane.b32.xlu0 %v6468, 64
      %v6513 = vpop.permute.xlu0 %6512
      %6514 = vrot.lane.b32.xlu0 %v6469, 64
      %v6515 = vpop.permute.xlu0 %6514
      %6516 = vrot.lane.b32.xlu0 %v6470, 64
      %v6517 = vpop.permute.xlu0 %6516
      %6518 = vrot.lane.b32.xlu0 %v6471, 64
      %v6519 = vpop.permute.xlu0 %6518
      %6536 = vst.msk [vmem:[#allocation9 + $0x8] sm:$0xff] %vm2639, %v6489
      %6537 = vst.msk [vmem:[#allocation9 + $0x28] sm:$0xff] %vm2639, %v6491
      %6538 = vst.msk [vmem:[#allocation9 + $0x48] sm:$0xff] %vm2639, %v6493
      %6539 = vst.msk [vmem:[#allocation9 + $0x68] sm:$0xff] %vm2639, %v6495
      %6540 = vst.msk [vmem:[#allocation9 + $0x88] sm:$0xff] %vm2639, %v6497
      %6541 = vst.msk [vmem:[#allocation9 + $0xa8] sm:$0xff] %vm2639, %v6499
      %6542 = vst.msk [vmem:[#allocation9 + $0xc8] sm:$0xff] %vm2639, %v6501
      %6543 = vst.msk [vmem:[#allocation9 + $0xe8] sm:$0xff] %vm2639, %v6503
      %6544 = vst.msk [vmem:[#allocation9 + $0x108] sm:$0xff] %vm2639, %v6505
      %6545 = vst.msk [vmem:[#allocation9 + $0x128] sm:$0xff] %vm2639, %v6507
      %6546 = vst.msk [vmem:[#allocation9 + $0x148] sm:$0xff] %vm2639, %v6509
      %6547 = vst.msk [vmem:[#allocation9 + $0x168] sm:$0xff] %vm2639, %v6511
      %6548 = vst.msk [vmem:[#allocation9 + $0x188] sm:$0xff] %vm2639, %v6513
      %6549 = vst.msk [vmem:[#allocation9 + $0x1a8] sm:$0xff] %vm2639, %v6515
      %6550 = vst.msk [vmem:[#allocation9 + $0x1c8] sm:$0xff] %vm2639, %v6517
      %6551 = vst.msk [vmem:[#allocation9 + $0x1e8] sm:$0xff] %vm2639, %v6519
      %v6552 = vld [vmem:[%s4981 + $0x9] sm:$0xff]
      %v6553 = vld [vmem:[%s4981 + $0x11] sm:$0xff]
      %v6554 = vld [vmem:[%s4981 + $0x29] sm:$0xff]
      %v6555 = vld [vmem:[%s4981 + $0x31] sm:$0xff]
      %v6556 = vld [vmem:[%s4981 + $0x49] sm:$0xff]
      %v6557 = vld [vmem:[%s4981 + $0x51] sm:$0xff]
      %v6558 = vld [vmem:[%s4981 + $0x69] sm:$0xff]
      %v6559 = vld [vmem:[%s4981 + $0x71] sm:$0xff]
      %v6560 = vld [vmem:[%s4981 + $0x89] sm:$0xff]
      %v6561 = vld [vmem:[%s4981 + $0x91] sm:$0xff]
      %v6562 = vld [vmem:[%s4981 + $0xa9] sm:$0xff]
      %v6563 = vld [vmem:[%s4981 + $0xb1] sm:$0xff]
      %v6564 = vld [vmem:[%s4981 + $0xc9] sm:$0xff]
      %v6565 = vld [vmem:[%s4981 + $0xd1] sm:$0xff]
      %v6566 = vld [vmem:[%s4981 + $0xe9] sm:$0xff]
      %v6567 = vld [vmem:[%s4981 + $0xf1] sm:$0xff]
      %v6568 = vld [vmem:[%s4981 + $0x109] sm:$0xff]
      %v6569 = vld [vmem:[%s4981 + $0x111] sm:$0xff]
      %v6570 = vld [vmem:[%s4981 + $0x129] sm:$0xff]
      %v6571 = vld [vmem:[%s4981 + $0x131] sm:$0xff]
      %v6572 = vld [vmem:[%s4981 + $0x149] sm:$0xff]
      %v6573 = vld [vmem:[%s4981 + $0x151] sm:$0xff]
      %v6574 = vld [vmem:[%s4981 + $0x169] sm:$0xff]
      %v6575 = vld [vmem:[%s4981 + $0x171] sm:$0xff]
      %v6576 = vld [vmem:[%s4981 + $0x189] sm:$0xff]
      %v6577 = vld [vmem:[%s4981 + $0x191] sm:$0xff]
      %v6578 = vld [vmem:[%s4981 + $0x1a9] sm:$0xff]
      %v6579 = vld [vmem:[%s4981 + $0x1b1] sm:$0xff]
      %v6580 = vld [vmem:[%s4981 + $0x1c9] sm:$0xff]
      %v6581 = vld [vmem:[%s4981 + $0x1d1] sm:$0xff]
      %v6582 = vld [vmem:[%s4981 + $0x1e9] sm:$0xff]
      %v6583 = vld [vmem:[%s4981 + $0x1f1] sm:$0xff]
      %v6584 = vpack.c.bf16 %v6553, %v6552
      %v6585 = vpack.c.bf16 %v6555, %v6554
      %v6586 = vpack.c.bf16 %v6557, %v6556
      %v6587 = vpack.c.bf16 %v6559, %v6558
      %v6588 = vpack.c.bf16 %v6561, %v6560
      %v6589 = vpack.c.bf16 %v6563, %v6562
      %v6590 = vpack.c.bf16 %v6565, %v6564
      %v6591 = vpack.c.bf16 %v6567, %v6566
      %v6592 = vpack.c.bf16 %v6569, %v6568
      %v6593 = vpack.c.bf16 %v6571, %v6570
      %v6594 = vpack.c.bf16 %v6573, %v6572
      %v6595 = vpack.c.bf16 %v6575, %v6574
      %v6596 = vpack.c.bf16 %v6577, %v6576
      %v6597 = vpack.c.bf16 %v6579, %v6578
      %v6598 = vpack.c.bf16 %v6581, %v6580
      %v6599 = vpack.c.bf16 %v6583, %v6582
      %6616 = vrot.lane.b32.xlu0 %v6584, 80
      %v6617 = vpop.permute.xlu0 %6616
      %6618 = vrot.lane.b32.xlu0 %v6585, 80
      %v6619 = vpop.permute.xlu0 %6618
      %6620 = vrot.lane.b32.xlu0 %v6586, 80
      %v6621 = vpop.permute.xlu0 %6620
      %6622 = vrot.lane.b32.xlu0 %v6587, 80
      %v6623 = vpop.permute.xlu0 %6622
      %6624 = vrot.lane.b32.xlu0 %v6588, 80
      %v6625 = vpop.permute.xlu0 %6624
      %6626 = vrot.lane.b32.xlu0 %v6589, 80
      %v6627 = vpop.permute.xlu0 %6626
      %6628 = vrot.lane.b32.xlu0 %v6590, 80
      %v6629 = vpop.permute.xlu0 %6628
      %6630 = vrot.lane.b32.xlu0 %v6591, 80
      %v6631 = vpop.permute.xlu0 %6630
      %6632 = vrot.lane.b32.xlu0 %v6592, 80
      %v6633 = vpop.permute.xlu0 %6632
      %6634 = vrot.lane.b32.xlu0 %v6593, 80
      %v6635 = vpop.permute.xlu0 %6634
      %6636 = vrot.lane.b32.xlu0 %v6594, 80
      %v6637 = vpop.permute.xlu0 %6636
      %6638 = vrot.lane.b32.xlu0 %v6595, 80
      %v6639 = vpop.permute.xlu0 %6638
      %6640 = vrot.lane.b32.xlu0 %v6596, 80
      %v6641 = vpop.permute.xlu0 %6640
      %6642 = vrot.lane.b32.xlu0 %v6597, 80
      %v6643 = vpop.permute.xlu0 %6642
      %6644 = vrot.lane.b32.xlu0 %v6598, 80
      %v6645 = vpop.permute.xlu0 %6644
      %6646 = vrot.lane.b32.xlu0 %v6599, 80
      %v6647 = vpop.permute.xlu0 %6646
      %6664 = vst.msk [vmem:[#allocation9 + $0x8] sm:$0xff] %vm2768, %v6617
      %6665 = vst.msk [vmem:[#allocation9 + $0x28] sm:$0xff] %vm2768, %v6619
      %6666 = vst.msk [vmem:[#allocation9 + $0x48] sm:$0xff] %vm2768, %v6621
      %6667 = vst.msk [vmem:[#allocation9 + $0x68] sm:$0xff] %vm2768, %v6623
      %6668 = vst.msk [vmem:[#allocation9 + $0x88] sm:$0xff] %vm2768, %v6625
      %6669 = vst.msk [vmem:[#allocation9 + $0xa8] sm:$0xff] %vm2768, %v6627
      %6670 = vst.msk [vmem:[#allocation9 + $0xc8] sm:$0xff] %vm2768, %v6629
      %6671 = vst.msk [vmem:[#allocation9 + $0xe8] sm:$0xff] %vm2768, %v6631
      %6672 = vst.msk [vmem:[#allocation9 + $0x108] sm:$0xff] %vm2768, %v6633
      %6673 = vst.msk [vmem:[#allocation9 + $0x128] sm:$0xff] %vm2768, %v6635
      %6674 = vst.msk [vmem:[#allocation9 + $0x148] sm:$0xff] %vm2768, %v6637
      %6675 = vst.msk [vmem:[#allocation9 + $0x168] sm:$0xff] %vm2768, %v6639
      %6676 = vst.msk [vmem:[#allocation9 + $0x188] sm:$0xff] %vm2768, %v6641
      %6677 = vst.msk [vmem:[#allocation9 + $0x1a8] sm:$0xff] %vm2768, %v6643
      %6678 = vst.msk [vmem:[#allocation9 + $0x1c8] sm:$0xff] %vm2768, %v6645
      %6679 = vst.msk [vmem:[#allocation9 + $0x1e8] sm:$0xff] %vm2768, %v6647
      %v6680 = vld [vmem:[%s4981 + $0xa] sm:$0xff]
      %v6681 = vld [vmem:[%s4981 + $0x12] sm:$0xff]
      %v6682 = vld [vmem:[%s4981 + $0x2a] sm:$0xff]
      %v6683 = vld [vmem:[%s4981 + $0x32] sm:$0xff]
      %v6684 = vld [vmem:[%s4981 + $0x4a] sm:$0xff]
      %v6685 = vld [vmem:[%s4981 + $0x52] sm:$0xff]
      %v6686 = vld [vmem:[%s4981 + $0x6a] sm:$0xff]
      %v6687 = vld [vmem:[%s4981 + $0x72] sm:$0xff]
      %v6688 = vld [vmem:[%s4981 + $0x8a] sm:$0xff]
      %v6689 = vld [vmem:[%s4981 + $0x92] sm:$0xff]
      %v6690 = vld [vmem:[%s4981 + $0xaa] sm:$0xff]
      %v6691 = vld [vmem:[%s4981 + $0xb2] sm:$0xff]
      %v6692 = vld [vmem:[%s4981 + $0xca] sm:$0xff]
      %v6693 = vld [vmem:[%s4981 + $0xd2] sm:$0xff]
      %v6694 = vld [vmem:[%s4981 + $0xea] sm:$0xff]
      %v6695 = vld [vmem:[%s4981 + $0xf2] sm:$0xff]
      %v6696 = vld [vmem:[%s4981 + $0x10a] sm:$0xff]
      %v6697 = vld [vmem:[%s4981 + $0x112] sm:$0xff]
      %v6698 = vld [vmem:[%s4981 + $0x12a] sm:$0xff]
      %v6699 = vld [vmem:[%s4981 + $0x132] sm:$0xff]
      %v6700 = vld [vmem:[%s4981 + $0x14a] sm:$0xff]
      %v6701 = vld [vmem:[%s4981 + $0x152] sm:$0xff]
      %v6702 = vld [vmem:[%s4981 + $0x16a] sm:$0xff]
      %v6703 = vld [vmem:[%s4981 + $0x172] sm:$0xff]
      %v6704 = vld [vmem:[%s4981 + $0x18a] sm:$0xff]
      %v6705 = vld [vmem:[%s4981 + $0x192] sm:$0xff]
      %v6706 = vld [vmem:[%s4981 + $0x1aa] sm:$0xff]
      %v6707 = vld [vmem:[%s4981 + $0x1b2] sm:$0xff]
      %v6708 = vld [vmem:[%s4981 + $0x1ca] sm:$0xff]
      %v6709 = vld [vmem:[%s4981 + $0x1d2] sm:$0xff]
      %v6710 = vld [vmem:[%s4981 + $0x1ea] sm:$0xff]
      %v6711 = vld [vmem:[%s4981 + $0x1f2] sm:$0xff]
      %v6712 = vpack.c.bf16 %v6681, %v6680
      %v6713 = vpack.c.bf16 %v6683, %v6682
      %v6714 = vpack.c.bf16 %v6685, %v6684
      %v6715 = vpack.c.bf16 %v6687, %v6686
      %v6716 = vpack.c.bf16 %v6689, %v6688
      %v6717 = vpack.c.bf16 %v6691, %v6690
      %v6718 = vpack.c.bf16 %v6693, %v6692
      %v6719 = vpack.c.bf16 %v6695, %v6694
      %v6720 = vpack.c.bf16 %v6697, %v6696
      %v6721 = vpack.c.bf16 %v6699, %v6698
      %v6722 = vpack.c.bf16 %v6701, %v6700
      %v6723 = vpack.c.bf16 %v6703, %v6702
      %v6724 = vpack.c.bf16 %v6705, %v6704
      %v6725 = vpack.c.bf16 %v6707, %v6706
      %v6726 = vpack.c.bf16 %v6709, %v6708
      %v6727 = vpack.c.bf16 %v6711, %v6710
      %6744 = vrot.lane.b32.xlu0 %v6712, 96
      %v6745 = vpop.permute.xlu0 %6744
      %6746 = vrot.lane.b32.xlu0 %v6713, 96
      %v6747 = vpop.permute.xlu0 %6746
      %6748 = vrot.lane.b32.xlu0 %v6714, 96
      %v6749 = vpop.permute.xlu0 %6748
      %6750 = vrot.lane.b32.xlu0 %v6715, 96
      %v6751 = vpop.permute.xlu0 %6750
      %6752 = vrot.lane.b32.xlu0 %v6716, 96
      %v6753 = vpop.permute.xlu0 %6752
      %6754 = vrot.lane.b32.xlu0 %v6717, 96
      %v6755 = vpop.permute.xlu0 %6754
      %6756 = vrot.lane.b32.xlu0 %v6718, 96
      %v6757 = vpop.permute.xlu0 %6756
      %6758 = vrot.lane.b32.xlu0 %v6719, 96
      %v6759 = vpop.permute.xlu0 %6758
      %6760 = vrot.lane.b32.xlu0 %v6720, 96
      %v6761 = vpop.permute.xlu0 %6760
      %6762 = vrot.lane.b32.xlu0 %v6721, 96
      %v6763 = vpop.permute.xlu0 %6762
      %6764 = vrot.lane.b32.xlu0 %v6722, 96
      %v6765 = vpop.permute.xlu0 %6764
      %6766 = vrot.lane.b32.xlu0 %v6723, 96
      %v6767 = vpop.permute.xlu0 %6766
      %6768 = vrot.lane.b32.xlu0 %v6724, 96
      %v6769 = vpop.permute.xlu0 %6768
      %6770 = vrot.lane.b32.xlu0 %v6725, 96
      %v6771 = vpop.permute.xlu0 %6770
      %6772 = vrot.lane.b32.xlu0 %v6726, 96
      %v6773 = vpop.permute.xlu0 %6772
      %6774 = vrot.lane.b32.xlu0 %v6727, 96
      %v6775 = vpop.permute.xlu0 %6774
      %6792 = vst.msk [vmem:[#allocation9 + $0x8] sm:$0xff] %vm2898, %v6745
      %6793 = vst.msk [vmem:[#allocation9 + $0x28] sm:$0xff] %vm2898, %v6747
      %6794 = vst.msk [vmem:[#allocation9 + $0x48] sm:$0xff] %vm2898, %v6749
      %6795 = vst.msk [vmem:[#allocation9 + $0x68] sm:$0xff] %vm2898, %v6751
      %6796 = vst.msk [vmem:[#allocation9 + $0x88] sm:$0xff] %vm2898, %v6753
      %6797 = vst.msk [vmem:[#allocation9 + $0xa8] sm:$0xff] %vm2898, %v6755
      %6798 = vst.msk [vmem:[#allocation9 + $0xc8] sm:$0xff] %vm2898, %v6757
      %6799 = vst.msk [vmem:[#allocation9 + $0xe8] sm:$0xff] %vm2898, %v6759
      %6800 = vst.msk [vmem:[#allocation9 + $0x108] sm:$0xff] %vm2898, %v6761
      %6801 = vst.msk [vmem:[#allocation9 + $0x128] sm:$0xff] %vm2898, %v6763
      %6802 = vst.msk [vmem:[#allocation9 + $0x148] sm:$0xff] %vm2898, %v6765
      %6803 = vst.msk [vmem:[#allocation9 + $0x168] sm:$0xff] %vm2898, %v6767
      %6804 = vst.msk [vmem:[#allocation9 + $0x188] sm:$0xff] %vm2898, %v6769
      %6805 = vst.msk [vmem:[#allocation9 + $0x1a8] sm:$0xff] %vm2898, %v6771
      %6806 = vst.msk [vmem:[#allocation9 + $0x1c8] sm:$0xff] %vm2898, %v6773
      %6807 = vst.msk [vmem:[#allocation9 + $0x1e8] sm:$0xff] %vm2898, %v6775
      %s6808 = scalar_lea.vmem [#allocation5], 288
      %v6809 = vld [vmem:[%s6808 + $0x6] sm:$0xff]
      %v6810 = vld [vmem:[%s6808 + $0xe] sm:$0xff]
      %v6811 = vld [vmem:[%s6808 + $0x26] sm:$0xff]
      %v6812 = vld [vmem:[%s6808 + $0x2e] sm:$0xff]
      %v6813 = vld [vmem:[%s6808 + $0x46] sm:$0xff]
      %v6814 = vld [vmem:[%s6808 + $0x4e] sm:$0xff]
      %v6815 = vld [vmem:[%s6808 + $0x66] sm:$0xff]
      %v6816 = vld [vmem:[%s6808 + $0x6e] sm:$0xff]
      %v6817 = vld [vmem:[%s6808 + $0x86] sm:$0xff]
      %v6818 = vld [vmem:[%s6808 + $0x8e] sm:$0xff]
      %v6819 = vld [vmem:[%s6808 + $0xa6] sm:$0xff]
      %v6820 = vld [vmem:[%s6808 + $0xae] sm:$0xff]
      %v6821 = vld [vmem:[%s6808 + $0xc6] sm:$0xff]
      %v6822 = vld [vmem:[%s6808 + $0xce] sm:$0xff]
      %v6823 = vld [vmem:[%s6808 + $0xe6] sm:$0xff]
      %v6824 = vld [vmem:[%s6808 + $0xee] sm:$0xff]
      %v6825 = vld [vmem:[%s6808 + $0x106] sm:$0xff]
      %v6826 = vld [vmem:[%s6808 + $0x10e] sm:$0xff]
      %v6827 = vld [vmem:[%s6808 + $0x126] sm:$0xff]
      %v6828 = vld [vmem:[%s6808 + $0x12e] sm:$0xff]
      %v6829 = vld [vmem:[%s6808 + $0x146] sm:$0xff]
      %v6830 = vld [vmem:[%s6808 + $0x14e] sm:$0xff]
      %v6831 = vld [vmem:[%s6808 + $0x166] sm:$0xff]
      %v6832 = vld [vmem:[%s6808 + $0x16e] sm:$0xff]
      %v6833 = vld [vmem:[%s6808 + $0x186] sm:$0xff]
      %v6834 = vld [vmem:[%s6808 + $0x18e] sm:$0xff]
      %v6835 = vld [vmem:[%s6808 + $0x1a6] sm:$0xff]
      %v6836 = vld [vmem:[%s6808 + $0x1ae] sm:$0xff]
      %v6837 = vld [vmem:[%s6808 + $0x1c6] sm:$0xff]
      %v6838 = vld [vmem:[%s6808 + $0x1ce] sm:$0xff]
      %v6839 = vld [vmem:[%s6808 + $0x1e6] sm:$0xff]
      %v6840 = vld [vmem:[%s6808 + $0x1ee] sm:$0xff]
      %v6841 = vpack.c.bf16 %v6810, %v6809
      %v6842 = vpack.c.bf16 %v6812, %v6811
      %v6843 = vpack.c.bf16 %v6814, %v6813
      %v6844 = vpack.c.bf16 %v6816, %v6815
      %v6845 = vpack.c.bf16 %v6818, %v6817
      %v6846 = vpack.c.bf16 %v6820, %v6819
      %v6847 = vpack.c.bf16 %v6822, %v6821
      %v6848 = vpack.c.bf16 %v6824, %v6823
      %v6849 = vpack.c.bf16 %v6826, %v6825
      %v6850 = vpack.c.bf16 %v6828, %v6827
      %v6851 = vpack.c.bf16 %v6830, %v6829
      %v6852 = vpack.c.bf16 %v6832, %v6831
      %v6853 = vpack.c.bf16 %v6834, %v6833
      %v6854 = vpack.c.bf16 %v6836, %v6835
      %v6855 = vpack.c.bf16 %v6838, %v6837
      %v6856 = vpack.c.bf16 %v6840, %v6839
      %6873 = vrot.lane.b32.xlu0 %v6841, 112
      %v6874 = vpop.permute.xlu0 %6873
      %6875 = vrot.lane.b32.xlu0 %v6842, 112
      %v6876 = vpop.permute.xlu0 %6875
      %6877 = vrot.lane.b32.xlu0 %v6843, 112
      %v6878 = vpop.permute.xlu0 %6877
      %6879 = vrot.lane.b32.xlu0 %v6844, 112
      %v6880 = vpop.permute.xlu0 %6879
      %6881 = vrot.lane.b32.xlu0 %v6845, 112
      %v6882 = vpop.permute.xlu0 %6881
      %6883 = vrot.lane.b32.xlu0 %v6846, 112
      %v6884 = vpop.permute.xlu0 %6883
      %6885 = vrot.lane.b32.xlu0 %v6847, 112
      %v6886 = vpop.permute.xlu0 %6885
      %6887 = vrot.lane.b32.xlu0 %v6848, 112
      %v6888 = vpop.permute.xlu0 %6887
      %6889 = vrot.lane.b32.xlu0 %v6849, 112
      %v6890 = vpop.permute.xlu0 %6889
      %6891 = vrot.lane.b32.xlu0 %v6850, 112
      %v6892 = vpop.permute.xlu0 %6891
      %6893 = vrot.lane.b32.xlu0 %v6851, 112
      %v6894 = vpop.permute.xlu0 %6893
      %6895 = vrot.lane.b32.xlu0 %v6852, 112
      %v6896 = vpop.permute.xlu0 %6895
      %6897 = vrot.lane.b32.xlu0 %v6853, 112
      %v6898 = vpop.permute.xlu0 %6897
      %6899 = vrot.lane.b32.xlu0 %v6854, 112
      %v6900 = vpop.permute.xlu0 %6899
      %6901 = vrot.lane.b32.xlu0 %v6855, 112
      %v6902 = vpop.permute.xlu0 %6901
      %6903 = vrot.lane.b32.xlu0 %v6856, 112
      %v6904 = vpop.permute.xlu0 %6903
      %6921 = vst.msk [vmem:[#allocation9 + $0x8] sm:$0xff] %vm3027, %v6874
      %6922 = vst.msk [vmem:[#allocation9 + $0x28] sm:$0xff] %vm3027, %v6876
      %6923 = vst.msk [vmem:[#allocation9 + $0x48] sm:$0xff] %vm3027, %v6878
      %6924 = vst.msk [vmem:[#allocation9 + $0x68] sm:$0xff] %vm3027, %v6880
      %6925 = vst.msk [vmem:[#allocation9 + $0x88] sm:$0xff] %vm3027, %v6882
      %6926 = vst.msk [vmem:[#allocation9 + $0xa8] sm:$0xff] %vm3027, %v6884
      %6927 = vst.msk [vmem:[#allocation9 + $0xc8] sm:$0xff] %vm3027, %v6886
      %6928 = vst.msk [vmem:[#allocation9 + $0xe8] sm:$0xff] %vm3027, %v6888
      %6929 = vst.msk [vmem:[#allocation9 + $0x108] sm:$0xff] %vm3027, %v6890
      %6930 = vst.msk [vmem:[#allocation9 + $0x128] sm:$0xff] %vm3027, %v6892
      %6931 = vst.msk [vmem:[#allocation9 + $0x148] sm:$0xff] %vm3027, %v6894
      %6932 = vst.msk [vmem:[#allocation9 + $0x168] sm:$0xff] %vm3027, %v6896
      %6933 = vst.msk [vmem:[#allocation9 + $0x188] sm:$0xff] %vm3027, %v6898
      %6934 = vst.msk [vmem:[#allocation9 + $0x1a8] sm:$0xff] %vm3027, %v6900
      %6935 = vst.msk [vmem:[#allocation9 + $0x1c8] sm:$0xff] %vm3027, %v6902
      %6936 = vst.msk [vmem:[#allocation9 + $0x1e8] sm:$0xff] %vm3027, %v6904
      %v6937 = vld [vmem:[%s6808 + $0x7] sm:$0xff]
      %v6938 = vld [vmem:[%s6808 + $0xf] sm:$0xff]
      %v6939 = vld [vmem:[%s6808 + $0x27] sm:$0xff]
      %v6940 = vld [vmem:[%s6808 + $0x2f] sm:$0xff]
      %v6941 = vld [vmem:[%s6808 + $0x47] sm:$0xff]
      %v6942 = vld [vmem:[%s6808 + $0x4f] sm:$0xff]
      %v6943 = vld [vmem:[%s6808 + $0x67] sm:$0xff]
      %v6944 = vld [vmem:[%s6808 + $0x6f] sm:$0xff]
      %v6945 = vld [vmem:[%s6808 + $0x87] sm:$0xff]
      %v6946 = vld [vmem:[%s6808 + $0x8f] sm:$0xff]
      %v6947 = vld [vmem:[%s6808 + $0xa7] sm:$0xff]
      %v6948 = vld [vmem:[%s6808 + $0xaf] sm:$0xff]
      %v6949 = vld [vmem:[%s6808 + $0xc7] sm:$0xff]
      %v6950 = vld [vmem:[%s6808 + $0xcf] sm:$0xff]
      %v6951 = vld [vmem:[%s6808 + $0xe7] sm:$0xff]
      %v6952 = vld [vmem:[%s6808 + $0xef] sm:$0xff]
      %v6953 = vld [vmem:[%s6808 + $0x107] sm:$0xff]
      %v6954 = vld [vmem:[%s6808 + $0x10f] sm:$0xff]
      %v6955 = vld [vmem:[%s6808 + $0x127] sm:$0xff]
      %v6956 = vld [vmem:[%s6808 + $0x12f] sm:$0xff]
      %v6957 = vld [vmem:[%s6808 + $0x147] sm:$0xff]
      %v6958 = vld [vmem:[%s6808 + $0x14f] sm:$0xff]
      %v6959 = vld [vmem:[%s6808 + $0x167] sm:$0xff]
      %v6960 = vld [vmem:[%s6808 + $0x16f] sm:$0xff]
      %v6961 = vld [vmem:[%s6808 + $0x187] sm:$0xff]
      %v6962 = vld [vmem:[%s6808 + $0x18f] sm:$0xff]
      %v6963 = vld [vmem:[%s6808 + $0x1a7] sm:$0xff]
      %v6964 = vld [vmem:[%s6808 + $0x1af] sm:$0xff]
      %v6965 = vld [vmem:[%s6808 + $0x1c7] sm:$0xff]
      %v6966 = vld [vmem:[%s6808 + $0x1cf] sm:$0xff]
      %v6967 = vld [vmem:[%s6808 + $0x1e7] sm:$0xff]
      %v6968 = vld [vmem:[%s6808 + $0x1ef] sm:$0xff]
      %v6969 = vpack.c.bf16 %v6938, %v6937
      %v6970 = vpack.c.bf16 %v6940, %v6939
      %v6971 = vpack.c.bf16 %v6942, %v6941
      %v6972 = vpack.c.bf16 %v6944, %v6943
      %v6973 = vpack.c.bf16 %v6946, %v6945
      %v6974 = vpack.c.bf16 %v6948, %v6947
      %v6975 = vpack.c.bf16 %v6950, %v6949
      %v6976 = vpack.c.bf16 %v6952, %v6951
      %v6977 = vpack.c.bf16 %v6954, %v6953
      %v6978 = vpack.c.bf16 %v6956, %v6955
      %v6979 = vpack.c.bf16 %v6958, %v6957
      %v6980 = vpack.c.bf16 %v6960, %v6959
      %v6981 = vpack.c.bf16 %v6962, %v6961
      %v6982 = vpack.c.bf16 %v6964, %v6963
      %v6983 = vpack.c.bf16 %v6966, %v6965
      %v6984 = vpack.c.bf16 %v6968, %v6967
      %6985 = vst.msk [vmem:[#allocation9 + $0x10] sm:$0xff] %vm1940, %v6969
      %6986 = vst.msk [vmem:[#allocation9 + $0x30] sm:$0xff] %vm1940, %v6970
      %6987 = vst.msk [vmem:[#allocation9 + $0x50] sm:$0xff] %vm1940, %v6971
      %6988 = vst.msk [vmem:[#allocation9 + $0x70] sm:$0xff] %vm1940, %v6972
      %6989 = vst.msk [vmem:[#allocation9 + $0x90] sm:$0xff] %vm1940, %v6973
      %6990 = vst.msk [vmem:[#allocation9 + $0xb0] sm:$0xff] %vm1940, %v6974
      %6991 = vst.msk [vmem:[#allocation9 + $0xd0] sm:$0xff] %vm1940, %v6975
      %6992 = vst.msk [vmem:[#allocation9 + $0xf0] sm:$0xff] %vm1940, %v6976
      %6993 = vst.msk [vmem:[#allocation9 + $0x110] sm:$0xff] %vm1940, %v6977
      %6994 = vst.msk [vmem:[#allocation9 + $0x130] sm:$0xff] %vm1940, %v6978
      %6995 = vst.msk [vmem:[#allocation9 + $0x150] sm:$0xff] %vm1940, %v6979
      %6996 = vst.msk [vmem:[#allocation9 + $0x170] sm:$0xff] %vm1940, %v6980
      %6997 = vst.msk [vmem:[#allocation9 + $0x190] sm:$0xff] %vm1940, %v6981
      %6998 = vst.msk [vmem:[#allocation9 + $0x1b0] sm:$0xff] %vm1940, %v6982
      %6999 = vst.msk [vmem:[#allocation9 + $0x1d0] sm:$0xff] %vm1940, %v6983
      %7000 = vst.msk [vmem:[#allocation9 + $0x1f0] sm:$0xff] %vm1940, %v6984
      %v7001 = vld [vmem:[%s6808 + $0x8] sm:$0xff]
      %v7002 = vld [vmem:[%s6808 + $0x10] sm:$0xff]
      %v7003 = vld [vmem:[%s6808 + $0x28] sm:$0xff]
      %v7004 = vld [vmem:[%s6808 + $0x30] sm:$0xff]
      %v7005 = vld [vmem:[%s6808 + $0x48] sm:$0xff]
      %v7006 = vld [vmem:[%s6808 + $0x50] sm:$0xff]
      %v7007 = vld [vmem:[%s6808 + $0x68] sm:$0xff]
      %v7008 = vld [vmem:[%s6808 + $0x70] sm:$0xff]
      %v7009 = vld [vmem:[%s6808 + $0x88] sm:$0xff]
      %v7010 = vld [vmem:[%s6808 + $0x90] sm:$0xff]
      %v7011 = vld [vmem:[%s6808 + $0xa8] sm:$0xff]
      %v7012 = vld [vmem:[%s6808 + $0xb0] sm:$0xff]
      %v7013 = vld [vmem:[%s6808 + $0xc8] sm:$0xff]
      %v7014 = vld [vmem:[%s6808 + $0xd0] sm:$0xff]
      %v7015 = vld [vmem:[%s6808 + $0xe8] sm:$0xff]
      %v7016 = vld [vmem:[%s6808 + $0xf0] sm:$0xff]
      %v7017 = vld [vmem:[%s6808 + $0x108] sm:$0xff]
      %v7018 = vld [vmem:[%s6808 + $0x110] sm:$0xff]
      %v7019 = vld [vmem:[%s6808 + $0x128] sm:$0xff]
      %v7020 = vld [vmem:[%s6808 + $0x130] sm:$0xff]
      %v7021 = vld [vmem:[%s6808 + $0x148] sm:$0xff]
      %v7022 = vld [vmem:[%s6808 + $0x150] sm:$0xff]
      %v7023 = vld [vmem:[%s6808 + $0x168] sm:$0xff]
      %v7024 = vld [vmem:[%s6808 + $0x170] sm:$0xff]
      %v7025 = vld [vmem:[%s6808 + $0x188] sm:$0xff]
      %v7026 = vld [vmem:[%s6808 + $0x190] sm:$0xff]
      %v7027 = vld [vmem:[%s6808 + $0x1a8] sm:$0xff]
      %v7028 = vld [vmem:[%s6808 + $0x1b0] sm:$0xff]
      %v7029 = vld [vmem:[%s6808 + $0x1c8] sm:$0xff]
      %v7030 = vld [vmem:[%s6808 + $0x1d0] sm:$0xff]
      %v7031 = vld [vmem:[%s6808 + $0x1e8] sm:$0xff]
      %v7032 = vld [vmem:[%s6808 + $0x1f0] sm:$0xff]
      %v7033 = vpack.c.bf16 %v7002, %v7001
      %v7034 = vpack.c.bf16 %v7004, %v7003
      %v7035 = vpack.c.bf16 %v7006, %v7005
      %v7036 = vpack.c.bf16 %v7008, %v7007
      %v7037 = vpack.c.bf16 %v7010, %v7009
      %v7038 = vpack.c.bf16 %v7012, %v7011
      %v7039 = vpack.c.bf16 %v7014, %v7013
      %v7040 = vpack.c.bf16 %v7016, %v7015
      %v7041 = vpack.c.bf16 %v7018, %v7017
      %v7042 = vpack.c.bf16 %v7020, %v7019
      %v7043 = vpack.c.bf16 %v7022, %v7021
      %v7044 = vpack.c.bf16 %v7024, %v7023
      %v7045 = vpack.c.bf16 %v7026, %v7025
      %v7046 = vpack.c.bf16 %v7028, %v7027
      %v7047 = vpack.c.bf16 %v7030, %v7029
      %v7048 = vpack.c.bf16 %v7032, %v7031
      %7065 = vrot.lane.b32.xlu0 %v7033, 16
      %v7066 = vpop.permute.xlu0 %7065
      %7067 = vrot.lane.b32.xlu0 %v7034, 16
      %v7068 = vpop.permute.xlu0 %7067
      %7069 = vrot.lane.b32.xlu0 %v7035, 16
      %v7070 = vpop.permute.xlu0 %7069
      %7071 = vrot.lane.b32.xlu0 %v7036, 16
      %v7072 = vpop.permute.xlu0 %7071
      %7073 = vrot.lane.b32.xlu0 %v7037, 16
      %v7074 = vpop.permute.xlu0 %7073
      %7075 = vrot.lane.b32.xlu0 %v7038, 16
      %v7076 = vpop.permute.xlu0 %7075
      %7077 = vrot.lane.b32.xlu0 %v7039, 16
      %v7078 = vpop.permute.xlu0 %7077
      %7079 = vrot.lane.b32.xlu0 %v7040, 16
      %v7080 = vpop.permute.xlu0 %7079
      %7081 = vrot.lane.b32.xlu0 %v7041, 16
      %v7082 = vpop.permute.xlu0 %7081
      %7083 = vrot.lane.b32.xlu0 %v7042, 16
      %v7084 = vpop.permute.xlu0 %7083
      %7085 = vrot.lane.b32.xlu0 %v7043, 16
      %v7086 = vpop.permute.xlu0 %7085
      %7087 = vrot.lane.b32.xlu0 %v7044, 16
      %v7088 = vpop.permute.xlu0 %7087
      %7089 = vrot.lane.b32.xlu0 %v7045, 16
      %v7090 = vpop.permute.xlu0 %7089
      %7091 = vrot.lane.b32.xlu0 %v7046, 16
      %v7092 = vpop.permute.xlu0 %7091
      %7093 = vrot.lane.b32.xlu0 %v7047, 16
      %v7094 = vpop.permute.xlu0 %7093
      %7095 = vrot.lane.b32.xlu0 %v7048, 16
      %v7096 = vpop.permute.xlu0 %7095
      %7113 = vst.msk [vmem:[#allocation9 + $0x10] sm:$0xff] %vm2252, %v7066
      %7114 = vst.msk [vmem:[#allocation9 + $0x30] sm:$0xff] %vm2252, %v7068
      %7115 = vst.msk [vmem:[#allocation9 + $0x50] sm:$0xff] %vm2252, %v7070
      %7116 = vst.msk [vmem:[#allocation9 + $0x70] sm:$0xff] %vm2252, %v7072
      %7117 = vst.msk [vmem:[#allocation9 + $0x90] sm:$0xff] %vm2252, %v7074
      %7118 = vst.msk [vmem:[#allocation9 + $0xb0] sm:$0xff] %vm2252, %v7076
      %7119 = vst.msk [vmem:[#allocation9 + $0xd0] sm:$0xff] %vm2252, %v7078
      %7120 = vst.msk [vmem:[#allocation9 + $0xf0] sm:$0xff] %vm2252, %v7080
      %7121 = vst.msk [vmem:[#allocation9 + $0x110] sm:$0xff] %vm2252, %v7082
      %7122 = vst.msk [vmem:[#allocation9 + $0x130] sm:$0xff] %vm2252, %v7084
      %7123 = vst.msk [vmem:[#allocation9 + $0x150] sm:$0xff] %vm2252, %v7086
      %7124 = vst.msk [vmem:[#allocation9 + $0x170] sm:$0xff] %vm2252, %v7088
      %7125 = vst.msk [vmem:[#allocation9 + $0x190] sm:$0xff] %vm2252, %v7090
      %7126 = vst.msk [vmem:[#allocation9 + $0x1b0] sm:$0xff] %vm2252, %v7092
      %7127 = vst.msk [vmem:[#allocation9 + $0x1d0] sm:$0xff] %vm2252, %v7094
      %7128 = vst.msk [vmem:[#allocation9 + $0x1f0] sm:$0xff] %vm2252, %v7096
      %v7129 = vld [vmem:[%s6808 + $0x9] sm:$0xff]
      %v7130 = vld [vmem:[%s6808 + $0x11] sm:$0xff]
      %v7131 = vld [vmem:[%s6808 + $0x29] sm:$0xff]
      %v7132 = vld [vmem:[%s6808 + $0x31] sm:$0xff]
      %v7133 = vld [vmem:[%s6808 + $0x49] sm:$0xff]
      %v7134 = vld [vmem:[%s6808 + $0x51] sm:$0xff]
      %v7135 = vld [vmem:[%s6808 + $0x69] sm:$0xff]
      %v7136 = vld [vmem:[%s6808 + $0x71] sm:$0xff]
      %v7137 = vld [vmem:[%s6808 + $0x89] sm:$0xff]
      %v7138 = vld [vmem:[%s6808 + $0x91] sm:$0xff]
      %v7139 = vld [vmem:[%s6808 + $0xa9] sm:$0xff]
      %v7140 = vld [vmem:[%s6808 + $0xb1] sm:$0xff]
      %v7141 = vld [vmem:[%s6808 + $0xc9] sm:$0xff]
      %v7142 = vld [vmem:[%s6808 + $0xd1] sm:$0xff]
      %v7143 = vld [vmem:[%s6808 + $0xe9] sm:$0xff]
      %v7144 = vld [vmem:[%s6808 + $0xf1] sm:$0xff]
      %v7145 = vld [vmem:[%s6808 + $0x109] sm:$0xff]
      %v7146 = vld [vmem:[%s6808 + $0x111] sm:$0xff]
      %v7147 = vld [vmem:[%s6808 + $0x129] sm:$0xff]
      %v7148 = vld [vmem:[%s6808 + $0x131] sm:$0xff]
      %v7149 = vld [vmem:[%s6808 + $0x149] sm:$0xff]
      %v7150 = vld [vmem:[%s6808 + $0x151] sm:$0xff]
      %v7151 = vld [vmem:[%s6808 + $0x169] sm:$0xff]
      %v7152 = vld [vmem:[%s6808 + $0x171] sm:$0xff]
      %v7153 = vld [vmem:[%s6808 + $0x189] sm:$0xff]
      %v7154 = vld [vmem:[%s6808 + $0x191] sm:$0xff]
      %v7155 = vld [vmem:[%s6808 + $0x1a9] sm:$0xff]
      %v7156 = vld [vmem:[%s6808 + $0x1b1] sm:$0xff]
      %v7157 = vld [vmem:[%s6808 + $0x1c9] sm:$0xff]
      %v7158 = vld [vmem:[%s6808 + $0x1d1] sm:$0xff]
      %v7159 = vld [vmem:[%s6808 + $0x1e9] sm:$0xff]
      %v7160 = vld [vmem:[%s6808 + $0x1f1] sm:$0xff]
      %v7161 = vpack.c.bf16 %v7130, %v7129
      %v7162 = vpack.c.bf16 %v7132, %v7131
      %v7163 = vpack.c.bf16 %v7134, %v7133
      %v7164 = vpack.c.bf16 %v7136, %v7135
      %v7165 = vpack.c.bf16 %v7138, %v7137
      %v7166 = vpack.c.bf16 %v7140, %v7139
      %v7167 = vpack.c.bf16 %v7142, %v7141
      %v7168 = vpack.c.bf16 %v7144, %v7143
      %v7169 = vpack.c.bf16 %v7146, %v7145
      %v7170 = vpack.c.bf16 %v7148, %v7147
      %v7171 = vpack.c.bf16 %v7150, %v7149
      %v7172 = vpack.c.bf16 %v7152, %v7151
      %v7173 = vpack.c.bf16 %v7154, %v7153
      %v7174 = vpack.c.bf16 %v7156, %v7155
      %v7175 = vpack.c.bf16 %v7158, %v7157
      %v7176 = vpack.c.bf16 %v7160, %v7159
      %7193 = vrot.lane.b32.xlu0 %v7161, 32
      %v7194 = vpop.permute.xlu0 %7193
      %7195 = vrot.lane.b32.xlu0 %v7162, 32
      %v7196 = vpop.permute.xlu0 %7195
      %7197 = vrot.lane.b32.xlu0 %v7163, 32
      %v7198 = vpop.permute.xlu0 %7197
      %7199 = vrot.lane.b32.xlu0 %v7164, 32
      %v7200 = vpop.permute.xlu0 %7199
      %7201 = vrot.lane.b32.xlu0 %v7165, 32
      %v7202 = vpop.permute.xlu0 %7201
      %7203 = vrot.lane.b32.xlu0 %v7166, 32
      %v7204 = vpop.permute.xlu0 %7203
      %7205 = vrot.lane.b32.xlu0 %v7167, 32
      %v7206 = vpop.permute.xlu0 %7205
      %7207 = vrot.lane.b32.xlu0 %v7168, 32
      %v7208 = vpop.permute.xlu0 %7207
      %7209 = vrot.lane.b32.xlu0 %v7169, 32
      %v7210 = vpop.permute.xlu0 %7209
      %7211 = vrot.lane.b32.xlu0 %v7170, 32
      %v7212 = vpop.permute.xlu0 %7211
      %7213 = vrot.lane.b32.xlu0 %v7171, 32
      %v7214 = vpop.permute.xlu0 %7213
      %7215 = vrot.lane.b32.xlu0 %v7172, 32
      %v7216 = vpop.permute.xlu0 %7215
      %7217 = vrot.lane.b32.xlu0 %v7173, 32
      %v7218 = vpop.permute.xlu0 %7217
      %7219 = vrot.lane.b32.xlu0 %v7174, 32
      %v7220 = vpop.permute.xlu0 %7219
      %7221 = vrot.lane.b32.xlu0 %v7175, 32
      %v7222 = vpop.permute.xlu0 %7221
      %7223 = vrot.lane.b32.xlu0 %v7176, 32
      %v7224 = vpop.permute.xlu0 %7223
      %7241 = vst.msk [vmem:[#allocation9 + $0x10] sm:$0xff] %vm2381, %v7194
      %7242 = vst.msk [vmem:[#allocation9 + $0x30] sm:$0xff] %vm2381, %v7196
      %7243 = vst.msk [vmem:[#allocation9 + $0x50] sm:$0xff] %vm2381, %v7198
      %7244 = vst.msk [vmem:[#allocation9 + $0x70] sm:$0xff] %vm2381, %v7200
      %7245 = vst.msk [vmem:[#allocation9 + $0x90] sm:$0xff] %vm2381, %v7202
      %7246 = vst.msk [vmem:[#allocation9 + $0xb0] sm:$0xff] %vm2381, %v7204
      %7247 = vst.msk [vmem:[#allocation9 + $0xd0] sm:$0xff] %vm2381, %v7206
      %7248 = vst.msk [vmem:[#allocation9 + $0xf0] sm:$0xff] %vm2381, %v7208
      %7249 = vst.msk [vmem:[#allocation9 + $0x110] sm:$0xff] %vm2381, %v7210
      %7250 = vst.msk [vmem:[#allocation9 + $0x130] sm:$0xff] %vm2381, %v7212
      %7251 = vst.msk [vmem:[#allocation9 + $0x150] sm:$0xff] %vm2381, %v7214
      %7252 = vst.msk [vmem:[#allocation9 + $0x170] sm:$0xff] %vm2381, %v7216
      %7253 = vst.msk [vmem:[#allocation9 + $0x190] sm:$0xff] %vm2381, %v7218
      %7254 = vst.msk [vmem:[#allocation9 + $0x1b0] sm:$0xff] %vm2381, %v7220
      %7255 = vst.msk [vmem:[#allocation9 + $0x1d0] sm:$0xff] %vm2381, %v7222
      %7256 = vst.msk [vmem:[#allocation9 + $0x1f0] sm:$0xff] %vm2381, %v7224
      %v7257 = vld [vmem:[%s6808 + $0xa] sm:$0xff]
      %v7258 = vld [vmem:[%s6808 + $0x12] sm:$0xff]
      %v7259 = vld [vmem:[%s6808 + $0x2a] sm:$0xff]
      %v7260 = vld [vmem:[%s6808 + $0x32] sm:$0xff]
      %v7261 = vld [vmem:[%s6808 + $0x4a] sm:$0xff]
      %v7262 = vld [vmem:[%s6808 + $0x52] sm:$0xff]
      %v7263 = vld [vmem:[%s6808 + $0x6a] sm:$0xff]
      %v7264 = vld [vmem:[%s6808 + $0x72] sm:$0xff]
      %v7265 = vld [vmem:[%s6808 + $0x8a] sm:$0xff]
      %v7266 = vld [vmem:[%s6808 + $0x92] sm:$0xff]
      %v7267 = vld [vmem:[%s6808 + $0xaa] sm:$0xff]
      %v7268 = vld [vmem:[%s6808 + $0xb2] sm:$0xff]
      %v7269 = vld [vmem:[%s6808 + $0xca] sm:$0xff]
      %v7270 = vld [vmem:[%s6808 + $0xd2] sm:$0xff]
      %v7271 = vld [vmem:[%s6808 + $0xea] sm:$0xff]
      %v7272 = vld [vmem:[%s6808 + $0xf2] sm:$0xff]
      %v7273 = vld [vmem:[%s6808 + $0x10a] sm:$0xff]
      %v7274 = vld [vmem:[%s6808 + $0x112] sm:$0xff]
      %v7275 = vld [vmem:[%s6808 + $0x12a] sm:$0xff]
      %v7276 = vld [vmem:[%s6808 + $0x132] sm:$0xff]
      %v7277 = vld [vmem:[%s6808 + $0x14a] sm:$0xff]
      %v7278 = vld [vmem:[%s6808 + $0x152] sm:$0xff]
      %v7279 = vld [vmem:[%s6808 + $0x16a] sm:$0xff]
      %v7280 = vld [vmem:[%s6808 + $0x172] sm:$0xff]
      %v7281 = vld [vmem:[%s6808 + $0x18a] sm:$0xff]
      %v7282 = vld [vmem:[%s6808 + $0x192] sm:$0xff]
      %v7283 = vld [vmem:[%s6808 + $0x1aa] sm:$0xff]
      %v7284 = vld [vmem:[%s6808 + $0x1b2] sm:$0xff]
      %v7285 = vld [vmem:[%s6808 + $0x1ca] sm:$0xff]
      %v7286 = vld [vmem:[%s6808 + $0x1d2] sm:$0xff]
      %v7287 = vld [vmem:[%s6808 + $0x1ea] sm:$0xff]
      %v7288 = vld [vmem:[%s6808 + $0x1f2] sm:$0xff]
      %v7289 = vpack.c.bf16 %v7258, %v7257
      %v7290 = vpack.c.bf16 %v7260, %v7259
      %v7291 = vpack.c.bf16 %v7262, %v7261
      %v7292 = vpack.c.bf16 %v7264, %v7263
      %v7293 = vpack.c.bf16 %v7266, %v7265
      %v7294 = vpack.c.bf16 %v7268, %v7267
      %v7295 = vpack.c.bf16 %v7270, %v7269
      %v7296 = vpack.c.bf16 %v7272, %v7271
      %v7297 = vpack.c.bf16 %v7274, %v7273
      %v7298 = vpack.c.bf16 %v7276, %v7275
      %v7299 = vpack.c.bf16 %v7278, %v7277
      %v7300 = vpack.c.bf16 %v7280, %v7279
      %v7301 = vpack.c.bf16 %v7282, %v7281
      %v7302 = vpack.c.bf16 %v7284, %v7283
      %v7303 = vpack.c.bf16 %v7286, %v7285
      %v7304 = vpack.c.bf16 %v7288, %v7287
      %7321 = vrot.lane.b32.xlu0 %v7289, 48
      %v7322 = vpop.permute.xlu0 %7321
      %7323 = vrot.lane.b32.xlu0 %v7290, 48
      %v7324 = vpop.permute.xlu0 %7323
      %7325 = vrot.lane.b32.xlu0 %v7291, 48
      %v7326 = vpop.permute.xlu0 %7325
      %7327 = vrot.lane.b32.xlu0 %v7292, 48
      %v7328 = vpop.permute.xlu0 %7327
      %7329 = vrot.lane.b32.xlu0 %v7293, 48
      %v7330 = vpop.permute.xlu0 %7329
      %7331 = vrot.lane.b32.xlu0 %v7294, 48
      %v7332 = vpop.permute.xlu0 %7331
      %7333 = vrot.lane.b32.xlu0 %v7295, 48
      %v7334 = vpop.permute.xlu0 %7333
      %7335 = vrot.lane.b32.xlu0 %v7296, 48
      %v7336 = vpop.permute.xlu0 %7335
      %7337 = vrot.lane.b32.xlu0 %v7297, 48
      %v7338 = vpop.permute.xlu0 %7337
      %7339 = vrot.lane.b32.xlu0 %v7298, 48
      %v7340 = vpop.permute.xlu0 %7339
      %7341 = vrot.lane.b32.xlu0 %v7299, 48
      %v7342 = vpop.permute.xlu0 %7341
      %7343 = vrot.lane.b32.xlu0 %v7300, 48
      %v7344 = vpop.permute.xlu0 %7343
      %7345 = vrot.lane.b32.xlu0 %v7301, 48
      %v7346 = vpop.permute.xlu0 %7345
      %7347 = vrot.lane.b32.xlu0 %v7302, 48
      %v7348 = vpop.permute.xlu0 %7347
      %7349 = vrot.lane.b32.xlu0 %v7303, 48
      %v7350 = vpop.permute.xlu0 %7349
      %7351 = vrot.lane.b32.xlu0 %v7304, 48
      %v7352 = vpop.permute.xlu0 %7351
      %7369 = vst.msk [vmem:[#allocation9 + $0x10] sm:$0xff] %vm2510, %v7322
      %7370 = vst.msk [vmem:[#allocation9 + $0x30] sm:$0xff] %vm2510, %v7324
      %7371 = vst.msk [vmem:[#allocation9 + $0x50] sm:$0xff] %vm2510, %v7326
      %7372 = vst.msk [vmem:[#allocation9 + $0x70] sm:$0xff] %vm2510, %v7328
      %7373 = vst.msk [vmem:[#allocation9 + $0x90] sm:$0xff] %vm2510, %v7330
      %7374 = vst.msk [vmem:[#allocation9 + $0xb0] sm:$0xff] %vm2510, %v7332
      %7375 = vst.msk [vmem:[#allocation9 + $0xd0] sm:$0xff] %vm2510, %v7334
      %7376 = vst.msk [vmem:[#allocation9 + $0xf0] sm:$0xff] %vm2510, %v7336
      %7377 = vst.msk [vmem:[#allocation9 + $0x110] sm:$0xff] %vm2510, %v7338
      %7378 = vst.msk [vmem:[#allocation9 + $0x130] sm:$0xff] %vm2510, %v7340
      %7379 = vst.msk [vmem:[#allocation9 + $0x150] sm:$0xff] %vm2510, %v7342
      %7380 = vst.msk [vmem:[#allocation9 + $0x170] sm:$0xff] %vm2510, %v7344
      %7381 = vst.msk [vmem:[#allocation9 + $0x190] sm:$0xff] %vm2510, %v7346
      %7382 = vst.msk [vmem:[#allocation9 + $0x1b0] sm:$0xff] %vm2510, %v7348
      %7383 = vst.msk [vmem:[#allocation9 + $0x1d0] sm:$0xff] %vm2510, %v7350
      %7384 = vst.msk [vmem:[#allocation9 + $0x1f0] sm:$0xff] %vm2510, %v7352
      %s7385 = scalar_lea.vmem [#allocation5], 320
      %v7386 = vld [vmem:[%s7385 + $0x6] sm:$0xff]
      %v7387 = vld [vmem:[%s7385 + $0xe] sm:$0xff]
      %v7388 = vld [vmem:[%s7385 + $0x26] sm:$0xff]
      %v7389 = vld [vmem:[%s7385 + $0x2e] sm:$0xff]
      %v7390 = vld [vmem:[%s7385 + $0x46] sm:$0xff]
      %v7391 = vld [vmem:[%s7385 + $0x4e] sm:$0xff]
      %v7392 = vld [vmem:[%s7385 + $0x66] sm:$0xff]
      %v7393 = vld [vmem:[%s7385 + $0x6e] sm:$0xff]
      %v7394 = vld [vmem:[%s7385 + $0x86] sm:$0xff]
      %v7395 = vld [vmem:[%s7385 + $0x8e] sm:$0xff]
      %v7396 = vld [vmem:[%s7385 + $0xa6] sm:$0xff]
      %v7397 = vld [vmem:[%s7385 + $0xae] sm:$0xff]
      %v7398 = vld [vmem:[%s7385 + $0xc6] sm:$0xff]
      %v7399 = vld [vmem:[%s7385 + $0xce] sm:$0xff]
      %v7400 = vld [vmem:[%s7385 + $0xe6] sm:$0xff]
      %v7401 = vld [vmem:[%s7385 + $0xee] sm:$0xff]
      %v7402 = vld [vmem:[%s7385 + $0x106] sm:$0xff]
      %v7403 = vld [vmem:[%s7385 + $0x10e] sm:$0xff]
      %v7404 = vld [vmem:[%s7385 + $0x126] sm:$0xff]
      %v7405 = vld [vmem:[%s7385 + $0x12e] sm:$0xff]
      %v7406 = vld [vmem:[%s7385 + $0x146] sm:$0xff]
      %v7407 = vld [vmem:[%s7385 + $0x14e] sm:$0xff]
      %v7408 = vld [vmem:[%s7385 + $0x166] sm:$0xff]
      %v7409 = vld [vmem:[%s7385 + $0x16e] sm:$0xff]
      %v7410 = vld [vmem:[%s7385 + $0x186] sm:$0xff]
      %v7411 = vld [vmem:[%s7385 + $0x18e] sm:$0xff]
      %v7412 = vld [vmem:[%s7385 + $0x1a6] sm:$0xff]
      %v7413 = vld [vmem:[%s7385 + $0x1ae] sm:$0xff]
      %v7414 = vld [vmem:[%s7385 + $0x1c6] sm:$0xff]
      %v7415 = vld [vmem:[%s7385 + $0x1ce] sm:$0xff]
      %v7416 = vld [vmem:[%s7385 + $0x1e6] sm:$0xff]
      %v7417 = vld [vmem:[%s7385 + $0x1ee] sm:$0xff]
      %v7418 = vpack.c.bf16 %v7387, %v7386
      %v7419 = vpack.c.bf16 %v7389, %v7388
      %v7420 = vpack.c.bf16 %v7391, %v7390
      %v7421 = vpack.c.bf16 %v7393, %v7392
      %v7422 = vpack.c.bf16 %v7395, %v7394
      %v7423 = vpack.c.bf16 %v7397, %v7396
      %v7424 = vpack.c.bf16 %v7399, %v7398
      %v7425 = vpack.c.bf16 %v7401, %v7400
      %v7426 = vpack.c.bf16 %v7403, %v7402
      %v7427 = vpack.c.bf16 %v7405, %v7404
      %v7428 = vpack.c.bf16 %v7407, %v7406
      %v7429 = vpack.c.bf16 %v7409, %v7408
      %v7430 = vpack.c.bf16 %v7411, %v7410
      %v7431 = vpack.c.bf16 %v7413, %v7412
      %v7432 = vpack.c.bf16 %v7415, %v7414
      %v7433 = vpack.c.bf16 %v7417, %v7416
      %7450 = vrot.lane.b32.xlu0 %v7418, 64
      %v7451 = vpop.permute.xlu0 %7450
      %7452 = vrot.lane.b32.xlu0 %v7419, 64
      %v7453 = vpop.permute.xlu0 %7452
      %7454 = vrot.lane.b32.xlu0 %v7420, 64
      %v7455 = vpop.permute.xlu0 %7454
      %7456 = vrot.lane.b32.xlu0 %v7421, 64
      %v7457 = vpop.permute.xlu0 %7456
      %7458 = vrot.lane.b32.xlu0 %v7422, 64
      %v7459 = vpop.permute.xlu0 %7458
      %7460 = vrot.lane.b32.xlu0 %v7423, 64
      %v7461 = vpop.permute.xlu0 %7460
      %7462 = vrot.lane.b32.xlu0 %v7424, 64
      %v7463 = vpop.permute.xlu0 %7462
      %7464 = vrot.lane.b32.xlu0 %v7425, 64
      %v7465 = vpop.permute.xlu0 %7464
      %7466 = vrot.lane.b32.xlu0 %v7426, 64
      %v7467 = vpop.permute.xlu0 %7466
      %7468 = vrot.lane.b32.xlu0 %v7427, 64
      %v7469 = vpop.permute.xlu0 %7468
      %7470 = vrot.lane.b32.xlu0 %v7428, 64
      %v7471 = vpop.permute.xlu0 %7470
      %7472 = vrot.lane.b32.xlu0 %v7429, 64
      %v7473 = vpop.permute.xlu0 %7472
      %7474 = vrot.lane.b32.xlu0 %v7430, 64
      %v7475 = vpop.permute.xlu0 %7474
      %7476 = vrot.lane.b32.xlu0 %v7431, 64
      %v7477 = vpop.permute.xlu0 %7476
      %7478 = vrot.lane.b32.xlu0 %v7432, 64
      %v7479 = vpop.permute.xlu0 %7478
      %7480 = vrot.lane.b32.xlu0 %v7433, 64
      %v7481 = vpop.permute.xlu0 %7480
      %7498 = vst.msk [vmem:[#allocation9 + $0x10] sm:$0xff] %vm2639, %v7451
      %7499 = vst.msk [vmem:[#allocation9 + $0x30] sm:$0xff] %vm2639, %v7453
      %7500 = vst.msk [vmem:[#allocation9 + $0x50] sm:$0xff] %vm2639, %v7455
      %7501 = vst.msk [vmem:[#allocation9 + $0x70] sm:$0xff] %vm2639, %v7457
      %7502 = vst.msk [vmem:[#allocation9 + $0x90] sm:$0xff] %vm2639, %v7459
      %7503 = vst.msk [vmem:[#allocation9 + $0xb0] sm:$0xff] %vm2639, %v7461
      %7504 = vst.msk [vmem:[#allocation9 + $0xd0] sm:$0xff] %vm2639, %v7463
      %7505 = vst.msk [vmem:[#allocation9 + $0xf0] sm:$0xff] %vm2639, %v7465
      %7506 = vst.msk [vmem:[#allocation9 + $0x110] sm:$0xff] %vm2639, %v7467
      %7507 = vst.msk [vmem:[#allocation9 + $0x130] sm:$0xff] %vm2639, %v7469
      %7508 = vst.msk [vmem:[#allocation9 + $0x150] sm:$0xff] %vm2639, %v7471
      %7509 = vst.msk [vmem:[#allocation9 + $0x170] sm:$0xff] %vm2639, %v7473
      %7510 = vst.msk [vmem:[#allocation9 + $0x190] sm:$0xff] %vm2639, %v7475
      %7511 = vst.msk [vmem:[#allocation9 + $0x1b0] sm:$0xff] %vm2639, %v7477
      %7512 = vst.msk [vmem:[#allocation9 + $0x1d0] sm:$0xff] %vm2639, %v7479
      %7513 = vst.msk [vmem:[#allocation9 + $0x1f0] sm:$0xff] %vm2639, %v7481
      %v7514 = vld [vmem:[%s7385 + $0x7] sm:$0xff]
      %v7515 = vld [vmem:[%s7385 + $0xf] sm:$0xff]
      %v7516 = vld [vmem:[%s7385 + $0x27] sm:$0xff]
      %v7517 = vld [vmem:[%s7385 + $0x2f] sm:$0xff]
      %v7518 = vld [vmem:[%s7385 + $0x47] sm:$0xff]
      %v7519 = vld [vmem:[%s7385 + $0x4f] sm:$0xff]
      %v7520 = vld [vmem:[%s7385 + $0x67] sm:$0xff]
      %v7521 = vld [vmem:[%s7385 + $0x6f] sm:$0xff]
      %v7522 = vld [vmem:[%s7385 + $0x87] sm:$0xff]
      %v7523 = vld [vmem:[%s7385 + $0x8f] sm:$0xff]
      %v7524 = vld [vmem:[%s7385 + $0xa7] sm:$0xff]
      %v7525 = vld [vmem:[%s7385 + $0xaf] sm:$0xff]
      %v7526 = vld [vmem:[%s7385 + $0xc7] sm:$0xff]
      %v7527 = vld [vmem:[%s7385 + $0xcf] sm:$0xff]
      %v7528 = vld [vmem:[%s7385 + $0xe7] sm:$0xff]
      %v7529 = vld [vmem:[%s7385 + $0xef] sm:$0xff]
      %v7530 = vld [vmem:[%s7385 + $0x107] sm:$0xff]
      %v7531 = vld [vmem:[%s7385 + $0x10f] sm:$0xff]
      %v7532 = vld [vmem:[%s7385 + $0x127] sm:$0xff]
      %v7533 = vld [vmem:[%s7385 + $0x12f] sm:$0xff]
      %v7534 = vld [vmem:[%s7385 + $0x147] sm:$0xff]
      %v7535 = vld [vmem:[%s7385 + $0x14f] sm:$0xff]
      %v7536 = vld [vmem:[%s7385 + $0x167] sm:$0xff]
      %v7537 = vld [vmem:[%s7385 + $0x16f] sm:$0xff]
      %v7538 = vld [vmem:[%s7385 + $0x187] sm:$0xff]
      %v7539 = vld [vmem:[%s7385 + $0x18f] sm:$0xff]
      %v7540 = vld [vmem:[%s7385 + $0x1a7] sm:$0xff]
      %v7541 = vld [vmem:[%s7385 + $0x1af] sm:$0xff]
      %v7542 = vld [vmem:[%s7385 + $0x1c7] sm:$0xff]
      %v7543 = vld [vmem:[%s7385 + $0x1cf] sm:$0xff]
      %v7544 = vld [vmem:[%s7385 + $0x1e7] sm:$0xff]
      %v7545 = vld [vmem:[%s7385 + $0x1ef] sm:$0xff]
      %v7546 = vpack.c.bf16 %v7515, %v7514
      %v7547 = vpack.c.bf16 %v7517, %v7516
      %v7548 = vpack.c.bf16 %v7519, %v7518
      %v7549 = vpack.c.bf16 %v7521, %v7520
      %v7550 = vpack.c.bf16 %v7523, %v7522
      %v7551 = vpack.c.bf16 %v7525, %v7524
      %v7552 = vpack.c.bf16 %v7527, %v7526
      %v7553 = vpack.c.bf16 %v7529, %v7528
      %v7554 = vpack.c.bf16 %v7531, %v7530
      %v7555 = vpack.c.bf16 %v7533, %v7532
      %v7556 = vpack.c.bf16 %v7535, %v7534
      %v7557 = vpack.c.bf16 %v7537, %v7536
      %v7558 = vpack.c.bf16 %v7539, %v7538
      %v7559 = vpack.c.bf16 %v7541, %v7540
      %v7560 = vpack.c.bf16 %v7543, %v7542
      %v7561 = vpack.c.bf16 %v7545, %v7544
      %7578 = vrot.lane.b32.xlu0 %v7546, 80
      %v7579 = vpop.permute.xlu0 %7578
      %7580 = vrot.lane.b32.xlu0 %v7547, 80
      %v7581 = vpop.permute.xlu0 %7580
      %7582 = vrot.lane.b32.xlu0 %v7548, 80
      %v7583 = vpop.permute.xlu0 %7582
      %7584 = vrot.lane.b32.xlu0 %v7549, 80
      %v7585 = vpop.permute.xlu0 %7584
      %7586 = vrot.lane.b32.xlu0 %v7550, 80
      %v7587 = vpop.permute.xlu0 %7586
      %7588 = vrot.lane.b32.xlu0 %v7551, 80
      %v7589 = vpop.permute.xlu0 %7588
      %7590 = vrot.lane.b32.xlu0 %v7552, 80
      %v7591 = vpop.permute.xlu0 %7590
      %7592 = vrot.lane.b32.xlu0 %v7553, 80
      %v7593 = vpop.permute.xlu0 %7592
      %7594 = vrot.lane.b32.xlu0 %v7554, 80
      %v7595 = vpop.permute.xlu0 %7594
      %7596 = vrot.lane.b32.xlu0 %v7555, 80
      %v7597 = vpop.permute.xlu0 %7596
      %7598 = vrot.lane.b32.xlu0 %v7556, 80
      %v7599 = vpop.permute.xlu0 %7598
      %7600 = vrot.lane.b32.xlu0 %v7557, 80
      %v7601 = vpop.permute.xlu0 %7600
      %7602 = vrot.lane.b32.xlu0 %v7558, 80
      %v7603 = vpop.permute.xlu0 %7602
      %7604 = vrot.lane.b32.xlu0 %v7559, 80
      %v7605 = vpop.permute.xlu0 %7604
      %7606 = vrot.lane.b32.xlu0 %v7560, 80
      %v7607 = vpop.permute.xlu0 %7606
      %7608 = vrot.lane.b32.xlu0 %v7561, 80
      %v7609 = vpop.permute.xlu0 %7608
      %7626 = vst.msk [vmem:[#allocation9 + $0x10] sm:$0xff] %vm2768, %v7579
      %7627 = vst.msk [vmem:[#allocation9 + $0x30] sm:$0xff] %vm2768, %v7581
      %7628 = vst.msk [vmem:[#allocation9 + $0x50] sm:$0xff] %vm2768, %v7583
      %7629 = vst.msk [vmem:[#allocation9 + $0x70] sm:$0xff] %vm2768, %v7585
      %7630 = vst.msk [vmem:[#allocation9 + $0x90] sm:$0xff] %vm2768, %v7587
      %7631 = vst.msk [vmem:[#allocation9 + $0xb0] sm:$0xff] %vm2768, %v7589
      %7632 = vst.msk [vmem:[#allocation9 + $0xd0] sm:$0xff] %vm2768, %v7591
      %7633 = vst.msk [vmem:[#allocation9 + $0xf0] sm:$0xff] %vm2768, %v7593
      %7634 = vst.msk [vmem:[#allocation9 + $0x110] sm:$0xff] %vm2768, %v7595
      %7635 = vst.msk [vmem:[#allocation9 + $0x130] sm:$0xff] %vm2768, %v7597
      %7636 = vst.msk [vmem:[#allocation9 + $0x150] sm:$0xff] %vm2768, %v7599
      %7637 = vst.msk [vmem:[#allocation9 + $0x170] sm:$0xff] %vm2768, %v7601
      %7638 = vst.msk [vmem:[#allocation9 + $0x190] sm:$0xff] %vm2768, %v7603
      %7639 = vst.msk [vmem:[#allocation9 + $0x1b0] sm:$0xff] %vm2768, %v7605
      %7640 = vst.msk [vmem:[#allocation9 + $0x1d0] sm:$0xff] %vm2768, %v7607
      %7641 = vst.msk [vmem:[#allocation9 + $0x1f0] sm:$0xff] %vm2768, %v7609
      %v7642 = vld [vmem:[%s7385 + $0x8] sm:$0xff]
      %v7643 = vld [vmem:[%s7385 + $0x10] sm:$0xff]
      %v7644 = vld [vmem:[%s7385 + $0x28] sm:$0xff]
      %v7645 = vld [vmem:[%s7385 + $0x30] sm:$0xff]
      %v7646 = vld [vmem:[%s7385 + $0x48] sm:$0xff]
      %v7647 = vld [vmem:[%s7385 + $0x50] sm:$0xff]
      %v7648 = vld [vmem:[%s7385 + $0x68] sm:$0xff]
      %v7649 = vld [vmem:[%s7385 + $0x70] sm:$0xff]
      %v7650 = vld [vmem:[%s7385 + $0x88] sm:$0xff]
      %v7651 = vld [vmem:[%s7385 + $0x90] sm:$0xff]
      %v7652 = vld [vmem:[%s7385 + $0xa8] sm:$0xff]
      %v7653 = vld [vmem:[%s7385 + $0xb0] sm:$0xff]
      %v7654 = vld [vmem:[%s7385 + $0xc8] sm:$0xff]
      %v7655 = vld [vmem:[%s7385 + $0xd0] sm:$0xff]
      %v7656 = vld [vmem:[%s7385 + $0xe8] sm:$0xff]
      %v7657 = vld [vmem:[%s7385 + $0xf0] sm:$0xff]
      %v7658 = vld [vmem:[%s7385 + $0x108] sm:$0xff]
      %v7659 = vld [vmem:[%s7385 + $0x110] sm:$0xff]
      %v7660 = vld [vmem:[%s7385 + $0x128] sm:$0xff]
      %v7661 = vld [vmem:[%s7385 + $0x130] sm:$0xff]
      %v7662 = vld [vmem:[%s7385 + $0x148] sm:$0xff]
      %v7663 = vld [vmem:[%s7385 + $0x150] sm:$0xff]
      %v7664 = vld [vmem:[%s7385 + $0x168] sm:$0xff]
      %v7665 = vld [vmem:[%s7385 + $0x170] sm:$0xff]
      %v7666 = vld [vmem:[%s7385 + $0x188] sm:$0xff]
      %v7667 = vld [vmem:[%s7385 + $0x190] sm:$0xff]
      %v7668 = vld [vmem:[%s7385 + $0x1a8] sm:$0xff]
      %v7669 = vld [vmem:[%s7385 + $0x1b0] sm:$0xff]
      %v7670 = vld [vmem:[%s7385 + $0x1c8] sm:$0xff]
      %v7671 = vld [vmem:[%s7385 + $0x1d0] sm:$0xff]
      %v7672 = vld [vmem:[%s7385 + $0x1e8] sm:$0xff]
      %v7673 = vld [vmem:[%s7385 + $0x1f0] sm:$0xff]
      %v7674 = vpack.c.bf16 %v7643, %v7642
      %v7675 = vpack.c.bf16 %v7645, %v7644
      %v7676 = vpack.c.bf16 %v7647, %v7646
      %v7677 = vpack.c.bf16 %v7649, %v7648
      %v7678 = vpack.c.bf16 %v7651, %v7650
      %v7679 = vpack.c.bf16 %v7653, %v7652
      %v7680 = vpack.c.bf16 %v7655, %v7654
      %v7681 = vpack.c.bf16 %v7657, %v7656
      %v7682 = vpack.c.bf16 %v7659, %v7658
      %v7683 = vpack.c.bf16 %v7661, %v7660
      %v7684 = vpack.c.bf16 %v7663, %v7662
      %v7685 = vpack.c.bf16 %v7665, %v7664
      %v7686 = vpack.c.bf16 %v7667, %v7666
      %v7687 = vpack.c.bf16 %v7669, %v7668
      %v7688 = vpack.c.bf16 %v7671, %v7670
      %v7689 = vpack.c.bf16 %v7673, %v7672
      %7706 = vrot.lane.b32.xlu0 %v7674, 96
      %v7707 = vpop.permute.xlu0 %7706
      %7708 = vrot.lane.b32.xlu0 %v7675, 96
      %v7709 = vpop.permute.xlu0 %7708
      %7710 = vrot.lane.b32.xlu0 %v7676, 96
      %v7711 = vpop.permute.xlu0 %7710
      %7712 = vrot.lane.b32.xlu0 %v7677, 96
      %v7713 = vpop.permute.xlu0 %7712
      %7714 = vrot.lane.b32.xlu0 %v7678, 96
      %v7715 = vpop.permute.xlu0 %7714
      %7716 = vrot.lane.b32.xlu0 %v7679, 96
      %v7717 = vpop.permute.xlu0 %7716
      %7718 = vrot.lane.b32.xlu0 %v7680, 96
      %v7719 = vpop.permute.xlu0 %7718
      %7720 = vrot.lane.b32.xlu0 %v7681, 96
      %v7721 = vpop.permute.xlu0 %7720
      %7722 = vrot.lane.b32.xlu0 %v7682, 96
      %v7723 = vpop.permute.xlu0 %7722
      %7724 = vrot.lane.b32.xlu0 %v7683, 96
      %v7725 = vpop.permute.xlu0 %7724
      %7726 = vrot.lane.b32.xlu0 %v7684, 96
      %v7727 = vpop.permute.xlu0 %7726
      %7728 = vrot.lane.b32.xlu0 %v7685, 96
      %v7729 = vpop.permute.xlu0 %7728
      %7730 = vrot.lane.b32.xlu0 %v7686, 96
      %v7731 = vpop.permute.xlu0 %7730
      %7732 = vrot.lane.b32.xlu0 %v7687, 96
      %v7733 = vpop.permute.xlu0 %7732
      %7734 = vrot.lane.b32.xlu0 %v7688, 96
      %v7735 = vpop.permute.xlu0 %7734
      %7736 = vrot.lane.b32.xlu0 %v7689, 96
      %v7737 = vpop.permute.xlu0 %7736
      %7754 = vst.msk [vmem:[#allocation9 + $0x10] sm:$0xff] %vm2898, %v7707
      %7755 = vst.msk [vmem:[#allocation9 + $0x30] sm:$0xff] %vm2898, %v7709
      %7756 = vst.msk [vmem:[#allocation9 + $0x50] sm:$0xff] %vm2898, %v7711
      %7757 = vst.msk [vmem:[#allocation9 + $0x70] sm:$0xff] %vm2898, %v7713
      %7758 = vst.msk [vmem:[#allocation9 + $0x90] sm:$0xff] %vm2898, %v7715
      %7759 = vst.msk [vmem:[#allocation9 + $0xb0] sm:$0xff] %vm2898, %v7717
      %7760 = vst.msk [vmem:[#allocation9 + $0xd0] sm:$0xff] %vm2898, %v7719
      %7761 = vst.msk [vmem:[#allocation9 + $0xf0] sm:$0xff] %vm2898, %v7721
      %7762 = vst.msk [vmem:[#allocation9 + $0x110] sm:$0xff] %vm2898, %v7723
      %7763 = vst.msk [vmem:[#allocation9 + $0x130] sm:$0xff] %vm2898, %v7725
      %7764 = vst.msk [vmem:[#allocation9 + $0x150] sm:$0xff] %vm2898, %v7727
      %7765 = vst.msk [vmem:[#allocation9 + $0x170] sm:$0xff] %vm2898, %v7729
      %7766 = vst.msk [vmem:[#allocation9 + $0x190] sm:$0xff] %vm2898, %v7731
      %7767 = vst.msk [vmem:[#allocation9 + $0x1b0] sm:$0xff] %vm2898, %v7733
      %7768 = vst.msk [vmem:[#allocation9 + $0x1d0] sm:$0xff] %vm2898, %v7735
      %7769 = vst.msk [vmem:[#allocation9 + $0x1f0] sm:$0xff] %vm2898, %v7737
      %v7770 = vld [vmem:[%s7385 + $0x9] sm:$0xff]
      %v7771 = vld [vmem:[%s7385 + $0x11] sm:$0xff]
      %v7772 = vld [vmem:[%s7385 + $0x29] sm:$0xff]
      %v7773 = vld [vmem:[%s7385 + $0x31] sm:$0xff]
      %v7774 = vld [vmem:[%s7385 + $0x49] sm:$0xff]
      %v7775 = vld [vmem:[%s7385 + $0x51] sm:$0xff]
      %v7776 = vld [vmem:[%s7385 + $0x69] sm:$0xff]
      %v7777 = vld [vmem:[%s7385 + $0x71] sm:$0xff]
      %v7778 = vld [vmem:[%s7385 + $0x89] sm:$0xff]
      %v7779 = vld [vmem:[%s7385 + $0x91] sm:$0xff]
      %v7780 = vld [vmem:[%s7385 + $0xa9] sm:$0xff]
      %v7781 = vld [vmem:[%s7385 + $0xb1] sm:$0xff]
      %v7782 = vld [vmem:[%s7385 + $0xc9] sm:$0xff]
      %v7783 = vld [vmem:[%s7385 + $0xd1] sm:$0xff]
      %v7784 = vld [vmem:[%s7385 + $0xe9] sm:$0xff]
      %v7785 = vld [vmem:[%s7385 + $0xf1] sm:$0xff]
      %v7786 = vld [vmem:[%s7385 + $0x109] sm:$0xff]
      %v7787 = vld [vmem:[%s7385 + $0x111] sm:$0xff]
      %v7788 = vld [vmem:[%s7385 + $0x129] sm:$0xff]
      %v7789 = vld [vmem:[%s7385 + $0x131] sm:$0xff]
      %v7790 = vld [vmem:[%s7385 + $0x149] sm:$0xff]
      %v7791 = vld [vmem:[%s7385 + $0x151] sm:$0xff]
      %v7792 = vld [vmem:[%s7385 + $0x169] sm:$0xff]
      %v7793 = vld [vmem:[%s7385 + $0x171] sm:$0xff]
      %v7794 = vld [vmem:[%s7385 + $0x189] sm:$0xff]
      %v7795 = vld [vmem:[%s7385 + $0x191] sm:$0xff]
      %v7796 = vld [vmem:[%s7385 + $0x1a9] sm:$0xff]
      %v7797 = vld [vmem:[%s7385 + $0x1b1] sm:$0xff]
      %v7798 = vld [vmem:[%s7385 + $0x1c9] sm:$0xff]
      %v7799 = vld [vmem:[%s7385 + $0x1d1] sm:$0xff]
      %v7800 = vld [vmem:[%s7385 + $0x1e9] sm:$0xff]
      %v7801 = vld [vmem:[%s7385 + $0x1f1] sm:$0xff]
      %v7802 = vpack.c.bf16 %v7771, %v7770
      %v7803 = vpack.c.bf16 %v7773, %v7772
      %v7804 = vpack.c.bf16 %v7775, %v7774
      %v7805 = vpack.c.bf16 %v7777, %v7776
      %v7806 = vpack.c.bf16 %v7779, %v7778
      %v7807 = vpack.c.bf16 %v7781, %v7780
      %v7808 = vpack.c.bf16 %v7783, %v7782
      %v7809 = vpack.c.bf16 %v7785, %v7784
      %v7810 = vpack.c.bf16 %v7787, %v7786
      %v7811 = vpack.c.bf16 %v7789, %v7788
      %v7812 = vpack.c.bf16 %v7791, %v7790
      %v7813 = vpack.c.bf16 %v7793, %v7792
      %v7814 = vpack.c.bf16 %v7795, %v7794
      %v7815 = vpack.c.bf16 %v7797, %v7796
      %v7816 = vpack.c.bf16 %v7799, %v7798
      %v7817 = vpack.c.bf16 %v7801, %v7800
      %7834 = vrot.lane.b32.xlu0 %v7802, 112
      %v7835 = vpop.permute.xlu0 %7834
      %7836 = vrot.lane.b32.xlu0 %v7803, 112
      %v7837 = vpop.permute.xlu0 %7836
      %7838 = vrot.lane.b32.xlu0 %v7804, 112
      %v7839 = vpop.permute.xlu0 %7838
      %7840 = vrot.lane.b32.xlu0 %v7805, 112
      %v7841 = vpop.permute.xlu0 %7840
      %7842 = vrot.lane.b32.xlu0 %v7806, 112
      %v7843 = vpop.permute.xlu0 %7842
      %7844 = vrot.lane.b32.xlu0 %v7807, 112
      %v7845 = vpop.permute.xlu0 %7844
      %7846 = vrot.lane.b32.xlu0 %v7808, 112
      %v7847 = vpop.permute.xlu0 %7846
      %7848 = vrot.lane.b32.xlu0 %v7809, 112
      %v7849 = vpop.permute.xlu0 %7848
      %7850 = vrot.lane.b32.xlu0 %v7810, 112
      %v7851 = vpop.permute.xlu0 %7850
      %7852 = vrot.lane.b32.xlu0 %v7811, 112
      %v7853 = vpop.permute.xlu0 %7852
      %7854 = vrot.lane.b32.xlu0 %v7812, 112
      %v7855 = vpop.permute.xlu0 %7854
      %7856 = vrot.lane.b32.xlu0 %v7813, 112
      %v7857 = vpop.permute.xlu0 %7856
      %7858 = vrot.lane.b32.xlu0 %v7814, 112
      %v7859 = vpop.permute.xlu0 %7858
      %7860 = vrot.lane.b32.xlu0 %v7815, 112
      %v7861 = vpop.permute.xlu0 %7860
      %7862 = vrot.lane.b32.xlu0 %v7816, 112
      %v7863 = vpop.permute.xlu0 %7862
      %7864 = vrot.lane.b32.xlu0 %v7817, 112
      %v7865 = vpop.permute.xlu0 %7864
      %7882 = vst.msk [vmem:[#allocation9 + $0x10] sm:$0xff] %vm3027, %v7835
      %7883 = vst.msk [vmem:[#allocation9 + $0x30] sm:$0xff] %vm3027, %v7837
      %7884 = vst.msk [vmem:[#allocation9 + $0x50] sm:$0xff] %vm3027, %v7839
      %7885 = vst.msk [vmem:[#allocation9 + $0x70] sm:$0xff] %vm3027, %v7841
      %7886 = vst.msk [vmem:[#allocation9 + $0x90] sm:$0xff] %vm3027, %v7843
      %7887 = vst.msk [vmem:[#allocation9 + $0xb0] sm:$0xff] %vm3027, %v7845
      %7888 = vst.msk [vmem:[#allocation9 + $0xd0] sm:$0xff] %vm3027, %v7847
      %7889 = vst.msk [vmem:[#allocation9 + $0xf0] sm:$0xff] %vm3027, %v7849
      %7890 = vst.msk [vmem:[#allocation9 + $0x110] sm:$0xff] %vm3027, %v7851
      %7891 = vst.msk [vmem:[#allocation9 + $0x130] sm:$0xff] %vm3027, %v7853
      %7892 = vst.msk [vmem:[#allocation9 + $0x150] sm:$0xff] %vm3027, %v7855
      %7893 = vst.msk [vmem:[#allocation9 + $0x170] sm:$0xff] %vm3027, %v7857
      %7894 = vst.msk [vmem:[#allocation9 + $0x190] sm:$0xff] %vm3027, %v7859
      %7895 = vst.msk [vmem:[#allocation9 + $0x1b0] sm:$0xff] %vm3027, %v7861
      %7896 = vst.msk [vmem:[#allocation9 + $0x1d0] sm:$0xff] %vm3027, %v7863
      %7897 = vst.msk [vmem:[#allocation9 + $0x1f0] sm:$0xff] %vm3027, %v7865
      %v7898 = vld [vmem:[%s7385 + $0xa] sm:$0xff]
      %v7899 = vld [vmem:[%s7385 + $0x12] sm:$0xff]
      %v7900 = vld [vmem:[%s7385 + $0x2a] sm:$0xff]
      %v7901 = vld [vmem:[%s7385 + $0x32] sm:$0xff]
      %v7902 = vld [vmem:[%s7385 + $0x4a] sm:$0xff]
      %v7903 = vld [vmem:[%s7385 + $0x52] sm:$0xff]
      %v7904 = vld [vmem:[%s7385 + $0x6a] sm:$0xff]
      %v7905 = vld [vmem:[%s7385 + $0x72] sm:$0xff]
      %v7906 = vld [vmem:[%s7385 + $0x8a] sm:$0xff]
      %v7907 = vld [vmem:[%s7385 + $0x92] sm:$0xff]
      %v7908 = vld [vmem:[%s7385 + $0xaa] sm:$0xff]
      %v7909 = vld [vmem:[%s7385 + $0xb2] sm:$0xff]
      %v7910 = vld [vmem:[%s7385 + $0xca] sm:$0xff]
      %v7911 = vld [vmem:[%s7385 + $0xd2] sm:$0xff]
      %v7912 = vld [vmem:[%s7385 + $0xea] sm:$0xff]
      %v7913 = vld [vmem:[%s7385 + $0xf2] sm:$0xff]
      %v7914 = vld [vmem:[%s7385 + $0x10a] sm:$0xff]
      %v7915 = vld [vmem:[%s7385 + $0x112] sm:$0xff]
      %v7916 = vld [vmem:[%s7385 + $0x12a] sm:$0xff]
      %v7917 = vld [vmem:[%s7385 + $0x132] sm:$0xff]
      %v7918 = vld [vmem:[%s7385 + $0x14a] sm:$0xff]
      %v7919 = vld [vmem:[%s7385 + $0x152] sm:$0xff]
      %v7920 = vld [vmem:[%s7385 + $0x16a] sm:$0xff]
      %v7921 = vld [vmem:[%s7385 + $0x172] sm:$0xff]
      %v7922 = vld [vmem:[%s7385 + $0x18a] sm:$0xff]
      %v7923 = vld [vmem:[%s7385 + $0x192] sm:$0xff]
      %v7924 = vld [vmem:[%s7385 + $0x1aa] sm:$0xff]
      %v7925 = vld [vmem:[%s7385 + $0x1b2] sm:$0xff]
      %v7926 = vld [vmem:[%s7385 + $0x1ca] sm:$0xff]
      %v7927 = vld [vmem:[%s7385 + $0x1d2] sm:$0xff]
      %v7928 = vld [vmem:[%s7385 + $0x1ea] sm:$0xff]
      %v7929 = vld [vmem:[%s7385 + $0x1f2] sm:$0xff]
      %v7930 = vpack.c.bf16 %v7899, %v7898
      %v7931 = vpack.c.bf16 %v7901, %v7900
      %v7932 = vpack.c.bf16 %v7903, %v7902
      %v7933 = vpack.c.bf16 %v7905, %v7904
      %v7934 = vpack.c.bf16 %v7907, %v7906
      %v7935 = vpack.c.bf16 %v7909, %v7908
      %v7936 = vpack.c.bf16 %v7911, %v7910
      %v7937 = vpack.c.bf16 %v7913, %v7912
      %v7938 = vpack.c.bf16 %v7915, %v7914
      %v7939 = vpack.c.bf16 %v7917, %v7916
      %v7940 = vpack.c.bf16 %v7919, %v7918
      %v7941 = vpack.c.bf16 %v7921, %v7920
      %v7942 = vpack.c.bf16 %v7923, %v7922
      %v7943 = vpack.c.bf16 %v7925, %v7924
      %v7944 = vpack.c.bf16 %v7927, %v7926
      %v7945 = vpack.c.bf16 %v7929, %v7928
      %7946 = vst.msk [vmem:[#allocation9 + $0x18] sm:$0xff] %vm1940, %v7930
      %7947 = vst.msk [vmem:[#allocation9 + $0x38] sm:$0xff] %vm1940, %v7931
      %7948 = vst.msk [vmem:[#allocation9 + $0x58] sm:$0xff] %vm1940, %v7932
      %7949 = vst.msk [vmem:[#allocation9 + $0x78] sm:$0xff] %vm1940, %v7933
      %7950 = vst.msk [vmem:[#allocation9 + $0x98] sm:$0xff] %vm1940, %v7934
      %7951 = vst.msk [vmem:[#allocation9 + $0xb8] sm:$0xff] %vm1940, %v7935
      %7952 = vst.msk [vmem:[#allocation9 + $0xd8] sm:$0xff] %vm1940, %v7936
      %7953 = vst.msk [vmem:[#allocation9 + $0xf8] sm:$0xff] %vm1940, %v7937
      %7954 = vst.msk [vmem:[#allocation9 + $0x118] sm:$0xff] %vm1940, %v7938
      %7955 = vst.msk [vmem:[#allocation9 + $0x138] sm:$0xff] %vm1940, %v7939
      %7956 = vst.msk [vmem:[#allocation9 + $0x158] sm:$0xff] %vm1940, %v7940
      %7957 = vst.msk [vmem:[#allocation9 + $0x178] sm:$0xff] %vm1940, %v7941
      %7958 = vst.msk [vmem:[#allocation9 + $0x198] sm:$0xff] %vm1940, %v7942
      %7959 = vst.msk [vmem:[#allocation9 + $0x1b8] sm:$0xff] %vm1940, %v7943
      %7960 = vst.msk [vmem:[#allocation9 + $0x1d8] sm:$0xff] %vm1940, %v7944
      %7961 = vst.msk [vmem:[#allocation9 + $0x1f8] sm:$0xff] %vm1940, %v7945
      %v7962 = vld [vmem:[#allocation9] sm:$0xff]
      %v7963 = vld [vmem:[#allocation9 + $0x8] sm:$0xff]
      %v7964 = vld [vmem:[#allocation9 + $0x10] sm:$0xff]
      %v7965 = vld [vmem:[#allocation9 + $0x18] sm:$0xff]
      %v7966 = vld [vmem:[#allocation9 + $0x20] sm:$0xff]
      %v7967 = vld [vmem:[#allocation9 + $0x28] sm:$0xff]
      %v7968 = vld [vmem:[#allocation9 + $0x30] sm:$0xff]
      %v7969 = vld [vmem:[#allocation9 + $0x38] sm:$0xff]
      %v7970 = vld [vmem:[#allocation9 + $0x40] sm:$0xff]
      %v7971 = vld [vmem:[#allocation9 + $0x48] sm:$0xff]
      %v7972 = vld [vmem:[#allocation9 + $0x50] sm:$0xff]
      %v7973 = vld [vmem:[#allocation9 + $0x58] sm:$0xff]
      %v7974 = vld [vmem:[#allocation9 + $0x60] sm:$0xff]
      %v7975 = vld [vmem:[#allocation9 + $0x68] sm:$0xff]
      %v7976 = vld [vmem:[#allocation9 + $0x70] sm:$0xff]
      %v7977 = vld [vmem:[#allocation9 + $0x78] sm:$0xff]
      %v7978 = vld [vmem:[#allocation9 + $0x80] sm:$0xff]
      %v7979 = vld [vmem:[#allocation9 + $0x88] sm:$0xff]
      %v7980 = vld [vmem:[#allocation9 + $0x90] sm:$0xff]
      %v7981 = vld [vmem:[#allocation9 + $0x98] sm:$0xff]
      %v7982 = vld [vmem:[#allocation9 + $0xa0] sm:$0xff]
      %v7983 = vld [vmem:[#allocation9 + $0xa8] sm:$0xff]
      %v7984 = vld [vmem:[#allocation9 + $0xb0] sm:$0xff]
      %v7985 = vld [vmem:[#allocation9 + $0xb8] sm:$0xff]
      %v7986 = vld [vmem:[#allocation9 + $0xc0] sm:$0xff]
      %v7987 = vld [vmem:[#allocation9 + $0xc8] sm:$0xff]
      %v7988 = vld [vmem:[#allocation9 + $0xd0] sm:$0xff]
      %v7989 = vld [vmem:[#allocation9 + $0xd8] sm:$0xff]
      %v7990 = vld [vmem:[#allocation9 + $0xe0] sm:$0xff]
      %v7991 = vld [vmem:[#allocation9 + $0xe8] sm:$0xff]
      %v7992 = vld [vmem:[#allocation9 + $0xf0] sm:$0xff]
      %v7993 = vld [vmem:[#allocation9 + $0xf8] sm:$0xff]
      %v7994 = vld [vmem:[#allocation9 + $0x100] sm:$0xff]
      %v7995 = vld [vmem:[#allocation9 + $0x108] sm:$0xff]
      %v7996 = vld [vmem:[#allocation9 + $0x110] sm:$0xff]
      %v7997 = vld [vmem:[#allocation9 + $0x118] sm:$0xff]
      %v7998 = vld [vmem:[#allocation9 + $0x120] sm:$0xff]
      %v7999 = vld [vmem:[#allocation9 + $0x128] sm:$0xff]
      %v8000 = vld [vmem:[#allocation9 + $0x130] sm:$0xff]
      %v8001 = vld [vmem:[#allocation9 + $0x138] sm:$0xff]
      %v8002 = vld [vmem:[#allocation9 + $0x140] sm:$0xff]
      %v8003 = vld [vmem:[#allocation9 + $0x148] sm:$0xff]
      %v8004 = vld [vmem:[#allocation9 + $0x150] sm:$0xff]
      %v8005 = vld [vmem:[#allocation9 + $0x158] sm:$0xff]
      %v8006 = vld [vmem:[#allocation9 + $0x160] sm:$0xff]
      %v8007 = vld [vmem:[#allocation9 + $0x168] sm:$0xff]
      %v8008 = vld [vmem:[#allocation9 + $0x170] sm:$0xff]
      %v8009 = vld [vmem:[#allocation9 + $0x178] sm:$0xff]
      %v8010 = vld [vmem:[#allocation9 + $0x180] sm:$0xff]
      %v8011 = vld [vmem:[#allocation9 + $0x188] sm:$0xff]
      %v8012 = vld [vmem:[#allocation9 + $0x190] sm:$0xff]
      %v8013 = vld [vmem:[#allocation9 + $0x198] sm:$0xff]
      %v8014 = vld [vmem:[#allocation9 + $0x1a0] sm:$0xff]
      %v8015 = vld [vmem:[#allocation9 + $0x1a8] sm:$0xff]
      %v8016 = vld [vmem:[#allocation9 + $0x1b0] sm:$0xff]
      %v8017 = vld [vmem:[#allocation9 + $0x1b8] sm:$0xff]
      %v8018 = vld [vmem:[#allocation9 + $0x1c0] sm:$0xff]
      %v8019 = vld [vmem:[#allocation9 + $0x1c8] sm:$0xff]
      %v8020 = vld [vmem:[#allocation9 + $0x1d0] sm:$0xff]
      %v8021 = vld [vmem:[#allocation9 + $0x1d8] sm:$0xff]
      %v8022 = vld [vmem:[#allocation9 + $0x1e0] sm:$0xff]
      %v8023 = vld [vmem:[#allocation9 + $0x1e8] sm:$0xff]
      %v8024 = vld [vmem:[#allocation9 + $0x1f0] sm:$0xff]
      %v8025 = vld [vmem:[#allocation9 + $0x1f8] sm:$0xff]
      %v8026 = vld [vmem:[%s7] sm:$0xf]
      %v8027 = vld [vmem:[%s7 + $0x4] sm:$0xf]
      %v8028 = vld [vmem:[%s7 + $0x8] sm:$0xf]
      %v8029 = vld [vmem:[%s7 + $0xc] sm:$0xf]
      %v8030 = vld [vmem:[%s7 + $0x10] sm:$0xf]
      %v8031 = vld [vmem:[%s7 + $0x14] sm:$0xf]
      %v8032 = vld [vmem:[%s7 + $0x18] sm:$0xf]
      %v8033 = vld [vmem:[%s7 + $0x1c] sm:$0xf]
      %v8034 = vld [vmem:[%s7 + $0x20] sm:$0xf]
      %v8035 = vld [vmem:[%s7 + $0x24] sm:$0xf]
      %v8036 = vld [vmem:[%s7 + $0x28] sm:$0xf]
      %v8037 = vld [vmem:[%s7 + $0x2c] sm:$0xf]
      %v8038 = vld [vmem:[%s7 + $0x30] sm:$0xf]
      %v8039 = vld [vmem:[%s7 + $0x34] sm:$0xf]
      %v8040 = vld [vmem:[%s7 + $0x38] sm:$0xf]
      %v8041 = vld [vmem:[%s7 + $0x3c] sm:$0xf]
      %v8042 = vld [vmem:[%s7 + $0x40] sm:$0xf]
      %v8043 = vld [vmem:[%s7 + $0x44] sm:$0xf]
      %v8044 = vld [vmem:[%s7 + $0x48] sm:$0xf]
      %v8045 = vld [vmem:[%s7 + $0x4c] sm:$0xf]
      %v8046 = vld [vmem:[%s7 + $0x50] sm:$0xf]
      %v8047 = vld [vmem:[%s7 + $0x54] sm:$0xf]
      %v8048 = vld [vmem:[%s7 + $0x58] sm:$0xf]
      %v8049 = vld [vmem:[%s7 + $0x5c] sm:$0xf]
      %v8050 = vld [vmem:[%s7 + $0x60] sm:$0xf]
      %v8051 = vld [vmem:[%s7 + $0x64] sm:$0xf]
      %v8052 = vld [vmem:[%s7 + $0x68] sm:$0xf]
      %v8053 = vld [vmem:[%s7 + $0x6c] sm:$0xf]
      %v8054 = vld [vmem:[%s7 + $0x70] sm:$0xf]
      %v8055 = vld [vmem:[%s7 + $0x74] sm:$0xf]
      %v8056 = vld [vmem:[%s7 + $0x78] sm:$0xf]
      %v8057 = vld [vmem:[%s7 + $0x7c] sm:$0xf]
      %v8058 = vld [vmem:[%s7 + $0x80] sm:$0xf]
      %v8059 = vld [vmem:[%s7 + $0x84] sm:$0xf]
      %v8060 = vld [vmem:[%s7 + $0x88] sm:$0xf]
      %v8061 = vld [vmem:[%s7 + $0x8c] sm:$0xf]
      %v8062 = vld [vmem:[%s7 + $0x90] sm:$0xf]
      %v8063 = vld [vmem:[%s7 + $0x94] sm:$0xf]
      %v8064 = vld [vmem:[%s7 + $0x98] sm:$0xf]
      %v8065 = vld [vmem:[%s7 + $0x9c] sm:$0xf]
      %v8066 = vld [vmem:[%s7 + $0xa0] sm:$0xf]
      %v8067 = vld [vmem:[%s7 + $0xa4] sm:$0xf]
      %v8068 = vld [vmem:[%s7 + $0xa8] sm:$0xf]
      %v8069 = vld [vmem:[%s7 + $0xac] sm:$0xf]
      %v8070 = vld [vmem:[%s7 + $0xb0] sm:$0xf]
      %v8071 = vld [vmem:[%s7 + $0xb4] sm:$0xf]
      %v8072 = vld [vmem:[%s7 + $0xb8] sm:$0xf]
      %v8073 = vld [vmem:[%s7 + $0xbc] sm:$0xf]
      %v8074 = vld [vmem:[%s7 + $0xc0] sm:$0xf]
      %v8075 = vld [vmem:[%s7 + $0xc4] sm:$0xf]
      %v8076 = vld [vmem:[%s8] sm:$0x1]
      %v8078 = vlaneseq
      %v8079 = vshrl.u32 %v8078, 7
      %v8080 = vsub.s32 0, %v8079
      %v8081 = vrot.slane %v8076, %v8080
      %v8133 = vunpack.c.l.b16 %v8026
      %v8134 = vunpack.c.l.b16 %v8027
      %v8135 = vunpack.c.l.b16 %v8028
      %v8136 = vunpack.c.l.b16 %v8029
      %v8137 = vunpack.c.l.b16 %v8030
      %v8138 = vunpack.c.l.b16 %v8031
      %v8139 = vunpack.c.l.b16 %v8032
      %v8140 = vunpack.c.l.b16 %v8033
      %v8141 = vunpack.c.l.b16 %v8034
      %v8142 = vunpack.c.l.b16 %v8035
      %v8143 = vunpack.c.l.b16 %v8036
      %v8144 = vunpack.c.l.b16 %v8037
      %v8145 = vunpack.c.l.b16 %v8038
      %v8146 = vunpack.c.l.b16 %v8039
      %v8147 = vunpack.c.l.b16 %v8040
      %v8148 = vunpack.c.l.b16 %v8041
      %v8149 = vunpack.c.l.b16 %v8042
      %v8150 = vunpack.c.l.b16 %v8043
      %v8151 = vunpack.c.l.b16 %v8044
      %v8152 = vunpack.c.l.b16 %v8045
      %v8153 = vunpack.c.l.b16 %v8046
      %v8154 = vunpack.c.l.b16 %v8047
      %v8155 = vunpack.c.l.b16 %v8048
      %v8156 = vunpack.c.l.b16 %v8049
      %v8157 = vunpack.c.l.b16 %v8050
      %v8158 = vunpack.c.l.b16 %v8051
      %v8159 = vunpack.c.l.b16 %v8052
      %v8160 = vunpack.c.l.b16 %v8053
      %v8161 = vunpack.c.l.b16 %v8054
      %v8162 = vunpack.c.l.b16 %v8055
      %v8163 = vunpack.c.l.b16 %v8056
      %v8164 = vunpack.c.l.b16 %v8057
      %v8165 = vunpack.c.l.b16 %v8058
      %v8166 = vunpack.c.l.b16 %v8059
      %v8167 = vunpack.c.l.b16 %v8060
      %v8168 = vunpack.c.l.b16 %v8061
      %v8169 = vunpack.c.l.b16 %v8062
      %v8170 = vunpack.c.l.b16 %v8063
      %v8171 = vunpack.c.l.b16 %v8064
      %v8172 = vunpack.c.l.b16 %v8065
      %v8173 = vunpack.c.l.b16 %v8066
      %v8174 = vunpack.c.l.b16 %v8067
      %v8175 = vunpack.c.l.b16 %v8068
      %v8176 = vunpack.c.l.b16 %v8069
      %v8177 = vunpack.c.l.b16 %v8070
      %v8178 = vunpack.c.l.b16 %v8071
      %v8179 = vunpack.c.l.b16 %v8072
      %v8180 = vunpack.c.l.b16 %v8073
      %v8181 = vunpack.c.l.b16 %v8074
      %v8182 = vunpack.c.l.b16 %v8075
      %v8183 = vpack.c.b16 %v8134, %v8133
      %v8184 = vpack.c.b16 %v8136, %v8135
      %v8185 = vpack.c.b16 %v8138, %v8137
      %v8186 = vpack.c.b16 %v8140, %v8139
      %v8187 = vpack.c.b16 %v8142, %v8141
      %v8188 = vpack.c.b16 %v8144, %v8143
      %v8189 = vpack.c.b16 %v8146, %v8145
      %v8190 = vpack.c.b16 %v8148, %v8147
      %v8191 = vpack.c.b16 %v8150, %v8149
      %v8192 = vpack.c.b16 %v8152, %v8151
      %v8193 = vpack.c.b16 %v8154, %v8153
      %v8194 = vpack.c.b16 %v8156, %v8155
      %v8195 = vpack.c.b16 %v8158, %v8157
      %v8196 = vpack.c.b16 %v8160, %v8159
      %v8197 = vpack.c.b16 %v8162, %v8161
      %v8198 = vpack.c.b16 %v8164, %v8163
      %v8199 = vpack.c.b16 %v8166, %v8165
      %v8200 = vpack.c.b16 %v8168, %v8167
      %v8201 = vpack.c.b16 %v8170, %v8169
      %v8202 = vpack.c.b16 %v8172, %v8171
      %v8203 = vpack.c.b16 %v8174, %v8173
      %v8204 = vpack.c.b16 %v8176, %v8175
      %v8205 = vpack.c.b16 %v8178, %v8177
      %v8206 = vpack.c.b16 %v8180, %v8179
      %v8207 = vpack.c.b16 %v8182, %v8181
      %v8234 = vsel %vm1940, %v7965, 0
      %v8237 = vsel %vm1940, %v7969, 0
      %v8240 = vsel %vm1940, %v7973, 0
      %v8243 = vsel %vm1940, %v7977, 0
      %v8246 = vsel %vm1940, %v7981, 0
      %v8249 = vsel %vm1940, %v7985, 0
      %v8252 = vsel %vm1940, %v7989, 0
      %v8255 = vsel %vm1940, %v7993, 0
      %v8258 = vsel %vm1940, %v7997, 0
      %v8261 = vsel %vm1940, %v8001, 0
      %v8264 = vsel %vm1940, %v8005, 0
      %v8267 = vsel %vm1940, %v8009, 0
      %v8270 = vsel %vm1940, %v8013, 0
      %v8273 = vsel %vm1940, %v8017, 0
      %v8276 = vsel %vm1940, %v8021, 0
      %v8279 = vsel %vm1940, %v8025, 0
      %8281 = vmatprep.subr.bf16.mxu0 0
      %8282 = vmatpush1.bf16.msra.mxu0 %v8183
      %8283 = vmatprep.subr.bf16.mxu0 0
      %8284 = vmatpush1.bf16.msra.mxu0 %v8184
      %8285 = vmatprep.subr.bf16.mxu0 0
      %8286 = vmatpush1.bf16.msra.mxu0 %v8185
      %8287 = vmatprep.subr.bf16.mxu0 0
      %8288 = vmatpush1.bf16.msra.mxu0 %v8186
      %8289 = vmatprep.subr.bf16.mxu0 0
      %8290 = vmatpush1.bf16.msra.mxu0 %v8187
      %8291 = vmatprep.subr.bf16.mxu0 0
      %8292 = vmatpush1.bf16.msra.mxu0 %v8188
      %8293 = vmatprep.subr.bf16.mxu0 0
      %8294 = vmatpush1.bf16.msra.mxu0 %v8189
      %8295 = vmatprep.subr.bf16.mxu0 0
      %8296 = vmatpush1.bf16.msra.mxu0 %v8190
      %8297 = vmatprep.subr.bf16.mxu0 0
      %8298 = vmatpush1.bf16.msra.mxu0 %v8191
      %8299 = vmatprep.subr.bf16.mxu0 0
      %8300 = vmatpush1.bf16.msra.mxu0 %v8192
      %8301 = vmatprep.subr.bf16.mxu0 0
      %8302 = vmatpush1.bf16.msra.mxu0 %v8193
      %8303 = vmatprep.subr.bf16.mxu0 0
      %8304 = vmatpush1.bf16.msra.mxu0 %v8194
      %8305 = vmatprep.subr.bf16.mxu0 0
      %8306 = vmatpush1.bf16.msra.mxu0 %v8195
      %8307 = vmatprep.subr.bf16.mxu0 0
      %8308 = vmatpush1.bf16.msra.mxu0 %v8196
      %8309 = vmatprep.subr.bf16.mxu0 0
      %8310 = vmatpush1.bf16.msra.mxu0 %v8197
      %8311 = vmatprep.subr.bf16.mxu0 0
      %8312 = vmatpush1.bf16.msra.mxu0 %v8198
      %8313 = vmatprep.mubr.bf16.mxu0 %v7963
      %8314 = vmatmul.mubr.bf16.gmra.mrb[0].mxu0 %v7962
      %v8315 = vpop.f32.mrb[0].mxu0
      %v8316 = vadd.f32 %v8081, %v8315
      %v8317 = vpop.f32.mrb[0].mxu0
      %v8318 = vpop.f32.mrb[0].mxu0
      %v8319 = vadd.f32 %v8081, %v8318
      %v8320 = vpop.f32.mrb[0].mxu0
      %8321 = vmatprep.mubr.bf16.mxu0 %v7967
      %8322 = vmatmul.mubr.bf16.gmra.mrb[0].mxu0 %v7966
      %v8323 = vpop.f32.mrb[0].mxu0
      %v8324 = vadd.f32 %v8081, %v8323
      %v8325 = vpop.f32.mrb[0].mxu0
      %v8326 = vpop.f32.mrb[0].mxu0
      %v8327 = vadd.f32 %v8081, %v8326
      %v8328 = vpop.f32.mrb[0].mxu0
      %8329 = vmatprep.mubr.bf16.mxu0 %v7971
      %8330 = vmatmul.mubr.bf16.gmra.mrb[0].mxu0 %v7970
      %v8331 = vpop.f32.mrb[0].mxu0
      %v8332 = vadd.f32 %v8081, %v8331
      %v8333 = vpop.f32.mrb[0].mxu0
      %v8334 = vpop.f32.mrb[0].mxu0
      %v8335 = vadd.f32 %v8081, %v8334
      %v8336 = vpop.f32.mrb[0].mxu0
      %8337 = vmatprep.mubr.bf16.mxu0 %v7975
      %8338 = vmatmul.mubr.bf16.gmra.mrb[0].mxu0 %v7974
      %v8339 = vpop.f32.mrb[0].mxu0
      %v8340 = vadd.f32 %v8081, %v8339
      %v8341 = vpop.f32.mrb[0].mxu0
      %v8342 = vpop.f32.mrb[0].mxu0
      %v8343 = vadd.f32 %v8081, %v8342
      %v8344 = vpop.f32.mrb[0].mxu0
      %8345 = vmatprep.mubr.bf16.mxu0 %v7979
      %8346 = vmatmul.mubr.bf16.gmra.mrb[0].mxu0 %v7978
      %v8347 = vpop.f32.mrb[0].mxu0
      %v8348 = vadd.f32 %v8081, %v8347
      %v8349 = vpop.f32.mrb[0].mxu0
      %v8350 = vpop.f32.mrb[0].mxu0
      %v8351 = vadd.f32 %v8081, %v8350
      %v8352 = vpop.f32.mrb[0].mxu0
      %8353 = vmatprep.mubr.bf16.mxu0 %v7983
      %8354 = vmatmul.mubr.bf16.gmra.mrb[0].mxu0 %v7982
      %v8355 = vpop.f32.mrb[0].mxu0
      %v8356 = vadd.f32 %v8081, %v8355
      %v8357 = vpop.f32.mrb[0].mxu0
      %v8358 = vpop.f32.mrb[0].mxu0
      %v8359 = vadd.f32 %v8081, %v8358
      %v8360 = vpop.f32.mrb[0].mxu0
      %8361 = vmatprep.mubr.bf16.mxu0 %v7987
      %8362 = vmatmul.mubr.bf16.gmra.mrb[0].mxu0 %v7986
      %v8363 = vpop.f32.mrb[0].mxu0
      %v8364 = vadd.f32 %v8081, %v8363
      %v8365 = vpop.f32.mrb[0].mxu0
      %v8366 = vpop.f32.mrb[0].mxu0
      %v8367 = vadd.f32 %v8081, %v8366
      %v8368 = vpop.f32.mrb[0].mxu0
      %8369 = vmatprep.mubr.bf16.mxu0 %v7991
      %8370 = vmatmul.mubr.bf16.gmra.mrb[0].mxu0 %v7990
      %v8371 = vpop.f32.mrb[0].mxu0
      %v8372 = vadd.f32 %v8081, %v8371
      %v8373 = vpop.f32.mrb[0].mxu0
      %v8374 = vpop.f32.mrb[0].mxu0
      %v8375 = vadd.f32 %v8081, %v8374
      %v8376 = vpop.f32.mrb[0].mxu0
      %8377 = vmatprep.mubr.bf16.mxu0 %v7995
      %8378 = vmatmul.mubr.bf16.gmra.mrb[0].mxu0 %v7994
      %v8379 = vpop.f32.mrb[0].mxu0
      %v8380 = vadd.f32 %v8081, %v8379
      %v8381 = vpop.f32.mrb[0].mxu0
      %v8382 = vpop.f32.mrb[0].mxu0
      %v8383 = vadd.f32 %v8081, %v8382
      %v8384 = vpop.f32.mrb[0].mxu0
      %8385 = vmatprep.mubr.bf16.mxu0 %v7999
      %8386 = vmatmul.mubr.bf16.gmra.mrb[0].mxu0 %v7998
      %v8387 = vpop.f32.mrb[0].mxu0
      %v8388 = vadd.f32 %v8081, %v8387
      %v8389 = vpop.f32.mrb[0].mxu0
      %v8390 = vpop.f32.mrb[0].mxu0
      %v8391 = vadd.f32 %v8081, %v8390
      %v8392 = vpop.f32.mrb[0].mxu0
      %8393 = vmatprep.mubr.bf16.mxu0 %v8003
      %8394 = vmatmul.mubr.bf16.gmra.mrb[0].mxu0 %v8002
      %v8395 = vpop.f32.mrb[0].mxu0
      %v8396 = vadd.f32 %v8081, %v8395
      %v8397 = vpop.f32.mrb[0].mxu0
      %v8398 = vpop.f32.mrb[0].mxu0
      %v8399 = vadd.f32 %v8081, %v8398
      %v8400 = vpop.f32.mrb[0].mxu0
      %8401 = vmatprep.mubr.bf16.mxu0 %v8007
      %8402 = vmatmul.mubr.bf16.gmra.mrb[0].mxu0 %v8006
      %v8403 = vpop.f32.mrb[0].mxu0
      %v8404 = vadd.f32 %v8081, %v8403
      %v8405 = vpop.f32.mrb[0].mxu0
      %v8406 = vpop.f32.mrb[0].mxu0
      %v8407 = vadd.f32 %v8081, %v8406
      %v8408 = vpop.f32.mrb[0].mxu0
      %8409 = vmatprep.mubr.bf16.mxu0 %v8011
      %8410 = vmatmul.mubr.bf16.gmra.mrb[0].mxu0 %v8010
      %v8411 = vpop.f32.mrb[0].mxu0
      %v8412 = vadd.f32 %v8081, %v8411
      %v8413 = vpop.f32.mrb[0].mxu0
      %v8414 = vpop.f32.mrb[0].mxu0
      %v8415 = vadd.f32 %v8081, %v8414
      %v8416 = vpop.f32.mrb[0].mxu0
      %8417 = vmatprep.mubr.bf16.mxu0 %v8015
      %8418 = vmatmul.mubr.bf16.gmra.mrb[0].mxu0 %v8014
      %v8419 = vpop.f32.mrb[0].mxu0
      %v8420 = vadd.f32 %v8081, %v8419
      %v8421 = vpop.f32.mrb[0].mxu0
      %v8422 = vpop.f32.mrb[0].mxu0
      %v8423 = vadd.f32 %v8081, %v8422
      %v8424 = vpop.f32.mrb[0].mxu0
      %8425 = vmatprep.mubr.bf16.mxu0 %v8019
      %8426 = vmatmul.mubr.bf16.gmra.mrb[0].mxu0 %v8018
      %v8427 = vpop.f32.mrb[0].mxu0
      %v8428 = vadd.f32 %v8081, %v8427
      %v8429 = vpop.f32.mrb[0].mxu0
      %v8430 = vpop.f32.mrb[0].mxu0
      %v8431 = vadd.f32 %v8081, %v8430
      %v8432 = vpop.f32.mrb[0].mxu0
      %8433 = vmatprep.mubr.bf16.mxu0 %v8023
      %8434 = vmatmul.mubr.bf16.gmra.mrb[0].mxu0 %v8022
      %v8435 = vpop.f32.mrb[0].mxu0
      %v8436 = vadd.f32 %v8081, %v8435
      %v8437 = vpop.f32.mrb[0].mxu0
      %v8438 = vpop.f32.mrb[0].mxu0
      %v8439 = vadd.f32 %v8081, %v8438
      %v8440 = vpop.f32.mrb[0].mxu0
      %8441 = vdwg.mxu0
      %8442 = vmatprep.subr.bf16.mxu0 0
      %8443 = vmatpush1.bf16.msra.mxu0 %v8199
      %8444 = vmatprep.subr.bf16.mxu0 0
      %8445 = vmatpush1.bf16.msra.mxu0 %v8200
      %8446 = vmatprep.subr.bf16.mxu0 0
      %8447 = vmatpush1.bf16.msra.mxu0 %v8201
      %8448 = vmatprep.subr.bf16.mxu0 0
      %8449 = vmatpush1.bf16.msra.mxu0 %v8202
      %8450 = vmatprep.subr.bf16.mxu0 0
      %8451 = vmatpush1.bf16.msra.mxu0 %v8203
      %8452 = vmatprep.subr.bf16.mxu0 0
      %8453 = vmatpush1.bf16.msra.mxu0 %v8204
      %8454 = vmatprep.subr.bf16.mxu0 0
      %8455 = vmatpush1.bf16.msra.mxu0 %v8205
      %8456 = vmatprep.subr.bf16.mxu0 0
      %8457 = vmatpush1.bf16.msra.mxu0 %v8206
      %8458 = vmatprep.subr.bf16.mxu0 0
      %8459 = vmatpush1.bf16.msra.mxu0 %v8207
      %8460 = vmatprep.subr.bf16.mxu0 0
      %8461 = vmatpush1.bf16.msra.mxu0 0
      %8462 = vmatprep.subr.bf16.mxu0 0
      %8463 = vmatpush1.bf16.msra.mxu0 0
      %8464 = vmatprep.subr.bf16.mxu0 0
      %8465 = vmatpush1.bf16.msra.mxu0 0
      %8466 = vmatprep.subr.bf16.mxu0 0
      %8467 = vmatpush1.bf16.msra.mxu0 0
      %8468 = vmatprep.subr.bf16.mxu0 0
      %8469 = vmatpush1.bf16.msra.mxu0 0
      %8470 = vmatprep.subr.bf16.mxu0 0
      %8471 = vmatpush1.bf16.msra.mxu0 0
      %8472 = vmatprep.subr.bf16.mxu0 0
      %8473 = vmatpush1.bf16.msra.mxu0 0
      %8474 = vmatprep.mubr.bf16.mxu0 %v8234
      %8475 = vmatmul.mubr.bf16.gmra.mrb[0].mxu0 %v7964
      %v8476 = vpop.f32.mrb[0].mxu0
      %v8477 = vadd.f32 %v8316, %v8476
      %v8478 = vpop.f32.mrb[0].mxu0
      %v8479 = vpop.f32.mrb[0].mxu0
      %v8480 = vadd.f32 %v8319, %v8479
      %v8481 = vpop.f32.mrb[0].mxu0
      %8482 = vmatprep.mubr.bf16.mxu0 %v8237
      %8483 = vmatmul.mubr.bf16.gmra.mrb[0].mxu0 %v7968
      %v8484 = vpop.f32.mrb[0].mxu0
      %v8485 = vadd.f32 %v8324, %v8484
      %v8486 = vpop.f32.mrb[0].mxu0
      %v8487 = vpop.f32.mrb[0].mxu0
      %v8488 = vadd.f32 %v8327, %v8487
      %v8489 = vpop.f32.mrb[0].mxu0
      %8490 = vmatprep.mubr.bf16.mxu0 %v8240
      %8491 = vmatmul.mubr.bf16.gmra.mrb[0].mxu0 %v7972
      %v8492 = vpop.f32.mrb[0].mxu0
      %v8493 = vadd.f32 %v8332, %v8492
      %v8494 = vpop.f32.mrb[0].mxu0
      %v8495 = vpop.f32.mrb[0].mxu0
      %v8496 = vadd.f32 %v8335, %v8495
      %v8497 = vpop.f32.mrb[0].mxu0
      %8498 = vmatprep.mubr.bf16.mxu0 %v8243
      %8499 = vmatmul.mubr.bf16.gmra.mrb[0].mxu0 %v7976
      %v8500 = vpop.f32.mrb[0].mxu0
      %v8501 = vadd.f32 %v8340, %v8500
      %v8502 = vpop.f32.mrb[0].mxu0
      %v8503 = vpop.f32.mrb[0].mxu0
      %v8504 = vadd.f32 %v8343, %v8503
      %v8505 = vpop.f32.mrb[0].mxu0
      %8506 = vmatprep.mubr.bf16.mxu0 %v8246
      %8507 = vmatmul.mubr.bf16.gmra.mrb[0].mxu0 %v7980
      %v8508 = vpop.f32.mrb[0].mxu0
      %v8509 = vadd.f32 %v8348, %v8508
      %v8510 = vpop.f32.mrb[0].mxu0
      %v8511 = vpop.f32.mrb[0].mxu0
      %v8512 = vadd.f32 %v8351, %v8511
      %v8513 = vpop.f32.mrb[0].mxu0
      %8514 = vmatprep.mubr.bf16.mxu0 %v8249
      %8515 = vmatmul.mubr.bf16.gmra.mrb[0].mxu0 %v7984
      %v8516 = vpop.f32.mrb[0].mxu0
      %v8517 = vadd.f32 %v8356, %v8516
      %v8518 = vpop.f32.mrb[0].mxu0
      %v8519 = vpop.f32.mrb[0].mxu0
      %v8520 = vadd.f32 %v8359, %v8519
      %v8521 = vpop.f32.mrb[0].mxu0
      %8522 = vmatprep.mubr.bf16.mxu0 %v8252
      %8523 = vmatmul.mubr.bf16.gmra.mrb[0].mxu0 %v7988
      %v8524 = vpop.f32.mrb[0].mxu0
      %v8525 = vadd.f32 %v8364, %v8524
      %v8526 = vpop.f32.mrb[0].mxu0
      %v8527 = vpop.f32.mrb[0].mxu0
      %v8528 = vadd.f32 %v8367, %v8527
      %v8529 = vpop.f32.mrb[0].mxu0
      %8530 = vmatprep.mubr.bf16.mxu0 %v8255
      %8531 = vmatmul.mubr.bf16.gmra.mrb[0].mxu0 %v7992
      %v8532 = vpop.f32.mrb[0].mxu0
      %v8533 = vadd.f32 %v8372, %v8532
      %v8534 = vpop.f32.mrb[0].mxu0
      %v8535 = vpop.f32.mrb[0].mxu0
      %v8536 = vadd.f32 %v8375, %v8535
      %v8537 = vpop.f32.mrb[0].mxu0
      %8538 = vmatprep.mubr.bf16.mxu0 %v8258
      %8539 = vmatmul.mubr.bf16.gmra.mrb[0].mxu0 %v7996
      %v8540 = vpop.f32.mrb[0].mxu0
      %v8541 = vadd.f32 %v8380, %v8540
      %v8542 = vpop.f32.mrb[0].mxu0
      %v8543 = vpop.f32.mrb[0].mxu0
      %v8544 = vadd.f32 %v8383, %v8543
      %v8545 = vpop.f32.mrb[0].mxu0
      %8546 = vmatprep.mubr.bf16.mxu0 %v8261
      %8547 = vmatmul.mubr.bf16.gmra.mrb[0].mxu0 %v8000
      %v8548 = vpop.f32.mrb[0].mxu0
      %v8549 = vadd.f32 %v8388, %v8548
      %v8550 = vpop.f32.mrb[0].mxu0
      %v8551 = vpop.f32.mrb[0].mxu0
      %v8552 = vadd.f32 %v8391, %v8551
      %v8553 = vpop.f32.mrb[0].mxu0
      %8554 = vmatprep.mubr.bf16.mxu0 %v8264
      %8555 = vmatmul.mubr.bf16.gmra.mrb[0].mxu0 %v8004
      %v8556 = vpop.f32.mrb[0].mxu0
      %v8557 = vadd.f32 %v8396, %v8556
      %v8558 = vpop.f32.mrb[0].mxu0
      %v8559 = vpop.f32.mrb[0].mxu0
      %v8560 = vadd.f32 %v8399, %v8559
      %v8561 = vpop.f32.mrb[0].mxu0
      %8562 = vmatprep.mubr.bf16.mxu0 %v8267
      %8563 = vmatmul.mubr.bf16.gmra.mrb[0].mxu0 %v8008
      %v8564 = vpop.f32.mrb[0].mxu0
      %v8565 = vadd.f32 %v8404, %v8564
      %v8566 = vpop.f32.mrb[0].mxu0
      %v8567 = vpop.f32.mrb[0].mxu0
      %v8568 = vadd.f32 %v8407, %v8567
      %v8569 = vpop.f32.mrb[0].mxu0
      %8570 = vmatprep.mubr.bf16.mxu0 %v8270
      %8571 = vmatmul.mubr.bf16.gmra.mrb[0].mxu0 %v8012
      %v8572 = vpop.f32.mrb[0].mxu0
      %v8573 = vadd.f32 %v8412, %v8572
      %v8574 = vpop.f32.mrb[0].mxu0
      %v8575 = vpop.f32.mrb[0].mxu0
      %v8576 = vadd.f32 %v8415, %v8575
      %v8577 = vpop.f32.mrb[0].mxu0
      %8578 = vmatprep.mubr.bf16.mxu0 %v8273
      %8579 = vmatmul.mubr.bf16.gmra.mrb[0].mxu0 %v8016
      %v8580 = vpop.f32.mrb[0].mxu0
      %v8581 = vadd.f32 %v8420, %v8580
      %v8582 = vpop.f32.mrb[0].mxu0
      %v8583 = vpop.f32.mrb[0].mxu0
      %v8584 = vadd.f32 %v8423, %v8583
      %v8585 = vpop.f32.mrb[0].mxu0
      %8586 = vmatprep.mubr.bf16.mxu0 %v8276
      %8587 = vmatmul.mubr.bf16.gmra.mrb[0].mxu0 %v8020
      %v8588 = vpop.f32.mrb[0].mxu0
      %v8589 = vadd.f32 %v8428, %v8588
      %v8590 = vpop.f32.mrb[0].mxu0
      %v8591 = vpop.f32.mrb[0].mxu0
      %v8592 = vadd.f32 %v8431, %v8591
      %v8593 = vpop.f32.mrb[0].mxu0
      %8594 = vmatprep.mubr.bf16.mxu0 %v8279
      %8595 = vmatmul.mubr.bf16.gmra.mrb[0].mxu0 %v8024
      %v8596 = vpop.f32.mrb[0].mxu0
      %v8597 = vadd.f32 %v8436, %v8596
      %v8598 = vpop.f32.mrb[0].mxu0
      %v8599 = vpop.f32.mrb[0].mxu0
      %v8600 = vadd.f32 %v8439, %v8599
      %v8601 = vpop.f32.mrb[0].mxu0
      %8602 = vdwg.mxu0
      %vm8603 = vcmask 15360
      %8604 = vst.msk [vmem:[%s386] sm:$0xff] %vm8603, %v8477
      %8605 = vst.msk [vmem:[%s386 + $0x8] sm:$0xff] %vm8603, %v8480
      %8606 = vst.msk [vmem:[%s386 + $0x10] sm:$0xff] %vm8603, %v8485
      %8607 = vst.msk [vmem:[%s386 + $0x18] sm:$0xff] %vm8603, %v8488
      %8608 = vst.msk [vmem:[%s386 + $0x20] sm:$0xff] %vm8603, %v8493
      %8609 = vst.msk [vmem:[%s386 + $0x28] sm:$0xff] %vm8603, %v8496
      %8610 = vst.msk [vmem:[%s386 + $0x30] sm:$0xff] %vm8603, %v8501
      %8611 = vst.msk [vmem:[%s386 + $0x38] sm:$0xff] %vm8603, %v8504
      %8612 = vst.msk [vmem:[%s386 + $0x40] sm:$0xff] %vm8603, %v8509
      %8613 = vst.msk [vmem:[%s386 + $0x48] sm:$0xff] %vm8603, %v8512
      %8614 = vst.msk [vmem:[%s386 + $0x50] sm:$0xff] %vm8603, %v8517
      %8615 = vst.msk [vmem:[%s386 + $0x58] sm:$0xff] %vm8603, %v8520
      %8616 = vst.msk [vmem:[%s386 + $0x60] sm:$0xff] %vm8603, %v8525
      %8617 = vst.msk [vmem:[%s386 + $0x68] sm:$0xff] %vm8603, %v8528
      %8618 = vst.msk [vmem:[%s386 + $0x70] sm:$0xff] %vm8603, %v8533
      %8619 = vst.msk [vmem:[%s386 + $0x78] sm:$0xff] %vm8603, %v8536
      %8620 = vst.msk [vmem:[%s386 + $0x80] sm:$0xff] %vm8603, %v8541
      %8621 = vst.msk [vmem:[%s386 + $0x88] sm:$0xff] %vm8603, %v8544
      %8622 = vst.msk [vmem:[%s386 + $0x90] sm:$0xff] %vm8603, %v8549
      %8623 = vst.msk [vmem:[%s386 + $0x98] sm:$0xff] %vm8603, %v8552
      %8624 = vst.msk [vmem:[%s386 + $0xa0] sm:$0xff] %vm8603, %v8557
      %8625 = vst.msk [vmem:[%s386 + $0xa8] sm:$0xff] %vm8603, %v8560
      %8626 = vst.msk [vmem:[%s386 + $0xb0] sm:$0xff] %vm8603, %v8565
      %8627 = vst.msk [vmem:[%s386 + $0xb8] sm:$0xff] %vm8603, %v8568
      %8628 = vst.msk [vmem:[%s386 + $0xc0] sm:$0xff] %vm8603, %v8573
      %8629 = vst.msk [vmem:[%s386 + $0xc8] sm:$0xff] %vm8603, %v8576
      %8630 = vst.msk [vmem:[%s386 + $0xd0] sm:$0xff] %vm8603, %v8581
      %8631 = vst.msk [vmem:[%s386 + $0xd8] sm:$0xff] %vm8603, %v8584
      %8632 = vst.msk [vmem:[%s386 + $0xe0] sm:$0xff] %vm8603, %v8589
      %8633 = vst.msk [vmem:[%s386 + $0xe8] sm:$0xff] %vm8603, %v8592
      %8634 = vst.msk [vmem:[%s386 + $0xf0] sm:$0xff] %vm8603, %v8597
      %8635 = vst.msk [vmem:[%s386 + $0xf8] sm:$0xff] %vm8603, %v8600
      %p8636 = scmp.lt.s32.totalorder %s22, 1
      %s8637 = scalar_select %p8636, %s22, 1
      %s8638 = smul.addr %s8637, 32
      %s8639 = smul.addr %s8638, 8
      %s8640 = scalar_lea.vmem %s11, %s8639
      // Predicated region
      $region65: #{fcn_forward.1} parent=63 // pred_check
        %p8641 = pneg %p276
      $region66: #{fcn_forward.1} parent=63 // pred_check_branch
        %8643 = sbr.rel (%p8641) target = $region68
      $region67: #{fcn_forward.1} parent=63 // pred_region
        _
      $region68: #{fcn_forward.1} parent=63 // pred_fallthru
        _
    $region64: #{fcn_forward.1} parent=5 // pred_fallthru
      _
    %p8644 = scmp.le.s32.totalorder 2, %s17
    // Predicated region
    $region69: #{fcn_forward.1} parent=5 // pred_check
      %p8645 = pneg %p8644
    $region70: #{fcn_forward.1} parent=5 // pred_check_branch
      %8647 = sbr.rel (%p8645) target = $region72
    $region71: #{fcn_forward.1} parent=5 // pred_region
      %s8648 = ssub.s32 %s17, 2
      // Predicated region
      $region73: #{fcn_forward.1} parent=71 // pred_check
        %p8649 = pneg %p282
      $region74: #{fcn_forward.1} parent=71 // pred_check_branch
        %8651 = sbr.rel (%p8649) target = $region76
      $region75: #{fcn_forward.1} parent=71 // pred_region
        %p8652 = scmp.lt.s32.totalorder %s23, 1
        %s8653 = scalar_select %p8652, %s23, 1
        %s8654 = smul.addr %s8653, 32
        %s8655 = smul.addr %s8654, 8
        %s8656 = scalar_lea.vmem %s11, %s8655
      $region76: #{fcn_forward.1} parent=71 // pred_fallthru
        _
    $region72: #{fcn_forward.1} parent=5 // pred_fallthru
      _
  $region6: #{fcn_forward.1} parent=0 // loop_footer
    %s21 = sadd.s32 1, %s17
  $region7: #{fcn_forward.1} parent=0 // loop_footer_branch
    %16 = sbr.rel target = $region3
  $region8: #{fcn_forward.1} parent=0 // loop_exit
    _

</llo_original>
